<compile_context>
chip_gen: v5e
topology: v5e:2x2
jax: 0.10.0
libtpu: 0.0.40
codegen_flags: <defaults>
</compile_context>

<pallas_src>
import numpy as np
import jax
import jax.numpy as jnp
from jax.experimental import pallas as pl
from jax.experimental.pallas import tpu as pltpu


LANE = 128
VMEM_LIMIT = 32 * 1024 * 1024       # safe scoped-VMEM request on v5e/v6e/v7x
CONV1_K = 27                        # 3 input channels * 9 taps
CONV1_KP = 32                       # padded to next multiple of 8 only (review: not 128)


def _out_hw(h, stride):
    """Output spatial size of a 3x3 conv with padding=1."""
    return (h + 2 - 3) // stride + 1


# ----------------------------------------------------------------------------
# "Virtual im2col": 0/1 tap-gather matrices (precomputed constants, VMEM-resident).
# G[t] @ x_flat selects, for tap t = kh*3+kw, the input pixel feeding every output
# position (all-zero row where the tap lands in the zero padding).  Stride/padding are
# baked in, so the kernel only ever issues plain 2-D matmuls.
# ----------------------------------------------------------------------------

def _make_gather(h, w, stride):
    ho, wo = _out_hw(h, stride), _out_hw(w, stride)
    g = np.zeros((9, ho * wo, h * w), np.float32)
    for kh in range(3):
        for kw in range(3):
            t = kh * 3 + kw
            for oh in range(ho):
                ih = oh * stride + kh - 1
                if not (0 <= ih < h):
                    continue
                for ow in range(wo):
                    iw = ow * stride + kw - 1
                    if 0 <= iw < w:
                        g[t, oh * wo + ow, ih * w + iw] = 1.0
    return g


# ----------------------------------------------------------------------------
# The fused whole-network kernel (one grid step == one sample).
# ----------------------------------------------------------------------------

def _mm(a, b):
    """bf16 MXU matmul with f32 accumulation."""
    return jnp.dot(a.astype(jnp.bfloat16), b, preferred_element_type=jnp.float32)


def xception_kernel(x_ref,
                    w1_ref, b1_ref,
                    g2_ref, w2_ref, b2_ref,
                    g3_ref, dww3_ref, dwb3_ref, pww3_ref, pwb3_ref,
                    g4_ref, dww4_ref, dwb4_ref, pww4_ref, pwb4_ref,
                    g5_ref, dww5_ref, dwb5_ref, pww5_ref, pwb5_ref,
                    fcw_ref, fcb_ref,
                    o_ref):
    # --- conv1 (3->32, 3x3, s2): im2col'd outside (tiny); BN scale folded into weight.
    x = jnp.maximum(_mm(x_ref[0], w1_ref[...]) + b1_ref[...], 0.0)        # (M1, 32) f32

    # --- conv2 (32->64, 3x3, s1): sum over 9 taps of (gather-matmul, tap-weight matmul).
    xb = x.astype(jnp.bfloat16)
    acc = jnp.zeros((g2_ref.shape[1], w2_ref.shape[2]), jnp.float32)
    for t in range(9):                                                    # static unroll
        acc = acc + _mm(_mm(g2_ref[t], xb), w2_ref[t])
    x = jnp.maximum(acc + b2_ref[...], 0.0)                               # (M1, 64) f32

    # --- depthwise-separable blocks: dw 3x3 (BN folded) + ReLU, pw 1x1 (BN folded) + ReLU.
    #     The depthwise intermediate never leaves VMEM/vregs.
    def ds_block(x_f32, g_ref, dww_ref, dwb_ref, pww_ref, pwb_ref):
        xb = x_f32.astype(jnp.bfloat16)
        a = jnp.zeros((g_ref.shape[1], x_f32.shape[1]), jnp.float32)
        for t in range(9):
            a = a + _mm(g_ref[t], xb) * dww_ref[t]      # (1, C) per-channel tap weight
        dw = jnp.maximum(a + dwb_ref[...], 0.0)
        return jnp.maximum(_mm(dw, pww_ref[...]) + pwb_ref[...], 0.0)

    x = ds_block(x, g3_ref, dww3_ref, dwb3_ref, pww3_ref, pwb3_ref)       # (M2, 128)
    x = ds_block(x, g4_ref, dww4_ref, dwb4_ref, pww4_ref, pwb4_ref)       # (M3, 256)
    x = ds_block(x, g5_ref, dww5_ref, dwb5_ref, pww5_ref, pwb5_ref)       # (M4, 512)

    # --- AdaptiveAvgPool2d((1,1)) + Linear, computed lane-dense into 128 padded classes.
    pooled = jnp.sum(x, axis=0, keepdims=True) * (1.0 / x.shape[0])       # (1, 512) f32
    o_ref[0] = _mm(pooled, fcw_ref[...]) + fcb_ref[...]                   # (1, 128) f32


# ----------------------------------------------------------------------------
# XLA-side glue for the tiny first layer only (review-blessed).
# ----------------------------------------------------------------------------

def _conv1_patches(x_nchw):
    """NCHW f32 -> (N, Ho*Wo, 32) bf16 im2col patches for conv1 (3x3, s2, p1); column
    order (kh, kw, cin), zero-padded 27 -> 32 columns."""
    n, c, h, w = x_nchw.shape
    assert c == 3, "xception_style stem expects 3 input channels"
    ho, wo = _out_hw(h, 2), _out_hw(w, 2)
    xt = jnp.transpose(x_nchw, (0, 2, 3, 1))
    xp = jnp.pad(xt, ((0, 0), (1, 1), (1, 1), (0, 0)))
    taps = [xp[:, kh:kh + 2 * (ho - 1) + 1:2, kw:kw + 2 * (wo - 1) + 1:2, :]
            for kh in range(3) for kw in range(3)]
    p = jnp.stack(taps, axis=3).reshape(n, ho * wo, 9 * c)
    p = jnp.pad(p, ((0, 0), (0, 0), (0, CONV1_KP - 9 * c)))
    return p.astype(jnp.bfloat16)


# ----------------------------------------------------------------------------
# Forward pass: one pallas_call for the whole backbone.
# ----------------------------------------------------------------------------

def cnn_baseline_forward(x_nchw, q, num_classes=2):
    n = x_nchw.shape[0]
    patches = _conv1_patches(x_nchw)                                      # (N, M1, 32)

    args = [patches, q['conv1_w'], q['conv1_b'],
            q['conv2_g'], q['conv2_w'], q['conv2_b']]
    for i in range(3):
        args += [q[f'ds{i}_g'], q[f'ds{i}_dw_w'], q[f'ds{i}_dw_b'],
                 q[f'ds{i}_pw_w'], q[f'ds{i}_pw_b']]
    args += [q['fc_w'], q['fc_b']]

    def resident(a):    # full-array block, constant index_map -> loaded once, stays in VMEM
        return pl.BlockSpec(a.shape, lambda i, _nd=a.ndim: (0,) * _nd)

    in_specs = ([pl.BlockSpec((1,) + patches.shape[1:], lambda i: (i, 0, 0))]
                + [resident(a) for a in args[1:]])

    out = pl.pallas_call(
        xception_kernel,
        out_shape=jax.ShapeDtypeStruct((n, 1, LANE), jnp.float32),
        grid=(n,),                                    # batch-parallel: both v7x TCs get work
        in_specs=in_specs,
        out_specs=pl.BlockSpec((1, 1, LANE), lambda i: (i, 0, 0)),
        compiler_params=pltpu.CompilerParams(
            dimension_semantics=("parallel",),
            vmem_limit_bytes=VMEM_LIMIT),
    )(*args)
    return out[:, 0, :num_classes]                    # (N, num_classes) f32


# ----------------------------------------------------------------------------
# Parameter initialization (deterministic, synthetic; PyTorch layouts)
# ----------------------------------------------------------------------------

def _folded_bn(key, c, eps=1e-5):
    k1, k2, k3, k4 = jax.random.split(key, 4)
    gamma = jax.random.uniform(k1, (c,), jnp.float32, 0.5, 1.5)
    beta = 0.1 * jax.random.normal(k2, (c,), jnp.float32)
    r_mean = 0.1 * jax.random.normal(k3, (c,), jnp.float32)
    r_var = jax.random.uniform(k4, (c,), jnp.float32, 0.5, 1.5)
    scale = gamma / jnp.sqrt(r_var + eps)
    bias = beta - r_mean * scale
    return scale, bias


def init_params(key, num_classes=2):
    keys = iter(jax.random.split(key, 64))
    p = {}

    def conv_w(shape, fan_in):
        return jax.random.normal(next(keys), shape, jnp.float32) / np.sqrt(fan_in)

    p['conv1_w'] = conv_w((32, 3, 3, 3), 3 * 9)
    p['bn1_scale'], p['bn1_bias'] = _folded_bn(next(keys), 32)
    p['conv2_w'] = conv_w((64, 32, 3, 3), 32 * 9)
    p['bn2_scale'], p['bn2_bias'] = _folded_bn(next(keys), 64)
    for i, (cin, cout) in enumerate([(64, 128), (128, 256), (256, 512)]):
        p[f'ds{i}_dw_w'] = conv_w((cin, 1, 3, 3), 9)
        p[f'ds{i}_dw_bn_scale'], p[f'ds{i}_dw_bn_bias'] = _folded_bn(next(keys), cin)
        p[f'ds{i}_pw_w'] = conv_w((cout, cin, 1, 1), cin)
        p[f'ds{i}_pw_bn_scale'], p[f'ds{i}_pw_bn_bias'] = _folded_bn(next(keys), cout)
    p['fc_w'] = conv_w((num_classes, 512), 512)       # PyTorch layout (out, in)
    p['fc_b'] = 0.1 * jax.random.normal(next(keys), (num_classes,), jnp.float32)
    return p


def prepare_params(p, image_hw=32, num_classes=2):
    """One-time conversion: PyTorch layouts -> kernel-ready arrays.  BN scales folded
    into the weights (f32), bf16 MXU operands, tap-gather matrices for the static input
    resolution, lane-dense (128-padded) classifier."""
    q = {}
    h1 = _out_hw(image_hw, 2)                 # spatial size after conv1 (conv2 keeps it)

    # conv1
    w = np.asarray(p['conv1_w'], np.float32)                      # (32, 3, 3, 3)
    scale = np.asarray(p['bn1_scale'], np.float32)
    wm = np.transpose(w, (2, 3, 1, 0)).reshape(CONV1_K, 32) * scale[None, :]
    q['conv1_w'] = jnp.asarray(np.pad(wm, ((0, CONV1_KP - CONV1_K), (0, 0))), jnp.bfloat16)
    q['conv1_b'] = jnp.asarray(np.asarray(p['bn1_bias']).reshape(1, 32), jnp.float32)

    # conv2
    w = np.asarray(p['conv2_w'], np.float32)                      # (64, 32, 3, 3)
    scale = np.asarray(p['bn2_scale'], np.float32)
    wt = np.transpose(w, (2, 3, 1, 0)).reshape(9, 32, 64) * scale[None, None, :]
    q['conv2_w'] = jnp.asarray(wt, jnp.bfloat16)
    q['conv2_b'] = jnp.asarray(np.asarray(p['bn2_bias']).reshape(1, 64), jnp.float32)
    q['conv2_g'] = jnp.asarray(_make_gather(h1, h1, 1), jnp.bfloat16)

    # depthwise-separable blocks
    h = h1
    for i, (cin, cout) in enumerate([(64, 128), (128, 256), (256, 512)]):
        dw = np.asarray(p[f'ds{i}_dw_w'], np.float32)              # (cin, 1, 3, 3)
        dscale = np.asarray(p[f'ds{i}_dw_bn_scale'], np.float32)
        dwt = np.transpose(dw, (2, 3, 1, 0)).reshape(9, 1, cin) * dscale[None, None, :]
        q[f'ds{i}_dw_w'] = jnp.asarray(dwt, jnp.float32)           # depthwise fold stays f32
        q[f'ds{i}_dw_b'] = jnp.asarray(
            np.asarray(p[f'ds{i}_dw_bn_bias']).reshape(1, cin), jnp.float32)
        pw = np.asarray(p[f'ds{i}_pw_w'], np.float32).reshape(cout, cin).T
        pscale = np.asarray(p[f'ds{i}_pw_bn_scale'], np.float32)
        q[f'ds{i}_pw_w'] = jnp.asarray(pw * pscale[None, :], jnp.bfloat16)
        q[f'ds{i}_pw_b'] = jnp.asarray(
            np.asarray(p[f'ds{i}_pw_bn_bias']).reshape(1, cout), jnp.float32)
        q[f'ds{i}_g'] = jnp.asarray(_make_gather(h, h, 2), jnp.bfloat16)
        h = _out_hw(h, 2)

    # classifier (padded to 128 lane-dense class columns; sliced outside the kernel)
    fcw = np.asarray(p['fc_w'], np.float32).T                      # (512, num_classes)
    fcb = np.asarray(p['fc_b'], np.float32)
    q['fc_w'] = jnp.asarray(np.pad(fcw, ((0, 0), (0, LANE - num_classes))), jnp.bfloat16)
    q['fc_b'] = jnp.asarray(np.pad(fcb, (0, LANE - num_classes)).reshape(1, LANE),
                            jnp.float32)
    return q


if __name__ == "__main__":
    key = jax.random.PRNGKey(0)
    k_params, k_x = jax.random.split(key)

    params = init_params(k_params, num_classes=2)
    prepped = prepare_params(params, image_hw=32, num_classes=2)

    # Small input consistent with the module: batch=2, 3 channels, 32x32 spatial so the
    # four stride-2 stages leave a 2x2 map before global pooling.
    x = jax.random.normal(k_x, (2, 3, 32, 32), jnp.float32)

    fwd = jax.jit(cnn_baseline_forward)
    logits = fwd(x, prepped)
    jax.block_until_ready(logits)

    assert logits.shape == (2, 2) and logits.dtype == jnp.float32
    print("KERNEL_OK")
</pallas_src>

<mosaic_0001>
module attributes {stable_mosaic.version = 11 : i64} {
  func.func @xception_kernel(%arg0: i32, %arg1: memref<1x256x32xbf16, #tpu.memory_space<vmem>>, %arg2: memref<32x32xbf16, #tpu.memory_space<vmem>>, %arg3: memref<1x32xf32, #tpu.memory_space<vmem>>, %arg4: memref<9x256x256xbf16, #tpu.memory_space<vmem>>, %arg5: memref<9x32x64xbf16, #tpu.memory_space<vmem>>, %arg6: memref<1x64xf32, #tpu.memory_space<vmem>>, %arg7: memref<9x64x256xbf16, #tpu.memory_space<vmem>>, %arg8: memref<9x1x64xf32, #tpu.memory_space<vmem>>, %arg9: memref<1x64xf32, #tpu.memory_space<vmem>>, %arg10: memref<64x128xbf16, #tpu.memory_space<vmem>>, %arg11: memref<1x128xf32, #tpu.memory_space<vmem>>, %arg12: memref<9x16x64xbf16, #tpu.memory_space<vmem>>, %arg13: memref<9x1x128xf32, #tpu.memory_space<vmem>>, %arg14: memref<1x128xf32, #tpu.memory_space<vmem>>, %arg15: memref<128x256xbf16, #tpu.memory_space<vmem>>, %arg16: memref<1x256xf32, #tpu.memory_space<vmem>>, %arg17: memref<9x4x16xbf16, #tpu.memory_space<vmem>>, %arg18: memref<9x1x256xf32, #tpu.memory_space<vmem>>, %arg19: memref<1x256xf32, #tpu.memory_space<vmem>>, %arg20: memref<256x512xbf16, #tpu.memory_space<vmem>>, %arg21: memref<1x512xf32, #tpu.memory_space<vmem>>, %arg22: memref<512x128xbf16, #tpu.memory_space<vmem>>, %arg23: memref<1x128xf32, #tpu.memory_space<vmem>>, %arg24: memref<1x1x128xf32, #tpu.memory_space<vmem>>) attributes {dimension_semantics = [#tpu.dimension_semantics<parallel>], iteration_bounds = array<i64: 2>, scalar_prefetch = 0 : i64, scratch_operands = 0 : i64, tpu.core_type = #tpu.core_type<tc>, window_params = [{transform_indices = @transform_0, window_bounds = array<i64: 1, 256, 32>}, {pipeline_mode = #tpu.pipeline_mode<synchronous>, transform_indices = @transform_1, window_bounds = array<i64: 32, 32>}, {pipeline_mode = #tpu.pipeline_mode<synchronous>, transform_indices = @transform_2, window_bounds = array<i64: 1, 32>}, {pipeline_mode = #tpu.pipeline_mode<synchronous>, transform_indices = @transform_3, window_bounds = array<i64: 9, 256, 256>}, {pipeline_mode = #tpu.pipeline_mode<synchronous>, transform_indices = @transform_4, window_bounds = array<i64: 9, 32, 64>}, {pipeline_mode = #tpu.pipeline_mode<synchronous>, transform_indices = @transform_5, window_bounds = array<i64: 1, 64>}, {pipeline_mode = #tpu.pipeline_mode<synchronous>, transform_indices = @transform_6, window_bounds = array<i64: 9, 64, 256>}, {pipeline_mode = #tpu.pipeline_mode<synchronous>, transform_indices = @transform_7, window_bounds = array<i64: 9, 1, 64>}, {pipeline_mode = #tpu.pipeline_mode<synchronous>, transform_indices = @transform_8, window_bounds = array<i64: 1, 64>}, {pipeline_mode = #tpu.pipeline_mode<synchronous>, transform_indices = @transform_9, window_bounds = array<i64: 64, 128>}, {pipeline_mode = #tpu.pipeline_mode<synchronous>, transform_indices = @transform_10, window_bounds = array<i64: 1, 128>}, {pipeline_mode = #tpu.pipeline_mode<synchronous>, transform_indices = @transform_11, window_bounds = array<i64: 9, 16, 64>}, {pipeline_mode = #tpu.pipeline_mode<synchronous>, transform_indices = @transform_12, window_bounds = array<i64: 9, 1, 128>}, {pipeline_mode = #tpu.pipeline_mode<synchronous>, transform_indices = @transform_13, window_bounds = array<i64: 1, 128>}, {pipeline_mode = #tpu.pipeline_mode<synchronous>, transform_indices = @transform_14, window_bounds = array<i64: 128, 256>}, {pipeline_mode = #tpu.pipeline_mode<synchronous>, transform_indices = @transform_15, window_bounds = array<i64: 1, 256>}, {pipeline_mode = #tpu.pipeline_mode<synchronous>, transform_indices = @transform_16, window_bounds = array<i64: 9, 4, 16>}, {pipeline_mode = #tpu.pipeline_mode<synchronous>, transform_indices = @transform_17, window_bounds = array<i64: 9, 1, 256>}, {pipeline_mode = #tpu.pipeline_mode<synchronous>, transform_indices = @transform_18, window_bounds = array<i64: 1, 256>}, {pipeline_mode = #tpu.pipeline_mode<synchronous>, transform_indices = @transform_19, window_bounds = array<i64: 256, 512>}, {pipeline_mode = #tpu.pipeline_mode<synchronous>, transform_indices = @transform_20, window_bounds = array<i64: 1, 512>}, {pipeline_mode = #tpu.pipeline_mode<synchronous>, transform_indices = @transform_21, window_bounds = array<i64: 512, 128>}, {pipeline_mode = #tpu.pipeline_mode<synchronous>, transform_indices = @transform_22, window_bounds = array<i64: 1, 128>}, {transform_indices = @transform_23, window_bounds = array<i64: 1, 1, 128>}]} {
    %c0 = arith.constant 0 : index
    %c0_0 = arith.constant 0 : index
    %c0_1 = arith.constant 0 : index
    %0 = vector.load %arg1[%c0, %c0_0, %c0_1] : memref<1x256x32xbf16, #tpu.memory_space<vmem>>, vector<1x256x32xbf16>
    %1 = vector.shape_cast %0 : vector<1x256x32xbf16> to vector<256x32xbf16>
    %c0_2 = arith.constant 0 : index
    %c0_3 = arith.constant 0 : index
    %2 = vector.load %arg2[%c0_2, %c0_3] : memref<32x32xbf16, #tpu.memory_space<vmem>>, vector<32x32xbf16>
    %cst = arith.constant dense<0.000000e+00> : vector<256x32xf32>
    %3 = tpu.matmul %1, %2, %cst {dimension_numbers = #tpu.dot_dimension_numbers<[1], [0], [0], [1], [0, 0, 1, 1], [], []>} : vector<256x32xbf16>, vector<32x32xbf16>, vector<256x32xf32> -> vector<256x32xf32>
    %c0_4 = arith.constant 0 : index
    %c0_5 = arith.constant 0 : index
    %4 = vector.load %arg3[%c0_4, %c0_5] : memref<1x32xf32, #tpu.memory_space<vmem>>, vector<1x32xf32>
    %5 = vector.broadcast %4 : vector<1x32xf32> to vector<256x32xf32>
    %6 = arith.addf %3, %5 : vector<256x32xf32>
    %cst_6 = arith.constant 0.000000e+00 : f32
    %7 = vector.broadcast %cst_6 : f32 to vector<256x32xf32>
    %8 = arith.maximumf %6, %7 : vector<256x32xf32>
    %9 = arith.truncf %8 : vector<256x32xf32> to vector<256x32xbf16>
    %cst_7 = arith.constant 0.000000e+00 : f32
    %10 = vector.broadcast %cst_7 : f32 to vector<256x64xf32>
    %c0_8 = arith.constant 0 : index
    %c0_9 = arith.constant 0 : index
    %c0_10 = arith.constant 0 : index
    %11 = vector.load %arg4[%c0_8, %c0_9, %c0_10] : memref<9x256x256xbf16, #tpu.memory_space<vmem>>, vector<1x256x256xbf16>
    %12 = vector.shape_cast %11 : vector<1x256x256xbf16> to vector<256x256xbf16>
    %cst_11 = arith.constant dense<0.000000e+00> : vector<256x32xf32>
    %13 = tpu.matmul %12, %9, %cst_11 {dimension_numbers = #tpu.dot_dimension_numbers<[1], [0], [0], [1], [0, 0, 1, 1], [], []>} : vector<256x256xbf16>, vector<256x32xbf16>, vector<256x32xf32> -> vector<256x32xf32>
    %c0_12 = arith.constant 0 : index
    %c0_13 = arith.constant 0 : index
    %c0_14 = arith.constant 0 : index
    %14 = vector.load %arg5[%c0_12, %c0_13, %c0_14] : memref<9x32x64xbf16, #tpu.memory_space<vmem>>, vector<1x32x64xbf16>
    %15 = vector.shape_cast %14 : vector<1x32x64xbf16> to vector<32x64xbf16>
    %16 = arith.truncf %13 : vector<256x32xf32> to vector<256x32xbf16>
    %cst_15 = arith.constant dense<0.000000e+00> : vector<256x64xf32>
    %17 = tpu.matmul %16, %15, %cst_15 {dimension_numbers = #tpu.dot_dimension_numbers<[1], [0], [0], [1], [0, 0, 1, 1], [], []>} : vector<256x32xbf16>, vector<32x64xbf16>, vector<256x64xf32> -> vector<256x64xf32>
    %18 = arith.addf %10, %17 : vector<256x64xf32>
    %c1 = arith.constant 1 : index
    %c0_16 = arith.constant 0 : index
    %c0_17 = arith.constant 0 : index
    %19 = vector.load %arg4[%c1, %c0_16, %c0_17] : memref<9x256x256xbf16, #tpu.memory_space<vmem>>, vector<1x256x256xbf16>
    %20 = vector.shape_cast %19 : vector<1x256x256xbf16> to vector<256x256xbf16>
    %cst_18 = arith.constant dense<0.000000e+00> : vector<256x32xf32>
    %21 = tpu.matmul %20, %9, %cst_18 {dimension_numbers = #tpu.dot_dimension_numbers<[1], [0], [0], [1], [0, 0, 1, 1], [], []>} : vector<256x256xbf16>, vector<256x32xbf16>, vector<256x32xf32> -> vector<256x32xf32>
    %c1_19 = arith.constant 1 : index
    %c0_20 = arith.constant 0 : index
    %c0_21 = arith.constant 0 : index
    %22 = vector.load %arg5[%c1_19, %c0_20, %c0_21] : memref<9x32x64xbf16, #tpu.memory_space<vmem>>, vector<1x32x64xbf16>
    %23 = vector.shape_cast %22 : vector<1x32x64xbf16> to vector<32x64xbf16>
    %24 = arith.truncf %21 : vector<256x32xf32> to vector<256x32xbf16>
    %cst_22 = arith.constant dense<0.000000e+00> : vector<256x64xf32>
    %25 = tpu.matmul %24, %23, %cst_22 {dimension_numbers = #tpu.dot_dimension_numbers<[1], [0], [0], [1], [0, 0, 1, 1], [], []>} : vector<256x32xbf16>, vector<32x64xbf16>, vector<256x64xf32> -> vector<256x64xf32>
    %26 = arith.addf %18, %25 : vector<256x64xf32>
    %c2 = arith.constant 2 : index
    %c0_23 = arith.constant 0 : index
    %c0_24 = arith.constant 0 : index
    %27 = vector.load %arg4[%c2, %c0_23, %c0_24] : memref<9x256x256xbf16, #tpu.memory_space<vmem>>, vector<1x256x256xbf16>
    %28 = vector.shape_cast %27 : vector<1x256x256xbf16> to vector<256x256xbf16>
    %cst_25 = arith.constant dense<0.000000e+00> : vector<256x32xf32>
    %29 = tpu.matmul %28, %9, %cst_25 {dimension_numbers = #tpu.dot_dimension_numbers<[1], [0], [0], [1], [0, 0, 1, 1], [], []>} : vector<256x256xbf16>, vector<256x32xbf16>, vector<256x32xf32> -> vector<256x32xf32>
    %c2_26 = arith.constant 2 : index
    %c0_27 = arith.constant 0 : index
    %c0_28 = arith.constant 0 : index
    %30 = vector.load %arg5[%c2_26, %c0_27, %c0_28] : memref<9x32x64xbf16, #tpu.memory_space<vmem>>, vector<1x32x64xbf16>
    %31 = vector.shape_cast %30 : vector<1x32x64xbf16> to vector<32x64xbf16>
    %32 = arith.truncf %29 : vector<256x32xf32> to vector<256x32xbf16>
    %cst_29 = arith.constant dense<0.000000e+00> : vector<256x64xf32>
    %33 = tpu.matmul %32, %31, %cst_29 {dimension_numbers = #tpu.dot_dimension_numbers<[1], [0], [0], [1], [0, 0, 1, 1], [], []>} : vector<256x32xbf16>, vector<32x64xbf16>, vector<256x64xf32> -> vector<256x64xf32>
    %34 = arith.addf %26, %33 : vector<256x64xf32>
    %c3 = arith.constant 3 : index
    %c0_30 = arith.constant 0 : index
    %c0_31 = arith.constant 0 : index
    %35 = vector.load %arg4[%c3, %c0_30, %c0_31] : memref<9x256x256xbf16, #tpu.memory_space<vmem>>, vector<1x256x256xbf16>
    %36 = vector.shape_cast %35 : vector<1x256x256xbf16> to vector<256x256xbf16>
    %cst_32 = arith.constant dense<0.000000e+00> : vector<256x32xf32>
    %37 = tpu.matmul %36, %9, %cst_32 {dimension_numbers = #tpu.dot_dimension_numbers<[1], [0], [0], [1], [0, 0, 1, 1], [], []>} : vector<256x256xbf16>, vector<256x32xbf16>, vector<256x32xf32> -> vector<256x32xf32>
    %c3_33 = arith.constant 3 : index
    %c0_34 = arith.constant 0 : index
    %c0_35 = arith.constant 0 : index
    %38 = vector.load %arg5[%c3_33, %c0_34, %c0_35] : memref<9x32x64xbf16, #tpu.memory_space<vmem>>, vector<1x32x64xbf16>
    %39 = vector.shape_cast %38 : vector<1x32x64xbf16> to vector<32x64xbf16>
    %40 = arith.truncf %37 : vector<256x32xf32> to vector<256x32xbf16>
    %cst_36 = arith.constant dense<0.000000e+00> : vector<256x64xf32>
    %41 = tpu.matmul %40, %39, %cst_36 {dimension_numbers = #tpu.dot_dimension_numbers<[1], [0], [0], [1], [0, 0, 1, 1], [], []>} : vector<256x32xbf16>, vector<32x64xbf16>, vector<256x64xf32> -> vector<256x64xf32>
    %42 = arith.addf %34, %41 : vector<256x64xf32>
    %c4 = arith.constant 4 : index
    %c0_37 = arith.constant 0 : index
    %c0_38 = arith.constant 0 : index
    %43 = vector.load %arg4[%c4, %c0_37, %c0_38] : memref<9x256x256xbf16, #tpu.memory_space<vmem>>, vector<1x256x256xbf16>
    %44 = vector.shape_cast %43 : vector<1x256x256xbf16> to vector<256x256xbf16>
    %cst_39 = arith.constant dense<0.000000e+00> : vector<256x32xf32>
    %45 = tpu.matmul %44, %9, %cst_39 {dimension_numbers = #tpu.dot_dimension_numbers<[1], [0], [0], [1], [0, 0, 1, 1], [], []>} : vector<256x256xbf16>, vector<256x32xbf16>, vector<256x32xf32> -> vector<256x32xf32>
    %c4_40 = arith.constant 4 : index
    %c0_41 = arith.constant 0 : index
    %c0_42 = arith.constant 0 : index
    %46 = vector.load %arg5[%c4_40, %c0_41, %c0_42] : memref<9x32x64xbf16, #tpu.memory_space<vmem>>, vector<1x32x64xbf16>
    %47 = vector.shape_cast %46 : vector<1x32x64xbf16> to vector<32x64xbf16>
    %48 = arith.truncf %45 : vector<256x32xf32> to vector<256x32xbf16>
    %cst_43 = arith.constant dense<0.000000e+00> : vector<256x64xf32>
    %49 = tpu.matmul %48, %47, %cst_43 {dimension_numbers = #tpu.dot_dimension_numbers<[1], [0], [0], [1], [0, 0, 1, 1], [], []>} : vector<256x32xbf16>, vector<32x64xbf16>, vector<256x64xf32> -> vector<256x64xf32>
    %50 = arith.addf %42, %49 : vector<256x64xf32>
    %c5 = arith.constant 5 : index
    %c0_44 = arith.constant 0 : index
    %c0_45 = arith.constant 0 : index
    %51 = vector.load %arg4[%c5, %c0_44, %c0_45] : memref<9x256x256xbf16, #tpu.memory_space<vmem>>, vector<1x256x256xbf16>
    %52 = vector.shape_cast %51 : vector<1x256x256xbf16> to vector<256x256xbf16>
    %cst_46 = arith.constant dense<0.000000e+00> : vector<256x32xf32>
    %53 = tpu.matmul %52, %9, %cst_46 {dimension_numbers = #tpu.dot_dimension_numbers<[1], [0], [0], [1], [0, 0, 1, 1], [], []>} : vector<256x256xbf16>, vector<256x32xbf16>, vector<256x32xf32> -> vector<256x32xf32>
    %c5_47 = arith.constant 5 : index
    %c0_48 = arith.constant 0 : index
    %c0_49 = arith.constant 0 : index
    %54 = vector.load %arg5[%c5_47, %c0_48, %c0_49] : memref<9x32x64xbf16, #tpu.memory_space<vmem>>, vector<1x32x64xbf16>
    %55 = vector.shape_cast %54 : vector<1x32x64xbf16> to vector<32x64xbf16>
    %56 = arith.truncf %53 : vector<256x32xf32> to vector<256x32xbf16>
    %cst_50 = arith.constant dense<0.000000e+00> : vector<256x64xf32>
    %57 = tpu.matmul %56, %55, %cst_50 {dimension_numbers = #tpu.dot_dimension_numbers<[1], [0], [0], [1], [0, 0, 1, 1], [], []>} : vector<256x32xbf16>, vector<32x64xbf16>, vector<256x64xf32> -> vector<256x64xf32>
    %58 = arith.addf %50, %57 : vector<256x64xf32>
    %c6 = arith.constant 6 : index
    %c0_51 = arith.constant 0 : index
    %c0_52 = arith.constant 0 : index
    %59 = vector.load %arg4[%c6, %c0_51, %c0_52] : memref<9x256x256xbf16, #tpu.memory_space<vmem>>, vector<1x256x256xbf16>
    %60 = vector.shape_cast %59 : vector<1x256x256xbf16> to vector<256x256xbf16>
    %cst_53 = arith.constant dense<0.000000e+00> : vector<256x32xf32>
    %61 = tpu.matmul %60, %9, %cst_53 {dimension_numbers = #tpu.dot_dimension_numbers<[1], [0], [0], [1], [0, 0, 1, 1], [], []>} : vector<256x256xbf16>, vector<256x32xbf16>, vector<256x32xf32> -> vector<256x32xf32>
    %c6_54 = arith.constant 6 : index
    %c0_55 = arith.constant 0 : index
    %c0_56 = arith.constant 0 : index
    %62 = vector.load %arg5[%c6_54, %c0_55, %c0_56] : memref<9x32x64xbf16, #tpu.memory_space<vmem>>, vector<1x32x64xbf16>
    %63 = vector.shape_cast %62 : vector<1x32x64xbf16> to vector<32x64xbf16>
    %64 = arith.truncf %61 : vector<256x32xf32> to vector<256x32xbf16>
    %cst_57 = arith.constant dense<0.000000e+00> : vector<256x64xf32>
    %65 = tpu.matmul %64, %63, %cst_57 {dimension_numbers = #tpu.dot_dimension_numbers<[1], [0], [0], [1], [0, 0, 1, 1], [], []>} : vector<256x32xbf16>, vector<32x64xbf16>, vector<256x64xf32> -> vector<256x64xf32>
    %66 = arith.addf %58, %65 : vector<256x64xf32>
    %c7 = arith.constant 7 : index
    %c0_58 = arith.constant 0 : index
    %c0_59 = arith.constant 0 : index
    %67 = vector.load %arg4[%c7, %c0_58, %c0_59] : memref<9x256x256xbf16, #tpu.memory_space<vmem>>, vector<1x256x256xbf16>
    %68 = vector.shape_cast %67 : vector<1x256x256xbf16> to vector<256x256xbf16>
    %cst_60 = arith.constant dense<0.000000e+00> : vector<256x32xf32>
    %69 = tpu.matmul %68, %9, %cst_60 {dimension_numbers = #tpu.dot_dimension_numbers<[1], [0], [0], [1], [0, 0, 1, 1], [], []>} : vector<256x256xbf16>, vector<256x32xbf16>, vector<256x32xf32> -> vector<256x32xf32>
    %c7_61 = arith.constant 7 : index
    %c0_62 = arith.constant 0 : index
    %c0_63 = arith.constant 0 : index
    %70 = vector.load %arg5[%c7_61, %c0_62, %c0_63] : memref<9x32x64xbf16, #tpu.memory_space<vmem>>, vector<1x32x64xbf16>
    %71 = vector.shape_cast %70 : vector<1x32x64xbf16> to vector<32x64xbf16>
    %72 = arith.truncf %69 : vector<256x32xf32> to vector<256x32xbf16>
    %cst_64 = arith.constant dense<0.000000e+00> : vector<256x64xf32>
    %73 = tpu.matmul %72, %71, %cst_64 {dimension_numbers = #tpu.dot_dimension_numbers<[1], [0], [0], [1], [0, 0, 1, 1], [], []>} : vector<256x32xbf16>, vector<32x64xbf16>, vector<256x64xf32> -> vector<256x64xf32>
    %74 = arith.addf %66, %73 : vector<256x64xf32>
    %c8 = arith.constant 8 : index
    %c0_65 = arith.constant 0 : index
    %c0_66 = arith.constant 0 : index
    %75 = vector.load %arg4[%c8, %c0_65, %c0_66] : memref<9x256x256xbf16, #tpu.memory_space<vmem>>, vector<1x256x256xbf16>
    %76 = vector.shape_cast %75 : vector<1x256x256xbf16> to vector<256x256xbf16>
    %cst_67 = arith.constant dense<0.000000e+00> : vector<256x32xf32>
    %77 = tpu.matmul %76, %9, %cst_67 {dimension_numbers = #tpu.dot_dimension_numbers<[1], [0], [0], [1], [0, 0, 1, 1], [], []>} : vector<256x256xbf16>, vector<256x32xbf16>, vector<256x32xf32> -> vector<256x32xf32>
    %c8_68 = arith.constant 8 : index
    %c0_69 = arith.constant 0 : index
    %c0_70 = arith.constant 0 : index
    %78 = vector.load %arg5[%c8_68, %c0_69, %c0_70] : memref<9x32x64xbf16, #tpu.memory_space<vmem>>, vector<1x32x64xbf16>
    %79 = vector.shape_cast %78 : vector<1x32x64xbf16> to vector<32x64xbf16>
    %80 = arith.truncf %77 : vector<256x32xf32> to vector<256x32xbf16>
    %cst_71 = arith.constant dense<0.000000e+00> : vector<256x64xf32>
    %81 = tpu.matmul %80, %79, %cst_71 {dimension_numbers = #tpu.dot_dimension_numbers<[1], [0], [0], [1], [0, 0, 1, 1], [], []>} : vector<256x32xbf16>, vector<32x64xbf16>, vector<256x64xf32> -> vector<256x64xf32>
    %82 = arith.addf %74, %81 : vector<256x64xf32>
    %c0_72 = arith.constant 0 : index
    %c0_73 = arith.constant 0 : index
    %83 = vector.load %arg6[%c0_72, %c0_73] : memref<1x64xf32, #tpu.memory_space<vmem>>, vector<1x64xf32>
    %84 = vector.broadcast %83 : vector<1x64xf32> to vector<256x64xf32>
    %85 = arith.addf %82, %84 : vector<256x64xf32>
    %cst_74 = arith.constant 0.000000e+00 : f32
    %86 = vector.broadcast %cst_74 : f32 to vector<256x64xf32>
    %87 = arith.maximumf %85, %86 : vector<256x64xf32>
    %88 = arith.truncf %87 : vector<256x64xf32> to vector<256x64xbf16>
    %cst_75 = arith.constant 0.000000e+00 : f32
    %89 = vector.broadcast %cst_75 : f32 to vector<64x64xf32>
    %c0_76 = arith.constant 0 : index
    %c0_77 = arith.constant 0 : index
    %c0_78 = arith.constant 0 : index
    %90 = vector.load %arg7[%c0_76, %c0_77, %c0_78] : memref<9x64x256xbf16, #tpu.memory_space<vmem>>, vector<1x64x256xbf16>
    %91 = vector.shape_cast %90 : vector<1x64x256xbf16> to vector<64x256xbf16>
    %cst_79 = arith.constant dense<0.000000e+00> : vector<64x64xf32>
    %92 = tpu.matmul %91, %88, %cst_79 {dimension_numbers = #tpu.dot_dimension_numbers<[1], [0], [0], [1], [0, 0, 1, 1], [], []>} : vector<64x256xbf16>, vector<256x64xbf16>, vector<64x64xf32> -> vector<64x64xf32>
    %c0_80 = arith.constant 0 : index
    %c0_81 = arith.constant 0 : index
    %c0_82 = arith.constant 0 : index
    %93 = vector.load %arg8[%c0_80, %c0_81, %c0_82] : memref<9x1x64xf32, #tpu.memory_space<vmem>>, vector<1x1x64xf32>
    %94 = vector.shape_cast %93 : vector<1x1x64xf32> to vector<1x64xf32>
    %95 = vector.broadcast %94 : vector<1x64xf32> to vector<64x64xf32>
    %96 = arith.mulf %92, %95 : vector<64x64xf32>
    %97 = arith.addf %89, %96 : vector<64x64xf32>
    %c1_83 = arith.constant 1 : index
    %c0_84 = arith.constant 0 : index
    %c0_85 = arith.constant 0 : index
    %98 = vector.load %arg7[%c1_83, %c0_84, %c0_85] : memref<9x64x256xbf16, #tpu.memory_space<vmem>>, vector<1x64x256xbf16>
    %99 = vector.shape_cast %98 : vector<1x64x256xbf16> to vector<64x256xbf16>
    %cst_86 = arith.constant dense<0.000000e+00> : vector<64x64xf32>
    %100 = tpu.matmul %99, %88, %cst_86 {dimension_numbers = #tpu.dot_dimension_numbers<[1], [0], [0], [1], [0, 0, 1, 1], [], []>} : vector<64x256xbf16>, vector<256x64xbf16>, vector<64x64xf32> -> vector<64x64xf32>
    %c1_87 = arith.constant 1 : index
    %c0_88 = arith.constant 0 : index
    %c0_89 = arith.constant 0 : index
    %101 = vector.load %arg8[%c1_87, %c0_88, %c0_89] : memref<9x1x64xf32, #tpu.memory_space<vmem>>, vector<1x1x64xf32>
    %102 = vector.shape_cast %101 : vector<1x1x64xf32> to vector<1x64xf32>
    %103 = vector.broadcast %102 : vector<1x64xf32> to vector<64x64xf32>
    %104 = arith.mulf %100, %103 : vector<64x64xf32>
    %105 = arith.addf %97, %104 : vector<64x64xf32>
    %c2_90 = arith.constant 2 : index
    %c0_91 = arith.constant 0 : index
    %c0_92 = arith.constant 0 : index
    %106 = vector.load %arg7[%c2_90, %c0_91, %c0_92] : memref<9x64x256xbf16, #tpu.memory_space<vmem>>, vector<1x64x256xbf16>
    %107 = vector.shape_cast %106 : vector<1x64x256xbf16> to vector<64x256xbf16>
    %cst_93 = arith.constant dense<0.000000e+00> : vector<64x64xf32>
    %108 = tpu.matmul %107, %88, %cst_93 {dimension_numbers = #tpu.dot_dimension_numbers<[1], [0], [0], [1], [0, 0, 1, 1], [], []>} : vector<64x256xbf16>, vector<256x64xbf16>, vector<64x64xf32> -> vector<64x64xf32>
    %c2_94 = arith.constant 2 : index
    %c0_95 = arith.constant 0 : index
    %c0_96 = arith.constant 0 : index
    %109 = vector.load %arg8[%c2_94, %c0_95, %c0_96] : memref<9x1x64xf32, #tpu.memory_space<vmem>>, vector<1x1x64xf32>
    %110 = vector.shape_cast %109 : vector<1x1x64xf32> to vector<1x64xf32>
    %111 = vector.broadcast %110 : vector<1x64xf32> to vector<64x64xf32>
    %112 = arith.mulf %108, %111 : vector<64x64xf32>
    %113 = arith.addf %105, %112 : vector<64x64xf32>
    %c3_97 = arith.constant 3 : index
    %c0_98 = arith.constant 0 : index
    %c0_99 = arith.constant 0 : index
    %114 = vector.load %arg7[%c3_97, %c0_98, %c0_99] : memref<9x64x256xbf16, #tpu.memory_space<vmem>>, vector<1x64x256xbf16>
    %115 = vector.shape_cast %114 : vector<1x64x256xbf16> to vector<64x256xbf16>
    %cst_100 = arith.constant dense<0.000000e+00> : vector<64x64xf32>
    %116 = tpu.matmul %115, %88, %cst_100 {dimension_numbers = #tpu.dot_dimension_numbers<[1], [0], [0], [1], [0, 0, 1, 1], [], []>} : vector<64x256xbf16>, vector<256x64xbf16>, vector<64x64xf32> -> vector<64x64xf32>
    %c3_101 = arith.constant 3 : index
    %c0_102 = arith.constant 0 : index
    %c0_103 = arith.constant 0 : index
    %117 = vector.load %arg8[%c3_101, %c0_102, %c0_103] : memref<9x1x64xf32, #tpu.memory_space<vmem>>, vector<1x1x64xf32>
    %118 = vector.shape_cast %117 : vector<1x1x64xf32> to vector<1x64xf32>
    %119 = vector.broadcast %118 : vector<1x64xf32> to vector<64x64xf32>
    %120 = arith.mulf %116, %119 : vector<64x64xf32>
    %121 = arith.addf %113, %120 : vector<64x64xf32>
    %c4_104 = arith.constant 4 : index
    %c0_105 = arith.constant 0 : index
    %c0_106 = arith.constant 0 : index
    %122 = vector.load %arg7[%c4_104, %c0_105, %c0_106] : memref<9x64x256xbf16, #tpu.memory_space<vmem>>, vector<1x64x256xbf16>
    %123 = vector.shape_cast %122 : vector<1x64x256xbf16> to vector<64x256xbf16>
    %cst_107 = arith.constant dense<0.000000e+00> : vector<64x64xf32>
    %124 = tpu.matmul %123, %88, %cst_107 {dimension_numbers = #tpu.dot_dimension_numbers<[1], [0], [0], [1], [0, 0, 1, 1], [], []>} : vector<64x256xbf16>, vector<256x64xbf16>, vector<64x64xf32> -> vector<64x64xf32>
    %c4_108 = arith.constant 4 : index
    %c0_109 = arith.constant 0 : index
    %c0_110 = arith.constant 0 : index
    %125 = vector.load %arg8[%c4_108, %c0_109, %c0_110] : memref<9x1x64xf32, #tpu.memory_space<vmem>>, vector<1x1x64xf32>
    %126 = vector.shape_cast %125 : vector<1x1x64xf32> to vector<1x64xf32>
    %127 = vector.broadcast %126 : vector<1x64xf32> to vector<64x64xf32>
    %128 = arith.mulf %124, %127 : vector<64x64xf32>
    %129 = arith.addf %121, %128 : vector<64x64xf32>
    %c5_111 = arith.constant 5 : index
    %c0_112 = arith.constant 0 : index
    %c0_113 = arith.constant 0 : index
    %130 = vector.load %arg7[%c5_111, %c0_112, %c0_113] : memref<9x64x256xbf16, #tpu.memory_space<vmem>>, vector<1x64x256xbf16>
    %131 = vector.shape_cast %130 : vector<1x64x256xbf16> to vector<64x256xbf16>
    %cst_114 = arith.constant dense<0.000000e+00> : vector<64x64xf32>
    %132 = tpu.matmul %131, %88, %cst_114 {dimension_numbers = #tpu.dot_dimension_numbers<[1], [0], [0], [1], [0, 0, 1, 1], [], []>} : vector<64x256xbf16>, vector<256x64xbf16>, vector<64x64xf32> -> vector<64x64xf32>
    %c5_115 = arith.constant 5 : index
    %c0_116 = arith.constant 0 : index
    %c0_117 = arith.constant 0 : index
    %133 = vector.load %arg8[%c5_115, %c0_116, %c0_117] : memref<9x1x64xf32, #tpu.memory_space<vmem>>, vector<1x1x64xf32>
    %134 = vector.shape_cast %133 : vector<1x1x64xf32> to vector<1x64xf32>
    %135 = vector.broadcast %134 : vector<1x64xf32> to vector<64x64xf32>
    %136 = arith.mulf %132, %135 : vector<64x64xf32>
    %137 = arith.addf %129, %136 : vector<64x64xf32>
    %c6_118 = arith.constant 6 : index
    %c0_119 = arith.constant 0 : index
    %c0_120 = arith.constant 0 : index
    %138 = vector.load %arg7[%c6_118, %c0_119, %c0_120] : memref<9x64x256xbf16, #tpu.memory_space<vmem>>, vector<1x64x256xbf16>
    %139 = vector.shape_cast %138 : vector<1x64x256xbf16> to vector<64x256xbf16>
    %cst_121 = arith.constant dense<0.000000e+00> : vector<64x64xf32>
    %140 = tpu.matmul %139, %88, %cst_121 {dimension_numbers = #tpu.dot_dimension_numbers<[1], [0], [0], [1], [0, 0, 1, 1], [], []>} : vector<64x256xbf16>, vector<256x64xbf16>, vector<64x64xf32> -> vector<64x64xf32>
    %c6_122 = arith.constant 6 : index
    %c0_123 = arith.constant 0 : index
    %c0_124 = arith.constant 0 : index
    %141 = vector.load %arg8[%c6_122, %c0_123, %c0_124] : memref<9x1x64xf32, #tpu.memory_space<vmem>>, vector<1x1x64xf32>
    %142 = vector.shape_cast %141 : vector<1x1x64xf32> to vector<1x64xf32>
    %143 = vector.broadcast %142 : vector<1x64xf32> to vector<64x64xf32>
    %144 = arith.mulf %140, %143 : vector<64x64xf32>
    %145 = arith.addf %137, %144 : vector<64x64xf32>
    %c7_125 = arith.constant 7 : index
    %c0_126 = arith.constant 0 : index
    %c0_127 = arith.constant 0 : index
    %146 = vector.load %arg7[%c7_125, %c0_126, %c0_127] : memref<9x64x256xbf16, #tpu.memory_space<vmem>>, vector<1x64x256xbf16>
    %147 = vector.shape_cast %146 : vector<1x64x256xbf16> to vector<64x256xbf16>
    %cst_128 = arith.constant dense<0.000000e+00> : vector<64x64xf32>
    %148 = tpu.matmul %147, %88, %cst_128 {dimension_numbers = #tpu.dot_dimension_numbers<[1], [0], [0], [1], [0, 0, 1, 1], [], []>} : vector<64x256xbf16>, vector<256x64xbf16>, vector<64x64xf32> -> vector<64x64xf32>
    %c7_129 = arith.constant 7 : index
    %c0_130 = arith.constant 0 : index
    %c0_131 = arith.constant 0 : index
    %149 = vector.load %arg8[%c7_129, %c0_130, %c0_131] : memref<9x1x64xf32, #tpu.memory_space<vmem>>, vector<1x1x64xf32>
    %150 = vector.shape_cast %149 : vector<1x1x64xf32> to vector<1x64xf32>
    %151 = vector.broadcast %150 : vector<1x64xf32> to vector<64x64xf32>
    %152 = arith.mulf %148, %151 : vector<64x64xf32>
    %153 = arith.addf %145, %152 : vector<64x64xf32>
    %c8_132 = arith.constant 8 : index
    %c0_133 = arith.constant 0 : index
    %c0_134 = arith.constant 0 : index
    %154 = vector.load %arg7[%c8_132, %c0_133, %c0_134] : memref<9x64x256xbf16, #tpu.memory_space<vmem>>, vector<1x64x256xbf16>
    %155 = vector.shape_cast %154 : vector<1x64x256xbf16> to vector<64x256xbf16>
    %cst_135 = arith.constant dense<0.000000e+00> : vector<64x64xf32>
    %156 = tpu.matmul %155, %88, %cst_135 {dimension_numbers = #tpu.dot_dimension_numbers<[1], [0], [0], [1], [0, 0, 1, 1], [], []>} : vector<64x256xbf16>, vector<256x64xbf16>, vector<64x64xf32> -> vector<64x64xf32>
    %c8_136 = arith.constant 8 : index
    %c0_137 = arith.constant 0 : index
    %c0_138 = arith.constant 0 : index
    %157 = vector.load %arg8[%c8_136, %c0_137, %c0_138] : memref<9x1x64xf32, #tpu.memory_space<vmem>>, vector<1x1x64xf32>
    %158 = vector.shape_cast %157 : vector<1x1x64xf32> to vector<1x64xf32>
    %159 = vector.broadcast %158 : vector<1x64xf32> to vector<64x64xf32>
    %160 = arith.mulf %156, %159 : vector<64x64xf32>
    %161 = arith.addf %153, %160 : vector<64x64xf32>
    %c0_139 = arith.constant 0 : index
    %c0_140 = arith.constant 0 : index
    %162 = vector.load %arg9[%c0_139, %c0_140] : memref<1x64xf32, #tpu.memory_space<vmem>>, vector<1x64xf32>
    %163 = vector.broadcast %162 : vector<1x64xf32> to vector<64x64xf32>
    %164 = arith.addf %161, %163 : vector<64x64xf32>
    %cst_141 = arith.constant 0.000000e+00 : f32
    %165 = vector.broadcast %cst_141 : f32 to vector<64x64xf32>
    %166 = arith.maximumf %164, %165 : vector<64x64xf32>
    %c0_142 = arith.constant 0 : index
    %c0_143 = arith.constant 0 : index
    %167 = vector.load %arg10[%c0_142, %c0_143] : memref<64x128xbf16, #tpu.memory_space<vmem>>, vector<64x128xbf16>
    %168 = arith.truncf %166 : vector<64x64xf32> to vector<64x64xbf16>
    %cst_144 = arith.constant dense<0.000000e+00> : vector<64x128xf32>
    %169 = tpu.matmul %168, %167, %cst_144 {dimension_numbers = #tpu.dot_dimension_numbers<[1], [0], [0], [1], [0, 0, 1, 1], [], []>} : vector<64x64xbf16>, vector<64x128xbf16>, vector<64x128xf32> -> vector<64x128xf32>
    %c0_145 = arith.constant 0 : index
    %c0_146 = arith.constant 0 : index
    %170 = vector.load %arg11[%c0_145, %c0_146] : memref<1x128xf32, #tpu.memory_space<vmem>>, vector<1x128xf32>
    %171 = vector.broadcast %170 : vector<1x128xf32> to vector<64x128xf32>
    %172 = arith.addf %169, %171 : vector<64x128xf32>
    %cst_147 = arith.constant 0.000000e+00 : f32
    %173 = vector.broadcast %cst_147 : f32 to vector<64x128xf32>
    %174 = arith.maximumf %172, %173 : vector<64x128xf32>
    %175 = arith.truncf %174 : vector<64x128xf32> to vector<64x128xbf16>
    %cst_148 = arith.constant 0.000000e+00 : f32
    %176 = vector.broadcast %cst_148 : f32 to vector<16x128xf32>
    %c0_149 = arith.constant 0 : index
    %c0_150 = arith.constant 0 : index
    %c0_151 = arith.constant 0 : index
    %177 = vector.load %arg12[%c0_149, %c0_150, %c0_151] : memref<9x16x64xbf16, #tpu.memory_space<vmem>>, vector<1x16x64xbf16>
    %178 = vector.shape_cast %177 : vector<1x16x64xbf16> to vector<16x64xbf16>
    %cst_152 = arith.constant dense<0.000000e+00> : vector<16x128xf32>
    %179 = tpu.matmul %178, %175, %cst_152 {dimension_numbers = #tpu.dot_dimension_numbers<[1], [0], [0], [1], [0, 0, 1, 1], [], []>} : vector<16x64xbf16>, vector<64x128xbf16>, vector<16x128xf32> -> vector<16x128xf32>
    %c0_153 = arith.constant 0 : index
    %c0_154 = arith.constant 0 : index
    %c0_155 = arith.constant 0 : index
    %180 = vector.load %arg13[%c0_153, %c0_154, %c0_155] : memref<9x1x128xf32, #tpu.memory_space<vmem>>, vector<1x1x128xf32>
    %181 = vector.shape_cast %180 : vector<1x1x128xf32> to vector<1x128xf32>
    %182 = vector.broadcast %181 : vector<1x128xf32> to vector<16x128xf32>
    %183 = arith.mulf %179, %182 : vector<16x128xf32>
    %184 = arith.addf %176, %183 : vector<16x128xf32>
    %c1_156 = arith.constant 1 : index
    %c0_157 = arith.constant 0 : index
    %c0_158 = arith.constant 0 : index
    %185 = vector.load %arg12[%c1_156, %c0_157, %c0_158] : memref<9x16x64xbf16, #tpu.memory_space<vmem>>, vector<1x16x64xbf16>
    %186 = vector.shape_cast %185 : vector<1x16x64xbf16> to vector<16x64xbf16>
    %cst_159 = arith.constant dense<0.000000e+00> : vector<16x128xf32>
    %187 = tpu.matmul %186, %175, %cst_159 {dimension_numbers = #tpu.dot_dimension_numbers<[1], [0], [0], [1], [0, 0, 1, 1], [], []>} : vector<16x64xbf16>, vector<64x128xbf16>, vector<16x128xf32> -> vector<16x128xf32>
    %c1_160 = arith.constant 1 : index
    %c0_161 = arith.constant 0 : index
    %c0_162 = arith.constant 0 : index
    %188 = vector.load %arg13[%c1_160, %c0_161, %c0_162] : memref<9x1x128xf32, #tpu.memory_space<vmem>>, vector<1x1x128xf32>
    %189 = vector.shape_cast %188 : vector<1x1x128xf32> to vector<1x128xf32>
    %190 = vector.broadcast %189 : vector<1x128xf32> to vector<16x128xf32>
    %191 = arith.mulf %187, %190 : vector<16x128xf32>
    %192 = arith.addf %184, %191 : vector<16x128xf32>
    %c2_163 = arith.constant 2 : index
    %c0_164 = arith.constant 0 : index
    %c0_165 = arith.constant 0 : index
    %193 = vector.load %arg12[%c2_163, %c0_164, %c0_165] : memref<9x16x64xbf16, #tpu.memory_space<vmem>>, vector<1x16x64xbf16>
    %194 = vector.shape_cast %193 : vector<1x16x64xbf16> to vector<16x64xbf16>
    %cst_166 = arith.constant dense<0.000000e+00> : vector<16x128xf32>
    %195 = tpu.matmul %194, %175, %cst_166 {dimension_numbers = #tpu.dot_dimension_numbers<[1], [0], [0], [1], [0, 0, 1, 1], [], []>} : vector<16x64xbf16>, vector<64x128xbf16>, vector<16x128xf32> -> vector<16x128xf32>
    %c2_167 = arith.constant 2 : index
    %c0_168 = arith.constant 0 : index
    %c0_169 = arith.constant 0 : index
    %196 = vector.load %arg13[%c2_167, %c0_168, %c0_169] : memref<9x1x128xf32, #tpu.memory_space<vmem>>, vector<1x1x128xf32>
    %197 = vector.shape_cast %196 : vector<1x1x128xf32> to vector<1x128xf32>
    %198 = vector.broadcast %197 : vector<1x128xf32> to vector<16x128xf32>
    %199 = arith.mulf %195, %198 : vector<16x128xf32>
    %200 = arith.addf %192, %199 : vector<16x128xf32>
    %c3_170 = arith.constant 3 : index
    %c0_171 = arith.constant 0 : index
    %c0_172 = arith.constant 0 : index
    %201 = vector.load %arg12[%c3_170, %c0_171, %c0_172] : memref<9x16x64xbf16, #tpu.memory_space<vmem>>, vector<1x16x64xbf16>
    %202 = vector.shape_cast %201 : vector<1x16x64xbf16> to vector<16x64xbf16>
    %cst_173 = arith.constant dense<0.000000e+00> : vector<16x128xf32>
    %203 = tpu.matmul %202, %175, %cst_173 {dimension_numbers = #tpu.dot_dimension_numbers<[1], [0], [0], [1], [0, 0, 1, 1], [], []>} : vector<16x64xbf16>, vector<64x128xbf16>, vector<16x128xf32> -> vector<16x128xf32>
    %c3_174 = arith.constant 3 : index
    %c0_175 = arith.constant 0 : index
    %c0_176 = arith.constant 0 : index
    %204 = vector.load %arg13[%c3_174, %c0_175, %c0_176] : memref<9x1x128xf32, #tpu.memory_space<vmem>>, vector<1x1x128xf32>
    %205 = vector.shape_cast %204 : vector<1x1x128xf32> to vector<1x128xf32>
    %206 = vector.broadcast %205 : vector<1x128xf32> to vector<16x128xf32>
    %207 = arith.mulf %203, %206 : vector<16x128xf32>
    %208 = arith.addf %200, %207 : vector<16x128xf32>
    %c4_177 = arith.constant 4 : index
    %c0_178 = arith.constant 0 : index
    %c0_179 = arith.constant 0 : index
    %209 = vector.load %arg12[%c4_177, %c0_178, %c0_179] : memref<9x16x64xbf16, #tpu.memory_space<vmem>>, vector<1x16x64xbf16>
    %210 = vector.shape_cast %209 : vector<1x16x64xbf16> to vector<16x64xbf16>
    %cst_180 = arith.constant dense<0.000000e+00> : vector<16x128xf32>
    %211 = tpu.matmul %210, %175, %cst_180 {dimension_numbers = #tpu.dot_dimension_numbers<[1], [0], [0], [1], [0, 0, 1, 1], [], []>} : vector<16x64xbf16>, vector<64x128xbf16>, vector<16x128xf32> -> vector<16x128xf32>
    %c4_181 = arith.constant 4 : index
    %c0_182 = arith.constant 0 : index
    %c0_183 = arith.constant 0 : index
    %212 = vector.load %arg13[%c4_181, %c0_182, %c0_183] : memref<9x1x128xf32, #tpu.memory_space<vmem>>, vector<1x1x128xf32>
    %213 = vector.shape_cast %212 : vector<1x1x128xf32> to vector<1x128xf32>
    %214 = vector.broadcast %213 : vector<1x128xf32> to vector<16x128xf32>
    %215 = arith.mulf %211, %214 : vector<16x128xf32>
    %216 = arith.addf %208, %215 : vector<16x128xf32>
    %c5_184 = arith.constant 5 : index
    %c0_185 = arith.constant 0 : index
    %c0_186 = arith.constant 0 : index
    %217 = vector.load %arg12[%c5_184, %c0_185, %c0_186] : memref<9x16x64xbf16, #tpu.memory_space<vmem>>, vector<1x16x64xbf16>
    %218 = vector.shape_cast %217 : vector<1x16x64xbf16> to vector<16x64xbf16>
    %cst_187 = arith.constant dense<0.000000e+00> : vector<16x128xf32>
    %219 = tpu.matmul %218, %175, %cst_187 {dimension_numbers = #tpu.dot_dimension_numbers<[1], [0], [0], [1], [0, 0, 1, 1], [], []>} : vector<16x64xbf16>, vector<64x128xbf16>, vector<16x128xf32> -> vector<16x128xf32>
    %c5_188 = arith.constant 5 : index
    %c0_189 = arith.constant 0 : index
    %c0_190 = arith.constant 0 : index
    %220 = vector.load %arg13[%c5_188, %c0_189, %c0_190] : memref<9x1x128xf32, #tpu.memory_space<vmem>>, vector<1x1x128xf32>
    %221 = vector.shape_cast %220 : vector<1x1x128xf32> to vector<1x128xf32>
    %222 = vector.broadcast %221 : vector<1x128xf32> to vector<16x128xf32>
    %223 = arith.mulf %219, %222 : vector<16x128xf32>
    %224 = arith.addf %216, %223 : vector<16x128xf32>
    %c6_191 = arith.constant 6 : index
    %c0_192 = arith.constant 0 : index
    %c0_193 = arith.constant 0 : index
    %225 = vector.load %arg12[%c6_191, %c0_192, %c0_193] : memref<9x16x64xbf16, #tpu.memory_space<vmem>>, vector<1x16x64xbf16>
    %226 = vector.shape_cast %225 : vector<1x16x64xbf16> to vector<16x64xbf16>
    %cst_194 = arith.constant dense<0.000000e+00> : vector<16x128xf32>
    %227 = tpu.matmul %226, %175, %cst_194 {dimension_numbers = #tpu.dot_dimension_numbers<[1], [0], [0], [1], [0, 0, 1, 1], [], []>} : vector<16x64xbf16>, vector<64x128xbf16>, vector<16x128xf32> -> vector<16x128xf32>
    %c6_195 = arith.constant 6 : index
    %c0_196 = arith.constant 0 : index
    %c0_197 = arith.constant 0 : index
    %228 = vector.load %arg13[%c6_195, %c0_196, %c0_197] : memref<9x1x128xf32, #tpu.memory_space<vmem>>, vector<1x1x128xf32>
    %229 = vector.shape_cast %228 : vector<1x1x128xf32> to vector<1x128xf32>
    %230 = vector.broadcast %229 : vector<1x128xf32> to vector<16x128xf32>
    %231 = arith.mulf %227, %230 : vector<16x128xf32>
    %232 = arith.addf %224, %231 : vector<16x128xf32>
    %c7_198 = arith.constant 7 : index
    %c0_199 = arith.constant 0 : index
    %c0_200 = arith.constant 0 : index
    %233 = vector.load %arg12[%c7_198, %c0_199, %c0_200] : memref<9x16x64xbf16, #tpu.memory_space<vmem>>, vector<1x16x64xbf16>
    %234 = vector.shape_cast %233 : vector<1x16x64xbf16> to vector<16x64xbf16>
    %cst_201 = arith.constant dense<0.000000e+00> : vector<16x128xf32>
    %235 = tpu.matmul %234, %175, %cst_201 {dimension_numbers = #tpu.dot_dimension_numbers<[1], [0], [0], [1], [0, 0, 1, 1], [], []>} : vector<16x64xbf16>, vector<64x128xbf16>, vector<16x128xf32> -> vector<16x128xf32>
    %c7_202 = arith.constant 7 : index
    %c0_203 = arith.constant 0 : index
    %c0_204 = arith.constant 0 : index
    %236 = vector.load %arg13[%c7_202, %c0_203, %c0_204] : memref<9x1x128xf32, #tpu.memory_space<vmem>>, vector<1x1x128xf32>
    %237 = vector.shape_cast %236 : vector<1x1x128xf32> to vector<1x128xf32>
    %238 = vector.broadcast %237 : vector<1x128xf32> to vector<16x128xf32>
    %239 = arith.mulf %235, %238 : vector<16x128xf32>
    %240 = arith.addf %232, %239 : vector<16x128xf32>
    %c8_205 = arith.constant 8 : index
    %c0_206 = arith.constant 0 : index
    %c0_207 = arith.constant 0 : index
    %241 = vector.load %arg12[%c8_205, %c0_206, %c0_207] : memref<9x16x64xbf16, #tpu.memory_space<vmem>>, vector<1x16x64xbf16>
    %242 = vector.shape_cast %241 : vector<1x16x64xbf16> to vector<16x64xbf16>
    %cst_208 = arith.constant dense<0.000000e+00> : vector<16x128xf32>
    %243 = tpu.matmul %242, %175, %cst_208 {dimension_numbers = #tpu.dot_dimension_numbers<[1], [0], [0], [1], [0, 0, 1, 1], [], []>} : vector<16x64xbf16>, vector<64x128xbf16>, vector<16x128xf32> -> vector<16x128xf32>
    %c8_209 = arith.constant 8 : index
    %c0_210 = arith.constant 0 : index
    %c0_211 = arith.constant 0 : index
    %244 = vector.load %arg13[%c8_209, %c0_210, %c0_211] : memref<9x1x128xf32, #tpu.memory_space<vmem>>, vector<1x1x128xf32>
    %245 = vector.shape_cast %244 : vector<1x1x128xf32> to vector<1x128xf32>
    %246 = vector.broadcast %245 : vector<1x128xf32> to vector<16x128xf32>
    %247 = arith.mulf %243, %246 : vector<16x128xf32>
    %248 = arith.addf %240, %247 : vector<16x128xf32>
    %c0_212 = arith.constant 0 : index
    %c0_213 = arith.constant 0 : index
    %249 = vector.load %arg14[%c0_212, %c0_213] : memref<1x128xf32, #tpu.memory_space<vmem>>, vector<1x128xf32>
    %250 = vector.broadcast %249 : vector<1x128xf32> to vector<16x128xf32>
    %251 = arith.addf %248, %250 : vector<16x128xf32>
    %cst_214 = arith.constant 0.000000e+00 : f32
    %252 = vector.broadcast %cst_214 : f32 to vector<16x128xf32>
    %253 = arith.maximumf %251, %252 : vector<16x128xf32>
    %c0_215 = arith.constant 0 : index
    %c0_216 = arith.constant 0 : index
    %254 = vector.load %arg15[%c0_215, %c0_216] : memref<128x256xbf16, #tpu.memory_space<vmem>>, vector<128x256xbf16>
    %255 = arith.truncf %253 : vector<16x128xf32> to vector<16x128xbf16>
    %cst_217 = arith.constant dense<0.000000e+00> : vector<16x256xf32>
    %256 = tpu.matmul %255, %254, %cst_217 {dimension_numbers = #tpu.dot_dimension_numbers<[1], [0], [0], [1], [0, 0, 1, 1], [], []>} : vector<16x128xbf16>, vector<128x256xbf16>, vector<16x256xf32> -> vector<16x256xf32>
    %c0_218 = arith.constant 0 : index
    %c0_219 = arith.constant 0 : index
    %257 = vector.load %arg16[%c0_218, %c0_219] : memref<1x256xf32, #tpu.memory_space<vmem>>, vector<1x256xf32>
    %258 = vector.broadcast %257 : vector<1x256xf32> to vector<16x256xf32>
    %259 = arith.addf %256, %258 : vector<16x256xf32>
    %cst_220 = arith.constant 0.000000e+00 : f32
    %260 = vector.broadcast %cst_220 : f32 to vector<16x256xf32>
    %261 = arith.maximumf %259, %260 : vector<16x256xf32>
    %262 = arith.truncf %261 : vector<16x256xf32> to vector<16x256xbf16>
    %cst_221 = arith.constant 0.000000e+00 : f32
    %263 = vector.broadcast %cst_221 : f32 to vector<4x256xf32>
    %c0_222 = arith.constant 0 : index
    %c0_223 = arith.constant 0 : index
    %c0_224 = arith.constant 0 : index
    %264 = vector.load %arg17[%c0_222, %c0_223, %c0_224] : memref<9x4x16xbf16, #tpu.memory_space<vmem>>, vector<1x4x16xbf16>
    %265 = vector.shape_cast %264 : vector<1x4x16xbf16> to vector<4x16xbf16>
    %cst_225 = arith.constant dense<0.000000e+00> : vector<4x256xf32>
    %266 = tpu.matmul %265, %262, %cst_225 {dimension_numbers = #tpu.dot_dimension_numbers<[1], [0], [0], [1], [0, 0, 1, 1], [], []>} : vector<4x16xbf16>, vector<16x256xbf16>, vector<4x256xf32> -> vector<4x256xf32>
    %c0_226 = arith.constant 0 : index
    %c0_227 = arith.constant 0 : index
    %c0_228 = arith.constant 0 : index
    %267 = vector.load %arg18[%c0_226, %c0_227, %c0_228] : memref<9x1x256xf32, #tpu.memory_space<vmem>>, vector<1x1x256xf32>
    %268 = vector.shape_cast %267 : vector<1x1x256xf32> to vector<1x256xf32>
    %269 = vector.broadcast %268 : vector<1x256xf32> to vector<4x256xf32>
    %270 = arith.mulf %266, %269 : vector<4x256xf32>
    %271 = arith.addf %263, %270 : vector<4x256xf32>
    %c1_229 = arith.constant 1 : index
    %c0_230 = arith.constant 0 : index
    %c0_231 = arith.constant 0 : index
    %272 = vector.load %arg17[%c1_229, %c0_230, %c0_231] : memref<9x4x16xbf16, #tpu.memory_space<vmem>>, vector<1x4x16xbf16>
    %273 = vector.shape_cast %272 : vector<1x4x16xbf16> to vector<4x16xbf16>
    %cst_232 = arith.constant dense<0.000000e+00> : vector<4x256xf32>
    %274 = tpu.matmul %273, %262, %cst_232 {dimension_numbers = #tpu.dot_dimension_numbers<[1], [0], [0], [1], [0, 0, 1, 1], [], []>} : vector<4x16xbf16>, vector<16x256xbf16>, vector<4x256xf32> -> vector<4x256xf32>
    %c1_233 = arith.constant 1 : index
    %c0_234 = arith.constant 0 : index
    %c0_235 = arith.constant 0 : index
    %275 = vector.load %arg18[%c1_233, %c0_234, %c0_235] : memref<9x1x256xf32, #tpu.memory_space<vmem>>, vector<1x1x256xf32>
    %276 = vector.shape_cast %275 : vector<1x1x256xf32> to vector<1x256xf32>
    %277 = vector.broadcast %276 : vector<1x256xf32> to vector<4x256xf32>
    %278 = arith.mulf %274, %277 : vector<4x256xf32>
    %279 = arith.addf %271, %278 : vector<4x256xf32>
    %c2_236 = arith.constant 2 : index
    %c0_237 = arith.constant 0 : index
    %c0_238 = arith.constant 0 : index
    %280 = vector.load %arg17[%c2_236, %c0_237, %c0_238] : memref<9x4x16xbf16, #tpu.memory_space<vmem>>, vector<1x4x16xbf16>
    %281 = vector.shape_cast %280 : vector<1x4x16xbf16> to vector<4x16xbf16>
    %cst_239 = arith.constant dense<0.000000e+00> : vector<4x256xf32>
    %282 = tpu.matmul %281, %262, %cst_239 {dimension_numbers = #tpu.dot_dimension_numbers<[1], [0], [0], [1], [0, 0, 1, 1], [], []>} : vector<4x16xbf16>, vector<16x256xbf16>, vector<4x256xf32> -> vector<4x256xf32>
    %c2_240 = arith.constant 2 : index
    %c0_241 = arith.constant 0 : index
    %c0_242 = arith.constant 0 : index
    %283 = vector.load %arg18[%c2_240, %c0_241, %c0_242] : memref<9x1x256xf32, #tpu.memory_space<vmem>>, vector<1x1x256xf32>
    %284 = vector.shape_cast %283 : vector<1x1x256xf32> to vector<1x256xf32>
    %285 = vector.broadcast %284 : vector<1x256xf32> to vector<4x256xf32>
    %286 = arith.mulf %282, %285 : vector<4x256xf32>
    %287 = arith.addf %279, %286 : vector<4x256xf32>
    %c3_243 = arith.constant 3 : index
    %c0_244 = arith.constant 0 : index
    %c0_245 = arith.constant 0 : index
    %288 = vector.load %arg17[%c3_243, %c0_244, %c0_245] : memref<9x4x16xbf16, #tpu.memory_space<vmem>>, vector<1x4x16xbf16>
    %289 = vector.shape_cast %288 : vector<1x4x16xbf16> to vector<4x16xbf16>
    %cst_246 = arith.constant dense<0.000000e+00> : vector<4x256xf32>
    %290 = tpu.matmul %289, %262, %cst_246 {dimension_numbers = #tpu.dot_dimension_numbers<[1], [0], [0], [1], [0, 0, 1, 1], [], []>} : vector<4x16xbf16>, vector<16x256xbf16>, vector<4x256xf32> -> vector<4x256xf32>
    %c3_247 = arith.constant 3 : index
    %c0_248 = arith.constant 0 : index
    %c0_249 = arith.constant 0 : index
    %291 = vector.load %arg18[%c3_247, %c0_248, %c0_249] : memref<9x1x256xf32, #tpu.memory_space<vmem>>, vector<1x1x256xf32>
    %292 = vector.shape_cast %291 : vector<1x1x256xf32> to vector<1x256xf32>
    %293 = vector.broadcast %292 : vector<1x256xf32> to vector<4x256xf32>
    %294 = arith.mulf %290, %293 : vector<4x256xf32>
    %295 = arith.addf %287, %294 : vector<4x256xf32>
    %c4_250 = arith.constant 4 : index
    %c0_251 = arith.constant 0 : index
    %c0_252 = arith.constant 0 : index
    %296 = vector.load %arg17[%c4_250, %c0_251, %c0_252] : memref<9x4x16xbf16, #tpu.memory_space<vmem>>, vector<1x4x16xbf16>
    %297 = vector.shape_cast %296 : vector<1x4x16xbf16> to vector<4x16xbf16>
    %cst_253 = arith.constant dense<0.000000e+00> : vector<4x256xf32>
    %298 = tpu.matmul %297, %262, %cst_253 {dimension_numbers = #tpu.dot_dimension_numbers<[1], [0], [0], [1], [0, 0, 1, 1], [], []>} : vector<4x16xbf16>, vector<16x256xbf16>, vector<4x256xf32> -> vector<4x256xf32>
    %c4_254 = arith.constant 4 : index
    %c0_255 = arith.constant 0 : index
    %c0_256 = arith.constant 0 : index
    %299 = vector.load %arg18[%c4_254, %c0_255, %c0_256] : memref<9x1x256xf32, #tpu.memory_space<vmem>>, vector<1x1x256xf32>
    %300 = vector.shape_cast %299 : vector<1x1x256xf32> to vector<1x256xf32>
    %301 = vector.broadcast %300 : vector<1x256xf32> to vector<4x256xf32>
    %302 = arith.mulf %298, %301 : vector<4x256xf32>
    %303 = arith.addf %295, %302 : vector<4x256xf32>
    %c5_257 = arith.constant 5 : index
    %c0_258 = arith.constant 0 : index
    %c0_259 = arith.constant 0 : index
    %304 = vector.load %arg17[%c5_257, %c0_258, %c0_259] : memref<9x4x16xbf16, #tpu.memory_space<vmem>>, vector<1x4x16xbf16>
    %305 = vector.shape_cast %304 : vector<1x4x16xbf16> to vector<4x16xbf16>
    %cst_260 = arith.constant dense<0.000000e+00> : vector<4x256xf32>
    %306 = tpu.matmul %305, %262, %cst_260 {dimension_numbers = #tpu.dot_dimension_numbers<[1], [0], [0], [1], [0, 0, 1, 1], [], []>} : vector<4x16xbf16>, vector<16x256xbf16>, vector<4x256xf32> -> vector<4x256xf32>
    %c5_261 = arith.constant 5 : index
    %c0_262 = arith.constant 0 : index
    %c0_263 = arith.constant 0 : index
    %307 = vector.load %arg18[%c5_261, %c0_262, %c0_263] : memref<9x1x256xf32, #tpu.memory_space<vmem>>, vector<1x1x256xf32>
    %308 = vector.shape_cast %307 : vector<1x1x256xf32> to vector<1x256xf32>
    %309 = vector.broadcast %308 : vector<1x256xf32> to vector<4x256xf32>
    %310 = arith.mulf %306, %309 : vector<4x256xf32>
    %311 = arith.addf %303, %310 : vector<4x256xf32>
    %c6_264 = arith.constant 6 : index
    %c0_265 = arith.constant 0 : index
    %c0_266 = arith.constant 0 : index
    %312 = vector.load %arg17[%c6_264, %c0_265, %c0_266] : memref<9x4x16xbf16, #tpu.memory_space<vmem>>, vector<1x4x16xbf16>
    %313 = vector.shape_cast %312 : vector<1x4x16xbf16> to vector<4x16xbf16>
    %cst_267 = arith.constant dense<0.000000e+00> : vector<4x256xf32>
    %314 = tpu.matmul %313, %262, %cst_267 {dimension_numbers = #tpu.dot_dimension_numbers<[1], [0], [0], [1], [0, 0, 1, 1], [], []>} : vector<4x16xbf16>, vector<16x256xbf16>, vector<4x256xf32> -> vector<4x256xf32>
    %c6_268 = arith.constant 6 : index
    %c0_269 = arith.constant 0 : index
    %c0_270 = arith.constant 0 : index
    %315 = vector.load %arg18[%c6_268, %c0_269, %c0_270] : memref<9x1x256xf32, #tpu.memory_space<vmem>>, vector<1x1x256xf32>
    %316 = vector.shape_cast %315 : vector<1x1x256xf32> to vector<1x256xf32>
    %317 = vector.broadcast %316 : vector<1x256xf32> to vector<4x256xf32>
    %318 = arith.mulf %314, %317 : vector<4x256xf32>
    %319 = arith.addf %311, %318 : vector<4x256xf32>
    %c7_271 = arith.constant 7 : index
    %c0_272 = arith.constant 0 : index
    %c0_273 = arith.constant 0 : index
    %320 = vector.load %arg17[%c7_271, %c0_272, %c0_273] : memref<9x4x16xbf16, #tpu.memory_space<vmem>>, vector<1x4x16xbf16>
    %321 = vector.shape_cast %320 : vector<1x4x16xbf16> to vector<4x16xbf16>
    %cst_274 = arith.constant dense<0.000000e+00> : vector<4x256xf32>
    %322 = tpu.matmul %321, %262, %cst_274 {dimension_numbers = #tpu.dot_dimension_numbers<[1], [0], [0], [1], [0, 0, 1, 1], [], []>} : vector<4x16xbf16>, vector<16x256xbf16>, vector<4x256xf32> -> vector<4x256xf32>
    %c7_275 = arith.constant 7 : index
    %c0_276 = arith.constant 0 : index
    %c0_277 = arith.constant 0 : index
    %323 = vector.load %arg18[%c7_275, %c0_276, %c0_277] : memref<9x1x256xf32, #tpu.memory_space<vmem>>, vector<1x1x256xf32>
    %324 = vector.shape_cast %323 : vector<1x1x256xf32> to vector<1x256xf32>
    %325 = vector.broadcast %324 : vector<1x256xf32> to vector<4x256xf32>
    %326 = arith.mulf %322, %325 : vector<4x256xf32>
    %327 = arith.addf %319, %326 : vector<4x256xf32>
    %c8_278 = arith.constant 8 : index
    %c0_279 = arith.constant 0 : index
    %c0_280 = arith.constant 0 : index
    %328 = vector.load %arg17[%c8_278, %c0_279, %c0_280] : memref<9x4x16xbf16, #tpu.memory_space<vmem>>, vector<1x4x16xbf16>
    %329 = vector.shape_cast %328 : vector<1x4x16xbf16> to vector<4x16xbf16>
    %cst_281 = arith.constant dense<0.000000e+00> : vector<4x256xf32>
    %330 = tpu.matmul %329, %262, %cst_281 {dimension_numbers = #tpu.dot_dimension_numbers<[1], [0], [0], [1], [0, 0, 1, 1], [], []>} : vector<4x16xbf16>, vector<16x256xbf16>, vector<4x256xf32> -> vector<4x256xf32>
    %c8_282 = arith.constant 8 : index
    %c0_283 = arith.constant 0 : index
    %c0_284 = arith.constant 0 : index
    %331 = vector.load %arg18[%c8_282, %c0_283, %c0_284] : memref<9x1x256xf32, #tpu.memory_space<vmem>>, vector<1x1x256xf32>
    %332 = vector.shape_cast %331 : vector<1x1x256xf32> to vector<1x256xf32>
    %333 = vector.broadcast %332 : vector<1x256xf32> to vector<4x256xf32>
    %334 = arith.mulf %330, %333 : vector<4x256xf32>
    %335 = arith.addf %327, %334 : vector<4x256xf32>
    %c0_285 = arith.constant 0 : index
    %c0_286 = arith.constant 0 : index
    %336 = vector.load %arg19[%c0_285, %c0_286] : memref<1x256xf32, #tpu.memory_space<vmem>>, vector<1x256xf32>
    %337 = vector.broadcast %336 : vector<1x256xf32> to vector<4x256xf32>
    %338 = arith.addf %335, %337 : vector<4x256xf32>
    %cst_287 = arith.constant 0.000000e+00 : f32
    %339 = vector.broadcast %cst_287 : f32 to vector<4x256xf32>
    %340 = arith.maximumf %338, %339 : vector<4x256xf32>
    %c0_288 = arith.constant 0 : index
    %c0_289 = arith.constant 0 : index
    %341 = vector.load %arg20[%c0_288, %c0_289] : memref<256x512xbf16, #tpu.memory_space<vmem>>, vector<256x512xbf16>
    %342 = arith.truncf %340 : vector<4x256xf32> to vector<4x256xbf16>
    %cst_290 = arith.constant dense<0.000000e+00> : vector<4x512xf32>
    %343 = tpu.matmul %342, %341, %cst_290 {dimension_numbers = #tpu.dot_dimension_numbers<[1], [0], [0], [1], [0, 0, 1, 1], [], []>} : vector<4x256xbf16>, vector<256x512xbf16>, vector<4x512xf32> -> vector<4x512xf32>
    %c0_291 = arith.constant 0 : index
    %c0_292 = arith.constant 0 : index
    %344 = vector.load %arg21[%c0_291, %c0_292] : memref<1x512xf32, #tpu.memory_space<vmem>>, vector<1x512xf32>
    %345 = vector.broadcast %344 : vector<1x512xf32> to vector<4x512xf32>
    %346 = arith.addf %343, %345 : vector<4x512xf32>
    %cst_293 = arith.constant 0.000000e+00 : f32
    %347 = vector.broadcast %cst_293 : f32 to vector<4x512xf32>
    %348 = arith.maximumf %346, %347 : vector<4x512xf32>
    %cst_294 = arith.constant dense<0.000000e+00> : vector<512xf32>
    %349 = vector.multi_reduction <add>, %348, %cst_294 [0] : vector<4x512xf32> to vector<512xf32>
    %350 = vector.shape_cast %349 : vector<512xf32> to vector<1x512xf32>
    %cst_295 = arith.constant 2.500000e-01 : f32
    %351 = vector.broadcast %cst_295 : f32 to vector<1x512xf32>
    %352 = arith.mulf %350, %351 : vector<1x512xf32>
    %c0_296 = arith.constant 0 : index
    %c0_297 = arith.constant 0 : index
    %353 = vector.load %arg22[%c0_296, %c0_297] : memref<512x128xbf16, #tpu.memory_space<vmem>>, vector<512x128xbf16>
    %354 = arith.truncf %352 : vector<1x512xf32> to vector<1x512xbf16>
    %cst_298 = arith.constant dense<0.000000e+00> : vector<1x128xf32>
    %355 = tpu.matmul %354, %353, %cst_298 {dimension_numbers = #tpu.dot_dimension_numbers<[1], [0], [0], [1], [0, 0, 1, 1], [], []>} : vector<1x512xbf16>, vector<512x128xbf16>, vector<1x128xf32> -> vector<1x128xf32>
    %c0_299 = arith.constant 0 : index
    %c0_300 = arith.constant 0 : index
    %356 = vector.load %arg23[%c0_299, %c0_300] : memref<1x128xf32, #tpu.memory_space<vmem>>, vector<1x128xf32>
    %357 = arith.addf %355, %356 : vector<1x128xf32>
    %c0_301 = arith.constant 0 : index
    %c0_302 = arith.constant 0 : index
    %c0_303 = arith.constant 0 : index
    %358 = vector.load %arg24[%c0_301, %c0_302, %c0_303] : memref<1x1x128xf32, #tpu.memory_space<vmem>>, vector<1x1x128xf32>
    %359 = vector.shape_cast %358 : vector<1x1x128xf32> to vector<1x128xf32>
    %360 = vector.shape_cast %357 : vector<1x128xf32> to vector<1x1x128xf32>
    tpu.vector_store %arg24[%c0_301, %c0_302, %c0_303], %360 {strides = array<i32>} : memref<1x1x128xf32, #tpu.memory_space<vmem>>, vector<1x1x128xf32>,
    return
  }
  func.func @transform_0(%arg0: i32) -> (i32, i32, i32) {
    %c0_i32 = arith.constant 0 : i32
    %c0_i32_0 = arith.constant 0 : i32
    %c0_i32_1 = arith.constant 0 : i32
    return %arg0, %c0_i32, %c0_i32_0 : i32, i32, i32
  }
  func.func @transform_1(%arg0: i32) -> (i32, i32) {
    %c0_i32 = arith.constant 0 : i32
    %c0_i32_0 = arith.constant 0 : i32
    %c0_i32_1 = arith.constant 0 : i32
    return %c0_i32, %c0_i32_0 : i32, i32
  }
  func.func @transform_2(%arg0: i32) -> (i32, i32) {
    %c0_i32 = arith.constant 0 : i32
    %c0_i32_0 = arith.constant 0 : i32
    %c0_i32_1 = arith.constant 0 : i32
    return %c0_i32, %c0_i32_0 : i32, i32
  }
  func.func @transform_3(%arg0: i32) -> (i32, i32, i32) {
    %c0_i32 = arith.constant 0 : i32
    %c0_i32_0 = arith.constant 0 : i32
    %c0_i32_1 = arith.constant 0 : i32
    %c0_i32_2 = arith.constant 0 : i32
    return %c0_i32, %c0_i32_0, %c0_i32_1 : i32, i32, i32
  }
  func.func @transform_4(%arg0: i32) -> (i32, i32, i32) {
    %c0_i32 = arith.constant 0 : i32
    %c0_i32_0 = arith.constant 0 : i32
    %c0_i32_1 = arith.constant 0 : i32
    %c0_i32_2 = arith.constant 0 : i32
    return %c0_i32, %c0_i32_0, %c0_i32_1 : i32, i32, i32
  }
  func.func @transform_5(%arg0: i32) -> (i32, i32) {
    %c0_i32 = arith.constant 0 : i32
    %c0_i32_0 = arith.constant 0 : i32
    %c0_i32_1 = arith.constant 0 : i32
    return %c0_i32, %c0_i32_0 : i32, i32
  }
  func.func @transform_6(%arg0: i32) -> (i32, i32, i32) {
    %c0_i32 = arith.constant 0 : i32
    %c0_i32_0 = arith.constant 0 : i32
    %c0_i32_1 = arith.constant 0 : i32
    %c0_i32_2 = arith.constant 0 : i32
    return %c0_i32, %c0_i32_0, %c0_i32_1 : i32, i32, i32
  }
  func.func @transform_7(%arg0: i32) -> (i32, i32, i32) {
    %c0_i32 = arith.constant 0 : i32
    %c0_i32_0 = arith.constant 0 : i32
    %c0_i32_1 = arith.constant 0 : i32
    %c0_i32_2 = arith.constant 0 : i32
    return %c0_i32, %c0_i32_0, %c0_i32_1 : i32, i32, i32
  }
  func.func @transform_8(%arg0: i32) -> (i32, i32) {
    %c0_i32 = arith.constant 0 : i32
    %c0_i32_0 = arith.constant 0 : i32
    %c0_i32_1 = arith.constant 0 : i32
    return %c0_i32, %c0_i32_0 : i32, i32
  }
  func.func @transform_9(%arg0: i32) -> (i32, i32) {
    %c0_i32 = arith.constant 0 : i32
    %c0_i32_0 = arith.constant 0 : i32
    %c0_i32_1 = arith.constant 0 : i32
    return %c0_i32, %c0_i32_0 : i32, i32
  }
  func.func @transform_10(%arg0: i32) -> (i32, i32) {
    %c0_i32 = arith.constant 0 : i32
    %c0_i32_0 = arith.constant 0 : i32
    %c0_i32_1 = arith.constant 0 : i32
    return %c0_i32, %c0_i32_0 : i32, i32
  }
  func.func @transform_11(%arg0: i32) -> (i32, i32, i32) {
    %c0_i32 = arith.constant 0 : i32
    %c0_i32_0 = arith.constant 0 : i32
    %c0_i32_1 = arith.constant 0 : i32
    %c0_i32_2 = arith.constant 0 : i32
    return %c0_i32, %c0_i32_0, %c0_i32_1 : i32, i32, i32
  }
  func.func @transform_12(%arg0: i32) -> (i32, i32, i32) {
    %c0_i32 = arith.constant 0 : i32
    %c0_i32_0 = arith.constant 0 : i32
    %c0_i32_1 = arith.constant 0 : i32
    %c0_i32_2 = arith.constant 0 : i32
    return %c0_i32, %c0_i32_0, %c0_i32_1 : i32, i32, i32
  }
  func.func @transform_13(%arg0: i32) -> (i32, i32) {
    %c0_i32 = arith.constant 0 : i32
    %c0_i32_0 = arith.constant 0 : i32
    %c0_i32_1 = arith.constant 0 : i32
    return %c0_i32, %c0_i32_0 : i32, i32
  }
  func.func @transform_14(%arg0: i32) -> (i32, i32) {
    %c0_i32 = arith.constant 0 : i32
    %c0_i32_0 = arith.constant 0 : i32
    %c0_i32_1 = arith.constant 0 : i32
    return %c0_i32, %c0_i32_0 : i32, i32
  }
  func.func @transform_15(%arg0: i32) -> (i32, i32) {
    %c0_i32 = arith.constant 0 : i32
    %c0_i32_0 = arith.constant 0 : i32
    %c0_i32_1 = arith.constant 0 : i32
    return %c0_i32, %c0_i32_0 : i32, i32
  }
  func.func @transform_16(%arg0: i32) -> (i32, i32, i32) {
    %c0_i32 = arith.constant 0 : i32
    %c0_i32_0 = arith.constant 0 : i32
    %c0_i32_1 = arith.constant 0 : i32
    %c0_i32_2 = arith.constant 0 : i32
    return %c0_i32, %c0_i32_0, %c0_i32_1 : i32, i32, i32
  }
  func.func @transform_17(%arg0: i32) -> (i32, i32, i32) {
    %c0_i32 = arith.constant 0 : i32
    %c0_i32_0 = arith.constant 0 : i32
    %c0_i32_1 = arith.constant 0 : i32
    %c0_i32_2 = arith.constant 0 : i32
    return %c0_i32, %c0_i32_0, %c0_i32_1 : i32, i32, i32
  }
  func.func @transform_18(%arg0: i32) -> (i32, i32) {
    %c0_i32 = arith.constant 0 : i32
    %c0_i32_0 = arith.constant 0 : i32
    %c0_i32_1 = arith.constant 0 : i32
    return %c0_i32, %c0_i32_0 : i32, i32
  }
  func.func @transform_19(%arg0: i32) -> (i32, i32) {
    %c0_i32 = arith.constant 0 : i32
    %c0_i32_0 = arith.constant 0 : i32
    %c0_i32_1 = arith.constant 0 : i32
    return %c0_i32, %c0_i32_0 : i32, i32
  }
  func.func @transform_20(%arg0: i32) -> (i32, i32) {
    %c0_i32 = arith.constant 0 : i32
    %c0_i32_0 = arith.constant 0 : i32
    %c0_i32_1 = arith.constant 0 : i32
    return %c0_i32, %c0_i32_0 : i32, i32
  }
  func.func @transform_21(%arg0: i32) -> (i32, i32) {
    %c0_i32 = arith.constant 0 : i32
    %c0_i32_0 = arith.constant 0 : i32
    %c0_i32_1 = arith.constant 0 : i32
    return %c0_i32, %c0_i32_0 : i32, i32
  }
  func.func @transform_22(%arg0: i32) -> (i32, i32) {
    %c0_i32 = arith.constant 0 : i32
    %c0_i32_0 = arith.constant 0 : i32
    %c0_i32_1 = arith.constant 0 : i32
    return %c0_i32, %c0_i32_0 : i32, i32
  }
  func.func @transform_23(%arg0: i32) -> (i32, i32, i32) {
    %c0_i32 = arith.constant 0 : i32
    %c0_i32_0 = arith.constant 0 : i32
    %c0_i32_1 = arith.constant 0 : i32
    return %arg0, %c0_i32, %c0_i32_0 : i32, i32, i32
  }
}

</mosaic_0001>

<llo_original>
// kernel: cnn_baseline_forward.1
$region0: #{cnn_baseline_forward.1}
  #allocation0 [shape = 'u32[]', space=smem, size = 0x4, offset = 0x4, fixed_abs, tag = 'smem constant byte address 0x4 - core index']
  #allocation1 [shape = 'u32[72,128]{1,0:T(1,128)}', space=vmem, size = 0x9000, scoped, tag = 'internal scratch']
  %s0 = inlined_call_operand.vmem [shape: bf16[2,256,32], index: 0, kind: input, shape index: {}]
  %s1 = inlined_call_operand.vmem [shape: bf16[32,32], index: 1, kind: input, shape index: {}]
  %s2 = inlined_call_operand.vmem [shape: f32[1,32], index: 2, kind: input, shape index: {}]
  %s3 = inlined_call_operand.vmem [shape: bf16[9,256,256], index: 3, kind: input, shape index: {}]
  %s4 = inlined_call_operand.vmem [shape: bf16[9,32,64], index: 4, kind: input, shape index: {}]
  %s5 = inlined_call_operand.vmem [shape: f32[1,64], index: 5, kind: input, shape index: {}]
  %s6 = inlined_call_operand.vmem [shape: bf16[9,64,256], index: 6, kind: input, shape index: {}]
  %s7 = inlined_call_operand.vmem [shape: f32[9,1,64], index: 7, kind: input, shape index: {}]
  %s8 = inlined_call_operand.vmem [shape: f32[1,64], index: 8, kind: input, shape index: {}]
  %s9 = inlined_call_operand.vmem [shape: bf16[64,128], index: 9, kind: input, shape index: {}]
  %s10 = inlined_call_operand.vmem [shape: f32[1,128], index: 10, kind: input, shape index: {}]
  %s11 = inlined_call_operand.vmem [shape: bf16[9,16,64], index: 11, kind: input, shape index: {}]
  %s12 = inlined_call_operand.vmem [shape: f32[9,1,128], index: 12, kind: input, shape index: {}]
  %s13 = inlined_call_operand.vmem [shape: f32[1,128], index: 13, kind: input, shape index: {}]
  %s14 = inlined_call_operand.vmem [shape: bf16[128,256], index: 14, kind: input, shape index: {}]
  %s15 = inlined_call_operand.vmem [shape: f32[1,256], index: 15, kind: input, shape index: {}]
  %s16 = inlined_call_operand.vmem [shape: bf16[9,4,16], index: 16, kind: input, shape index: {}]
  %s17 = inlined_call_operand.vmem [shape: f32[9,1,256], index: 17, kind: input, shape index: {}]
  %s18 = inlined_call_operand.vmem [shape: f32[1,256], index: 18, kind: input, shape index: {}]
  %s19 = inlined_call_operand.vmem [shape: bf16[256,512], index: 19, kind: input, shape index: {}]
  %s20 = inlined_call_operand.vmem [shape: f32[1,512], index: 20, kind: input, shape index: {}]
  %s21 = inlined_call_operand.vmem [shape: bf16[512,128], index: 21, kind: input, shape index: {}]
  %s22 = inlined_call_operand.vmem [shape: f32[1,128], index: 22, kind: input, shape index: {}]
  %s23 = inlined_call_operand.hbm [shape: f32[2,1,128], index: 23, kind: output, shape index: {}]
  %s24 = sld [smem:[#allocation0]]
  $region125: #{cnn_baseline_forward.1} parent=0
    _
  %s26 = ssub.s32 1, %s24
  %s27 = scalar_select 0, %s26, %s24
  $region1: #{cnn_baseline_forward.1} parent=0
    #allocation2 [shape = 'u8[1024]{0}', space=vmem, size = 0x400, scoped, tag = 'output window, operand 0']
    #allocation3 [shape = 's32[2]{0}', space=sflag, size = 0x8, scoped, tag = 'scoped memory for cnn_baseline_forward.1']
    %28 = vsyncpa [#allocation3], 0
    %s29 = scalar_lea.sflag [#allocation3], 1
    %30 = vsyncpa %s29, 0
    loop: start=0, step=1, limit=4
    $region2: #{cnn_baseline_forward.1} parent=1 // loop_pre_header
      _
    $region3: #{cnn_baseline_forward.1} parent=1 // loop_header
      %s32 = sphi 0, %s36
      %p33 = scmp.ge.s32.totalorder %s32, 4
      %s42 = sphi 0, %s44
      %s45 = sphi 0, %s42
      %s46 = sphi 0, %s45
      %s62 = sphi 0, %s46
      %s66 = sphi 0, %s66
      %s68 = sphi 0, %s66
      %s69 = sphi 0, %s68
      %s83 = sphi 0, %s69
      %s87 = sphi 0, %s87
      %s89 = sphi 0, %s87
      %s90 = sphi 0, %s89
      %s104 = sphi 0, %s90
      %s108 = sphi 0, %s108
      %s110 = sphi 0, %s108
      %s111 = sphi 0, %s110
      %s125 = sphi 0, %s111
      %s129 = sphi 0, %s129
      %s131 = sphi 0, %s129
      %s132 = sphi 0, %s131
      %s146 = sphi 0, %s132
      %s150 = sphi 0, %s150
      %s152 = sphi 0, %s150
      %s153 = sphi 0, %s152
      %s167 = sphi 0, %s153
      %s171 = sphi 0, %s171
      %s173 = sphi 0, %s171
      %s174 = sphi 0, %s173
      %s188 = sphi 0, %s174
      %s192 = sphi 0, %s192
      %s194 = sphi 0, %s192
      %s195 = sphi 0, %s194
      %s209 = sphi 0, %s195
      %s213 = sphi 0, %s213
      %s215 = sphi 0, %s213
      %s216 = sphi 0, %s215
      %s230 = sphi 0, %s216
      %s234 = sphi 0, %s234
      %s236 = sphi 0, %s234
      %s237 = sphi 0, %s236
      %s251 = sphi 0, %s237
      %s255 = sphi 0, %s255
      %s257 = sphi 0, %s255
      %s258 = sphi 0, %s257
      %s272 = sphi 0, %s258
      %s276 = sphi 0, %s276
      %s278 = sphi 0, %s276
      %s279 = sphi 0, %s278
      %s293 = sphi 0, %s279
      %s297 = sphi 0, %s297
      %s299 = sphi 0, %s297
      %s300 = sphi 0, %s299
      %s314 = sphi 0, %s300
      %s318 = sphi 0, %s318
      %s320 = sphi 0, %s318
      %s321 = sphi 0, %s320
      %s335 = sphi 0, %s321
      %s339 = sphi 0, %s339
      %s341 = sphi 0, %s339
      %s342 = sphi 0, %s341
      %s356 = sphi 0, %s342
      %s360 = sphi 0, %s360
      %s362 = sphi 0, %s360
      %s363 = sphi 0, %s362
      %s377 = sphi 0, %s363
      %s381 = sphi 0, %s381
      %s383 = sphi 0, %s381
      %s384 = sphi 0, %s383
      %s398 = sphi 0, %s384
      %s402 = sphi 0, %s402
      %s404 = sphi 0, %s402
      %s405 = sphi 0, %s404
      %s419 = sphi 0, %s405
      %s423 = sphi 0, %s423
      %s425 = sphi 0, %s423
      %s426 = sphi 0, %s425
      %s440 = sphi 0, %s426
      %s444 = sphi 0, %s444
      %s446 = sphi 0, %s444
      %s447 = sphi 0, %s446
      %s461 = sphi 0, %s447
      %s465 = sphi 0, %s465
      %s467 = sphi 0, %s465
      %s468 = sphi 0, %s467
      %s482 = sphi 0, %s468
      %s486 = sphi 0, %s486
      %s488 = sphi 0, %s486
      %s489 = sphi 0, %s488
      %s503 = sphi 0, %s489
      %s507 = sphi 0, %s507
      %s509 = sphi 0, %s507
      %s510 = sphi 0, %s509
      %s524 = sphi 0, %s510
      %s530 = sphi 0, %s532
      %s533 = sphi 0, %s530
      %s534 = sphi 0, %s533
      %s550 = sphi 0, %s534
    $region4: #{cnn_baseline_forward.1} parent=1 // loop_header_branch
      %35 = sbr.rel (%p33) target = $region8
    $region5: #{cnn_baseline_forward.1} parent=1 // loop_body
      %s37 = ssub.s32 %s32, 1
      %s38 = ssub.s32 %s32, 2
      %s39 = sadd.s32 %s32, 1
      %s40 = ssub.s32 %s32, %s39
      %p41 = scmp.eq.s32.totalorder %s40, 0
      %s43 = sadd.s32 %s42, 1
      %s44 = scalar_select %p41, %s42, %s43
      %p47 = pneg %p41
      %p48 = scmp.eq.s32.totalorder %s32, 1
      %p49 = por %p47, %p48
      %p50 = scmp.ne.s32.totalorder %s42, %s45
      %p51 = scmp.eq.s32.totalorder %s32, 0
      %p52 = por %p50, %p51
      %p53 = scmp.ne.s32.totalorder %s42, %s45
      %p54 = scmp.eq.s32.totalorder %s37, 1
      %p55 = por %p53, %p54
      %p56 = scmp.ne.s32.totalorder %s45, %s46
      %p57 = scmp.eq.s32.totalorder %s37, 0
      %p58 = por %p56, %p57
      %p59 = scmp.ne.s32.totalorder %s45, %s46
      %p60 = scmp.eq.s32.totalorder %s38, 1
      %p61 = por %p59, %p60
      %p63 = scmp.ne.s32.totalorder %s46, %s62
      %p64 = scmp.eq.s32.totalorder %s38, 0
      %p65 = por %p63, %p64
      %s67 = sadd.s32 %s66, 1
      %p70 = scmp.eq.s32.totalorder %s32, 1
      %p71 = scmp.ne.s32.totalorder %s66, %s68
      %p72 = scmp.eq.s32.totalorder %s32, 0
      %p73 = por %p71, %p72
      %p74 = scmp.ne.s32.totalorder %s66, %s68
      %p75 = scmp.eq.s32.totalorder %s37, 1
      %p76 = por %p74, %p75
      %p77 = scmp.ne.s32.totalorder %s68, %s69
      %p78 = scmp.eq.s32.totalorder %s37, 0
      %p79 = por %p77, %p78
      %p80 = scmp.ne.s32.totalorder %s68, %s69
      %p81 = scmp.eq.s32.totalorder %s38, 1
      %p82 = por %p80, %p81
      %p84 = scmp.ne.s32.totalorder %s69, %s83
      %p85 = scmp.eq.s32.totalorder %s38, 0
      %p86 = por %p84, %p85
      %s88 = sadd.s32 %s87, 1
      %p91 = scmp.eq.s32.totalorder %s32, 1
      %p92 = scmp.ne.s32.totalorder %s87, %s89
      %p93 = scmp.eq.s32.totalorder %s32, 0
      %p94 = por %p92, %p93
      %p95 = scmp.ne.s32.totalorder %s87, %s89
      %p96 = scmp.eq.s32.totalorder %s37, 1
      %p97 = por %p95, %p96
      %p98 = scmp.ne.s32.totalorder %s89, %s90
      %p99 = scmp.eq.s32.totalorder %s37, 0
      %p100 = por %p98, %p99
      %p101 = scmp.ne.s32.totalorder %s89, %s90
      %p102 = scmp.eq.s32.totalorder %s38, 1
      %p103 = por %p101, %p102
      %p105 = scmp.ne.s32.totalorder %s90, %s104
      %p106 = scmp.eq.s32.totalorder %s38, 0
      %p107 = por %p105, %p106
      %s109 = sadd.s32 %s108, 1
      %p112 = scmp.eq.s32.totalorder %s32, 1
      %p113 = scmp.ne.s32.totalorder %s108, %s110
      %p114 = scmp.eq.s32.totalorder %s32, 0
      %p115 = por %p113, %p114
      %p116 = scmp.ne.s32.totalorder %s108, %s110
      %p117 = scmp.eq.s32.totalorder %s37, 1
      %p118 = por %p116, %p117
      %p119 = scmp.ne.s32.totalorder %s110, %s111
      %p120 = scmp.eq.s32.totalorder %s37, 0
      %p121 = por %p119, %p120
      %p122 = scmp.ne.s32.totalorder %s110, %s111
      %p123 = scmp.eq.s32.totalorder %s38, 1
      %p124 = por %p122, %p123
      %p126 = scmp.ne.s32.totalorder %s111, %s125
      %p127 = scmp.eq.s32.totalorder %s38, 0
      %p128 = por %p126, %p127
      %s130 = sadd.s32 %s129, 1
      %p133 = scmp.eq.s32.totalorder %s32, 1
      %p134 = scmp.ne.s32.totalorder %s129, %s131
      %p135 = scmp.eq.s32.totalorder %s32, 0
      %p136 = por %p134, %p135
      %p137 = scmp.ne.s32.totalorder %s129, %s131
      %p138 = scmp.eq.s32.totalorder %s37, 1
      %p139 = por %p137, %p138
      %p140 = scmp.ne.s32.totalorder %s131, %s132
      %p141 = scmp.eq.s32.totalorder %s37, 0
      %p142 = por %p140, %p141
      %p143 = scmp.ne.s32.totalorder %s131, %s132
      %p144 = scmp.eq.s32.totalorder %s38, 1
      %p145 = por %p143, %p144
      %p147 = scmp.ne.s32.totalorder %s132, %s146
      %p148 = scmp.eq.s32.totalorder %s38, 0
      %p149 = por %p147, %p148
      %s151 = sadd.s32 %s150, 1
      %p154 = scmp.eq.s32.totalorder %s32, 1
      %p155 = scmp.ne.s32.totalorder %s150, %s152
      %p156 = scmp.eq.s32.totalorder %s32, 0
      %p157 = por %p155, %p156
      %p158 = scmp.ne.s32.totalorder %s150, %s152
      %p159 = scmp.eq.s32.totalorder %s37, 1
      %p160 = por %p158, %p159
      %p161 = scmp.ne.s32.totalorder %s152, %s153
      %p162 = scmp.eq.s32.totalorder %s37, 0
      %p163 = por %p161, %p162
      %p164 = scmp.ne.s32.totalorder %s152, %s153
      %p165 = scmp.eq.s32.totalorder %s38, 1
      %p166 = por %p164, %p165
      %p168 = scmp.ne.s32.totalorder %s153, %s167
      %p169 = scmp.eq.s32.totalorder %s38, 0
      %p170 = por %p168, %p169
      %s172 = sadd.s32 %s171, 1
      %p175 = scmp.eq.s32.totalorder %s32, 1
      %p176 = scmp.ne.s32.totalorder %s171, %s173
      %p177 = scmp.eq.s32.totalorder %s32, 0
      %p178 = por %p176, %p177
      %p179 = scmp.ne.s32.totalorder %s171, %s173
      %p180 = scmp.eq.s32.totalorder %s37, 1
      %p181 = por %p179, %p180
      %p182 = scmp.ne.s32.totalorder %s173, %s174
      %p183 = scmp.eq.s32.totalorder %s37, 0
      %p184 = por %p182, %p183
      %p185 = scmp.ne.s32.totalorder %s173, %s174
      %p186 = scmp.eq.s32.totalorder %s38, 1
      %p187 = por %p185, %p186
      %p189 = scmp.ne.s32.totalorder %s174, %s188
      %p190 = scmp.eq.s32.totalorder %s38, 0
      %p191 = por %p189, %p190
      %s193 = sadd.s32 %s192, 1
      %p196 = scmp.eq.s32.totalorder %s32, 1
      %p197 = scmp.ne.s32.totalorder %s192, %s194
      %p198 = scmp.eq.s32.totalorder %s32, 0
      %p199 = por %p197, %p198
      %p200 = scmp.ne.s32.totalorder %s192, %s194
      %p201 = scmp.eq.s32.totalorder %s37, 1
      %p202 = por %p200, %p201
      %p203 = scmp.ne.s32.totalorder %s194, %s195
      %p204 = scmp.eq.s32.totalorder %s37, 0
      %p205 = por %p203, %p204
      %p206 = scmp.ne.s32.totalorder %s194, %s195
      %p207 = scmp.eq.s32.totalorder %s38, 1
      %p208 = por %p206, %p207
      %p210 = scmp.ne.s32.totalorder %s195, %s209
      %p211 = scmp.eq.s32.totalorder %s38, 0
      %p212 = por %p210, %p211
      %s214 = sadd.s32 %s213, 1
      %p217 = scmp.eq.s32.totalorder %s32, 1
      %p218 = scmp.ne.s32.totalorder %s213, %s215
      %p219 = scmp.eq.s32.totalorder %s32, 0
      %p220 = por %p218, %p219
      %p221 = scmp.ne.s32.totalorder %s213, %s215
      %p222 = scmp.eq.s32.totalorder %s37, 1
      %p223 = por %p221, %p222
      %p224 = scmp.ne.s32.totalorder %s215, %s216
      %p225 = scmp.eq.s32.totalorder %s37, 0
      %p226 = por %p224, %p225
      %p227 = scmp.ne.s32.totalorder %s215, %s216
      %p228 = scmp.eq.s32.totalorder %s38, 1
      %p229 = por %p227, %p228
      %p231 = scmp.ne.s32.totalorder %s216, %s230
      %p232 = scmp.eq.s32.totalorder %s38, 0
      %p233 = por %p231, %p232
      %s235 = sadd.s32 %s234, 1
      %p238 = scmp.eq.s32.totalorder %s32, 1
      %p239 = scmp.ne.s32.totalorder %s234, %s236
      %p240 = scmp.eq.s32.totalorder %s32, 0
      %p241 = por %p239, %p240
      %p242 = scmp.ne.s32.totalorder %s234, %s236
      %p243 = scmp.eq.s32.totalorder %s37, 1
      %p244 = por %p242, %p243
      %p245 = scmp.ne.s32.totalorder %s236, %s237
      %p246 = scmp.eq.s32.totalorder %s37, 0
      %p247 = por %p245, %p246
      %p248 = scmp.ne.s32.totalorder %s236, %s237
      %p249 = scmp.eq.s32.totalorder %s38, 1
      %p250 = por %p248, %p249
      %p252 = scmp.ne.s32.totalorder %s237, %s251
      %p253 = scmp.eq.s32.totalorder %s38, 0
      %p254 = por %p252, %p253
      %s256 = sadd.s32 %s255, 1
      %p259 = scmp.eq.s32.totalorder %s32, 1
      %p260 = scmp.ne.s32.totalorder %s255, %s257
      %p261 = scmp.eq.s32.totalorder %s32, 0
      %p262 = por %p260, %p261
      %p263 = scmp.ne.s32.totalorder %s255, %s257
      %p264 = scmp.eq.s32.totalorder %s37, 1
      %p265 = por %p263, %p264
      %p266 = scmp.ne.s32.totalorder %s257, %s258
      %p267 = scmp.eq.s32.totalorder %s37, 0
      %p268 = por %p266, %p267
      %p269 = scmp.ne.s32.totalorder %s257, %s258
      %p270 = scmp.eq.s32.totalorder %s38, 1
      %p271 = por %p269, %p270
      %p273 = scmp.ne.s32.totalorder %s258, %s272
      %p274 = scmp.eq.s32.totalorder %s38, 0
      %p275 = por %p273, %p274
      %s277 = sadd.s32 %s276, 1
      %p280 = scmp.eq.s32.totalorder %s32, 1
      %p281 = scmp.ne.s32.totalorder %s276, %s278
      %p282 = scmp.eq.s32.totalorder %s32, 0
      %p283 = por %p281, %p282
      %p284 = scmp.ne.s32.totalorder %s276, %s278
      %p285 = scmp.eq.s32.totalorder %s37, 1
      %p286 = por %p284, %p285
      %p287 = scmp.ne.s32.totalorder %s278, %s279
      %p288 = scmp.eq.s32.totalorder %s37, 0
      %p289 = por %p287, %p288
      %p290 = scmp.ne.s32.totalorder %s278, %s279
      %p291 = scmp.eq.s32.totalorder %s38, 1
      %p292 = por %p290, %p291
      %p294 = scmp.ne.s32.totalorder %s279, %s293
      %p295 = scmp.eq.s32.totalorder %s38, 0
      %p296 = por %p294, %p295
      %s298 = sadd.s32 %s297, 1
      %p301 = scmp.eq.s32.totalorder %s32, 1
      %p302 = scmp.ne.s32.totalorder %s297, %s299
      %p303 = scmp.eq.s32.totalorder %s32, 0
      %p304 = por %p302, %p303
      %p305 = scmp.ne.s32.totalorder %s297, %s299
      %p306 = scmp.eq.s32.totalorder %s37, 1
      %p307 = por %p305, %p306
      %p308 = scmp.ne.s32.totalorder %s299, %s300
      %p309 = scmp.eq.s32.totalorder %s37, 0
      %p310 = por %p308, %p309
      %p311 = scmp.ne.s32.totalorder %s299, %s300
      %p312 = scmp.eq.s32.totalorder %s38, 1
      %p313 = por %p311, %p312
      %p315 = scmp.ne.s32.totalorder %s300, %s314
      %p316 = scmp.eq.s32.totalorder %s38, 0
      %p317 = por %p315, %p316
      %s319 = sadd.s32 %s318, 1
      %p322 = scmp.eq.s32.totalorder %s32, 1
      %p323 = scmp.ne.s32.totalorder %s318, %s320
      %p324 = scmp.eq.s32.totalorder %s32, 0
      %p325 = por %p323, %p324
      %p326 = scmp.ne.s32.totalorder %s318, %s320
      %p327 = scmp.eq.s32.totalorder %s37, 1
      %p328 = por %p326, %p327
      %p329 = scmp.ne.s32.totalorder %s320, %s321
      %p330 = scmp.eq.s32.totalorder %s37, 0
      %p331 = por %p329, %p330
      %p332 = scmp.ne.s32.totalorder %s320, %s321
      %p333 = scmp.eq.s32.totalorder %s38, 1
      %p334 = por %p332, %p333
      %p336 = scmp.ne.s32.totalorder %s321, %s335
      %p337 = scmp.eq.s32.totalorder %s38, 0
      %p338 = por %p336, %p337
      %s340 = sadd.s32 %s339, 1
      %p343 = scmp.eq.s32.totalorder %s32, 1
      %p344 = scmp.ne.s32.totalorder %s339, %s341
      %p345 = scmp.eq.s32.totalorder %s32, 0
      %p346 = por %p344, %p345
      %p347 = scmp.ne.s32.totalorder %s339, %s341
      %p348 = scmp.eq.s32.totalorder %s37, 1
      %p349 = por %p347, %p348
      %p350 = scmp.ne.s32.totalorder %s341, %s342
      %p351 = scmp.eq.s32.totalorder %s37, 0
      %p352 = por %p350, %p351
      %p353 = scmp.ne.s32.totalorder %s341, %s342
      %p354 = scmp.eq.s32.totalorder %s38, 1
      %p355 = por %p353, %p354
      %p357 = scmp.ne.s32.totalorder %s342, %s356
      %p358 = scmp.eq.s32.totalorder %s38, 0
      %p359 = por %p357, %p358
      %s361 = sadd.s32 %s360, 1
      %p364 = scmp.eq.s32.totalorder %s32, 1
      %p365 = scmp.ne.s32.totalorder %s360, %s362
      %p366 = scmp.eq.s32.totalorder %s32, 0
      %p367 = por %p365, %p366
      %p368 = scmp.ne.s32.totalorder %s360, %s362
      %p369 = scmp.eq.s32.totalorder %s37, 1
      %p370 = por %p368, %p369
      %p371 = scmp.ne.s32.totalorder %s362, %s363
      %p372 = scmp.eq.s32.totalorder %s37, 0
      %p373 = por %p371, %p372
      %p374 = scmp.ne.s32.totalorder %s362, %s363
      %p375 = scmp.eq.s32.totalorder %s38, 1
      %p376 = por %p374, %p375
      %p378 = scmp.ne.s32.totalorder %s363, %s377
      %p379 = scmp.eq.s32.totalorder %s38, 0
      %p380 = por %p378, %p379
      %s382 = sadd.s32 %s381, 1
      %p385 = scmp.eq.s32.totalorder %s32, 1
      %p386 = scmp.ne.s32.totalorder %s381, %s383
      %p387 = scmp.eq.s32.totalorder %s32, 0
      %p388 = por %p386, %p387
      %p389 = scmp.ne.s32.totalorder %s381, %s383
      %p390 = scmp.eq.s32.totalorder %s37, 1
      %p391 = por %p389, %p390
      %p392 = scmp.ne.s32.totalorder %s383, %s384
      %p393 = scmp.eq.s32.totalorder %s37, 0
      %p394 = por %p392, %p393
      %p395 = scmp.ne.s32.totalorder %s383, %s384
      %p396 = scmp.eq.s32.totalorder %s38, 1
      %p397 = por %p395, %p396
      %p399 = scmp.ne.s32.totalorder %s384, %s398
      %p400 = scmp.eq.s32.totalorder %s38, 0
      %p401 = por %p399, %p400
      %s403 = sadd.s32 %s402, 1
      %p406 = scmp.eq.s32.totalorder %s32, 1
      %p407 = scmp.ne.s32.totalorder %s402, %s404
      %p408 = scmp.eq.s32.totalorder %s32, 0
      %p409 = por %p407, %p408
      %p410 = scmp.ne.s32.totalorder %s402, %s404
      %p411 = scmp.eq.s32.totalorder %s37, 1
      %p412 = por %p410, %p411
      %p413 = scmp.ne.s32.totalorder %s404, %s405
      %p414 = scmp.eq.s32.totalorder %s37, 0
      %p415 = por %p413, %p414
      %p416 = scmp.ne.s32.totalorder %s404, %s405
      %p417 = scmp.eq.s32.totalorder %s38, 1
      %p418 = por %p416, %p417
      %p420 = scmp.ne.s32.totalorder %s405, %s419
      %p421 = scmp.eq.s32.totalorder %s38, 0
      %p422 = por %p420, %p421
      %s424 = sadd.s32 %s423, 1
      %p427 = scmp.eq.s32.totalorder %s32, 1
      %p428 = scmp.ne.s32.totalorder %s423, %s425
      %p429 = scmp.eq.s32.totalorder %s32, 0
      %p430 = por %p428, %p429
      %p431 = scmp.ne.s32.totalorder %s423, %s425
      %p432 = scmp.eq.s32.totalorder %s37, 1
      %p433 = por %p431, %p432
      %p434 = scmp.ne.s32.totalorder %s425, %s426
      %p435 = scmp.eq.s32.totalorder %s37, 0
      %p436 = por %p434, %p435
      %p437 = scmp.ne.s32.totalorder %s425, %s426
      %p438 = scmp.eq.s32.totalorder %s38, 1
      %p439 = por %p437, %p438
      %p441 = scmp.ne.s32.totalorder %s426, %s440
      %p442 = scmp.eq.s32.totalorder %s38, 0
      %p443 = por %p441, %p442
      %s445 = sadd.s32 %s444, 1
      %p448 = scmp.eq.s32.totalorder %s32, 1
      %p449 = scmp.ne.s32.totalorder %s444, %s446
      %p450 = scmp.eq.s32.totalorder %s32, 0
      %p451 = por %p449, %p450
      %p452 = scmp.ne.s32.totalorder %s444, %s446
      %p453 = scmp.eq.s32.totalorder %s37, 1
      %p454 = por %p452, %p453
      %p455 = scmp.ne.s32.totalorder %s446, %s447
      %p456 = scmp.eq.s32.totalorder %s37, 0
      %p457 = por %p455, %p456
      %p458 = scmp.ne.s32.totalorder %s446, %s447
      %p459 = scmp.eq.s32.totalorder %s38, 1
      %p460 = por %p458, %p459
      %p462 = scmp.ne.s32.totalorder %s447, %s461
      %p463 = scmp.eq.s32.totalorder %s38, 0
      %p464 = por %p462, %p463
      %s466 = sadd.s32 %s465, 1
      %p469 = scmp.eq.s32.totalorder %s32, 1
      %p470 = scmp.ne.s32.totalorder %s465, %s467
      %p471 = scmp.eq.s32.totalorder %s32, 0
      %p472 = por %p470, %p471
      %p473 = scmp.ne.s32.totalorder %s465, %s467
      %p474 = scmp.eq.s32.totalorder %s37, 1
      %p475 = por %p473, %p474
      %p476 = scmp.ne.s32.totalorder %s467, %s468
      %p477 = scmp.eq.s32.totalorder %s37, 0
      %p478 = por %p476, %p477
      %p479 = scmp.ne.s32.totalorder %s467, %s468
      %p480 = scmp.eq.s32.totalorder %s38, 1
      %p481 = por %p479, %p480
      %p483 = scmp.ne.s32.totalorder %s468, %s482
      %p484 = scmp.eq.s32.totalorder %s38, 0
      %p485 = por %p483, %p484
      %s487 = sadd.s32 %s486, 1
      %p490 = scmp.eq.s32.totalorder %s32, 1
      %p491 = scmp.ne.s32.totalorder %s486, %s488
      %p492 = scmp.eq.s32.totalorder %s32, 0
      %p493 = por %p491, %p492
      %p494 = scmp.ne.s32.totalorder %s486, %s488
      %p495 = scmp.eq.s32.totalorder %s37, 1
      %p496 = por %p494, %p495
      %p497 = scmp.ne.s32.totalorder %s488, %s489
      %p498 = scmp.eq.s32.totalorder %s37, 0
      %p499 = por %p497, %p498
      %p500 = scmp.ne.s32.totalorder %s488, %s489
      %p501 = scmp.eq.s32.totalorder %s38, 1
      %p502 = por %p500, %p501
      %p504 = scmp.ne.s32.totalorder %s489, %s503
      %p505 = scmp.eq.s32.totalorder %s38, 0
      %p506 = por %p504, %p505
      %s508 = sadd.s32 %s507, 1
      %p511 = scmp.eq.s32.totalorder %s32, 1
      %p512 = scmp.ne.s32.totalorder %s507, %s509
      %p513 = scmp.eq.s32.totalorder %s32, 0
      %p514 = por %p512, %p513
      %p515 = scmp.ne.s32.totalorder %s507, %s509
      %p516 = scmp.eq.s32.totalorder %s37, 1
      %p517 = por %p515, %p516
      %p518 = scmp.ne.s32.totalorder %s509, %s510
      %p519 = scmp.eq.s32.totalorder %s37, 0
      %p520 = por %p518, %p519
      %p521 = scmp.ne.s32.totalorder %s509, %s510
      %p522 = scmp.eq.s32.totalorder %s38, 1
      %p523 = por %p521, %p522
      %p525 = scmp.ne.s32.totalorder %s510, %s524
      %p526 = scmp.eq.s32.totalorder %s38, 0
      %p527 = por %p525, %p526
      %s528 = ssub.s32 %s32, %s39
      %p529 = scmp.eq.s32.totalorder %s528, 0
      %s531 = sadd.s32 %s530, 1
      %s532 = scalar_select %p529, %s530, %s531
      %p535 = pneg %p529
      %p536 = scmp.eq.s32.totalorder %s32, 1
      %p537 = por %p535, %p536
      %p538 = scmp.ne.s32.totalorder %s530, %s533
      %p539 = scmp.eq.s32.totalorder %s32, 0
      %p540 = por %p538, %p539
      %p541 = scmp.ne.s32.totalorder %s530, %s533
      %p542 = scmp.eq.s32.totalorder %s37, 1
      %p543 = por %p541, %p542
      %p544 = scmp.ne.s32.totalorder %s533, %s534
      %p545 = scmp.eq.s32.totalorder %s37, 0
      %p546 = por %p544, %p545
      %p547 = scmp.ne.s32.totalorder %s533, %s534
      %p548 = scmp.eq.s32.totalorder %s38, 1
      %p549 = por %p547, %p548
      %p551 = scmp.ne.s32.totalorder %s534, %s550
      %p552 = scmp.eq.s32.totalorder %s38, 0
      %p553 = por %p551, %p552
      %p554 = scmp.le.s32.totalorder 1, %s32
      %p555 = scmp.lt.s32.totalorder %s32, 3
      %p556 = pnand %p554, %p555
      %p557 = pneg %p556
      // Predicated region
      $region9: #{cnn_baseline_forward.1} parent=5 // pred_check
        _
      $region10: #{cnn_baseline_forward.1} parent=5 // pred_check_branch
        %559 = sbr.rel (%p556) target = $region12
      $region11: #{cnn_baseline_forward.1} parent=5 // pred_region
        %s560 = ssub.s32 %s32, 1
        // Predicated region
        $region13: #{cnn_baseline_forward.1} parent=11 // pred_check
          %p561 = pneg %p79
        $region14: #{cnn_baseline_forward.1} parent=11 // pred_check_branch
          %563 = sbr.rel (%p561) target = $region16
        $region15: #{cnn_baseline_forward.1} parent=11 // pred_region
          _
        $region16: #{cnn_baseline_forward.1} parent=11 // pred_fallthru
          _
        // Predicated region
        $region17: #{cnn_baseline_forward.1} parent=11 // pred_check
          %p564 = pneg %p100
        $region18: #{cnn_baseline_forward.1} parent=11 // pred_check_branch
          %566 = sbr.rel (%p564) target = $region20
        $region19: #{cnn_baseline_forward.1} parent=11 // pred_region
          _
        $region20: #{cnn_baseline_forward.1} parent=11 // pred_fallthru
          _
        // Predicated region
        $region21: #{cnn_baseline_forward.1} parent=11 // pred_check
          %p567 = pneg %p121
        $region22: #{cnn_baseline_forward.1} parent=11 // pred_check_branch
          %569 = sbr.rel (%p567) target = $region24
        $region23: #{cnn_baseline_forward.1} parent=11 // pred_region
          _
        $region24: #{cnn_baseline_forward.1} parent=11 // pred_fallthru
          _
        // Predicated region
        $region25: #{cnn_baseline_forward.1} parent=11 // pred_check
          %p570 = pneg %p142
        $region26: #{cnn_baseline_forward.1} parent=11 // pred_check_branch
          %572 = sbr.rel (%p570) target = $region28
        $region27: #{cnn_baseline_forward.1} parent=11 // pred_region
          _
        $region28: #{cnn_baseline_forward.1} parent=11 // pred_fallthru
          _
        // Predicated region
        $region29: #{cnn_baseline_forward.1} parent=11 // pred_check
          %p573 = pneg %p163
        $region30: #{cnn_baseline_forward.1} parent=11 // pred_check_branch
          %575 = sbr.rel (%p573) target = $region32
        $region31: #{cnn_baseline_forward.1} parent=11 // pred_region
          _
        $region32: #{cnn_baseline_forward.1} parent=11 // pred_fallthru
          _
        // Predicated region
        $region33: #{cnn_baseline_forward.1} parent=11 // pred_check
          %p576 = pneg %p184
        $region34: #{cnn_baseline_forward.1} parent=11 // pred_check_branch
          %578 = sbr.rel (%p576) target = $region36
        $region35: #{cnn_baseline_forward.1} parent=11 // pred_region
          _
        $region36: #{cnn_baseline_forward.1} parent=11 // pred_fallthru
          _
        // Predicated region
        $region37: #{cnn_baseline_forward.1} parent=11 // pred_check
          %p579 = pneg %p205
        $region38: #{cnn_baseline_forward.1} parent=11 // pred_check_branch
          %581 = sbr.rel (%p579) target = $region40
        $region39: #{cnn_baseline_forward.1} parent=11 // pred_region
          _
        $region40: #{cnn_baseline_forward.1} parent=11 // pred_fallthru
          _
        // Predicated region
        $region41: #{cnn_baseline_forward.1} parent=11 // pred_check
          %p582 = pneg %p226
        $region42: #{cnn_baseline_forward.1} parent=11 // pred_check_branch
          %584 = sbr.rel (%p582) target = $region44
        $region43: #{cnn_baseline_forward.1} parent=11 // pred_region
          _
        $region44: #{cnn_baseline_forward.1} parent=11 // pred_fallthru
          _
        // Predicated region
        $region45: #{cnn_baseline_forward.1} parent=11 // pred_check
          %p585 = pneg %p247
        $region46: #{cnn_baseline_forward.1} parent=11 // pred_check_branch
          %587 = sbr.rel (%p585) target = $region48
        $region47: #{cnn_baseline_forward.1} parent=11 // pred_region
          _
        $region48: #{cnn_baseline_forward.1} parent=11 // pred_fallthru
          _
        // Predicated region
        $region49: #{cnn_baseline_forward.1} parent=11 // pred_check
          %p588 = pneg %p268
        $region50: #{cnn_baseline_forward.1} parent=11 // pred_check_branch
          %590 = sbr.rel (%p588) target = $region52
        $region51: #{cnn_baseline_forward.1} parent=11 // pred_region
          _
        $region52: #{cnn_baseline_forward.1} parent=11 // pred_fallthru
          _
        // Predicated region
        $region53: #{cnn_baseline_forward.1} parent=11 // pred_check
          %p591 = pneg %p289
        $region54: #{cnn_baseline_forward.1} parent=11 // pred_check_branch
          %593 = sbr.rel (%p591) target = $region56
        $region55: #{cnn_baseline_forward.1} parent=11 // pred_region
          _
        $region56: #{cnn_baseline_forward.1} parent=11 // pred_fallthru
          _
        // Predicated region
        $region57: #{cnn_baseline_forward.1} parent=11 // pred_check
          %p594 = pneg %p310
        $region58: #{cnn_baseline_forward.1} parent=11 // pred_check_branch
          %596 = sbr.rel (%p594) target = $region60
        $region59: #{cnn_baseline_forward.1} parent=11 // pred_region
          _
        $region60: #{cnn_baseline_forward.1} parent=11 // pred_fallthru
          _
        // Predicated region
        $region61: #{cnn_baseline_forward.1} parent=11 // pred_check
          %p597 = pneg %p331
        $region62: #{cnn_baseline_forward.1} parent=11 // pred_check_branch
          %599 = sbr.rel (%p597) target = $region64
        $region63: #{cnn_baseline_forward.1} parent=11 // pred_region
          _
        $region64: #{cnn_baseline_forward.1} parent=11 // pred_fallthru
          _
        // Predicated region
        $region65: #{cnn_baseline_forward.1} parent=11 // pred_check
          %p600 = pneg %p352
        $region66: #{cnn_baseline_forward.1} parent=11 // pred_check_branch
          %602 = sbr.rel (%p600) target = $region68
        $region67: #{cnn_baseline_forward.1} parent=11 // pred_region
          _
        $region68: #{cnn_baseline_forward.1} parent=11 // pred_fallthru
          _
        // Predicated region
        $region69: #{cnn_baseline_forward.1} parent=11 // pred_check
          %p603 = pneg %p373
        $region70: #{cnn_baseline_forward.1} parent=11 // pred_check_branch
          %605 = sbr.rel (%p603) target = $region72
        $region71: #{cnn_baseline_forward.1} parent=11 // pred_region
          _
        $region72: #{cnn_baseline_forward.1} parent=11 // pred_fallthru
          _
        // Predicated region
        $region73: #{cnn_baseline_forward.1} parent=11 // pred_check
          %p606 = pneg %p394
        $region74: #{cnn_baseline_forward.1} parent=11 // pred_check_branch
          %608 = sbr.rel (%p606) target = $region76
        $region75: #{cnn_baseline_forward.1} parent=11 // pred_region
          _
        $region76: #{cnn_baseline_forward.1} parent=11 // pred_fallthru
          _
        // Predicated region
        $region77: #{cnn_baseline_forward.1} parent=11 // pred_check
          %p609 = pneg %p415
        $region78: #{cnn_baseline_forward.1} parent=11 // pred_check_branch
          %611 = sbr.rel (%p609) target = $region80
        $region79: #{cnn_baseline_forward.1} parent=11 // pred_region
          _
        $region80: #{cnn_baseline_forward.1} parent=11 // pred_fallthru
          _
        // Predicated region
        $region81: #{cnn_baseline_forward.1} parent=11 // pred_check
          %p612 = pneg %p436
        $region82: #{cnn_baseline_forward.1} parent=11 // pred_check_branch
          %614 = sbr.rel (%p612) target = $region84
        $region83: #{cnn_baseline_forward.1} parent=11 // pred_region
          _
        $region84: #{cnn_baseline_forward.1} parent=11 // pred_fallthru
          _
        // Predicated region
        $region85: #{cnn_baseline_forward.1} parent=11 // pred_check
          %p615 = pneg %p457
        $region86: #{cnn_baseline_forward.1} parent=11 // pred_check_branch
          %617 = sbr.rel (%p615) target = $region88
        $region87: #{cnn_baseline_forward.1} parent=11 // pred_region
          _
        $region88: #{cnn_baseline_forward.1} parent=11 // pred_fallthru
          _
        // Predicated region
        $region89: #{cnn_baseline_forward.1} parent=11 // pred_check
          %p618 = pneg %p478
        $region90: #{cnn_baseline_forward.1} parent=11 // pred_check_branch
          %620 = sbr.rel (%p618) target = $region92
        $region91: #{cnn_baseline_forward.1} parent=11 // pred_region
          _
        $region92: #{cnn_baseline_forward.1} parent=11 // pred_fallthru
          _
        // Predicated region
        $region93: #{cnn_baseline_forward.1} parent=11 // pred_check
          %p621 = pneg %p499
        $region94: #{cnn_baseline_forward.1} parent=11 // pred_check_branch
          %623 = sbr.rel (%p621) target = $region96
        $region95: #{cnn_baseline_forward.1} parent=11 // pred_region
          _
        $region96: #{cnn_baseline_forward.1} parent=11 // pred_fallthru
          _
        // Predicated region
        $region97: #{cnn_baseline_forward.1} parent=11 // pred_check
          %p624 = pneg %p520
        $region98: #{cnn_baseline_forward.1} parent=11 // pred_check_branch
          %626 = sbr.rel (%p624) target = $region100
        $region99: #{cnn_baseline_forward.1} parent=11 // pred_region
          _
        $region100: #{cnn_baseline_forward.1} parent=11 // pred_fallthru
          _
      $region12: #{cnn_baseline_forward.1} parent=5 // pred_fallthru
        _
      %p627 = scmp.lt.s32.totalorder %s32, 2
      // Predicated region
      $region101: #{cnn_baseline_forward.1} parent=5 // pred_check
        %p628 = pneg %p627
      $region102: #{cnn_baseline_forward.1} parent=5 // pred_check_branch
        %630 = sbr.rel (%p628) target = $region104
      $region103: #{cnn_baseline_forward.1} parent=5 // pred_region
        // Predicated region
        $region105: #{cnn_baseline_forward.1} parent=103 // pred_check
          %p631 = pneg %p52
        $region106: #{cnn_baseline_forward.1} parent=103 // pred_check_branch
          %633 = sbr.rel (%p631) target = $region108
        $region107: #{cnn_baseline_forward.1} parent=103 // pred_region
          %p634 = scmp.lt.s32.totalorder %s32, 1
          %s635 = scalar_select %p634, %s32, 1
          %s636 = smul.addr %s635, 32
          %s637 = smul.addr %s636, 4
          %s638 = scalar_lea.vmem %s0, %s637
        $region108: #{cnn_baseline_forward.1} parent=103 // pred_fallthru
          _
      $region104: #{cnn_baseline_forward.1} parent=5 // pred_fallthru
        _
      %p639 = scmp.le.s32.totalorder 1, %s32
      %p640 = scmp.lt.s32.totalorder %s32, 3
      %p641 = pnand %p639, %p640
      %p642 = pneg %p641
      // Predicated region
      $region109: #{cnn_baseline_forward.1} parent=5 // pred_check
        _
      $region110: #{cnn_baseline_forward.1} parent=5 // pred_check_branch
        %644 = sbr.rel (%p641) target = $region112
      $region111: #{cnn_baseline_forward.1} parent=5 // pred_region
        %s645 = ssub.s32 %s32, 1
        %p646 = scmp.lt.s32.totalorder %s37, 1
        %s647 = scalar_select %p646, %s37, 1
        %s648 = smul.addr %s647, 32
        %s649 = smul.addr %s648, 4
        %s650 = scalar_lea.vmem %s0, %s649
        %p651 = pneg %p58
        %p652 = pneg %p55
        %p653 = pneg %p79
        %p654 = pneg %p76
        %p655 = pneg %p100
        %p656 = pneg %p97
        %p657 = pneg %p121
        %p658 = pneg %p118
        %p659 = pneg %p142
        %p660 = pneg %p139
        %p661 = pneg %p163
        %p662 = pneg %p160
        %p663 = pneg %p184
        %p664 = pneg %p181
        %p665 = pneg %p205
        %p666 = pneg %p202
        %p667 = pneg %p226
        %p668 = pneg %p223
        %p669 = pneg %p247
        %p670 = pneg %p244
        %p671 = pneg %p268
        %p672 = pneg %p265
        %p673 = pneg %p289
        %p674 = pneg %p286
        %p675 = pneg %p310
        %p676 = pneg %p307
        %p677 = pneg %p331
        %p678 = pneg %p328
        %p679 = pneg %p352
        %p680 = pneg %p349
        %p681 = pneg %p373
        %p682 = pneg %p370
        %p683 = pneg %p394
        %p684 = pneg %p391
        %p685 = pneg %p415
        %p686 = pneg %p412
        %p687 = pneg %p436
        %p688 = pneg %p433
        %p689 = pneg %p457
        %p690 = pneg %p454
        %p691 = pneg %p478
        %p692 = pneg %p475
        %p693 = pneg %p499
        %p694 = pneg %p496
        %p695 = pneg %p520
        %p696 = pneg %p517
        %p697 = pneg %p546
        %p698 = pneg %p543
        %s699 = sand.u32 %s533, 1
        %s700 = scalar_lea.sflag [#allocation3], %s699
        %s701 = sand.u32 %s533, 1
        %s702 = scalar_lea.vmem [#allocation2], %s701
        %p703 = scmp.lt.s32.totalorder %s37, 1
        %s704 = scalar_select %p703, %s37, 1
        %s705 = smul.addr %s704, 32
        %s706 = smul.addr %s705, 4
        %s707 = scalar_lea.vmem %s0, %s706
        %v709 = vld [vmem:[%s707] sm:$0xf]
        %v710 = vld [vmem:[%s707 + $0x4] sm:$0xf]
        %v711 = vld [vmem:[%s707 + $0x8] sm:$0xf]
        %v712 = vld [vmem:[%s707 + $0xc] sm:$0xf]
        %v713 = vld [vmem:[%s707 + $0x10] sm:$0xf]
        %v714 = vld [vmem:[%s707 + $0x14] sm:$0xf]
        %v715 = vld [vmem:[%s707 + $0x18] sm:$0xf]
        %v716 = vld [vmem:[%s707 + $0x1c] sm:$0xf]
        %v717 = vld [vmem:[%s707 + $0x20] sm:$0xf]
        %v718 = vld [vmem:[%s707 + $0x24] sm:$0xf]
        %v719 = vld [vmem:[%s707 + $0x28] sm:$0xf]
        %v720 = vld [vmem:[%s707 + $0x2c] sm:$0xf]
        %v721 = vld [vmem:[%s707 + $0x30] sm:$0xf]
        %v722 = vld [vmem:[%s707 + $0x34] sm:$0xf]
        %v723 = vld [vmem:[%s707 + $0x38] sm:$0xf]
        %v724 = vld [vmem:[%s707 + $0x3c] sm:$0xf]
        %v725 = vld [vmem:[%s707 + $0x40] sm:$0xf]
        %v726 = vld [vmem:[%s707 + $0x44] sm:$0xf]
        %v727 = vld [vmem:[%s707 + $0x48] sm:$0xf]
        %v728 = vld [vmem:[%s707 + $0x4c] sm:$0xf]
        %v729 = vld [vmem:[%s707 + $0x50] sm:$0xf]
        %v730 = vld [vmem:[%s707 + $0x54] sm:$0xf]
        %v731 = vld [vmem:[%s707 + $0x58] sm:$0xf]
        %v732 = vld [vmem:[%s707 + $0x5c] sm:$0xf]
        %v733 = vld [vmem:[%s707 + $0x60] sm:$0xf]
        %v734 = vld [vmem:[%s707 + $0x64] sm:$0xf]
        %v735 = vld [vmem:[%s707 + $0x68] sm:$0xf]
        %v736 = vld [vmem:[%s707 + $0x6c] sm:$0xf]
        %v737 = vld [vmem:[%s707 + $0x70] sm:$0xf]
        %v738 = vld [vmem:[%s707 + $0x74] sm:$0xf]
        %v739 = vld [vmem:[%s707 + $0x78] sm:$0xf]
        %v740 = vld [vmem:[%s707 + $0x7c] sm:$0xf]
        %v741 = vld [vmem:[%s1] sm:$0xf]
        %v742 = vld [vmem:[%s1 + $0x4] sm:$0xf]
        %v743 = vld [vmem:[%s1 + $0x8] sm:$0xf]
        %v744 = vld [vmem:[%s1 + $0xc] sm:$0xf]
        %v745 = vld [vmem:[%s2] sm:$0x1]
        %v747 = vperm.slane %v745, 0
        %v781 = vunpack.c.l.b16 %v709
        %v782 = vunpack.c.l.b16 %v710
        %v783 = vunpack.c.l.b16 %v711
        %v784 = vunpack.c.l.b16 %v712
        %v785 = vunpack.c.l.b16 %v713
        %v786 = vunpack.c.l.b16 %v714
        %v787 = vunpack.c.l.b16 %v715
        %v788 = vunpack.c.l.b16 %v716
        %v789 = vunpack.c.l.b16 %v717
        %v790 = vunpack.c.l.b16 %v718
        %v791 = vunpack.c.l.b16 %v719
        %v792 = vunpack.c.l.b16 %v720
        %v793 = vunpack.c.l.b16 %v721
        %v794 = vunpack.c.l.b16 %v722
        %v795 = vunpack.c.l.b16 %v723
        %v796 = vunpack.c.l.b16 %v724
        %v797 = vunpack.c.l.b16 %v725
        %v798 = vunpack.c.l.b16 %v726
        %v799 = vunpack.c.l.b16 %v727
        %v800 = vunpack.c.l.b16 %v728
        %v801 = vunpack.c.l.b16 %v729
        %v802 = vunpack.c.l.b16 %v730
        %v803 = vunpack.c.l.b16 %v731
        %v804 = vunpack.c.l.b16 %v732
        %v805 = vunpack.c.l.b16 %v733
        %v806 = vunpack.c.l.b16 %v734
        %v807 = vunpack.c.l.b16 %v735
        %v808 = vunpack.c.l.b16 %v736
        %v809 = vunpack.c.l.b16 %v737
        %v810 = vunpack.c.l.b16 %v738
        %v811 = vunpack.c.l.b16 %v739
        %v812 = vunpack.c.l.b16 %v740
        %v813 = vpack.c.b16 %v782, %v781
        %v814 = vpack.c.b16 %v784, %v783
        %v815 = vpack.c.b16 %v786, %v785
        %v816 = vpack.c.b16 %v788, %v787
        %v817 = vpack.c.b16 %v790, %v789
        %v818 = vpack.c.b16 %v792, %v791
        %v819 = vpack.c.b16 %v794, %v793
        %v820 = vpack.c.b16 %v796, %v795
        %v821 = vpack.c.b16 %v798, %v797
        %v822 = vpack.c.b16 %v800, %v799
        %v823 = vpack.c.b16 %v802, %v801
        %v824 = vpack.c.b16 %v804, %v803
        %v825 = vpack.c.b16 %v806, %v805
        %v826 = vpack.c.b16 %v808, %v807
        %v827 = vpack.c.b16 %v810, %v809
        %v828 = vpack.c.b16 %v812, %v811
        %v833 = vunpack.c.l.b16 %v741
        %v834 = vunpack.c.l.b16 %v742
        %v835 = vunpack.c.l.b16 %v743
        %v836 = vunpack.c.l.b16 %v744
        %v837 = vpack.c.b16 %v834, %v833
        %v838 = vpack.c.b16 %v836, %v835
        %vm841 = vcmask 261120
        %v843 = vsel %vm841, %v813, 0
        %v846 = vsel %vm841, %v814, 0
        %v849 = vsel %vm841, %v815, 0
        %v852 = vsel %vm841, %v816, 0
        %v855 = vsel %vm841, %v817, 0
        %v858 = vsel %vm841, %v818, 0
        %v861 = vsel %vm841, %v819, 0
        %v864 = vsel %vm841, %v820, 0
        %v867 = vsel %vm841, %v821, 0
        %v870 = vsel %vm841, %v822, 0
        %v873 = vsel %vm841, %v823, 0
        %v876 = vsel %vm841, %v824, 0
        %v879 = vsel %vm841, %v825, 0
        %v882 = vsel %vm841, %v826, 0
        %v885 = vsel %vm841, %v827, 0
        %v888 = vsel %vm841, %v828, 0
        %890 = vmatpush.bf16.msra.mxu0 0
        %891 = vmatpush.bf16.msra.mxu0 0
        %892 = vmatpush.bf16.msra.mxu0 0
        %893 = vmatpush.bf16.msra.mxu0 0
        %894 = vmatpush.bf16.msra.mxu0 0
        %895 = vmatpush.bf16.msra.mxu0 0
        %896 = vmatpush.bf16.msra.mxu0 %v838
        %897 = vmatpush.bf16.msra.mxu0 %v837
        %898 = vmatmul.bf16.gmra.mxu0 %v843
        %v899 = vpop.f32.mrf.mxu0
        %v900 = vadd.f32 %v747, %v899
        %v901 = vpop.f32.mrf.mxu0
        %v902 = vadd.f32 %v747, %v901
        %903 = vmatmul.bf16.gmra.mxu0 %v846
        %v904 = vpop.f32.mrf.mxu0
        %v905 = vadd.f32 %v747, %v904
        %v906 = vpop.f32.mrf.mxu0
        %v907 = vadd.f32 %v747, %v906
        %908 = vmatmul.bf16.gmra.mxu0 %v849
        %v909 = vpop.f32.mrf.mxu0
        %v910 = vadd.f32 %v747, %v909
        %v911 = vpop.f32.mrf.mxu0
        %v912 = vadd.f32 %v747, %v911
        %913 = vmatmul.bf16.gmra.mxu0 %v852
        %v914 = vpop.f32.mrf.mxu0
        %v915 = vadd.f32 %v747, %v914
        %v916 = vpop.f32.mrf.mxu0
        %v917 = vadd.f32 %v747, %v916
        %918 = vmatmul.bf16.gmra.mxu0 %v855
        %v919 = vpop.f32.mrf.mxu0
        %v920 = vadd.f32 %v747, %v919
        %v921 = vpop.f32.mrf.mxu0
        %v922 = vadd.f32 %v747, %v921
        %923 = vmatmul.bf16.gmra.mxu0 %v858
        %v924 = vpop.f32.mrf.mxu0
        %v925 = vadd.f32 %v747, %v924
        %v926 = vpop.f32.mrf.mxu0
        %v927 = vadd.f32 %v747, %v926
        %928 = vmatmul.bf16.gmra.mxu0 %v861
        %v929 = vpop.f32.mrf.mxu0
        %v930 = vadd.f32 %v747, %v929
        %v931 = vpop.f32.mrf.mxu0
        %v932 = vadd.f32 %v747, %v931
        %933 = vmatmul.bf16.gmra.mxu0 %v864
        %v934 = vpop.f32.mrf.mxu0
        %v935 = vadd.f32 %v747, %v934
        %v936 = vpop.f32.mrf.mxu0
        %v937 = vadd.f32 %v747, %v936
        %938 = vmatmul.bf16.gmra.mxu0 %v867
        %v939 = vpop.f32.mrf.mxu0
        %v940 = vadd.f32 %v747, %v939
        %v941 = vpop.f32.mrf.mxu0
        %v942 = vadd.f32 %v747, %v941
        %943 = vmatmul.bf16.gmra.mxu0 %v870
        %v944 = vpop.f32.mrf.mxu0
        %v945 = vadd.f32 %v747, %v944
        %v946 = vpop.f32.mrf.mxu0
        %v947 = vadd.f32 %v747, %v946
        %948 = vmatmul.bf16.gmra.mxu0 %v873
        %v949 = vpop.f32.mrf.mxu0
        %v950 = vadd.f32 %v747, %v949
        %v951 = vpop.f32.mrf.mxu0
        %v952 = vadd.f32 %v747, %v951
        %953 = vmatmul.bf16.gmra.mxu0 %v876
        %v954 = vpop.f32.mrf.mxu0
        %v955 = vadd.f32 %v747, %v954
        %v956 = vpop.f32.mrf.mxu0
        %v957 = vadd.f32 %v747, %v956
        %958 = vmatmul.bf16.gmra.mxu0 %v879
        %v959 = vpop.f32.mrf.mxu0
        %v960 = vadd.f32 %v747, %v959
        %v961 = vpop.f32.mrf.mxu0
        %v962 = vadd.f32 %v747, %v961
        %963 = vmatmul.bf16.gmra.mxu0 %v882
        %v964 = vpop.f32.mrf.mxu0
        %v965 = vadd.f32 %v747, %v964
        %v966 = vpop.f32.mrf.mxu0
        %v967 = vadd.f32 %v747, %v966
        %968 = vmatmul.bf16.gmra.mxu0 %v885
        %v969 = vpop.f32.mrf.mxu0
        %v970 = vadd.f32 %v747, %v969
        %v971 = vpop.f32.mrf.mxu0
        %v972 = vadd.f32 %v747, %v971
        %973 = vmatmul.bf16.gmra.mxu0 %v888
        %v974 = vpop.f32.mrf.mxu0
        %v975 = vadd.f32 %v747, %v974
        %v976 = vpop.f32.mrf.mxu0
        %v977 = vadd.f32 %v747, %v976
        %978 = vdwg.mxu0
        %v979 = vmax.f32 %v900, 0.0
        %v980 = vmax.f32 %v902, 0.0
        %v981 = vmax.f32 %v905, 0.0
        %v982 = vmax.f32 %v907, 0.0
        %v983 = vmax.f32 %v910, 0.0
        %v984 = vmax.f32 %v912, 0.0
        %v985 = vmax.f32 %v915, 0.0
        %v986 = vmax.f32 %v917, 0.0
        %v987 = vmax.f32 %v920, 0.0
        %v988 = vmax.f32 %v922, 0.0
        %v989 = vmax.f32 %v925, 0.0
        %v990 = vmax.f32 %v927, 0.0
        %v991 = vmax.f32 %v930, 0.0
        %v992 = vmax.f32 %v932, 0.0
        %v993 = vmax.f32 %v935, 0.0
        %v994 = vmax.f32 %v937, 0.0
        %v995 = vmax.f32 %v940, 0.0
        %v996 = vmax.f32 %v942, 0.0
        %v997 = vmax.f32 %v945, 0.0
        %v998 = vmax.f32 %v947, 0.0
        %v999 = vmax.f32 %v950, 0.0
        %v1000 = vmax.f32 %v952, 0.0
        %v1001 = vmax.f32 %v955, 0.0
        %v1002 = vmax.f32 %v957, 0.0
        %v1003 = vmax.f32 %v960, 0.0
        %v1004 = vmax.f32 %v962, 0.0
        %v1005 = vmax.f32 %v965, 0.0
        %v1006 = vmax.f32 %v967, 0.0
        %v1007 = vmax.f32 %v970, 0.0
        %v1008 = vmax.f32 %v972, 0.0
        %v1009 = vmax.f32 %v975, 0.0
        %v1010 = vmax.f32 %v977, 0.0
        %v1011 = vpack.c.bf16 %v980, %v979
        %v1012 = vpack.c.bf16 %v982, %v981
        %v1013 = vpack.c.bf16 %v984, %v983
        %v1014 = vpack.c.bf16 %v986, %v985
        %v1015 = vpack.c.bf16 %v988, %v987
        %v1016 = vpack.c.bf16 %v990, %v989
        %v1017 = vpack.c.bf16 %v992, %v991
        %v1018 = vpack.c.bf16 %v994, %v993
        %v1019 = vpack.c.bf16 %v996, %v995
        %v1020 = vpack.c.bf16 %v998, %v997
        %v1021 = vpack.c.bf16 %v1000, %v999
        %v1022 = vpack.c.bf16 %v1002, %v1001
        %v1023 = vpack.c.bf16 %v1004, %v1003
        %v1024 = vpack.c.bf16 %v1006, %v1005
        %v1025 = vpack.c.bf16 %v1008, %v1007
        %v1026 = vpack.c.bf16 %v1010, %v1009
        %v1027 = vld [vmem:[%s3] sm:$0xff]
        %v1028 = vld [vmem:[%s3 + $0x8] sm:$0xff]
        %v1029 = vld [vmem:[%s3 + $0x10] sm:$0xff]
        %v1030 = vld [vmem:[%s3 + $0x18] sm:$0xff]
        %v1031 = vld [vmem:[%s3 + $0x20] sm:$0xff]
        %v1032 = vld [vmem:[%s3 + $0x28] sm:$0xff]
        %v1033 = vld [vmem:[%s3 + $0x30] sm:$0xff]
        %v1034 = vld [vmem:[%s3 + $0x38] sm:$0xff]
        %v1035 = vld [vmem:[%s3 + $0x40] sm:$0xff]
        %v1036 = vld [vmem:[%s3 + $0x48] sm:$0xff]
        %v1037 = vld [vmem:[%s3 + $0x50] sm:$0xff]
        %v1038 = vld [vmem:[%s3 + $0x58] sm:$0xff]
        %v1039 = vld [vmem:[%s3 + $0x60] sm:$0xff]
        %v1040 = vld [vmem:[%s3 + $0x68] sm:$0xff]
        %v1041 = vld [vmem:[%s3 + $0x70] sm:$0xff]
        %v1042 = vld [vmem:[%s3 + $0x78] sm:$0xff]
        %v1043 = vld [vmem:[%s3 + $0x80] sm:$0xff]
        %v1044 = vld [vmem:[%s3 + $0x88] sm:$0xff]
        %v1045 = vld [vmem:[%s3 + $0x90] sm:$0xff]
        %v1046 = vld [vmem:[%s3 + $0x98] sm:$0xff]
        %v1047 = vld [vmem:[%s3 + $0xa0] sm:$0xff]
        %v1048 = vld [vmem:[%s3 + $0xa8] sm:$0xff]
        %v1049 = vld [vmem:[%s3 + $0xb0] sm:$0xff]
        %v1050 = vld [vmem:[%s3 + $0xb8] sm:$0xff]
        %v1051 = vld [vmem:[%s3 + $0xc0] sm:$0xff]
        %v1052 = vld [vmem:[%s3 + $0xc8] sm:$0xff]
        %v1053 = vld [vmem:[%s3 + $0xd0] sm:$0xff]
        %v1054 = vld [vmem:[%s3 + $0xd8] sm:$0xff]
        %v1055 = vld [vmem:[%s3 + $0xe0] sm:$0xff]
        %v1056 = vld [vmem:[%s3 + $0xe8] sm:$0xff]
        %v1057 = vld [vmem:[%s3 + $0xf0] sm:$0xff]
        %v1058 = vld [vmem:[%s3 + $0xf8] sm:$0xff]
        %v1091 = vunpack.c.l.b16 %v1027
        %v1092 = vunpack.c.h.b16 %v1027
        %v1093 = vunpack.c.l.b16 %v1028
        %v1094 = vunpack.c.h.b16 %v1028
        %v1095 = vunpack.c.l.b16 %v1029
        %v1096 = vunpack.c.h.b16 %v1029
        %v1097 = vunpack.c.l.b16 %v1030
        %v1098 = vunpack.c.h.b16 %v1030
        %v1099 = vunpack.c.l.b16 %v1031
        %v1100 = vunpack.c.h.b16 %v1031
        %v1101 = vunpack.c.l.b16 %v1032
        %v1102 = vunpack.c.h.b16 %v1032
        %v1103 = vunpack.c.l.b16 %v1033
        %v1104 = vunpack.c.h.b16 %v1033
        %v1105 = vunpack.c.l.b16 %v1034
        %v1106 = vunpack.c.h.b16 %v1034
        %v1107 = vunpack.c.l.b16 %v1035
        %v1108 = vunpack.c.h.b16 %v1035
        %v1109 = vunpack.c.l.b16 %v1036
        %v1110 = vunpack.c.h.b16 %v1036
        %v1111 = vunpack.c.l.b16 %v1037
        %v1112 = vunpack.c.h.b16 %v1037
        %v1113 = vunpack.c.l.b16 %v1038
        %v1114 = vunpack.c.h.b16 %v1038
        %v1115 = vunpack.c.l.b16 %v1039
        %v1116 = vunpack.c.h.b16 %v1039
        %v1117 = vunpack.c.l.b16 %v1040
        %v1118 = vunpack.c.h.b16 %v1040
        %v1119 = vunpack.c.l.b16 %v1041
        %v1120 = vunpack.c.h.b16 %v1041
        %v1121 = vunpack.c.l.b16 %v1042
        %v1122 = vunpack.c.h.b16 %v1042
        %v1123 = vunpack.c.l.b16 %v1043
        %v1124 = vunpack.c.h.b16 %v1043
        %v1125 = vunpack.c.l.b16 %v1044
        %v1126 = vunpack.c.h.b16 %v1044
        %v1127 = vunpack.c.l.b16 %v1045
        %v1128 = vunpack.c.h.b16 %v1045
        %v1129 = vunpack.c.l.b16 %v1046
        %v1130 = vunpack.c.h.b16 %v1046
        %v1131 = vunpack.c.l.b16 %v1047
        %v1132 = vunpack.c.h.b16 %v1047
        %v1133 = vunpack.c.l.b16 %v1048
        %v1134 = vunpack.c.h.b16 %v1048
        %v1135 = vunpack.c.l.b16 %v1049
        %v1136 = vunpack.c.h.b16 %v1049
        %v1137 = vunpack.c.l.b16 %v1050
        %v1138 = vunpack.c.h.b16 %v1050
        %v1139 = vunpack.c.l.b16 %v1051
        %v1140 = vunpack.c.h.b16 %v1051
        %v1141 = vunpack.c.l.b16 %v1052
        %v1142 = vunpack.c.h.b16 %v1052
        %v1143 = vunpack.c.l.b16 %v1053
        %v1144 = vunpack.c.h.b16 %v1053
        %v1145 = vunpack.c.l.b16 %v1054
        %v1146 = vunpack.c.h.b16 %v1054
        %v1147 = vunpack.c.l.b16 %v1055
        %v1148 = vunpack.c.h.b16 %v1055
        %v1149 = vunpack.c.l.b16 %v1056
        %v1150 = vunpack.c.h.b16 %v1056
        %v1151 = vunpack.c.l.b16 %v1057
        %v1152 = vunpack.c.h.b16 %v1057
        %v1153 = vunpack.c.l.b16 %v1058
        %v1154 = vunpack.c.h.b16 %v1058
        %v1155 = vpack.c.b16 %v1093, %v1091
        %v1156 = vpack.c.b16 %v1094, %v1092
        %v1157 = vpack.c.b16 %v1097, %v1095
        %v1158 = vpack.c.b16 %v1098, %v1096
        %v1159 = vpack.c.b16 %v1101, %v1099
        %v1160 = vpack.c.b16 %v1102, %v1100
        %v1161 = vpack.c.b16 %v1105, %v1103
        %v1162 = vpack.c.b16 %v1106, %v1104
        %v1163 = vpack.c.b16 %v1109, %v1107
        %v1164 = vpack.c.b16 %v1110, %v1108
        %v1165 = vpack.c.b16 %v1113, %v1111
        %v1166 = vpack.c.b16 %v1114, %v1112
        %v1167 = vpack.c.b16 %v1117, %v1115
        %v1168 = vpack.c.b16 %v1118, %v1116
        %v1169 = vpack.c.b16 %v1121, %v1119
        %v1170 = vpack.c.b16 %v1122, %v1120
        %v1171 = vpack.c.b16 %v1125, %v1123
        %v1172 = vpack.c.b16 %v1126, %v1124
        %v1173 = vpack.c.b16 %v1129, %v1127
        %v1174 = vpack.c.b16 %v1130, %v1128
        %v1175 = vpack.c.b16 %v1133, %v1131
        %v1176 = vpack.c.b16 %v1134, %v1132
        %v1177 = vpack.c.b16 %v1137, %v1135
        %v1178 = vpack.c.b16 %v1138, %v1136
        %v1179 = vpack.c.b16 %v1141, %v1139
        %v1180 = vpack.c.b16 %v1142, %v1140
        %v1181 = vpack.c.b16 %v1145, %v1143
        %v1182 = vpack.c.b16 %v1146, %v1144
        %v1183 = vpack.c.b16 %v1149, %v1147
        %v1184 = vpack.c.b16 %v1150, %v1148
        %v1185 = vpack.c.b16 %v1153, %v1151
        %v1186 = vpack.c.b16 %v1154, %v1152
        %1219 = vmatpush.bf16.msra.mxu0 %v1018
        %1220 = vmatpush.bf16.msra.mxu0 %v1017
        %1221 = vmatpush.bf16.msra.mxu0 %v1016
        %1222 = vmatpush.bf16.msra.mxu0 %v1015
        %1223 = vmatpush.bf16.msra.mxu0 %v1014
        %1224 = vmatpush.bf16.msra.mxu0 %v1013
        %1225 = vmatpush.bf16.msra.mxu0 %v1012
        %1226 = vmatpush.bf16.msra.mxu0 %v1011
        %1227 = vmatmul.bf16.gmra.mxu0 %v1155
        %v1228 = vpop.f32.mrf.mxu0
        %v1229 = vadd.f32 0.0, %v1228
        %v1230 = vpop.f32.mrf.mxu0
        %v1231 = vadd.f32 0.0, %v1230
        %1232 = vmatmul.bf16.gmra.mxu0 %v1157
        %v1233 = vpop.f32.mrf.mxu0
        %v1234 = vadd.f32 0.0, %v1233
        %v1235 = vpop.f32.mrf.mxu0
        %v1236 = vadd.f32 0.0, %v1235
        %1237 = vmatmul.bf16.gmra.mxu0 %v1159
        %v1238 = vpop.f32.mrf.mxu0
        %v1239 = vadd.f32 0.0, %v1238
        %v1240 = vpop.f32.mrf.mxu0
        %v1241 = vadd.f32 0.0, %v1240
        %1242 = vmatmul.bf16.gmra.mxu0 %v1161
        %v1243 = vpop.f32.mrf.mxu0
        %v1244 = vadd.f32 0.0, %v1243
        %v1245 = vpop.f32.mrf.mxu0
        %v1246 = vadd.f32 0.0, %v1245
        %1247 = vmatmul.bf16.gmra.mxu0 %v1163
        %v1248 = vpop.f32.mrf.mxu0
        %v1249 = vadd.f32 0.0, %v1248
        %v1250 = vpop.f32.mrf.mxu0
        %v1251 = vadd.f32 0.0, %v1250
        %1252 = vmatmul.bf16.gmra.mxu0 %v1165
        %v1253 = vpop.f32.mrf.mxu0
        %v1254 = vadd.f32 0.0, %v1253
        %v1255 = vpop.f32.mrf.mxu0
        %v1256 = vadd.f32 0.0, %v1255
        %1257 = vmatmul.bf16.gmra.mxu0 %v1167
        %v1258 = vpop.f32.mrf.mxu0
        %v1259 = vadd.f32 0.0, %v1258
        %v1260 = vpop.f32.mrf.mxu0
        %v1261 = vadd.f32 0.0, %v1260
        %1262 = vmatmul.bf16.gmra.mxu0 %v1169
        %v1263 = vpop.f32.mrf.mxu0
        %v1264 = vadd.f32 0.0, %v1263
        %v1265 = vpop.f32.mrf.mxu0
        %v1266 = vadd.f32 0.0, %v1265
        %1267 = vmatmul.bf16.gmra.mxu0 %v1171
        %v1268 = vpop.f32.mrf.mxu0
        %v1269 = vadd.f32 0.0, %v1268
        %v1270 = vpop.f32.mrf.mxu0
        %v1271 = vadd.f32 0.0, %v1270
        %1272 = vmatmul.bf16.gmra.mxu0 %v1173
        %v1273 = vpop.f32.mrf.mxu0
        %v1274 = vadd.f32 0.0, %v1273
        %v1275 = vpop.f32.mrf.mxu0
        %v1276 = vadd.f32 0.0, %v1275
        %1277 = vmatmul.bf16.gmra.mxu0 %v1175
        %v1278 = vpop.f32.mrf.mxu0
        %v1279 = vadd.f32 0.0, %v1278
        %v1280 = vpop.f32.mrf.mxu0
        %v1281 = vadd.f32 0.0, %v1280
        %1282 = vmatmul.bf16.gmra.mxu0 %v1177
        %v1283 = vpop.f32.mrf.mxu0
        %v1284 = vadd.f32 0.0, %v1283
        %v1285 = vpop.f32.mrf.mxu0
        %v1286 = vadd.f32 0.0, %v1285
        %1287 = vmatmul.bf16.gmra.mxu0 %v1179
        %v1288 = vpop.f32.mrf.mxu0
        %v1289 = vadd.f32 0.0, %v1288
        %v1290 = vpop.f32.mrf.mxu0
        %v1291 = vadd.f32 0.0, %v1290
        %1292 = vmatmul.bf16.gmra.mxu0 %v1181
        %v1293 = vpop.f32.mrf.mxu0
        %v1294 = vadd.f32 0.0, %v1293
        %v1295 = vpop.f32.mrf.mxu0
        %v1296 = vadd.f32 0.0, %v1295
        %1297 = vmatmul.bf16.gmra.mxu0 %v1183
        %v1298 = vpop.f32.mrf.mxu0
        %v1299 = vadd.f32 0.0, %v1298
        %v1300 = vpop.f32.mrf.mxu0
        %v1301 = vadd.f32 0.0, %v1300
        %1302 = vmatmul.bf16.gmra.mxu0 %v1185
        %v1303 = vpop.f32.mrf.mxu0
        %v1304 = vadd.f32 0.0, %v1303
        %v1305 = vpop.f32.mrf.mxu0
        %v1306 = vadd.f32 0.0, %v1305
        %1307 = vdwg.mxu0
        %1308 = vmatpush.bf16.msra.mxu0 %v1026
        %1309 = vmatpush.bf16.msra.mxu0 %v1025
        %1310 = vmatpush.bf16.msra.mxu0 %v1024
        %1311 = vmatpush.bf16.msra.mxu0 %v1023
        %1312 = vmatpush.bf16.msra.mxu0 %v1022
        %1313 = vmatpush.bf16.msra.mxu0 %v1021
        %1314 = vmatpush.bf16.msra.mxu0 %v1020
        %1315 = vmatpush.bf16.msra.mxu0 %v1019
        %1316 = vmatmul.bf16.gmra.mxu0 %v1156
        %v1317 = vpop.f32.mrf.mxu0
        %v1318 = vadd.f32 %v1229, %v1317
        %v1319 = vpop.f32.mrf.mxu0
        %v1320 = vadd.f32 %v1231, %v1319
        %1321 = vmatmul.bf16.gmra.mxu0 %v1158
        %v1322 = vpop.f32.mrf.mxu0
        %v1323 = vadd.f32 %v1234, %v1322
        %v1324 = vpop.f32.mrf.mxu0
        %v1325 = vadd.f32 %v1236, %v1324
        %1326 = vmatmul.bf16.gmra.mxu0 %v1160
        %v1327 = vpop.f32.mrf.mxu0
        %v1328 = vadd.f32 %v1239, %v1327
        %v1329 = vpop.f32.mrf.mxu0
        %v1330 = vadd.f32 %v1241, %v1329
        %1331 = vmatmul.bf16.gmra.mxu0 %v1162
        %v1332 = vpop.f32.mrf.mxu0
        %v1333 = vadd.f32 %v1244, %v1332
        %v1334 = vpop.f32.mrf.mxu0
        %v1335 = vadd.f32 %v1246, %v1334
        %1336 = vmatmul.bf16.gmra.mxu0 %v1164
        %v1337 = vpop.f32.mrf.mxu0
        %v1338 = vadd.f32 %v1249, %v1337
        %v1339 = vpop.f32.mrf.mxu0
        %v1340 = vadd.f32 %v1251, %v1339
        %1341 = vmatmul.bf16.gmra.mxu0 %v1166
        %v1342 = vpop.f32.mrf.mxu0
        %v1343 = vadd.f32 %v1254, %v1342
        %v1344 = vpop.f32.mrf.mxu0
        %v1345 = vadd.f32 %v1256, %v1344
        %1346 = vmatmul.bf16.gmra.mxu0 %v1168
        %v1347 = vpop.f32.mrf.mxu0
        %v1348 = vadd.f32 %v1259, %v1347
        %v1349 = vpop.f32.mrf.mxu0
        %v1350 = vadd.f32 %v1261, %v1349
        %1351 = vmatmul.bf16.gmra.mxu0 %v1170
        %v1352 = vpop.f32.mrf.mxu0
        %v1353 = vadd.f32 %v1264, %v1352
        %v1354 = vpop.f32.mrf.mxu0
        %v1355 = vadd.f32 %v1266, %v1354
        %1356 = vmatmul.bf16.gmra.mxu0 %v1172
        %v1357 = vpop.f32.mrf.mxu0
        %v1358 = vadd.f32 %v1269, %v1357
        %v1359 = vpop.f32.mrf.mxu0
        %v1360 = vadd.f32 %v1271, %v1359
        %1361 = vmatmul.bf16.gmra.mxu0 %v1174
        %v1362 = vpop.f32.mrf.mxu0
        %v1363 = vadd.f32 %v1274, %v1362
        %v1364 = vpop.f32.mrf.mxu0
        %v1365 = vadd.f32 %v1276, %v1364
        %1366 = vmatmul.bf16.gmra.mxu0 %v1176
        %v1367 = vpop.f32.mrf.mxu0
        %v1368 = vadd.f32 %v1279, %v1367
        %v1369 = vpop.f32.mrf.mxu0
        %v1370 = vadd.f32 %v1281, %v1369
        %1371 = vmatmul.bf16.gmra.mxu0 %v1178
        %v1372 = vpop.f32.mrf.mxu0
        %v1373 = vadd.f32 %v1284, %v1372
        %v1374 = vpop.f32.mrf.mxu0
        %v1375 = vadd.f32 %v1286, %v1374
        %1376 = vmatmul.bf16.gmra.mxu0 %v1180
        %v1377 = vpop.f32.mrf.mxu0
        %v1378 = vadd.f32 %v1289, %v1377
        %v1379 = vpop.f32.mrf.mxu0
        %v1380 = vadd.f32 %v1291, %v1379
        %1381 = vmatmul.bf16.gmra.mxu0 %v1182
        %v1382 = vpop.f32.mrf.mxu0
        %v1383 = vadd.f32 %v1294, %v1382
        %v1384 = vpop.f32.mrf.mxu0
        %v1385 = vadd.f32 %v1296, %v1384
        %1386 = vmatmul.bf16.gmra.mxu0 %v1184
        %v1387 = vpop.f32.mrf.mxu0
        %v1388 = vadd.f32 %v1299, %v1387
        %v1389 = vpop.f32.mrf.mxu0
        %v1390 = vadd.f32 %v1301, %v1389
        %1391 = vmatmul.bf16.gmra.mxu0 %v1186
        %v1392 = vpop.f32.mrf.mxu0
        %v1393 = vadd.f32 %v1304, %v1392
        %v1394 = vpop.f32.mrf.mxu0
        %v1395 = vadd.f32 %v1306, %v1394
        %1396 = vdwg.mxu0
        %v1397 = vld [vmem:[%s4] sm:$0xf]
        %v1398 = vld [vmem:[%s4 + $0x4] sm:$0xf]
        %v1399 = vld [vmem:[%s4 + $0x8] sm:$0xf]
        %v1400 = vld [vmem:[%s4 + $0xc] sm:$0xf]
        %v1401 = vpack.c.bf16 %v1320, %v1318
        %v1402 = vpack.c.bf16 %v1325, %v1323
        %v1403 = vpack.c.bf16 %v1330, %v1328
        %v1404 = vpack.c.bf16 %v1335, %v1333
        %v1405 = vpack.c.bf16 %v1340, %v1338
        %v1406 = vpack.c.bf16 %v1345, %v1343
        %v1407 = vpack.c.bf16 %v1350, %v1348
        %v1408 = vpack.c.bf16 %v1355, %v1353
        %v1409 = vpack.c.bf16 %v1360, %v1358
        %v1410 = vpack.c.bf16 %v1365, %v1363
        %v1411 = vpack.c.bf16 %v1370, %v1368
        %v1412 = vpack.c.bf16 %v1375, %v1373
        %v1413 = vpack.c.bf16 %v1380, %v1378
        %v1414 = vpack.c.bf16 %v1385, %v1383
        %v1415 = vpack.c.bf16 %v1390, %v1388
        %v1416 = vpack.c.bf16 %v1395, %v1393
        %s1417 = scalar_lea.vmem %s3, 256
        %v1418 = vld [vmem:[%s1417] sm:$0xff]
        %v1419 = vld [vmem:[%s1417 + $0x8] sm:$0xff]
        %v1420 = vld [vmem:[%s1417 + $0x10] sm:$0xff]
        %v1421 = vld [vmem:[%s1417 + $0x18] sm:$0xff]
        %v1422 = vld [vmem:[%s1417 + $0x20] sm:$0xff]
        %v1423 = vld [vmem:[%s1417 + $0x28] sm:$0xff]
        %v1424 = vld [vmem:[%s1417 + $0x30] sm:$0xff]
        %v1425 = vld [vmem:[%s1417 + $0x38] sm:$0xff]
        %v1426 = vld [vmem:[%s1417 + $0x40] sm:$0xff]
        %v1427 = vld [vmem:[%s1417 + $0x48] sm:$0xff]
        %v1428 = vld [vmem:[%s1417 + $0x50] sm:$0xff]
        %v1429 = vld [vmem:[%s1417 + $0x58] sm:$0xff]
        %v1430 = vld [vmem:[%s1417 + $0x60] sm:$0xff]
        %v1431 = vld [vmem:[%s1417 + $0x68] sm:$0xff]
        %v1432 = vld [vmem:[%s1417 + $0x70] sm:$0xff]
        %v1433 = vld [vmem:[%s1417 + $0x78] sm:$0xff]
        %v1434 = vld [vmem:[%s1417 + $0x80] sm:$0xff]
        %v1435 = vld [vmem:[%s1417 + $0x88] sm:$0xff]
        %v1436 = vld [vmem:[%s1417 + $0x90] sm:$0xff]
        %v1437 = vld [vmem:[%s1417 + $0x98] sm:$0xff]
        %v1438 = vld [vmem:[%s1417 + $0xa0] sm:$0xff]
        %v1439 = vld [vmem:[%s1417 + $0xa8] sm:$0xff]
        %v1440 = vld [vmem:[%s1417 + $0xb0] sm:$0xff]
        %v1441 = vld [vmem:[%s1417 + $0xb8] sm:$0xff]
        %v1442 = vld [vmem:[%s1417 + $0xc0] sm:$0xff]
        %v1443 = vld [vmem:[%s1417 + $0xc8] sm:$0xff]
        %v1444 = vld [vmem:[%s1417 + $0xd0] sm:$0xff]
        %v1445 = vld [vmem:[%s1417 + $0xd8] sm:$0xff]
        %v1446 = vld [vmem:[%s1417 + $0xe0] sm:$0xff]
        %v1447 = vld [vmem:[%s1417 + $0xe8] sm:$0xff]
        %v1448 = vld [vmem:[%s1417 + $0xf0] sm:$0xff]
        %v1449 = vld [vmem:[%s1417 + $0xf8] sm:$0xff]
        %v1482 = vunpack.c.l.b16 %v1418
        %v1483 = vunpack.c.h.b16 %v1418
        %v1484 = vunpack.c.l.b16 %v1419
        %v1485 = vunpack.c.h.b16 %v1419
        %v1486 = vunpack.c.l.b16 %v1420
        %v1487 = vunpack.c.h.b16 %v1420
        %v1488 = vunpack.c.l.b16 %v1421
        %v1489 = vunpack.c.h.b16 %v1421
        %v1490 = vunpack.c.l.b16 %v1422
        %v1491 = vunpack.c.h.b16 %v1422
        %v1492 = vunpack.c.l.b16 %v1423
        %v1493 = vunpack.c.h.b16 %v1423
        %v1494 = vunpack.c.l.b16 %v1424
        %v1495 = vunpack.c.h.b16 %v1424
        %v1496 = vunpack.c.l.b16 %v1425
        %v1497 = vunpack.c.h.b16 %v1425
        %v1498 = vunpack.c.l.b16 %v1426
        %v1499 = vunpack.c.h.b16 %v1426
        %v1500 = vunpack.c.l.b16 %v1427
        %v1501 = vunpack.c.h.b16 %v1427
        %v1502 = vunpack.c.l.b16 %v1428
        %v1503 = vunpack.c.h.b16 %v1428
        %v1504 = vunpack.c.l.b16 %v1429
        %v1505 = vunpack.c.h.b16 %v1429
        %v1506 = vunpack.c.l.b16 %v1430
        %v1507 = vunpack.c.h.b16 %v1430
        %v1508 = vunpack.c.l.b16 %v1431
        %v1509 = vunpack.c.h.b16 %v1431
        %v1510 = vunpack.c.l.b16 %v1432
        %v1511 = vunpack.c.h.b16 %v1432
        %v1512 = vunpack.c.l.b16 %v1433
        %v1513 = vunpack.c.h.b16 %v1433
        %v1514 = vunpack.c.l.b16 %v1434
        %v1515 = vunpack.c.h.b16 %v1434
        %v1516 = vunpack.c.l.b16 %v1435
        %v1517 = vunpack.c.h.b16 %v1435
        %v1518 = vunpack.c.l.b16 %v1436
        %v1519 = vunpack.c.h.b16 %v1436
        %v1520 = vunpack.c.l.b16 %v1437
        %v1521 = vunpack.c.h.b16 %v1437
        %v1522 = vunpack.c.l.b16 %v1438
        %v1523 = vunpack.c.h.b16 %v1438
        %v1524 = vunpack.c.l.b16 %v1439
        %v1525 = vunpack.c.h.b16 %v1439
        %v1526 = vunpack.c.l.b16 %v1440
        %v1527 = vunpack.c.h.b16 %v1440
        %v1528 = vunpack.c.l.b16 %v1441
        %v1529 = vunpack.c.h.b16 %v1441
        %v1530 = vunpack.c.l.b16 %v1442
        %v1531 = vunpack.c.h.b16 %v1442
        %v1532 = vunpack.c.l.b16 %v1443
        %v1533 = vunpack.c.h.b16 %v1443
        %v1534 = vunpack.c.l.b16 %v1444
        %v1535 = vunpack.c.h.b16 %v1444
        %v1536 = vunpack.c.l.b16 %v1445
        %v1537 = vunpack.c.h.b16 %v1445
        %v1538 = vunpack.c.l.b16 %v1446
        %v1539 = vunpack.c.h.b16 %v1446
        %v1540 = vunpack.c.l.b16 %v1447
        %v1541 = vunpack.c.h.b16 %v1447
        %v1542 = vunpack.c.l.b16 %v1448
        %v1543 = vunpack.c.h.b16 %v1448
        %v1544 = vunpack.c.l.b16 %v1449
        %v1545 = vunpack.c.h.b16 %v1449
        %v1546 = vpack.c.b16 %v1484, %v1482
        %v1547 = vpack.c.b16 %v1485, %v1483
        %v1548 = vpack.c.b16 %v1488, %v1486
        %v1549 = vpack.c.b16 %v1489, %v1487
        %v1550 = vpack.c.b16 %v1492, %v1490
        %v1551 = vpack.c.b16 %v1493, %v1491
        %v1552 = vpack.c.b16 %v1496, %v1494
        %v1553 = vpack.c.b16 %v1497, %v1495
        %v1554 = vpack.c.b16 %v1500, %v1498
        %v1555 = vpack.c.b16 %v1501, %v1499
        %v1556 = vpack.c.b16 %v1504, %v1502
        %v1557 = vpack.c.b16 %v1505, %v1503
        %v1558 = vpack.c.b16 %v1508, %v1506
        %v1559 = vpack.c.b16 %v1509, %v1507
        %v1560 = vpack.c.b16 %v1512, %v1510
        %v1561 = vpack.c.b16 %v1513, %v1511
        %v1562 = vpack.c.b16 %v1516, %v1514
        %v1563 = vpack.c.b16 %v1517, %v1515
        %v1564 = vpack.c.b16 %v1520, %v1518
        %v1565 = vpack.c.b16 %v1521, %v1519
        %v1566 = vpack.c.b16 %v1524, %v1522
        %v1567 = vpack.c.b16 %v1525, %v1523
        %v1568 = vpack.c.b16 %v1528, %v1526
        %v1569 = vpack.c.b16 %v1529, %v1527
        %v1570 = vpack.c.b16 %v1532, %v1530
        %v1571 = vpack.c.b16 %v1533, %v1531
        %v1572 = vpack.c.b16 %v1536, %v1534
        %v1573 = vpack.c.b16 %v1537, %v1535
        %v1574 = vpack.c.b16 %v1540, %v1538
        %v1575 = vpack.c.b16 %v1541, %v1539
        %v1576 = vpack.c.b16 %v1544, %v1542
        %v1577 = vpack.c.b16 %v1545, %v1543
        %1610 = vmatpush.bf16.msra.mxu0 %v1018
        %1611 = vmatpush.bf16.msra.mxu0 %v1017
        %1612 = vmatpush.bf16.msra.mxu0 %v1016
        %1613 = vmatpush.bf16.msra.mxu0 %v1015
        %1614 = vmatpush.bf16.msra.mxu0 %v1014
        %1615 = vmatpush.bf16.msra.mxu0 %v1013
        %1616 = vmatpush.bf16.msra.mxu0 %v1012
        %1617 = vmatpush.bf16.msra.mxu0 %v1011
        %1618 = vmatmul.bf16.gmra.mxu0 %v1546
        %v1619 = vpop.f32.mrf.mxu0
        %v1620 = vadd.f32 0.0, %v1619
        %v1621 = vpop.f32.mrf.mxu0
        %v1622 = vadd.f32 0.0, %v1621
        %1623 = vmatmul.bf16.gmra.mxu0 %v1548
        %v1624 = vpop.f32.mrf.mxu0
        %v1625 = vadd.f32 0.0, %v1624
        %v1626 = vpop.f32.mrf.mxu0
        %v1627 = vadd.f32 0.0, %v1626
        %1628 = vmatmul.bf16.gmra.mxu0 %v1550
        %v1629 = vpop.f32.mrf.mxu0
        %v1630 = vadd.f32 0.0, %v1629
        %v1631 = vpop.f32.mrf.mxu0
        %v1632 = vadd.f32 0.0, %v1631
        %1633 = vmatmul.bf16.gmra.mxu0 %v1552
        %v1634 = vpop.f32.mrf.mxu0
        %v1635 = vadd.f32 0.0, %v1634
        %v1636 = vpop.f32.mrf.mxu0
        %v1637 = vadd.f32 0.0, %v1636
        %1638 = vmatmul.bf16.gmra.mxu0 %v1554
        %v1639 = vpop.f32.mrf.mxu0
        %v1640 = vadd.f32 0.0, %v1639
        %v1641 = vpop.f32.mrf.mxu0
        %v1642 = vadd.f32 0.0, %v1641
        %1643 = vmatmul.bf16.gmra.mxu0 %v1556
        %v1644 = vpop.f32.mrf.mxu0
        %v1645 = vadd.f32 0.0, %v1644
        %v1646 = vpop.f32.mrf.mxu0
        %v1647 = vadd.f32 0.0, %v1646
        %1648 = vmatmul.bf16.gmra.mxu0 %v1558
        %v1649 = vpop.f32.mrf.mxu0
        %v1650 = vadd.f32 0.0, %v1649
        %v1651 = vpop.f32.mrf.mxu0
        %v1652 = vadd.f32 0.0, %v1651
        %1653 = vmatmul.bf16.gmra.mxu0 %v1560
        %v1654 = vpop.f32.mrf.mxu0
        %v1655 = vadd.f32 0.0, %v1654
        %v1656 = vpop.f32.mrf.mxu0
        %v1657 = vadd.f32 0.0, %v1656
        %1658 = vmatmul.bf16.gmra.mxu0 %v1562
        %v1659 = vpop.f32.mrf.mxu0
        %v1660 = vadd.f32 0.0, %v1659
        %v1661 = vpop.f32.mrf.mxu0
        %v1662 = vadd.f32 0.0, %v1661
        %1663 = vmatmul.bf16.gmra.mxu0 %v1564
        %v1664 = vpop.f32.mrf.mxu0
        %v1665 = vadd.f32 0.0, %v1664
        %v1666 = vpop.f32.mrf.mxu0
        %v1667 = vadd.f32 0.0, %v1666
        %1668 = vmatmul.bf16.gmra.mxu0 %v1566
        %v1669 = vpop.f32.mrf.mxu0
        %v1670 = vadd.f32 0.0, %v1669
        %v1671 = vpop.f32.mrf.mxu0
        %v1672 = vadd.f32 0.0, %v1671
        %1673 = vmatmul.bf16.gmra.mxu0 %v1568
        %v1674 = vpop.f32.mrf.mxu0
        %v1675 = vadd.f32 0.0, %v1674
        %v1676 = vpop.f32.mrf.mxu0
        %v1677 = vadd.f32 0.0, %v1676
        %1678 = vmatmul.bf16.gmra.mxu0 %v1570
        %v1679 = vpop.f32.mrf.mxu0
        %v1680 = vadd.f32 0.0, %v1679
        %v1681 = vpop.f32.mrf.mxu0
        %v1682 = vadd.f32 0.0, %v1681
        %1683 = vmatmul.bf16.gmra.mxu0 %v1572
        %v1684 = vpop.f32.mrf.mxu0
        %v1685 = vadd.f32 0.0, %v1684
        %v1686 = vpop.f32.mrf.mxu0
        %v1687 = vadd.f32 0.0, %v1686
        %1688 = vmatmul.bf16.gmra.mxu0 %v1574
        %v1689 = vpop.f32.mrf.mxu0
        %v1690 = vadd.f32 0.0, %v1689
        %v1691 = vpop.f32.mrf.mxu0
        %v1692 = vadd.f32 0.0, %v1691
        %1693 = vmatmul.bf16.gmra.mxu0 %v1576
        %v1694 = vpop.f32.mrf.mxu0
        %v1695 = vadd.f32 0.0, %v1694
        %v1696 = vpop.f32.mrf.mxu0
        %v1697 = vadd.f32 0.0, %v1696
        %1698 = vdwg.mxu0
        %1699 = vmatpush.bf16.msra.mxu0 %v1026
        %1700 = vmatpush.bf16.msra.mxu0 %v1025
        %1701 = vmatpush.bf16.msra.mxu0 %v1024
        %1702 = vmatpush.bf16.msra.mxu0 %v1023
        %1703 = vmatpush.bf16.msra.mxu0 %v1022
        %1704 = vmatpush.bf16.msra.mxu0 %v1021
        %1705 = vmatpush.bf16.msra.mxu0 %v1020
        %1706 = vmatpush.bf16.msra.mxu0 %v1019
        %1707 = vmatmul.bf16.gmra.mxu0 %v1547
        %v1708 = vpop.f32.mrf.mxu0
        %v1709 = vadd.f32 %v1620, %v1708
        %v1710 = vpop.f32.mrf.mxu0
        %v1711 = vadd.f32 %v1622, %v1710
        %1712 = vmatmul.bf16.gmra.mxu0 %v1549
        %v1713 = vpop.f32.mrf.mxu0
        %v1714 = vadd.f32 %v1625, %v1713
        %v1715 = vpop.f32.mrf.mxu0
        %v1716 = vadd.f32 %v1627, %v1715
        %1717 = vmatmul.bf16.gmra.mxu0 %v1551
        %v1718 = vpop.f32.mrf.mxu0
        %v1719 = vadd.f32 %v1630, %v1718
        %v1720 = vpop.f32.mrf.mxu0
        %v1721 = vadd.f32 %v1632, %v1720
        %1722 = vmatmul.bf16.gmra.mxu0 %v1553
        %v1723 = vpop.f32.mrf.mxu0
        %v1724 = vadd.f32 %v1635, %v1723
        %v1725 = vpop.f32.mrf.mxu0
        %v1726 = vadd.f32 %v1637, %v1725
        %1727 = vmatmul.bf16.gmra.mxu0 %v1555
        %v1728 = vpop.f32.mrf.mxu0
        %v1729 = vadd.f32 %v1640, %v1728
        %v1730 = vpop.f32.mrf.mxu0
        %v1731 = vadd.f32 %v1642, %v1730
        %1732 = vmatmul.bf16.gmra.mxu0 %v1557
        %v1733 = vpop.f32.mrf.mxu0
        %v1734 = vadd.f32 %v1645, %v1733
        %v1735 = vpop.f32.mrf.mxu0
        %v1736 = vadd.f32 %v1647, %v1735
        %1737 = vmatmul.bf16.gmra.mxu0 %v1559
        %v1738 = vpop.f32.mrf.mxu0
        %v1739 = vadd.f32 %v1650, %v1738
        %v1740 = vpop.f32.mrf.mxu0
        %v1741 = vadd.f32 %v1652, %v1740
        %1742 = vmatmul.bf16.gmra.mxu0 %v1561
        %v1743 = vpop.f32.mrf.mxu0
        %v1744 = vadd.f32 %v1655, %v1743
        %v1745 = vpop.f32.mrf.mxu0
        %v1746 = vadd.f32 %v1657, %v1745
        %1747 = vmatmul.bf16.gmra.mxu0 %v1563
        %v1748 = vpop.f32.mrf.mxu0
        %v1749 = vadd.f32 %v1660, %v1748
        %v1750 = vpop.f32.mrf.mxu0
        %v1751 = vadd.f32 %v1662, %v1750
        %1752 = vmatmul.bf16.gmra.mxu0 %v1565
        %v1753 = vpop.f32.mrf.mxu0
        %v1754 = vadd.f32 %v1665, %v1753
        %v1755 = vpop.f32.mrf.mxu0
        %v1756 = vadd.f32 %v1667, %v1755
        %1757 = vmatmul.bf16.gmra.mxu0 %v1567
        %v1758 = vpop.f32.mrf.mxu0
        %v1759 = vadd.f32 %v1670, %v1758
        %v1760 = vpop.f32.mrf.mxu0
        %v1761 = vadd.f32 %v1672, %v1760
        %1762 = vmatmul.bf16.gmra.mxu0 %v1569
        %v1763 = vpop.f32.mrf.mxu0
        %v1764 = vadd.f32 %v1675, %v1763
        %v1765 = vpop.f32.mrf.mxu0
        %v1766 = vadd.f32 %v1677, %v1765
        %1767 = vmatmul.bf16.gmra.mxu0 %v1571
        %v1768 = vpop.f32.mrf.mxu0
        %v1769 = vadd.f32 %v1680, %v1768
        %v1770 = vpop.f32.mrf.mxu0
        %v1771 = vadd.f32 %v1682, %v1770
        %1772 = vmatmul.bf16.gmra.mxu0 %v1573
        %v1773 = vpop.f32.mrf.mxu0
        %v1774 = vadd.f32 %v1685, %v1773
        %v1775 = vpop.f32.mrf.mxu0
        %v1776 = vadd.f32 %v1687, %v1775
        %1777 = vmatmul.bf16.gmra.mxu0 %v1575
        %v1778 = vpop.f32.mrf.mxu0
        %v1779 = vadd.f32 %v1690, %v1778
        %v1780 = vpop.f32.mrf.mxu0
        %v1781 = vadd.f32 %v1692, %v1780
        %1782 = vmatmul.bf16.gmra.mxu0 %v1577
        %v1783 = vpop.f32.mrf.mxu0
        %v1784 = vadd.f32 %v1695, %v1783
        %v1785 = vpop.f32.mrf.mxu0
        %v1786 = vadd.f32 %v1697, %v1785
        %1787 = vdwg.mxu0
        %s1788 = scalar_lea.vmem %s4, 16
        %v1789 = vld [vmem:[%s1788] sm:$0xf]
        %v1790 = vld [vmem:[%s1788 + $0x4] sm:$0xf]
        %v1791 = vld [vmem:[%s1788 + $0x8] sm:$0xf]
        %v1792 = vld [vmem:[%s1788 + $0xc] sm:$0xf]
        %v1793 = vpack.c.bf16 %v1711, %v1709
        %v1794 = vpack.c.bf16 %v1716, %v1714
        %v1795 = vpack.c.bf16 %v1721, %v1719
        %v1796 = vpack.c.bf16 %v1726, %v1724
        %v1797 = vpack.c.bf16 %v1731, %v1729
        %v1798 = vpack.c.bf16 %v1736, %v1734
        %v1799 = vpack.c.bf16 %v1741, %v1739
        %v1800 = vpack.c.bf16 %v1746, %v1744
        %v1801 = vpack.c.bf16 %v1751, %v1749
        %v1802 = vpack.c.bf16 %v1756, %v1754
        %v1803 = vpack.c.bf16 %v1761, %v1759
        %v1804 = vpack.c.bf16 %v1766, %v1764
        %v1805 = vpack.c.bf16 %v1771, %v1769
        %v1806 = vpack.c.bf16 %v1776, %v1774
        %v1807 = vpack.c.bf16 %v1781, %v1779
        %v1808 = vpack.c.bf16 %v1786, %v1784
        %v1813 = vunpack.c.l.b16 %v1789
        %v1814 = vunpack.c.l.b16 %v1790
        %v1815 = vunpack.c.l.b16 %v1791
        %v1816 = vunpack.c.l.b16 %v1792
        %v1817 = vpack.c.b16 %v1814, %v1813
        %v1818 = vpack.c.b16 %v1816, %v1815
        %v1822 = vsel %vm841, %v1793, 0
        %v1825 = vsel %vm841, %v1794, 0
        %v1828 = vsel %vm841, %v1795, 0
        %v1831 = vsel %vm841, %v1796, 0
        %v1834 = vsel %vm841, %v1797, 0
        %v1837 = vsel %vm841, %v1798, 0
        %v1840 = vsel %vm841, %v1799, 0
        %v1843 = vsel %vm841, %v1800, 0
        %v1846 = vsel %vm841, %v1801, 0
        %v1849 = vsel %vm841, %v1802, 0
        %v1852 = vsel %vm841, %v1803, 0
        %v1855 = vsel %vm841, %v1804, 0
        %v1858 = vsel %vm841, %v1805, 0
        %v1861 = vsel %vm841, %v1806, 0
        %v1864 = vsel %vm841, %v1807, 0
        %v1867 = vsel %vm841, %v1808, 0
        %1869 = vmatpush.bf16.msra.mxu0 0
        %1870 = vmatpush.bf16.msra.mxu0 0
        %1871 = vmatpush.bf16.msra.mxu0 0
        %1872 = vmatpush.bf16.msra.mxu0 0
        %1873 = vmatpush.bf16.msra.mxu0 0
        %1874 = vmatpush.bf16.msra.mxu0 0
        %1875 = vmatpush.bf16.msra.mxu0 %v1818
        %1876 = vmatpush.bf16.msra.mxu0 %v1817
        %1877 = vmatmul.bf16.gmra.mxu0 %v1822
        %v1878 = vpop.f32.mrf.mxu0
        %v1879 = vadd.f32 0.0, %v1878
        %v1880 = vpop.f32.mrf.mxu0
        %v1881 = vadd.f32 0.0, %v1880
        %1882 = vmatmul.bf16.gmra.mxu0 %v1825
        %v1883 = vpop.f32.mrf.mxu0
        %v1884 = vadd.f32 0.0, %v1883
        %v1885 = vpop.f32.mrf.mxu0
        %v1886 = vadd.f32 0.0, %v1885
        %1887 = vmatmul.bf16.gmra.mxu0 %v1828
        %v1888 = vpop.f32.mrf.mxu0
        %v1889 = vadd.f32 0.0, %v1888
        %v1890 = vpop.f32.mrf.mxu0
        %v1891 = vadd.f32 0.0, %v1890
        %1892 = vmatmul.bf16.gmra.mxu0 %v1831
        %v1893 = vpop.f32.mrf.mxu0
        %v1894 = vadd.f32 0.0, %v1893
        %v1895 = vpop.f32.mrf.mxu0
        %v1896 = vadd.f32 0.0, %v1895
        %1897 = vmatmul.bf16.gmra.mxu0 %v1834
        %v1898 = vpop.f32.mrf.mxu0
        %v1899 = vadd.f32 0.0, %v1898
        %v1900 = vpop.f32.mrf.mxu0
        %v1901 = vadd.f32 0.0, %v1900
        %1902 = vmatmul.bf16.gmra.mxu0 %v1837
        %v1903 = vpop.f32.mrf.mxu0
        %v1904 = vadd.f32 0.0, %v1903
        %v1905 = vpop.f32.mrf.mxu0
        %v1906 = vadd.f32 0.0, %v1905
        %1907 = vmatmul.bf16.gmra.mxu0 %v1840
        %v1908 = vpop.f32.mrf.mxu0
        %v1909 = vadd.f32 0.0, %v1908
        %v1910 = vpop.f32.mrf.mxu0
        %v1911 = vadd.f32 0.0, %v1910
        %1912 = vmatmul.bf16.gmra.mxu0 %v1843
        %v1913 = vpop.f32.mrf.mxu0
        %v1914 = vadd.f32 0.0, %v1913
        %v1915 = vpop.f32.mrf.mxu0
        %v1916 = vadd.f32 0.0, %v1915
        %1917 = vmatmul.bf16.gmra.mxu0 %v1846
        %v1918 = vpop.f32.mrf.mxu0
        %v1919 = vadd.f32 0.0, %v1918
        %v1920 = vpop.f32.mrf.mxu0
        %v1921 = vadd.f32 0.0, %v1920
        %1922 = vmatmul.bf16.gmra.mxu0 %v1849
        %v1923 = vpop.f32.mrf.mxu0
        %v1924 = vadd.f32 0.0, %v1923
        %v1925 = vpop.f32.mrf.mxu0
        %v1926 = vadd.f32 0.0, %v1925
        %1927 = vmatmul.bf16.gmra.mxu0 %v1852
        %v1928 = vpop.f32.mrf.mxu0
        %v1929 = vadd.f32 0.0, %v1928
        %v1930 = vpop.f32.mrf.mxu0
        %v1931 = vadd.f32 0.0, %v1930
        %1932 = vmatmul.bf16.gmra.mxu0 %v1855
        %v1933 = vpop.f32.mrf.mxu0
        %v1934 = vadd.f32 0.0, %v1933
        %v1935 = vpop.f32.mrf.mxu0
        %v1936 = vadd.f32 0.0, %v1935
        %1937 = vmatmul.bf16.gmra.mxu0 %v1858
        %v1938 = vpop.f32.mrf.mxu0
        %v1939 = vadd.f32 0.0, %v1938
        %v1940 = vpop.f32.mrf.mxu0
        %v1941 = vadd.f32 0.0, %v1940
        %1942 = vmatmul.bf16.gmra.mxu0 %v1861
        %v1943 = vpop.f32.mrf.mxu0
        %v1944 = vadd.f32 0.0, %v1943
        %v1945 = vpop.f32.mrf.mxu0
        %v1946 = vadd.f32 0.0, %v1945
        %1947 = vmatmul.bf16.gmra.mxu0 %v1864
        %v1948 = vpop.f32.mrf.mxu0
        %v1949 = vadd.f32 0.0, %v1948
        %v1950 = vpop.f32.mrf.mxu0
        %v1951 = vadd.f32 0.0, %v1950
        %1952 = vmatmul.bf16.gmra.mxu0 %v1867
        %v1953 = vpop.f32.mrf.mxu0
        %v1954 = vadd.f32 0.0, %v1953
        %v1955 = vpop.f32.mrf.mxu0
        %v1956 = vadd.f32 0.0, %v1955
        %1957 = vdwg.mxu0
        %v1962 = vunpack.c.l.b16 %v1397
        %v1963 = vunpack.c.l.b16 %v1398
        %v1964 = vunpack.c.l.b16 %v1399
        %v1965 = vunpack.c.l.b16 %v1400
        %v1966 = vpack.c.b16 %v1963, %v1962
        %v1967 = vpack.c.b16 %v1965, %v1964
        %v1971 = vsel %vm841, %v1401, 0
        %v1974 = vsel %vm841, %v1402, 0
        %v1977 = vsel %vm841, %v1403, 0
        %v1980 = vsel %vm841, %v1404, 0
        %v1983 = vsel %vm841, %v1405, 0
        %v1986 = vsel %vm841, %v1406, 0
        %v1989 = vsel %vm841, %v1407, 0
        %v1992 = vsel %vm841, %v1408, 0
        %v1995 = vsel %vm841, %v1409, 0
        %v1998 = vsel %vm841, %v1410, 0
        %v2001 = vsel %vm841, %v1411, 0
        %v2004 = vsel %vm841, %v1412, 0
        %v2007 = vsel %vm841, %v1413, 0
        %v2010 = vsel %vm841, %v1414, 0
        %v2013 = vsel %vm841, %v1415, 0
        %v2016 = vsel %vm841, %v1416, 0
        %2018 = vmatpush.bf16.msra.mxu0 0
        %2019 = vmatpush.bf16.msra.mxu0 0
        %2020 = vmatpush.bf16.msra.mxu0 0
        %2021 = vmatpush.bf16.msra.mxu0 0
        %2022 = vmatpush.bf16.msra.mxu0 0
        %2023 = vmatpush.bf16.msra.mxu0 0
        %2024 = vmatpush.bf16.msra.mxu0 %v1967
        %2025 = vmatpush.bf16.msra.mxu0 %v1966
        %2026 = vmatmul.bf16.gmra.mxu0 %v1971
        %v2027 = vpop.f32.mrf.mxu0
        %v2028 = vadd.f32 %v1879, %v2027
        %v2029 = vpop.f32.mrf.mxu0
        %v2030 = vadd.f32 %v1881, %v2029
        %2031 = vmatmul.bf16.gmra.mxu0 %v1974
        %v2032 = vpop.f32.mrf.mxu0
        %v2033 = vadd.f32 %v1884, %v2032
        %v2034 = vpop.f32.mrf.mxu0
        %v2035 = vadd.f32 %v1886, %v2034
        %2036 = vmatmul.bf16.gmra.mxu0 %v1977
        %v2037 = vpop.f32.mrf.mxu0
        %v2038 = vadd.f32 %v1889, %v2037
        %v2039 = vpop.f32.mrf.mxu0
        %v2040 = vadd.f32 %v1891, %v2039
        %2041 = vmatmul.bf16.gmra.mxu0 %v1980
        %v2042 = vpop.f32.mrf.mxu0
        %v2043 = vadd.f32 %v1894, %v2042
        %v2044 = vpop.f32.mrf.mxu0
        %v2045 = vadd.f32 %v1896, %v2044
        %2046 = vmatmul.bf16.gmra.mxu0 %v1983
        %v2047 = vpop.f32.mrf.mxu0
        %v2048 = vadd.f32 %v1899, %v2047
        %v2049 = vpop.f32.mrf.mxu0
        %v2050 = vadd.f32 %v1901, %v2049
        %2051 = vmatmul.bf16.gmra.mxu0 %v1986
        %v2052 = vpop.f32.mrf.mxu0
        %v2053 = vadd.f32 %v1904, %v2052
        %v2054 = vpop.f32.mrf.mxu0
        %v2055 = vadd.f32 %v1906, %v2054
        %2056 = vmatmul.bf16.gmra.mxu0 %v1989
        %v2057 = vpop.f32.mrf.mxu0
        %v2058 = vadd.f32 %v1909, %v2057
        %v2059 = vpop.f32.mrf.mxu0
        %v2060 = vadd.f32 %v1911, %v2059
        %2061 = vmatmul.bf16.gmra.mxu0 %v1992
        %v2062 = vpop.f32.mrf.mxu0
        %v2063 = vadd.f32 %v1914, %v2062
        %v2064 = vpop.f32.mrf.mxu0
        %v2065 = vadd.f32 %v1916, %v2064
        %2066 = vmatmul.bf16.gmra.mxu0 %v1995
        %v2067 = vpop.f32.mrf.mxu0
        %v2068 = vadd.f32 %v1919, %v2067
        %v2069 = vpop.f32.mrf.mxu0
        %v2070 = vadd.f32 %v1921, %v2069
        %2071 = vmatmul.bf16.gmra.mxu0 %v1998
        %v2072 = vpop.f32.mrf.mxu0
        %v2073 = vadd.f32 %v1924, %v2072
        %v2074 = vpop.f32.mrf.mxu0
        %v2075 = vadd.f32 %v1926, %v2074
        %2076 = vmatmul.bf16.gmra.mxu0 %v2001
        %v2077 = vpop.f32.mrf.mxu0
        %v2078 = vadd.f32 %v1929, %v2077
        %v2079 = vpop.f32.mrf.mxu0
        %v2080 = vadd.f32 %v1931, %v2079
        %2081 = vmatmul.bf16.gmra.mxu0 %v2004
        %v2082 = vpop.f32.mrf.mxu0
        %v2083 = vadd.f32 %v1934, %v2082
        %v2084 = vpop.f32.mrf.mxu0
        %v2085 = vadd.f32 %v1936, %v2084
        %2086 = vmatmul.bf16.gmra.mxu0 %v2007
        %v2087 = vpop.f32.mrf.mxu0
        %v2088 = vadd.f32 %v1939, %v2087
        %v2089 = vpop.f32.mrf.mxu0
        %v2090 = vadd.f32 %v1941, %v2089
        %2091 = vmatmul.bf16.gmra.mxu0 %v2010
        %v2092 = vpop.f32.mrf.mxu0
        %v2093 = vadd.f32 %v1944, %v2092
        %v2094 = vpop.f32.mrf.mxu0
        %v2095 = vadd.f32 %v1946, %v2094
        %2096 = vmatmul.bf16.gmra.mxu0 %v2013
        %v2097 = vpop.f32.mrf.mxu0
        %v2098 = vadd.f32 %v1949, %v2097
        %v2099 = vpop.f32.mrf.mxu0
        %v2100 = vadd.f32 %v1951, %v2099
        %2101 = vmatmul.bf16.gmra.mxu0 %v2016
        %v2102 = vpop.f32.mrf.mxu0
        %v2103 = vadd.f32 %v1954, %v2102
        %v2104 = vpop.f32.mrf.mxu0
        %v2105 = vadd.f32 %v1956, %v2104
        %2106 = vdwg.mxu0
        %s2107 = scalar_lea.vmem %s3, 512
        %v2108 = vld [vmem:[%s2107] sm:$0xff]
        %v2109 = vld [vmem:[%s2107 + $0x8] sm:$0xff]
        %v2110 = vld [vmem:[%s2107 + $0x10] sm:$0xff]
        %v2111 = vld [vmem:[%s2107 + $0x18] sm:$0xff]
        %v2112 = vld [vmem:[%s2107 + $0x20] sm:$0xff]
        %v2113 = vld [vmem:[%s2107 + $0x28] sm:$0xff]
        %v2114 = vld [vmem:[%s2107 + $0x30] sm:$0xff]
        %v2115 = vld [vmem:[%s2107 + $0x38] sm:$0xff]
        %v2116 = vld [vmem:[%s2107 + $0x40] sm:$0xff]
        %v2117 = vld [vmem:[%s2107 + $0x48] sm:$0xff]
        %v2118 = vld [vmem:[%s2107 + $0x50] sm:$0xff]
        %v2119 = vld [vmem:[%s2107 + $0x58] sm:$0xff]
        %v2120 = vld [vmem:[%s2107 + $0x60] sm:$0xff]
        %v2121 = vld [vmem:[%s2107 + $0x68] sm:$0xff]
        %v2122 = vld [vmem:[%s2107 + $0x70] sm:$0xff]
        %v2123 = vld [vmem:[%s2107 + $0x78] sm:$0xff]
        %v2124 = vld [vmem:[%s2107 + $0x80] sm:$0xff]
        %v2125 = vld [vmem:[%s2107 + $0x88] sm:$0xff]
        %v2126 = vld [vmem:[%s2107 + $0x90] sm:$0xff]
        %v2127 = vld [vmem:[%s2107 + $0x98] sm:$0xff]
        %v2128 = vld [vmem:[%s2107 + $0xa0] sm:$0xff]
        %v2129 = vld [vmem:[%s2107 + $0xa8] sm:$0xff]
        %v2130 = vld [vmem:[%s2107 + $0xb0] sm:$0xff]
        %v2131 = vld [vmem:[%s2107 + $0xb8] sm:$0xff]
        %v2132 = vld [vmem:[%s2107 + $0xc0] sm:$0xff]
        %v2133 = vld [vmem:[%s2107 + $0xc8] sm:$0xff]
        %v2134 = vld [vmem:[%s2107 + $0xd0] sm:$0xff]
        %v2135 = vld [vmem:[%s2107 + $0xd8] sm:$0xff]
        %v2136 = vld [vmem:[%s2107 + $0xe0] sm:$0xff]
        %v2137 = vld [vmem:[%s2107 + $0xe8] sm:$0xff]
        %v2138 = vld [vmem:[%s2107 + $0xf0] sm:$0xff]
        %v2139 = vld [vmem:[%s2107 + $0xf8] sm:$0xff]
        %v2172 = vunpack.c.l.b16 %v2108
        %v2173 = vunpack.c.h.b16 %v2108
        %v2174 = vunpack.c.l.b16 %v2109
        %v2175 = vunpack.c.h.b16 %v2109
        %v2176 = vunpack.c.l.b16 %v2110
        %v2177 = vunpack.c.h.b16 %v2110
        %v2178 = vunpack.c.l.b16 %v2111
        %v2179 = vunpack.c.h.b16 %v2111
        %v2180 = vunpack.c.l.b16 %v2112
        %v2181 = vunpack.c.h.b16 %v2112
        %v2182 = vunpack.c.l.b16 %v2113
        %v2183 = vunpack.c.h.b16 %v2113
        %v2184 = vunpack.c.l.b16 %v2114
        %v2185 = vunpack.c.h.b16 %v2114
        %v2186 = vunpack.c.l.b16 %v2115
        %v2187 = vunpack.c.h.b16 %v2115
        %v2188 = vunpack.c.l.b16 %v2116
        %v2189 = vunpack.c.h.b16 %v2116
        %v2190 = vunpack.c.l.b16 %v2117
        %v2191 = vunpack.c.h.b16 %v2117
        %v2192 = vunpack.c.l.b16 %v2118
        %v2193 = vunpack.c.h.b16 %v2118
        %v2194 = vunpack.c.l.b16 %v2119
        %v2195 = vunpack.c.h.b16 %v2119
        %v2196 = vunpack.c.l.b16 %v2120
        %v2197 = vunpack.c.h.b16 %v2120
        %v2198 = vunpack.c.l.b16 %v2121
        %v2199 = vunpack.c.h.b16 %v2121
        %v2200 = vunpack.c.l.b16 %v2122
        %v2201 = vunpack.c.h.b16 %v2122
        %v2202 = vunpack.c.l.b16 %v2123
        %v2203 = vunpack.c.h.b16 %v2123
        %v2204 = vunpack.c.l.b16 %v2124
        %v2205 = vunpack.c.h.b16 %v2124
        %v2206 = vunpack.c.l.b16 %v2125
        %v2207 = vunpack.c.h.b16 %v2125
        %v2208 = vunpack.c.l.b16 %v2126
        %v2209 = vunpack.c.h.b16 %v2126
        %v2210 = vunpack.c.l.b16 %v2127
        %v2211 = vunpack.c.h.b16 %v2127
        %v2212 = vunpack.c.l.b16 %v2128
        %v2213 = vunpack.c.h.b16 %v2128
        %v2214 = vunpack.c.l.b16 %v2129
        %v2215 = vunpack.c.h.b16 %v2129
        %v2216 = vunpack.c.l.b16 %v2130
        %v2217 = vunpack.c.h.b16 %v2130
        %v2218 = vunpack.c.l.b16 %v2131
        %v2219 = vunpack.c.h.b16 %v2131
        %v2220 = vunpack.c.l.b16 %v2132
        %v2221 = vunpack.c.h.b16 %v2132
        %v2222 = vunpack.c.l.b16 %v2133
        %v2223 = vunpack.c.h.b16 %v2133
        %v2224 = vunpack.c.l.b16 %v2134
        %v2225 = vunpack.c.h.b16 %v2134
        %v2226 = vunpack.c.l.b16 %v2135
        %v2227 = vunpack.c.h.b16 %v2135
        %v2228 = vunpack.c.l.b16 %v2136
        %v2229 = vunpack.c.h.b16 %v2136
        %v2230 = vunpack.c.l.b16 %v2137
        %v2231 = vunpack.c.h.b16 %v2137
        %v2232 = vunpack.c.l.b16 %v2138
        %v2233 = vunpack.c.h.b16 %v2138
        %v2234 = vunpack.c.l.b16 %v2139
        %v2235 = vunpack.c.h.b16 %v2139
        %v2236 = vpack.c.b16 %v2174, %v2172
        %v2237 = vpack.c.b16 %v2175, %v2173
        %v2238 = vpack.c.b16 %v2178, %v2176
        %v2239 = vpack.c.b16 %v2179, %v2177
        %v2240 = vpack.c.b16 %v2182, %v2180
        %v2241 = vpack.c.b16 %v2183, %v2181
        %v2242 = vpack.c.b16 %v2186, %v2184
        %v2243 = vpack.c.b16 %v2187, %v2185
        %v2244 = vpack.c.b16 %v2190, %v2188
        %v2245 = vpack.c.b16 %v2191, %v2189
        %v2246 = vpack.c.b16 %v2194, %v2192
        %v2247 = vpack.c.b16 %v2195, %v2193
        %v2248 = vpack.c.b16 %v2198, %v2196
        %v2249 = vpack.c.b16 %v2199, %v2197
        %v2250 = vpack.c.b16 %v2202, %v2200
        %v2251 = vpack.c.b16 %v2203, %v2201
        %v2252 = vpack.c.b16 %v2206, %v2204
        %v2253 = vpack.c.b16 %v2207, %v2205
        %v2254 = vpack.c.b16 %v2210, %v2208
        %v2255 = vpack.c.b16 %v2211, %v2209
        %v2256 = vpack.c.b16 %v2214, %v2212
        %v2257 = vpack.c.b16 %v2215, %v2213
        %v2258 = vpack.c.b16 %v2218, %v2216
        %v2259 = vpack.c.b16 %v2219, %v2217
        %v2260 = vpack.c.b16 %v2222, %v2220
        %v2261 = vpack.c.b16 %v2223, %v2221
        %v2262 = vpack.c.b16 %v2226, %v2224
        %v2263 = vpack.c.b16 %v2227, %v2225
        %v2264 = vpack.c.b16 %v2230, %v2228
        %v2265 = vpack.c.b16 %v2231, %v2229
        %v2266 = vpack.c.b16 %v2234, %v2232
        %v2267 = vpack.c.b16 %v2235, %v2233
        %2300 = vmatpush.bf16.msra.mxu0 %v1018
        %2301 = vmatpush.bf16.msra.mxu0 %v1017
        %2302 = vmatpush.bf16.msra.mxu0 %v1016
        %2303 = vmatpush.bf16.msra.mxu0 %v1015
        %2304 = vmatpush.bf16.msra.mxu0 %v1014
        %2305 = vmatpush.bf16.msra.mxu0 %v1013
        %2306 = vmatpush.bf16.msra.mxu0 %v1012
        %2307 = vmatpush.bf16.msra.mxu0 %v1011
        %2308 = vmatmul.bf16.gmra.mxu0 %v2236
        %v2309 = vpop.f32.mrf.mxu0
        %v2310 = vadd.f32 0.0, %v2309
        %v2311 = vpop.f32.mrf.mxu0
        %v2312 = vadd.f32 0.0, %v2311
        %2313 = vmatmul.bf16.gmra.mxu0 %v2238
        %v2314 = vpop.f32.mrf.mxu0
        %v2315 = vadd.f32 0.0, %v2314
        %v2316 = vpop.f32.mrf.mxu0
        %v2317 = vadd.f32 0.0, %v2316
        %2318 = vmatmul.bf16.gmra.mxu0 %v2240
        %v2319 = vpop.f32.mrf.mxu0
        %v2320 = vadd.f32 0.0, %v2319
        %v2321 = vpop.f32.mrf.mxu0
        %v2322 = vadd.f32 0.0, %v2321
        %2323 = vmatmul.bf16.gmra.mxu0 %v2242
        %v2324 = vpop.f32.mrf.mxu0
        %v2325 = vadd.f32 0.0, %v2324
        %v2326 = vpop.f32.mrf.mxu0
        %v2327 = vadd.f32 0.0, %v2326
        %2328 = vmatmul.bf16.gmra.mxu0 %v2244
        %v2329 = vpop.f32.mrf.mxu0
        %v2330 = vadd.f32 0.0, %v2329
        %v2331 = vpop.f32.mrf.mxu0
        %v2332 = vadd.f32 0.0, %v2331
        %2333 = vmatmul.bf16.gmra.mxu0 %v2246
        %v2334 = vpop.f32.mrf.mxu0
        %v2335 = vadd.f32 0.0, %v2334
        %v2336 = vpop.f32.mrf.mxu0
        %v2337 = vadd.f32 0.0, %v2336
        %2338 = vmatmul.bf16.gmra.mxu0 %v2248
        %v2339 = vpop.f32.mrf.mxu0
        %v2340 = vadd.f32 0.0, %v2339
        %v2341 = vpop.f32.mrf.mxu0
        %v2342 = vadd.f32 0.0, %v2341
        %2343 = vmatmul.bf16.gmra.mxu0 %v2250
        %v2344 = vpop.f32.mrf.mxu0
        %v2345 = vadd.f32 0.0, %v2344
        %v2346 = vpop.f32.mrf.mxu0
        %v2347 = vadd.f32 0.0, %v2346
        %2348 = vmatmul.bf16.gmra.mxu0 %v2252
        %v2349 = vpop.f32.mrf.mxu0
        %v2350 = vadd.f32 0.0, %v2349
        %v2351 = vpop.f32.mrf.mxu0
        %v2352 = vadd.f32 0.0, %v2351
        %2353 = vmatmul.bf16.gmra.mxu0 %v2254
        %v2354 = vpop.f32.mrf.mxu0
        %v2355 = vadd.f32 0.0, %v2354
        %v2356 = vpop.f32.mrf.mxu0
        %v2357 = vadd.f32 0.0, %v2356
        %2358 = vmatmul.bf16.gmra.mxu0 %v2256
        %v2359 = vpop.f32.mrf.mxu0
        %v2360 = vadd.f32 0.0, %v2359
        %v2361 = vpop.f32.mrf.mxu0
        %v2362 = vadd.f32 0.0, %v2361
        %2363 = vmatmul.bf16.gmra.mxu0 %v2258
        %v2364 = vpop.f32.mrf.mxu0
        %v2365 = vadd.f32 0.0, %v2364
        %v2366 = vpop.f32.mrf.mxu0
        %v2367 = vadd.f32 0.0, %v2366
        %2368 = vmatmul.bf16.gmra.mxu0 %v2260
        %v2369 = vpop.f32.mrf.mxu0
        %v2370 = vadd.f32 0.0, %v2369
        %v2371 = vpop.f32.mrf.mxu0
        %v2372 = vadd.f32 0.0, %v2371
        %2373 = vmatmul.bf16.gmra.mxu0 %v2262
        %v2374 = vpop.f32.mrf.mxu0
        %v2375 = vadd.f32 0.0, %v2374
        %v2376 = vpop.f32.mrf.mxu0
        %v2377 = vadd.f32 0.0, %v2376
        %2378 = vmatmul.bf16.gmra.mxu0 %v2264
        %v2379 = vpop.f32.mrf.mxu0
        %v2380 = vadd.f32 0.0, %v2379
        %v2381 = vpop.f32.mrf.mxu0
        %v2382 = vadd.f32 0.0, %v2381
        %2383 = vmatmul.bf16.gmra.mxu0 %v2266
        %v2384 = vpop.f32.mrf.mxu0
        %v2385 = vadd.f32 0.0, %v2384
        %v2386 = vpop.f32.mrf.mxu0
        %v2387 = vadd.f32 0.0, %v2386
        %2388 = vdwg.mxu0
        %2389 = vmatpush.bf16.msra.mxu0 %v1026
        %2390 = vmatpush.bf16.msra.mxu0 %v1025
        %2391 = vmatpush.bf16.msra.mxu0 %v1024
        %2392 = vmatpush.bf16.msra.mxu0 %v1023
        %2393 = vmatpush.bf16.msra.mxu0 %v1022
        %2394 = vmatpush.bf16.msra.mxu0 %v1021
        %2395 = vmatpush.bf16.msra.mxu0 %v1020
        %2396 = vmatpush.bf16.msra.mxu0 %v1019
        %2397 = vmatmul.bf16.gmra.mxu0 %v2237
        %v2398 = vpop.f32.mrf.mxu0
        %v2399 = vadd.f32 %v2310, %v2398
        %v2400 = vpop.f32.mrf.mxu0
        %v2401 = vadd.f32 %v2312, %v2400
        %2402 = vmatmul.bf16.gmra.mxu0 %v2239
        %v2403 = vpop.f32.mrf.mxu0
        %v2404 = vadd.f32 %v2315, %v2403
        %v2405 = vpop.f32.mrf.mxu0
        %v2406 = vadd.f32 %v2317, %v2405
        %2407 = vmatmul.bf16.gmra.mxu0 %v2241
        %v2408 = vpop.f32.mrf.mxu0
        %v2409 = vadd.f32 %v2320, %v2408
        %v2410 = vpop.f32.mrf.mxu0
        %v2411 = vadd.f32 %v2322, %v2410
        %2412 = vmatmul.bf16.gmra.mxu0 %v2243
        %v2413 = vpop.f32.mrf.mxu0
        %v2414 = vadd.f32 %v2325, %v2413
        %v2415 = vpop.f32.mrf.mxu0
        %v2416 = vadd.f32 %v2327, %v2415
        %2417 = vmatmul.bf16.gmra.mxu0 %v2245
        %v2418 = vpop.f32.mrf.mxu0
        %v2419 = vadd.f32 %v2330, %v2418
        %v2420 = vpop.f32.mrf.mxu0
        %v2421 = vadd.f32 %v2332, %v2420
        %2422 = vmatmul.bf16.gmra.mxu0 %v2247
        %v2423 = vpop.f32.mrf.mxu0
        %v2424 = vadd.f32 %v2335, %v2423
        %v2425 = vpop.f32.mrf.mxu0
        %v2426 = vadd.f32 %v2337, %v2425
        %2427 = vmatmul.bf16.gmra.mxu0 %v2249
        %v2428 = vpop.f32.mrf.mxu0
        %v2429 = vadd.f32 %v2340, %v2428
        %v2430 = vpop.f32.mrf.mxu0
        %v2431 = vadd.f32 %v2342, %v2430
        %2432 = vmatmul.bf16.gmra.mxu0 %v2251
        %v2433 = vpop.f32.mrf.mxu0
        %v2434 = vadd.f32 %v2345, %v2433
        %v2435 = vpop.f32.mrf.mxu0
        %v2436 = vadd.f32 %v2347, %v2435
        %2437 = vmatmul.bf16.gmra.mxu0 %v2253
        %v2438 = vpop.f32.mrf.mxu0
        %v2439 = vadd.f32 %v2350, %v2438
        %v2440 = vpop.f32.mrf.mxu0
        %v2441 = vadd.f32 %v2352, %v2440
        %2442 = vmatmul.bf16.gmra.mxu0 %v2255
        %v2443 = vpop.f32.mrf.mxu0
        %v2444 = vadd.f32 %v2355, %v2443
        %v2445 = vpop.f32.mrf.mxu0
        %v2446 = vadd.f32 %v2357, %v2445
        %2447 = vmatmul.bf16.gmra.mxu0 %v2257
        %v2448 = vpop.f32.mrf.mxu0
        %v2449 = vadd.f32 %v2360, %v2448
        %v2450 = vpop.f32.mrf.mxu0
        %v2451 = vadd.f32 %v2362, %v2450
        %2452 = vmatmul.bf16.gmra.mxu0 %v2259
        %v2453 = vpop.f32.mrf.mxu0
        %v2454 = vadd.f32 %v2365, %v2453
        %v2455 = vpop.f32.mrf.mxu0
        %v2456 = vadd.f32 %v2367, %v2455
        %2457 = vmatmul.bf16.gmra.mxu0 %v2261
        %v2458 = vpop.f32.mrf.mxu0
        %v2459 = vadd.f32 %v2370, %v2458
        %v2460 = vpop.f32.mrf.mxu0
        %v2461 = vadd.f32 %v2372, %v2460
        %2462 = vmatmul.bf16.gmra.mxu0 %v2263
        %v2463 = vpop.f32.mrf.mxu0
        %v2464 = vadd.f32 %v2375, %v2463
        %v2465 = vpop.f32.mrf.mxu0
        %v2466 = vadd.f32 %v2377, %v2465
        %2467 = vmatmul.bf16.gmra.mxu0 %v2265
        %v2468 = vpop.f32.mrf.mxu0
        %v2469 = vadd.f32 %v2380, %v2468
        %v2470 = vpop.f32.mrf.mxu0
        %v2471 = vadd.f32 %v2382, %v2470
        %2472 = vmatmul.bf16.gmra.mxu0 %v2267
        %v2473 = vpop.f32.mrf.mxu0
        %v2474 = vadd.f32 %v2385, %v2473
        %v2475 = vpop.f32.mrf.mxu0
        %v2476 = vadd.f32 %v2387, %v2475
        %2477 = vdwg.mxu0
        %s2478 = scalar_lea.vmem %s4, 32
        %v2479 = vld [vmem:[%s2478] sm:$0xf]
        %v2480 = vld [vmem:[%s2478 + $0x4] sm:$0xf]
        %v2481 = vld [vmem:[%s2478 + $0x8] sm:$0xf]
        %v2482 = vld [vmem:[%s2478 + $0xc] sm:$0xf]
        %v2483 = vpack.c.bf16 %v2401, %v2399
        %v2484 = vpack.c.bf16 %v2406, %v2404
        %v2485 = vpack.c.bf16 %v2411, %v2409
        %v2486 = vpack.c.bf16 %v2416, %v2414
        %v2487 = vpack.c.bf16 %v2421, %v2419
        %v2488 = vpack.c.bf16 %v2426, %v2424
        %v2489 = vpack.c.bf16 %v2431, %v2429
        %v2490 = vpack.c.bf16 %v2436, %v2434
        %v2491 = vpack.c.bf16 %v2441, %v2439
        %v2492 = vpack.c.bf16 %v2446, %v2444
        %v2493 = vpack.c.bf16 %v2451, %v2449
        %v2494 = vpack.c.bf16 %v2456, %v2454
        %v2495 = vpack.c.bf16 %v2461, %v2459
        %v2496 = vpack.c.bf16 %v2466, %v2464
        %v2497 = vpack.c.bf16 %v2471, %v2469
        %v2498 = vpack.c.bf16 %v2476, %v2474
        %v2503 = vunpack.c.l.b16 %v2479
        %v2504 = vunpack.c.l.b16 %v2480
        %v2505 = vunpack.c.l.b16 %v2481
        %v2506 = vunpack.c.l.b16 %v2482
        %v2507 = vpack.c.b16 %v2504, %v2503
        %v2508 = vpack.c.b16 %v2506, %v2505
        %v2512 = vsel %vm841, %v2483, 0
        %v2515 = vsel %vm841, %v2484, 0
        %v2518 = vsel %vm841, %v2485, 0
        %v2521 = vsel %vm841, %v2486, 0
        %v2524 = vsel %vm841, %v2487, 0
        %v2527 = vsel %vm841, %v2488, 0
        %v2530 = vsel %vm841, %v2489, 0
        %v2533 = vsel %vm841, %v2490, 0
        %v2536 = vsel %vm841, %v2491, 0
        %v2539 = vsel %vm841, %v2492, 0
        %v2542 = vsel %vm841, %v2493, 0
        %v2545 = vsel %vm841, %v2494, 0
        %v2548 = vsel %vm841, %v2495, 0
        %v2551 = vsel %vm841, %v2496, 0
        %v2554 = vsel %vm841, %v2497, 0
        %v2557 = vsel %vm841, %v2498, 0
        %2559 = vmatpush.bf16.msra.mxu0 0
        %2560 = vmatpush.bf16.msra.mxu0 0
        %2561 = vmatpush.bf16.msra.mxu0 0
        %2562 = vmatpush.bf16.msra.mxu0 0
        %2563 = vmatpush.bf16.msra.mxu0 0
        %2564 = vmatpush.bf16.msra.mxu0 0
        %2565 = vmatpush.bf16.msra.mxu0 %v2508
        %2566 = vmatpush.bf16.msra.mxu0 %v2507
        %2567 = vmatmul.bf16.gmra.mxu0 %v2512
        %v2568 = vpop.f32.mrf.mxu0
        %v2569 = vadd.f32 0.0, %v2568
        %v2570 = vpop.f32.mrf.mxu0
        %v2571 = vadd.f32 0.0, %v2570
        %2572 = vmatmul.bf16.gmra.mxu0 %v2515
        %v2573 = vpop.f32.mrf.mxu0
        %v2574 = vadd.f32 0.0, %v2573
        %v2575 = vpop.f32.mrf.mxu0
        %v2576 = vadd.f32 0.0, %v2575
        %2577 = vmatmul.bf16.gmra.mxu0 %v2518
        %v2578 = vpop.f32.mrf.mxu0
        %v2579 = vadd.f32 0.0, %v2578
        %v2580 = vpop.f32.mrf.mxu0
        %v2581 = vadd.f32 0.0, %v2580
        %2582 = vmatmul.bf16.gmra.mxu0 %v2521
        %v2583 = vpop.f32.mrf.mxu0
        %v2584 = vadd.f32 0.0, %v2583
        %v2585 = vpop.f32.mrf.mxu0
        %v2586 = vadd.f32 0.0, %v2585
        %2587 = vmatmul.bf16.gmra.mxu0 %v2524
        %v2588 = vpop.f32.mrf.mxu0
        %v2589 = vadd.f32 0.0, %v2588
        %v2590 = vpop.f32.mrf.mxu0
        %v2591 = vadd.f32 0.0, %v2590
        %2592 = vmatmul.bf16.gmra.mxu0 %v2527
        %v2593 = vpop.f32.mrf.mxu0
        %v2594 = vadd.f32 0.0, %v2593
        %v2595 = vpop.f32.mrf.mxu0
        %v2596 = vadd.f32 0.0, %v2595
        %2597 = vmatmul.bf16.gmra.mxu0 %v2530
        %v2598 = vpop.f32.mrf.mxu0
        %v2599 = vadd.f32 0.0, %v2598
        %v2600 = vpop.f32.mrf.mxu0
        %v2601 = vadd.f32 0.0, %v2600
        %2602 = vmatmul.bf16.gmra.mxu0 %v2533
        %v2603 = vpop.f32.mrf.mxu0
        %v2604 = vadd.f32 0.0, %v2603
        %v2605 = vpop.f32.mrf.mxu0
        %v2606 = vadd.f32 0.0, %v2605
        %2607 = vmatmul.bf16.gmra.mxu0 %v2536
        %v2608 = vpop.f32.mrf.mxu0
        %v2609 = vadd.f32 0.0, %v2608
        %v2610 = vpop.f32.mrf.mxu0
        %v2611 = vadd.f32 0.0, %v2610
        %2612 = vmatmul.bf16.gmra.mxu0 %v2539
        %v2613 = vpop.f32.mrf.mxu0
        %v2614 = vadd.f32 0.0, %v2613
        %v2615 = vpop.f32.mrf.mxu0
        %v2616 = vadd.f32 0.0, %v2615
        %2617 = vmatmul.bf16.gmra.mxu0 %v2542
        %v2618 = vpop.f32.mrf.mxu0
        %v2619 = vadd.f32 0.0, %v2618
        %v2620 = vpop.f32.mrf.mxu0
        %v2621 = vadd.f32 0.0, %v2620
        %2622 = vmatmul.bf16.gmra.mxu0 %v2545
        %v2623 = vpop.f32.mrf.mxu0
        %v2624 = vadd.f32 0.0, %v2623
        %v2625 = vpop.f32.mrf.mxu0
        %v2626 = vadd.f32 0.0, %v2625
        %2627 = vmatmul.bf16.gmra.mxu0 %v2548
        %v2628 = vpop.f32.mrf.mxu0
        %v2629 = vadd.f32 0.0, %v2628
        %v2630 = vpop.f32.mrf.mxu0
        %v2631 = vadd.f32 0.0, %v2630
        %2632 = vmatmul.bf16.gmra.mxu0 %v2551
        %v2633 = vpop.f32.mrf.mxu0
        %v2634 = vadd.f32 0.0, %v2633
        %v2635 = vpop.f32.mrf.mxu0
        %v2636 = vadd.f32 0.0, %v2635
        %2637 = vmatmul.bf16.gmra.mxu0 %v2554
        %v2638 = vpop.f32.mrf.mxu0
        %v2639 = vadd.f32 0.0, %v2638
        %v2640 = vpop.f32.mrf.mxu0
        %v2641 = vadd.f32 0.0, %v2640
        %2642 = vmatmul.bf16.gmra.mxu0 %v2557
        %v2643 = vpop.f32.mrf.mxu0
        %v2644 = vadd.f32 0.0, %v2643
        %v2645 = vpop.f32.mrf.mxu0
        %v2646 = vadd.f32 0.0, %v2645
        %2647 = vdwg.mxu0
        %v2648 = vadd.f32 %v2028, %v2569
        %v2649 = vadd.f32 %v2030, %v2571
        %v2650 = vadd.f32 %v2033, %v2574
        %v2651 = vadd.f32 %v2035, %v2576
        %v2652 = vadd.f32 %v2038, %v2579
        %v2653 = vadd.f32 %v2040, %v2581
        %v2654 = vadd.f32 %v2043, %v2584
        %v2655 = vadd.f32 %v2045, %v2586
        %v2656 = vadd.f32 %v2048, %v2589
        %v2657 = vadd.f32 %v2050, %v2591
        %v2658 = vadd.f32 %v2053, %v2594
        %v2659 = vadd.f32 %v2055, %v2596
        %v2660 = vadd.f32 %v2058, %v2599
        %v2661 = vadd.f32 %v2060, %v2601
        %v2662 = vadd.f32 %v2063, %v2604
        %v2663 = vadd.f32 %v2065, %v2606
        %v2664 = vadd.f32 %v2068, %v2609
        %v2665 = vadd.f32 %v2070, %v2611
        %v2666 = vadd.f32 %v2073, %v2614
        %v2667 = vadd.f32 %v2075, %v2616
        %v2668 = vadd.f32 %v2078, %v2619
        %v2669 = vadd.f32 %v2080, %v2621
        %v2670 = vadd.f32 %v2083, %v2624
        %v2671 = vadd.f32 %v2085, %v2626
        %v2672 = vadd.f32 %v2088, %v2629
        %v2673 = vadd.f32 %v2090, %v2631
        %v2674 = vadd.f32 %v2093, %v2634
        %v2675 = vadd.f32 %v2095, %v2636
        %v2676 = vadd.f32 %v2098, %v2639
        %v2677 = vadd.f32 %v2100, %v2641
        %v2678 = vadd.f32 %v2103, %v2644
        %v2679 = vadd.f32 %v2105, %v2646
        %s2680 = scalar_lea.vmem %s3, 768
        %v2681 = vld [vmem:[%s2680] sm:$0xff]
        %v2682 = vld [vmem:[%s2680 + $0x8] sm:$0xff]
        %v2683 = vld [vmem:[%s2680 + $0x10] sm:$0xff]
        %v2684 = vld [vmem:[%s2680 + $0x18] sm:$0xff]
        %v2685 = vld [vmem:[%s2680 + $0x20] sm:$0xff]
        %v2686 = vld [vmem:[%s2680 + $0x28] sm:$0xff]
        %v2687 = vld [vmem:[%s2680 + $0x30] sm:$0xff]
        %v2688 = vld [vmem:[%s2680 + $0x38] sm:$0xff]
        %v2689 = vld [vmem:[%s2680 + $0x40] sm:$0xff]
        %v2690 = vld [vmem:[%s2680 + $0x48] sm:$0xff]
        %v2691 = vld [vmem:[%s2680 + $0x50] sm:$0xff]
        %v2692 = vld [vmem:[%s2680 + $0x58] sm:$0xff]
        %v2693 = vld [vmem:[%s2680 + $0x60] sm:$0xff]
        %v2694 = vld [vmem:[%s2680 + $0x68] sm:$0xff]
        %v2695 = vld [vmem:[%s2680 + $0x70] sm:$0xff]
        %v2696 = vld [vmem:[%s2680 + $0x78] sm:$0xff]
        %v2697 = vld [vmem:[%s2680 + $0x80] sm:$0xff]
        %v2698 = vld [vmem:[%s2680 + $0x88] sm:$0xff]
        %v2699 = vld [vmem:[%s2680 + $0x90] sm:$0xff]
        %v2700 = vld [vmem:[%s2680 + $0x98] sm:$0xff]
        %v2701 = vld [vmem:[%s2680 + $0xa0] sm:$0xff]
        %v2702 = vld [vmem:[%s2680 + $0xa8] sm:$0xff]
        %v2703 = vld [vmem:[%s2680 + $0xb0] sm:$0xff]
        %v2704 = vld [vmem:[%s2680 + $0xb8] sm:$0xff]
        %v2705 = vld [vmem:[%s2680 + $0xc0] sm:$0xff]
        %v2706 = vld [vmem:[%s2680 + $0xc8] sm:$0xff]
        %v2707 = vld [vmem:[%s2680 + $0xd0] sm:$0xff]
        %v2708 = vld [vmem:[%s2680 + $0xd8] sm:$0xff]
        %v2709 = vld [vmem:[%s2680 + $0xe0] sm:$0xff]
        %v2710 = vld [vmem:[%s2680 + $0xe8] sm:$0xff]
        %v2711 = vld [vmem:[%s2680 + $0xf0] sm:$0xff]
        %v2712 = vld [vmem:[%s2680 + $0xf8] sm:$0xff]
        %v2745 = vunpack.c.l.b16 %v2681
        %v2746 = vunpack.c.h.b16 %v2681
        %v2747 = vunpack.c.l.b16 %v2682
        %v2748 = vunpack.c.h.b16 %v2682
        %v2749 = vunpack.c.l.b16 %v2683
        %v2750 = vunpack.c.h.b16 %v2683
        %v2751 = vunpack.c.l.b16 %v2684
        %v2752 = vunpack.c.h.b16 %v2684
        %v2753 = vunpack.c.l.b16 %v2685
        %v2754 = vunpack.c.h.b16 %v2685
        %v2755 = vunpack.c.l.b16 %v2686
        %v2756 = vunpack.c.h.b16 %v2686
        %v2757 = vunpack.c.l.b16 %v2687
        %v2758 = vunpack.c.h.b16 %v2687
        %v2759 = vunpack.c.l.b16 %v2688
        %v2760 = vunpack.c.h.b16 %v2688
        %v2761 = vunpack.c.l.b16 %v2689
        %v2762 = vunpack.c.h.b16 %v2689
        %v2763 = vunpack.c.l.b16 %v2690
        %v2764 = vunpack.c.h.b16 %v2690
        %v2765 = vunpack.c.l.b16 %v2691
        %v2766 = vunpack.c.h.b16 %v2691
        %v2767 = vunpack.c.l.b16 %v2692
        %v2768 = vunpack.c.h.b16 %v2692
        %v2769 = vunpack.c.l.b16 %v2693
        %v2770 = vunpack.c.h.b16 %v2693
        %v2771 = vunpack.c.l.b16 %v2694
        %v2772 = vunpack.c.h.b16 %v2694
        %v2773 = vunpack.c.l.b16 %v2695
        %v2774 = vunpack.c.h.b16 %v2695
        %v2775 = vunpack.c.l.b16 %v2696
        %v2776 = vunpack.c.h.b16 %v2696
        %v2777 = vunpack.c.l.b16 %v2697
        %v2778 = vunpack.c.h.b16 %v2697
        %v2779 = vunpack.c.l.b16 %v2698
        %v2780 = vunpack.c.h.b16 %v2698
        %v2781 = vunpack.c.l.b16 %v2699
        %v2782 = vunpack.c.h.b16 %v2699
        %v2783 = vunpack.c.l.b16 %v2700
        %v2784 = vunpack.c.h.b16 %v2700
        %v2785 = vunpack.c.l.b16 %v2701
        %v2786 = vunpack.c.h.b16 %v2701
        %v2787 = vunpack.c.l.b16 %v2702
        %v2788 = vunpack.c.h.b16 %v2702
        %v2789 = vunpack.c.l.b16 %v2703
        %v2790 = vunpack.c.h.b16 %v2703
        %v2791 = vunpack.c.l.b16 %v2704
        %v2792 = vunpack.c.h.b16 %v2704
        %v2793 = vunpack.c.l.b16 %v2705
        %v2794 = vunpack.c.h.b16 %v2705
        %v2795 = vunpack.c.l.b16 %v2706
        %v2796 = vunpack.c.h.b16 %v2706
        %v2797 = vunpack.c.l.b16 %v2707
        %v2798 = vunpack.c.h.b16 %v2707
        %v2799 = vunpack.c.l.b16 %v2708
        %v2800 = vunpack.c.h.b16 %v2708
        %v2801 = vunpack.c.l.b16 %v2709
        %v2802 = vunpack.c.h.b16 %v2709
        %v2803 = vunpack.c.l.b16 %v2710
        %v2804 = vunpack.c.h.b16 %v2710
        %v2805 = vunpack.c.l.b16 %v2711
        %v2806 = vunpack.c.h.b16 %v2711
        %v2807 = vunpack.c.l.b16 %v2712
        %v2808 = vunpack.c.h.b16 %v2712
        %v2809 = vpack.c.b16 %v2747, %v2745
        %v2810 = vpack.c.b16 %v2748, %v2746
        %v2811 = vpack.c.b16 %v2751, %v2749
        %v2812 = vpack.c.b16 %v2752, %v2750
        %v2813 = vpack.c.b16 %v2755, %v2753
        %v2814 = vpack.c.b16 %v2756, %v2754
        %v2815 = vpack.c.b16 %v2759, %v2757
        %v2816 = vpack.c.b16 %v2760, %v2758
        %v2817 = vpack.c.b16 %v2763, %v2761
        %v2818 = vpack.c.b16 %v2764, %v2762
        %v2819 = vpack.c.b16 %v2767, %v2765
        %v2820 = vpack.c.b16 %v2768, %v2766
        %v2821 = vpack.c.b16 %v2771, %v2769
        %v2822 = vpack.c.b16 %v2772, %v2770
        %v2823 = vpack.c.b16 %v2775, %v2773
        %v2824 = vpack.c.b16 %v2776, %v2774
        %v2825 = vpack.c.b16 %v2779, %v2777
        %v2826 = vpack.c.b16 %v2780, %v2778
        %v2827 = vpack.c.b16 %v2783, %v2781
        %v2828 = vpack.c.b16 %v2784, %v2782
        %v2829 = vpack.c.b16 %v2787, %v2785
        %v2830 = vpack.c.b16 %v2788, %v2786
        %v2831 = vpack.c.b16 %v2791, %v2789
        %v2832 = vpack.c.b16 %v2792, %v2790
        %v2833 = vpack.c.b16 %v2795, %v2793
        %v2834 = vpack.c.b16 %v2796, %v2794
        %v2835 = vpack.c.b16 %v2799, %v2797
        %v2836 = vpack.c.b16 %v2800, %v2798
        %v2837 = vpack.c.b16 %v2803, %v2801
        %v2838 = vpack.c.b16 %v2804, %v2802
        %v2839 = vpack.c.b16 %v2807, %v2805
        %v2840 = vpack.c.b16 %v2808, %v2806
        %2873 = vmatpush.bf16.msra.mxu0 %v1018
        %2874 = vmatpush.bf16.msra.mxu0 %v1017
        %2875 = vmatpush.bf16.msra.mxu0 %v1016
        %2876 = vmatpush.bf16.msra.mxu0 %v1015
        %2877 = vmatpush.bf16.msra.mxu0 %v1014
        %2878 = vmatpush.bf16.msra.mxu0 %v1013
        %2879 = vmatpush.bf16.msra.mxu0 %v1012
        %2880 = vmatpush.bf16.msra.mxu0 %v1011
        %2881 = vmatmul.bf16.gmra.mxu0 %v2809
        %v2882 = vpop.f32.mrf.mxu0
        %v2883 = vadd.f32 0.0, %v2882
        %v2884 = vpop.f32.mrf.mxu0
        %v2885 = vadd.f32 0.0, %v2884
        %2886 = vmatmul.bf16.gmra.mxu0 %v2811
        %v2887 = vpop.f32.mrf.mxu0
        %v2888 = vadd.f32 0.0, %v2887
        %v2889 = vpop.f32.mrf.mxu0
        %v2890 = vadd.f32 0.0, %v2889
        %2891 = vmatmul.bf16.gmra.mxu0 %v2813
        %v2892 = vpop.f32.mrf.mxu0
        %v2893 = vadd.f32 0.0, %v2892
        %v2894 = vpop.f32.mrf.mxu0
        %v2895 = vadd.f32 0.0, %v2894
        %2896 = vmatmul.bf16.gmra.mxu0 %v2815
        %v2897 = vpop.f32.mrf.mxu0
        %v2898 = vadd.f32 0.0, %v2897
        %v2899 = vpop.f32.mrf.mxu0
        %v2900 = vadd.f32 0.0, %v2899
        %2901 = vmatmul.bf16.gmra.mxu0 %v2817
        %v2902 = vpop.f32.mrf.mxu0
        %v2903 = vadd.f32 0.0, %v2902
        %v2904 = vpop.f32.mrf.mxu0
        %v2905 = vadd.f32 0.0, %v2904
        %2906 = vmatmul.bf16.gmra.mxu0 %v2819
        %v2907 = vpop.f32.mrf.mxu0
        %v2908 = vadd.f32 0.0, %v2907
        %v2909 = vpop.f32.mrf.mxu0
        %v2910 = vadd.f32 0.0, %v2909
        %2911 = vmatmul.bf16.gmra.mxu0 %v2821
        %v2912 = vpop.f32.mrf.mxu0
        %v2913 = vadd.f32 0.0, %v2912
        %v2914 = vpop.f32.mrf.mxu0
        %v2915 = vadd.f32 0.0, %v2914
        %2916 = vmatmul.bf16.gmra.mxu0 %v2823
        %v2917 = vpop.f32.mrf.mxu0
        %v2918 = vadd.f32 0.0, %v2917
        %v2919 = vpop.f32.mrf.mxu0
        %v2920 = vadd.f32 0.0, %v2919
        %2921 = vmatmul.bf16.gmra.mxu0 %v2825
        %v2922 = vpop.f32.mrf.mxu0
        %v2923 = vadd.f32 0.0, %v2922
        %v2924 = vpop.f32.mrf.mxu0
        %v2925 = vadd.f32 0.0, %v2924
        %2926 = vmatmul.bf16.gmra.mxu0 %v2827
        %v2927 = vpop.f32.mrf.mxu0
        %v2928 = vadd.f32 0.0, %v2927
        %v2929 = vpop.f32.mrf.mxu0
        %v2930 = vadd.f32 0.0, %v2929
        %2931 = vmatmul.bf16.gmra.mxu0 %v2829
        %v2932 = vpop.f32.mrf.mxu0
        %v2933 = vadd.f32 0.0, %v2932
        %v2934 = vpop.f32.mrf.mxu0
        %v2935 = vadd.f32 0.0, %v2934
        %2936 = vmatmul.bf16.gmra.mxu0 %v2831
        %v2937 = vpop.f32.mrf.mxu0
        %v2938 = vadd.f32 0.0, %v2937
        %v2939 = vpop.f32.mrf.mxu0
        %v2940 = vadd.f32 0.0, %v2939
        %2941 = vmatmul.bf16.gmra.mxu0 %v2833
        %v2942 = vpop.f32.mrf.mxu0
        %v2943 = vadd.f32 0.0, %v2942
        %v2944 = vpop.f32.mrf.mxu0
        %v2945 = vadd.f32 0.0, %v2944
        %2946 = vmatmul.bf16.gmra.mxu0 %v2835
        %v2947 = vpop.f32.mrf.mxu0
        %v2948 = vadd.f32 0.0, %v2947
        %v2949 = vpop.f32.mrf.mxu0
        %v2950 = vadd.f32 0.0, %v2949
        %2951 = vmatmul.bf16.gmra.mxu0 %v2837
        %v2952 = vpop.f32.mrf.mxu0
        %v2953 = vadd.f32 0.0, %v2952
        %v2954 = vpop.f32.mrf.mxu0
        %v2955 = vadd.f32 0.0, %v2954
        %2956 = vmatmul.bf16.gmra.mxu0 %v2839
        %v2957 = vpop.f32.mrf.mxu0
        %v2958 = vadd.f32 0.0, %v2957
        %v2959 = vpop.f32.mrf.mxu0
        %v2960 = vadd.f32 0.0, %v2959
        %2961 = vdwg.mxu0
        %2962 = vmatpush.bf16.msra.mxu0 %v1026
        %2963 = vmatpush.bf16.msra.mxu0 %v1025
        %2964 = vmatpush.bf16.msra.mxu0 %v1024
        %2965 = vmatpush.bf16.msra.mxu0 %v1023
        %2966 = vmatpush.bf16.msra.mxu0 %v1022
        %2967 = vmatpush.bf16.msra.mxu0 %v1021
        %2968 = vmatpush.bf16.msra.mxu0 %v1020
        %2969 = vmatpush.bf16.msra.mxu0 %v1019
        %2970 = vmatmul.bf16.gmra.mxu0 %v2810
        %v2971 = vpop.f32.mrf.mxu0
        %v2972 = vadd.f32 %v2883, %v2971
        %v2973 = vpop.f32.mrf.mxu0
        %v2974 = vadd.f32 %v2885, %v2973
        %2975 = vmatmul.bf16.gmra.mxu0 %v2812
        %v2976 = vpop.f32.mrf.mxu0
        %v2977 = vadd.f32 %v2888, %v2976
        %v2978 = vpop.f32.mrf.mxu0
        %v2979 = vadd.f32 %v2890, %v2978
        %2980 = vmatmul.bf16.gmra.mxu0 %v2814
        %v2981 = vpop.f32.mrf.mxu0
        %v2982 = vadd.f32 %v2893, %v2981
        %v2983 = vpop.f32.mrf.mxu0
        %v2984 = vadd.f32 %v2895, %v2983
        %2985 = vmatmul.bf16.gmra.mxu0 %v2816
        %v2986 = vpop.f32.mrf.mxu0
        %v2987 = vadd.f32 %v2898, %v2986
        %v2988 = vpop.f32.mrf.mxu0
        %v2989 = vadd.f32 %v2900, %v2988
        %2990 = vmatmul.bf16.gmra.mxu0 %v2818
        %v2991 = vpop.f32.mrf.mxu0
        %v2992 = vadd.f32 %v2903, %v2991
        %v2993 = vpop.f32.mrf.mxu0
        %v2994 = vadd.f32 %v2905, %v2993
        %2995 = vmatmul.bf16.gmra.mxu0 %v2820
        %v2996 = vpop.f32.mrf.mxu0
        %v2997 = vadd.f32 %v2908, %v2996
        %v2998 = vpop.f32.mrf.mxu0
        %v2999 = vadd.f32 %v2910, %v2998
        %3000 = vmatmul.bf16.gmra.mxu0 %v2822
        %v3001 = vpop.f32.mrf.mxu0
        %v3002 = vadd.f32 %v2913, %v3001
        %v3003 = vpop.f32.mrf.mxu0
        %v3004 = vadd.f32 %v2915, %v3003
        %3005 = vmatmul.bf16.gmra.mxu0 %v2824
        %v3006 = vpop.f32.mrf.mxu0
        %v3007 = vadd.f32 %v2918, %v3006
        %v3008 = vpop.f32.mrf.mxu0
        %v3009 = vadd.f32 %v2920, %v3008
        %3010 = vmatmul.bf16.gmra.mxu0 %v2826
        %v3011 = vpop.f32.mrf.mxu0
        %v3012 = vadd.f32 %v2923, %v3011
        %v3013 = vpop.f32.mrf.mxu0
        %v3014 = vadd.f32 %v2925, %v3013
        %3015 = vmatmul.bf16.gmra.mxu0 %v2828
        %v3016 = vpop.f32.mrf.mxu0
        %v3017 = vadd.f32 %v2928, %v3016
        %v3018 = vpop.f32.mrf.mxu0
        %v3019 = vadd.f32 %v2930, %v3018
        %3020 = vmatmul.bf16.gmra.mxu0 %v2830
        %v3021 = vpop.f32.mrf.mxu0
        %v3022 = vadd.f32 %v2933, %v3021
        %v3023 = vpop.f32.mrf.mxu0
        %v3024 = vadd.f32 %v2935, %v3023
        %3025 = vmatmul.bf16.gmra.mxu0 %v2832
        %v3026 = vpop.f32.mrf.mxu0
        %v3027 = vadd.f32 %v2938, %v3026
        %v3028 = vpop.f32.mrf.mxu0
        %v3029 = vadd.f32 %v2940, %v3028
        %3030 = vmatmul.bf16.gmra.mxu0 %v2834
        %v3031 = vpop.f32.mrf.mxu0
        %v3032 = vadd.f32 %v2943, %v3031
        %v3033 = vpop.f32.mrf.mxu0
        %v3034 = vadd.f32 %v2945, %v3033
        %3035 = vmatmul.bf16.gmra.mxu0 %v2836
        %v3036 = vpop.f32.mrf.mxu0
        %v3037 = vadd.f32 %v2948, %v3036
        %v3038 = vpop.f32.mrf.mxu0
        %v3039 = vadd.f32 %v2950, %v3038
        %3040 = vmatmul.bf16.gmra.mxu0 %v2838
        %v3041 = vpop.f32.mrf.mxu0
        %v3042 = vadd.f32 %v2953, %v3041
        %v3043 = vpop.f32.mrf.mxu0
        %v3044 = vadd.f32 %v2955, %v3043
        %3045 = vmatmul.bf16.gmra.mxu0 %v2840
        %v3046 = vpop.f32.mrf.mxu0
        %v3047 = vadd.f32 %v2958, %v3046
        %v3048 = vpop.f32.mrf.mxu0
        %v3049 = vadd.f32 %v2960, %v3048
        %3050 = vdwg.mxu0
        %s3051 = scalar_lea.vmem %s4, 48
        %v3052 = vld [vmem:[%s3051] sm:$0xf]
        %v3053 = vld [vmem:[%s3051 + $0x4] sm:$0xf]
        %v3054 = vld [vmem:[%s3051 + $0x8] sm:$0xf]
        %v3055 = vld [vmem:[%s3051 + $0xc] sm:$0xf]
        %v3056 = vpack.c.bf16 %v2974, %v2972
        %v3057 = vpack.c.bf16 %v2979, %v2977
        %v3058 = vpack.c.bf16 %v2984, %v2982
        %v3059 = vpack.c.bf16 %v2989, %v2987
        %v3060 = vpack.c.bf16 %v2994, %v2992
        %v3061 = vpack.c.bf16 %v2999, %v2997
        %v3062 = vpack.c.bf16 %v3004, %v3002
        %v3063 = vpack.c.bf16 %v3009, %v3007
        %v3064 = vpack.c.bf16 %v3014, %v3012
        %v3065 = vpack.c.bf16 %v3019, %v3017
        %v3066 = vpack.c.bf16 %v3024, %v3022
        %v3067 = vpack.c.bf16 %v3029, %v3027
        %v3068 = vpack.c.bf16 %v3034, %v3032
        %v3069 = vpack.c.bf16 %v3039, %v3037
        %v3070 = vpack.c.bf16 %v3044, %v3042
        %v3071 = vpack.c.bf16 %v3049, %v3047
        %v3076 = vunpack.c.l.b16 %v3052
        %v3077 = vunpack.c.l.b16 %v3053
        %v3078 = vunpack.c.l.b16 %v3054
        %v3079 = vunpack.c.l.b16 %v3055
        %v3080 = vpack.c.b16 %v3077, %v3076
        %v3081 = vpack.c.b16 %v3079, %v3078
        %v3085 = vsel %vm841, %v3056, 0
        %v3088 = vsel %vm841, %v3057, 0
        %v3091 = vsel %vm841, %v3058, 0
        %v3094 = vsel %vm841, %v3059, 0
        %v3097 = vsel %vm841, %v3060, 0
        %v3100 = vsel %vm841, %v3061, 0
        %v3103 = vsel %vm841, %v3062, 0
        %v3106 = vsel %vm841, %v3063, 0
        %v3109 = vsel %vm841, %v3064, 0
        %v3112 = vsel %vm841, %v3065, 0
        %v3115 = vsel %vm841, %v3066, 0
        %v3118 = vsel %vm841, %v3067, 0
        %v3121 = vsel %vm841, %v3068, 0
        %v3124 = vsel %vm841, %v3069, 0
        %v3127 = vsel %vm841, %v3070, 0
        %v3130 = vsel %vm841, %v3071, 0
        %3132 = vmatpush.bf16.msra.mxu0 0
        %3133 = vmatpush.bf16.msra.mxu0 0
        %3134 = vmatpush.bf16.msra.mxu0 0
        %3135 = vmatpush.bf16.msra.mxu0 0
        %3136 = vmatpush.bf16.msra.mxu0 0
        %3137 = vmatpush.bf16.msra.mxu0 0
        %3138 = vmatpush.bf16.msra.mxu0 %v3081
        %3139 = vmatpush.bf16.msra.mxu0 %v3080
        %3140 = vmatmul.bf16.gmra.mxu0 %v3085
        %v3141 = vpop.f32.mrf.mxu0
        %v3142 = vadd.f32 0.0, %v3141
        %v3143 = vpop.f32.mrf.mxu0
        %v3144 = vadd.f32 0.0, %v3143
        %3145 = vmatmul.bf16.gmra.mxu0 %v3088
        %v3146 = vpop.f32.mrf.mxu0
        %v3147 = vadd.f32 0.0, %v3146
        %v3148 = vpop.f32.mrf.mxu0
        %v3149 = vadd.f32 0.0, %v3148
        %3150 = vmatmul.bf16.gmra.mxu0 %v3091
        %v3151 = vpop.f32.mrf.mxu0
        %v3152 = vadd.f32 0.0, %v3151
        %v3153 = vpop.f32.mrf.mxu0
        %v3154 = vadd.f32 0.0, %v3153
        %3155 = vmatmul.bf16.gmra.mxu0 %v3094
        %v3156 = vpop.f32.mrf.mxu0
        %v3157 = vadd.f32 0.0, %v3156
        %v3158 = vpop.f32.mrf.mxu0
        %v3159 = vadd.f32 0.0, %v3158
        %3160 = vmatmul.bf16.gmra.mxu0 %v3097
        %v3161 = vpop.f32.mrf.mxu0
        %v3162 = vadd.f32 0.0, %v3161
        %v3163 = vpop.f32.mrf.mxu0
        %v3164 = vadd.f32 0.0, %v3163
        %3165 = vmatmul.bf16.gmra.mxu0 %v3100
        %v3166 = vpop.f32.mrf.mxu0
        %v3167 = vadd.f32 0.0, %v3166
        %v3168 = vpop.f32.mrf.mxu0
        %v3169 = vadd.f32 0.0, %v3168
        %3170 = vmatmul.bf16.gmra.mxu0 %v3103
        %v3171 = vpop.f32.mrf.mxu0
        %v3172 = vadd.f32 0.0, %v3171
        %v3173 = vpop.f32.mrf.mxu0
        %v3174 = vadd.f32 0.0, %v3173
        %3175 = vmatmul.bf16.gmra.mxu0 %v3106
        %v3176 = vpop.f32.mrf.mxu0
        %v3177 = vadd.f32 0.0, %v3176
        %v3178 = vpop.f32.mrf.mxu0
        %v3179 = vadd.f32 0.0, %v3178
        %3180 = vmatmul.bf16.gmra.mxu0 %v3109
        %v3181 = vpop.f32.mrf.mxu0
        %v3182 = vadd.f32 0.0, %v3181
        %v3183 = vpop.f32.mrf.mxu0
        %v3184 = vadd.f32 0.0, %v3183
        %3185 = vmatmul.bf16.gmra.mxu0 %v3112
        %v3186 = vpop.f32.mrf.mxu0
        %v3187 = vadd.f32 0.0, %v3186
        %v3188 = vpop.f32.mrf.mxu0
        %v3189 = vadd.f32 0.0, %v3188
        %3190 = vmatmul.bf16.gmra.mxu0 %v3115
        %v3191 = vpop.f32.mrf.mxu0
        %v3192 = vadd.f32 0.0, %v3191
        %v3193 = vpop.f32.mrf.mxu0
        %v3194 = vadd.f32 0.0, %v3193
        %3195 = vmatmul.bf16.gmra.mxu0 %v3118
        %v3196 = vpop.f32.mrf.mxu0
        %v3197 = vadd.f32 0.0, %v3196
        %v3198 = vpop.f32.mrf.mxu0
        %v3199 = vadd.f32 0.0, %v3198
        %3200 = vmatmul.bf16.gmra.mxu0 %v3121
        %v3201 = vpop.f32.mrf.mxu0
        %v3202 = vadd.f32 0.0, %v3201
        %v3203 = vpop.f32.mrf.mxu0
        %v3204 = vadd.f32 0.0, %v3203
        %3205 = vmatmul.bf16.gmra.mxu0 %v3124
        %v3206 = vpop.f32.mrf.mxu0
        %v3207 = vadd.f32 0.0, %v3206
        %v3208 = vpop.f32.mrf.mxu0
        %v3209 = vadd.f32 0.0, %v3208
        %3210 = vmatmul.bf16.gmra.mxu0 %v3127
        %v3211 = vpop.f32.mrf.mxu0
        %v3212 = vadd.f32 0.0, %v3211
        %v3213 = vpop.f32.mrf.mxu0
        %v3214 = vadd.f32 0.0, %v3213
        %3215 = vmatmul.bf16.gmra.mxu0 %v3130
        %v3216 = vpop.f32.mrf.mxu0
        %v3217 = vadd.f32 0.0, %v3216
        %v3218 = vpop.f32.mrf.mxu0
        %v3219 = vadd.f32 0.0, %v3218
        %3220 = vdwg.mxu0
        %v3221 = vadd.f32 %v2648, %v3142
        %v3222 = vadd.f32 %v2649, %v3144
        %v3223 = vadd.f32 %v2650, %v3147
        %v3224 = vadd.f32 %v2651, %v3149
        %v3225 = vadd.f32 %v2652, %v3152
        %v3226 = vadd.f32 %v2653, %v3154
        %v3227 = vadd.f32 %v2654, %v3157
        %v3228 = vadd.f32 %v2655, %v3159
        %v3229 = vadd.f32 %v2656, %v3162
        %v3230 = vadd.f32 %v2657, %v3164
        %v3231 = vadd.f32 %v2658, %v3167
        %v3232 = vadd.f32 %v2659, %v3169
        %v3233 = vadd.f32 %v2660, %v3172
        %v3234 = vadd.f32 %v2661, %v3174
        %v3235 = vadd.f32 %v2662, %v3177
        %v3236 = vadd.f32 %v2663, %v3179
        %v3237 = vadd.f32 %v2664, %v3182
        %v3238 = vadd.f32 %v2665, %v3184
        %v3239 = vadd.f32 %v2666, %v3187
        %v3240 = vadd.f32 %v2667, %v3189
        %v3241 = vadd.f32 %v2668, %v3192
        %v3242 = vadd.f32 %v2669, %v3194
        %v3243 = vadd.f32 %v2670, %v3197
        %v3244 = vadd.f32 %v2671, %v3199
        %v3245 = vadd.f32 %v2672, %v3202
        %v3246 = vadd.f32 %v2673, %v3204
        %v3247 = vadd.f32 %v2674, %v3207
        %v3248 = vadd.f32 %v2675, %v3209
        %v3249 = vadd.f32 %v2676, %v3212
        %v3250 = vadd.f32 %v2677, %v3214
        %v3251 = vadd.f32 %v2678, %v3217
        %v3252 = vadd.f32 %v2679, %v3219
        %s3253 = scalar_lea.vmem %s3, 1024
        %v3254 = vld [vmem:[%s3253] sm:$0xff]
        %v3255 = vld [vmem:[%s3253 + $0x8] sm:$0xff]
        %v3256 = vld [vmem:[%s3253 + $0x10] sm:$0xff]
        %v3257 = vld [vmem:[%s3253 + $0x18] sm:$0xff]
        %v3258 = vld [vmem:[%s3253 + $0x20] sm:$0xff]
        %v3259 = vld [vmem:[%s3253 + $0x28] sm:$0xff]
        %v3260 = vld [vmem:[%s3253 + $0x30] sm:$0xff]
        %v3261 = vld [vmem:[%s3253 + $0x38] sm:$0xff]
        %v3262 = vld [vmem:[%s3253 + $0x40] sm:$0xff]
        %v3263 = vld [vmem:[%s3253 + $0x48] sm:$0xff]
        %v3264 = vld [vmem:[%s3253 + $0x50] sm:$0xff]
        %v3265 = vld [vmem:[%s3253 + $0x58] sm:$0xff]
        %v3266 = vld [vmem:[%s3253 + $0x60] sm:$0xff]
        %v3267 = vld [vmem:[%s3253 + $0x68] sm:$0xff]
        %v3268 = vld [vmem:[%s3253 + $0x70] sm:$0xff]
        %v3269 = vld [vmem:[%s3253 + $0x78] sm:$0xff]
        %v3270 = vld [vmem:[%s3253 + $0x80] sm:$0xff]
        %v3271 = vld [vmem:[%s3253 + $0x88] sm:$0xff]
        %v3272 = vld [vmem:[%s3253 + $0x90] sm:$0xff]
        %v3273 = vld [vmem:[%s3253 + $0x98] sm:$0xff]
        %v3274 = vld [vmem:[%s3253 + $0xa0] sm:$0xff]
        %v3275 = vld [vmem:[%s3253 + $0xa8] sm:$0xff]
        %v3276 = vld [vmem:[%s3253 + $0xb0] sm:$0xff]
        %v3277 = vld [vmem:[%s3253 + $0xb8] sm:$0xff]
        %v3278 = vld [vmem:[%s3253 + $0xc0] sm:$0xff]
        %v3279 = vld [vmem:[%s3253 + $0xc8] sm:$0xff]
        %v3280 = vld [vmem:[%s3253 + $0xd0] sm:$0xff]
        %v3281 = vld [vmem:[%s3253 + $0xd8] sm:$0xff]
        %v3282 = vld [vmem:[%s3253 + $0xe0] sm:$0xff]
        %v3283 = vld [vmem:[%s3253 + $0xe8] sm:$0xff]
        %v3284 = vld [vmem:[%s3253 + $0xf0] sm:$0xff]
        %v3285 = vld [vmem:[%s3253 + $0xf8] sm:$0xff]
        %v3318 = vunpack.c.l.b16 %v3254
        %v3319 = vunpack.c.h.b16 %v3254
        %v3320 = vunpack.c.l.b16 %v3255
        %v3321 = vunpack.c.h.b16 %v3255
        %v3322 = vunpack.c.l.b16 %v3256
        %v3323 = vunpack.c.h.b16 %v3256
        %v3324 = vunpack.c.l.b16 %v3257
        %v3325 = vunpack.c.h.b16 %v3257
        %v3326 = vunpack.c.l.b16 %v3258
        %v3327 = vunpack.c.h.b16 %v3258
        %v3328 = vunpack.c.l.b16 %v3259
        %v3329 = vunpack.c.h.b16 %v3259
        %v3330 = vunpack.c.l.b16 %v3260
        %v3331 = vunpack.c.h.b16 %v3260
        %v3332 = vunpack.c.l.b16 %v3261
        %v3333 = vunpack.c.h.b16 %v3261
        %v3334 = vunpack.c.l.b16 %v3262
        %v3335 = vunpack.c.h.b16 %v3262
        %v3336 = vunpack.c.l.b16 %v3263
        %v3337 = vunpack.c.h.b16 %v3263
        %v3338 = vunpack.c.l.b16 %v3264
        %v3339 = vunpack.c.h.b16 %v3264
        %v3340 = vunpack.c.l.b16 %v3265
        %v3341 = vunpack.c.h.b16 %v3265
        %v3342 = vunpack.c.l.b16 %v3266
        %v3343 = vunpack.c.h.b16 %v3266
        %v3344 = vunpack.c.l.b16 %v3267
        %v3345 = vunpack.c.h.b16 %v3267
        %v3346 = vunpack.c.l.b16 %v3268
        %v3347 = vunpack.c.h.b16 %v3268
        %v3348 = vunpack.c.l.b16 %v3269
        %v3349 = vunpack.c.h.b16 %v3269
        %v3350 = vunpack.c.l.b16 %v3270
        %v3351 = vunpack.c.h.b16 %v3270
        %v3352 = vunpack.c.l.b16 %v3271
        %v3353 = vunpack.c.h.b16 %v3271
        %v3354 = vunpack.c.l.b16 %v3272
        %v3355 = vunpack.c.h.b16 %v3272
        %v3356 = vunpack.c.l.b16 %v3273
        %v3357 = vunpack.c.h.b16 %v3273
        %v3358 = vunpack.c.l.b16 %v3274
        %v3359 = vunpack.c.h.b16 %v3274
        %v3360 = vunpack.c.l.b16 %v3275
        %v3361 = vunpack.c.h.b16 %v3275
        %v3362 = vunpack.c.l.b16 %v3276
        %v3363 = vunpack.c.h.b16 %v3276
        %v3364 = vunpack.c.l.b16 %v3277
        %v3365 = vunpack.c.h.b16 %v3277
        %v3366 = vunpack.c.l.b16 %v3278
        %v3367 = vunpack.c.h.b16 %v3278
        %v3368 = vunpack.c.l.b16 %v3279
        %v3369 = vunpack.c.h.b16 %v3279
        %v3370 = vunpack.c.l.b16 %v3280
        %v3371 = vunpack.c.h.b16 %v3280
        %v3372 = vunpack.c.l.b16 %v3281
        %v3373 = vunpack.c.h.b16 %v3281
        %v3374 = vunpack.c.l.b16 %v3282
        %v3375 = vunpack.c.h.b16 %v3282
        %v3376 = vunpack.c.l.b16 %v3283
        %v3377 = vunpack.c.h.b16 %v3283
        %v3378 = vunpack.c.l.b16 %v3284
        %v3379 = vunpack.c.h.b16 %v3284
        %v3380 = vunpack.c.l.b16 %v3285
        %v3381 = vunpack.c.h.b16 %v3285
        %v3382 = vpack.c.b16 %v3320, %v3318
        %v3383 = vpack.c.b16 %v3321, %v3319
        %v3384 = vpack.c.b16 %v3324, %v3322
        %v3385 = vpack.c.b16 %v3325, %v3323
        %v3386 = vpack.c.b16 %v3328, %v3326
        %v3387 = vpack.c.b16 %v3329, %v3327
        %v3388 = vpack.c.b16 %v3332, %v3330
        %v3389 = vpack.c.b16 %v3333, %v3331
        %v3390 = vpack.c.b16 %v3336, %v3334
        %v3391 = vpack.c.b16 %v3337, %v3335
        %v3392 = vpack.c.b16 %v3340, %v3338
        %v3393 = vpack.c.b16 %v3341, %v3339
        %v3394 = vpack.c.b16 %v3344, %v3342
        %v3395 = vpack.c.b16 %v3345, %v3343
        %v3396 = vpack.c.b16 %v3348, %v3346
        %v3397 = vpack.c.b16 %v3349, %v3347
        %v3398 = vpack.c.b16 %v3352, %v3350
        %v3399 = vpack.c.b16 %v3353, %v3351
        %v3400 = vpack.c.b16 %v3356, %v3354
        %v3401 = vpack.c.b16 %v3357, %v3355
        %v3402 = vpack.c.b16 %v3360, %v3358
        %v3403 = vpack.c.b16 %v3361, %v3359
        %v3404 = vpack.c.b16 %v3364, %v3362
        %v3405 = vpack.c.b16 %v3365, %v3363
        %v3406 = vpack.c.b16 %v3368, %v3366
        %v3407 = vpack.c.b16 %v3369, %v3367
        %v3408 = vpack.c.b16 %v3372, %v3370
        %v3409 = vpack.c.b16 %v3373, %v3371
        %v3410 = vpack.c.b16 %v3376, %v3374
        %v3411 = vpack.c.b16 %v3377, %v3375
        %v3412 = vpack.c.b16 %v3380, %v3378
        %v3413 = vpack.c.b16 %v3381, %v3379
        %3446 = vmatpush.bf16.msra.mxu0 %v1018
        %3447 = vmatpush.bf16.msra.mxu0 %v1017
        %3448 = vmatpush.bf16.msra.mxu0 %v1016
        %3449 = vmatpush.bf16.msra.mxu0 %v1015
        %3450 = vmatpush.bf16.msra.mxu0 %v1014
        %3451 = vmatpush.bf16.msra.mxu0 %v1013
        %3452 = vmatpush.bf16.msra.mxu0 %v1012
        %3453 = vmatpush.bf16.msra.mxu0 %v1011
        %3454 = vmatmul.bf16.gmra.mxu0 %v3382
        %v3455 = vpop.f32.mrf.mxu0
        %v3456 = vadd.f32 0.0, %v3455
        %v3457 = vpop.f32.mrf.mxu0
        %v3458 = vadd.f32 0.0, %v3457
        %3459 = vmatmul.bf16.gmra.mxu0 %v3384
        %v3460 = vpop.f32.mrf.mxu0
        %v3461 = vadd.f32 0.0, %v3460
        %v3462 = vpop.f32.mrf.mxu0
        %v3463 = vadd.f32 0.0, %v3462
        %3464 = vmatmul.bf16.gmra.mxu0 %v3386
        %v3465 = vpop.f32.mrf.mxu0
        %v3466 = vadd.f32 0.0, %v3465
        %v3467 = vpop.f32.mrf.mxu0
        %v3468 = vadd.f32 0.0, %v3467
        %3469 = vmatmul.bf16.gmra.mxu0 %v3388
        %v3470 = vpop.f32.mrf.mxu0
        %v3471 = vadd.f32 0.0, %v3470
        %v3472 = vpop.f32.mrf.mxu0
        %v3473 = vadd.f32 0.0, %v3472
        %3474 = vmatmul.bf16.gmra.mxu0 %v3390
        %v3475 = vpop.f32.mrf.mxu0
        %v3476 = vadd.f32 0.0, %v3475
        %v3477 = vpop.f32.mrf.mxu0
        %v3478 = vadd.f32 0.0, %v3477
        %3479 = vmatmul.bf16.gmra.mxu0 %v3392
        %v3480 = vpop.f32.mrf.mxu0
        %v3481 = vadd.f32 0.0, %v3480
        %v3482 = vpop.f32.mrf.mxu0
        %v3483 = vadd.f32 0.0, %v3482
        %3484 = vmatmul.bf16.gmra.mxu0 %v3394
        %v3485 = vpop.f32.mrf.mxu0
        %v3486 = vadd.f32 0.0, %v3485
        %v3487 = vpop.f32.mrf.mxu0
        %v3488 = vadd.f32 0.0, %v3487
        %3489 = vmatmul.bf16.gmra.mxu0 %v3396
        %v3490 = vpop.f32.mrf.mxu0
        %v3491 = vadd.f32 0.0, %v3490
        %v3492 = vpop.f32.mrf.mxu0
        %v3493 = vadd.f32 0.0, %v3492
        %3494 = vmatmul.bf16.gmra.mxu0 %v3398
        %v3495 = vpop.f32.mrf.mxu0
        %v3496 = vadd.f32 0.0, %v3495
        %v3497 = vpop.f32.mrf.mxu0
        %v3498 = vadd.f32 0.0, %v3497
        %3499 = vmatmul.bf16.gmra.mxu0 %v3400
        %v3500 = vpop.f32.mrf.mxu0
        %v3501 = vadd.f32 0.0, %v3500
        %v3502 = vpop.f32.mrf.mxu0
        %v3503 = vadd.f32 0.0, %v3502
        %3504 = vmatmul.bf16.gmra.mxu0 %v3402
        %v3505 = vpop.f32.mrf.mxu0
        %v3506 = vadd.f32 0.0, %v3505
        %v3507 = vpop.f32.mrf.mxu0
        %v3508 = vadd.f32 0.0, %v3507
        %3509 = vmatmul.bf16.gmra.mxu0 %v3404
        %v3510 = vpop.f32.mrf.mxu0
        %v3511 = vadd.f32 0.0, %v3510
        %v3512 = vpop.f32.mrf.mxu0
        %v3513 = vadd.f32 0.0, %v3512
        %3514 = vmatmul.bf16.gmra.mxu0 %v3406
        %v3515 = vpop.f32.mrf.mxu0
        %v3516 = vadd.f32 0.0, %v3515
        %v3517 = vpop.f32.mrf.mxu0
        %v3518 = vadd.f32 0.0, %v3517
        %3519 = vmatmul.bf16.gmra.mxu0 %v3408
        %v3520 = vpop.f32.mrf.mxu0
        %v3521 = vadd.f32 0.0, %v3520
        %v3522 = vpop.f32.mrf.mxu0
        %v3523 = vadd.f32 0.0, %v3522
        %3524 = vmatmul.bf16.gmra.mxu0 %v3410
        %v3525 = vpop.f32.mrf.mxu0
        %v3526 = vadd.f32 0.0, %v3525
        %v3527 = vpop.f32.mrf.mxu0
        %v3528 = vadd.f32 0.0, %v3527
        %3529 = vmatmul.bf16.gmra.mxu0 %v3412
        %v3530 = vpop.f32.mrf.mxu0
        %v3531 = vadd.f32 0.0, %v3530
        %v3532 = vpop.f32.mrf.mxu0
        %v3533 = vadd.f32 0.0, %v3532
        %3534 = vdwg.mxu0
        %3535 = vmatpush.bf16.msra.mxu0 %v1026
        %3536 = vmatpush.bf16.msra.mxu0 %v1025
        %3537 = vmatpush.bf16.msra.mxu0 %v1024
        %3538 = vmatpush.bf16.msra.mxu0 %v1023
        %3539 = vmatpush.bf16.msra.mxu0 %v1022
        %3540 = vmatpush.bf16.msra.mxu0 %v1021
        %3541 = vmatpush.bf16.msra.mxu0 %v1020
        %3542 = vmatpush.bf16.msra.mxu0 %v1019
        %3543 = vmatmul.bf16.gmra.mxu0 %v3383
        %v3544 = vpop.f32.mrf.mxu0
        %v3545 = vadd.f32 %v3456, %v3544
        %v3546 = vpop.f32.mrf.mxu0
        %v3547 = vadd.f32 %v3458, %v3546
        %3548 = vmatmul.bf16.gmra.mxu0 %v3385
        %v3549 = vpop.f32.mrf.mxu0
        %v3550 = vadd.f32 %v3461, %v3549
        %v3551 = vpop.f32.mrf.mxu0
        %v3552 = vadd.f32 %v3463, %v3551
        %3553 = vmatmul.bf16.gmra.mxu0 %v3387
        %v3554 = vpop.f32.mrf.mxu0
        %v3555 = vadd.f32 %v3466, %v3554
        %v3556 = vpop.f32.mrf.mxu0
        %v3557 = vadd.f32 %v3468, %v3556
        %3558 = vmatmul.bf16.gmra.mxu0 %v3389
        %v3559 = vpop.f32.mrf.mxu0
        %v3560 = vadd.f32 %v3471, %v3559
        %v3561 = vpop.f32.mrf.mxu0
        %v3562 = vadd.f32 %v3473, %v3561
        %3563 = vmatmul.bf16.gmra.mxu0 %v3391
        %v3564 = vpop.f32.mrf.mxu0
        %v3565 = vadd.f32 %v3476, %v3564
        %v3566 = vpop.f32.mrf.mxu0
        %v3567 = vadd.f32 %v3478, %v3566
        %3568 = vmatmul.bf16.gmra.mxu0 %v3393
        %v3569 = vpop.f32.mrf.mxu0
        %v3570 = vadd.f32 %v3481, %v3569
        %v3571 = vpop.f32.mrf.mxu0
        %v3572 = vadd.f32 %v3483, %v3571
        %3573 = vmatmul.bf16.gmra.mxu0 %v3395
        %v3574 = vpop.f32.mrf.mxu0
        %v3575 = vadd.f32 %v3486, %v3574
        %v3576 = vpop.f32.mrf.mxu0
        %v3577 = vadd.f32 %v3488, %v3576
        %3578 = vmatmul.bf16.gmra.mxu0 %v3397
        %v3579 = vpop.f32.mrf.mxu0
        %v3580 = vadd.f32 %v3491, %v3579
        %v3581 = vpop.f32.mrf.mxu0
        %v3582 = vadd.f32 %v3493, %v3581
        %3583 = vmatmul.bf16.gmra.mxu0 %v3399
        %v3584 = vpop.f32.mrf.mxu0
        %v3585 = vadd.f32 %v3496, %v3584
        %v3586 = vpop.f32.mrf.mxu0
        %v3587 = vadd.f32 %v3498, %v3586
        %3588 = vmatmul.bf16.gmra.mxu0 %v3401
        %v3589 = vpop.f32.mrf.mxu0
        %v3590 = vadd.f32 %v3501, %v3589
        %v3591 = vpop.f32.mrf.mxu0
        %v3592 = vadd.f32 %v3503, %v3591
        %3593 = vmatmul.bf16.gmra.mxu0 %v3403
        %v3594 = vpop.f32.mrf.mxu0
        %v3595 = vadd.f32 %v3506, %v3594
        %v3596 = vpop.f32.mrf.mxu0
        %v3597 = vadd.f32 %v3508, %v3596
        %3598 = vmatmul.bf16.gmra.mxu0 %v3405
        %v3599 = vpop.f32.mrf.mxu0
        %v3600 = vadd.f32 %v3511, %v3599
        %v3601 = vpop.f32.mrf.mxu0
        %v3602 = vadd.f32 %v3513, %v3601
        %3603 = vmatmul.bf16.gmra.mxu0 %v3407
        %v3604 = vpop.f32.mrf.mxu0
        %v3605 = vadd.f32 %v3516, %v3604
        %v3606 = vpop.f32.mrf.mxu0
        %v3607 = vadd.f32 %v3518, %v3606
        %3608 = vmatmul.bf16.gmra.mxu0 %v3409
        %v3609 = vpop.f32.mrf.mxu0
        %v3610 = vadd.f32 %v3521, %v3609
        %v3611 = vpop.f32.mrf.mxu0
        %v3612 = vadd.f32 %v3523, %v3611
        %3613 = vmatmul.bf16.gmra.mxu0 %v3411
        %v3614 = vpop.f32.mrf.mxu0
        %v3615 = vadd.f32 %v3526, %v3614
        %v3616 = vpop.f32.mrf.mxu0
        %v3617 = vadd.f32 %v3528, %v3616
        %3618 = vmatmul.bf16.gmra.mxu0 %v3413
        %v3619 = vpop.f32.mrf.mxu0
        %v3620 = vadd.f32 %v3531, %v3619
        %v3621 = vpop.f32.mrf.mxu0
        %v3622 = vadd.f32 %v3533, %v3621
        %3623 = vdwg.mxu0
        %s3624 = scalar_lea.vmem %s4, 64
        %v3625 = vld [vmem:[%s3624] sm:$0xf]
        %v3626 = vld [vmem:[%s3624 + $0x4] sm:$0xf]
        %v3627 = vld [vmem:[%s3624 + $0x8] sm:$0xf]
        %v3628 = vld [vmem:[%s3624 + $0xc] sm:$0xf]
        %v3629 = vpack.c.bf16 %v3547, %v3545
        %v3630 = vpack.c.bf16 %v3552, %v3550
        %v3631 = vpack.c.bf16 %v3557, %v3555
        %v3632 = vpack.c.bf16 %v3562, %v3560
        %v3633 = vpack.c.bf16 %v3567, %v3565
        %v3634 = vpack.c.bf16 %v3572, %v3570
        %v3635 = vpack.c.bf16 %v3577, %v3575
        %v3636 = vpack.c.bf16 %v3582, %v3580
        %v3637 = vpack.c.bf16 %v3587, %v3585
        %v3638 = vpack.c.bf16 %v3592, %v3590
        %v3639 = vpack.c.bf16 %v3597, %v3595
        %v3640 = vpack.c.bf16 %v3602, %v3600
        %v3641 = vpack.c.bf16 %v3607, %v3605
        %v3642 = vpack.c.bf16 %v3612, %v3610
        %v3643 = vpack.c.bf16 %v3617, %v3615
        %v3644 = vpack.c.bf16 %v3622, %v3620
        %v3649 = vunpack.c.l.b16 %v3625
        %v3650 = vunpack.c.l.b16 %v3626
        %v3651 = vunpack.c.l.b16 %v3627
        %v3652 = vunpack.c.l.b16 %v3628
        %v3653 = vpack.c.b16 %v3650, %v3649
        %v3654 = vpack.c.b16 %v3652, %v3651
        %v3658 = vsel %vm841, %v3629, 0
        %v3661 = vsel %vm841, %v3630, 0
        %v3664 = vsel %vm841, %v3631, 0
        %v3667 = vsel %vm841, %v3632, 0
        %v3670 = vsel %vm841, %v3633, 0
        %v3673 = vsel %vm841, %v3634, 0
        %v3676 = vsel %vm841, %v3635, 0
        %v3679 = vsel %vm841, %v3636, 0
        %v3682 = vsel %vm841, %v3637, 0
        %v3685 = vsel %vm841, %v3638, 0
        %v3688 = vsel %vm841, %v3639, 0
        %v3691 = vsel %vm841, %v3640, 0
        %v3694 = vsel %vm841, %v3641, 0
        %v3697 = vsel %vm841, %v3642, 0
        %v3700 = vsel %vm841, %v3643, 0
        %v3703 = vsel %vm841, %v3644, 0
        %3705 = vmatpush.bf16.msra.mxu0 0
        %3706 = vmatpush.bf16.msra.mxu0 0
        %3707 = vmatpush.bf16.msra.mxu0 0
        %3708 = vmatpush.bf16.msra.mxu0 0
        %3709 = vmatpush.bf16.msra.mxu0 0
        %3710 = vmatpush.bf16.msra.mxu0 0
        %3711 = vmatpush.bf16.msra.mxu0 %v3654
        %3712 = vmatpush.bf16.msra.mxu0 %v3653
        %3713 = vmatmul.bf16.gmra.mxu0 %v3658
        %v3714 = vpop.f32.mrf.mxu0
        %v3715 = vadd.f32 0.0, %v3714
        %v3716 = vpop.f32.mrf.mxu0
        %v3717 = vadd.f32 0.0, %v3716
        %3718 = vmatmul.bf16.gmra.mxu0 %v3661
        %v3719 = vpop.f32.mrf.mxu0
        %v3720 = vadd.f32 0.0, %v3719
        %v3721 = vpop.f32.mrf.mxu0
        %v3722 = vadd.f32 0.0, %v3721
        %3723 = vmatmul.bf16.gmra.mxu0 %v3664
        %v3724 = vpop.f32.mrf.mxu0
        %v3725 = vadd.f32 0.0, %v3724
        %v3726 = vpop.f32.mrf.mxu0
        %v3727 = vadd.f32 0.0, %v3726
        %3728 = vmatmul.bf16.gmra.mxu0 %v3667
        %v3729 = vpop.f32.mrf.mxu0
        %v3730 = vadd.f32 0.0, %v3729
        %v3731 = vpop.f32.mrf.mxu0
        %v3732 = vadd.f32 0.0, %v3731
        %3733 = vmatmul.bf16.gmra.mxu0 %v3670
        %v3734 = vpop.f32.mrf.mxu0
        %v3735 = vadd.f32 0.0, %v3734
        %v3736 = vpop.f32.mrf.mxu0
        %v3737 = vadd.f32 0.0, %v3736
        %3738 = vmatmul.bf16.gmra.mxu0 %v3673
        %v3739 = vpop.f32.mrf.mxu0
        %v3740 = vadd.f32 0.0, %v3739
        %v3741 = vpop.f32.mrf.mxu0
        %v3742 = vadd.f32 0.0, %v3741
        %3743 = vmatmul.bf16.gmra.mxu0 %v3676
        %v3744 = vpop.f32.mrf.mxu0
        %v3745 = vadd.f32 0.0, %v3744
        %v3746 = vpop.f32.mrf.mxu0
        %v3747 = vadd.f32 0.0, %v3746
        %3748 = vmatmul.bf16.gmra.mxu0 %v3679
        %v3749 = vpop.f32.mrf.mxu0
        %v3750 = vadd.f32 0.0, %v3749
        %v3751 = vpop.f32.mrf.mxu0
        %v3752 = vadd.f32 0.0, %v3751
        %3753 = vmatmul.bf16.gmra.mxu0 %v3682
        %v3754 = vpop.f32.mrf.mxu0
        %v3755 = vadd.f32 0.0, %v3754
        %v3756 = vpop.f32.mrf.mxu0
        %v3757 = vadd.f32 0.0, %v3756
        %3758 = vmatmul.bf16.gmra.mxu0 %v3685
        %v3759 = vpop.f32.mrf.mxu0
        %v3760 = vadd.f32 0.0, %v3759
        %v3761 = vpop.f32.mrf.mxu0
        %v3762 = vadd.f32 0.0, %v3761
        %3763 = vmatmul.bf16.gmra.mxu0 %v3688
        %v3764 = vpop.f32.mrf.mxu0
        %v3765 = vadd.f32 0.0, %v3764
        %v3766 = vpop.f32.mrf.mxu0
        %v3767 = vadd.f32 0.0, %v3766
        %3768 = vmatmul.bf16.gmra.mxu0 %v3691
        %v3769 = vpop.f32.mrf.mxu0
        %v3770 = vadd.f32 0.0, %v3769
        %v3771 = vpop.f32.mrf.mxu0
        %v3772 = vadd.f32 0.0, %v3771
        %3773 = vmatmul.bf16.gmra.mxu0 %v3694
        %v3774 = vpop.f32.mrf.mxu0
        %v3775 = vadd.f32 0.0, %v3774
        %v3776 = vpop.f32.mrf.mxu0
        %v3777 = vadd.f32 0.0, %v3776
        %3778 = vmatmul.bf16.gmra.mxu0 %v3697
        %v3779 = vpop.f32.mrf.mxu0
        %v3780 = vadd.f32 0.0, %v3779
        %v3781 = vpop.f32.mrf.mxu0
        %v3782 = vadd.f32 0.0, %v3781
        %3783 = vmatmul.bf16.gmra.mxu0 %v3700
        %v3784 = vpop.f32.mrf.mxu0
        %v3785 = vadd.f32 0.0, %v3784
        %v3786 = vpop.f32.mrf.mxu0
        %v3787 = vadd.f32 0.0, %v3786
        %3788 = vmatmul.bf16.gmra.mxu0 %v3703
        %v3789 = vpop.f32.mrf.mxu0
        %v3790 = vadd.f32 0.0, %v3789
        %v3791 = vpop.f32.mrf.mxu0
        %v3792 = vadd.f32 0.0, %v3791
        %3793 = vdwg.mxu0
        %v3794 = vadd.f32 %v3221, %v3715
        %v3795 = vadd.f32 %v3222, %v3717
        %v3796 = vadd.f32 %v3223, %v3720
        %v3797 = vadd.f32 %v3224, %v3722
        %v3798 = vadd.f32 %v3225, %v3725
        %v3799 = vadd.f32 %v3226, %v3727
        %v3800 = vadd.f32 %v3227, %v3730
        %v3801 = vadd.f32 %v3228, %v3732
        %v3802 = vadd.f32 %v3229, %v3735
        %v3803 = vadd.f32 %v3230, %v3737
        %v3804 = vadd.f32 %v3231, %v3740
        %v3805 = vadd.f32 %v3232, %v3742
        %v3806 = vadd.f32 %v3233, %v3745
        %v3807 = vadd.f32 %v3234, %v3747
        %v3808 = vadd.f32 %v3235, %v3750
        %v3809 = vadd.f32 %v3236, %v3752
        %v3810 = vadd.f32 %v3237, %v3755
        %v3811 = vadd.f32 %v3238, %v3757
        %v3812 = vadd.f32 %v3239, %v3760
        %v3813 = vadd.f32 %v3240, %v3762
        %v3814 = vadd.f32 %v3241, %v3765
        %v3815 = vadd.f32 %v3242, %v3767
        %v3816 = vadd.f32 %v3243, %v3770
        %v3817 = vadd.f32 %v3244, %v3772
        %v3818 = vadd.f32 %v3245, %v3775
        %v3819 = vadd.f32 %v3246, %v3777
        %v3820 = vadd.f32 %v3247, %v3780
        %v3821 = vadd.f32 %v3248, %v3782
        %v3822 = vadd.f32 %v3249, %v3785
        %v3823 = vadd.f32 %v3250, %v3787
        %v3824 = vadd.f32 %v3251, %v3790
        %v3825 = vadd.f32 %v3252, %v3792
        %s3826 = scalar_lea.vmem %s3, 1280
        %v3827 = vld [vmem:[%s3826] sm:$0xff]
        %v3828 = vld [vmem:[%s3826 + $0x8] sm:$0xff]
        %v3829 = vld [vmem:[%s3826 + $0x10] sm:$0xff]
        %v3830 = vld [vmem:[%s3826 + $0x18] sm:$0xff]
        %v3831 = vld [vmem:[%s3826 + $0x20] sm:$0xff]
        %v3832 = vld [vmem:[%s3826 + $0x28] sm:$0xff]
        %v3833 = vld [vmem:[%s3826 + $0x30] sm:$0xff]
        %v3834 = vld [vmem:[%s3826 + $0x38] sm:$0xff]
        %v3835 = vld [vmem:[%s3826 + $0x40] sm:$0xff]
        %v3836 = vld [vmem:[%s3826 + $0x48] sm:$0xff]
        %v3837 = vld [vmem:[%s3826 + $0x50] sm:$0xff]
        %v3838 = vld [vmem:[%s3826 + $0x58] sm:$0xff]
        %v3839 = vld [vmem:[%s3826 + $0x60] sm:$0xff]
        %v3840 = vld [vmem:[%s3826 + $0x68] sm:$0xff]
        %v3841 = vld [vmem:[%s3826 + $0x70] sm:$0xff]
        %v3842 = vld [vmem:[%s3826 + $0x78] sm:$0xff]
        %v3843 = vld [vmem:[%s3826 + $0x80] sm:$0xff]
        %v3844 = vld [vmem:[%s3826 + $0x88] sm:$0xff]
        %v3845 = vld [vmem:[%s3826 + $0x90] sm:$0xff]
        %v3846 = vld [vmem:[%s3826 + $0x98] sm:$0xff]
        %v3847 = vld [vmem:[%s3826 + $0xa0] sm:$0xff]
        %v3848 = vld [vmem:[%s3826 + $0xa8] sm:$0xff]
        %v3849 = vld [vmem:[%s3826 + $0xb0] sm:$0xff]
        %v3850 = vld [vmem:[%s3826 + $0xb8] sm:$0xff]
        %v3851 = vld [vmem:[%s3826 + $0xc0] sm:$0xff]
        %v3852 = vld [vmem:[%s3826 + $0xc8] sm:$0xff]
        %v3853 = vld [vmem:[%s3826 + $0xd0] sm:$0xff]
        %v3854 = vld [vmem:[%s3826 + $0xd8] sm:$0xff]
        %v3855 = vld [vmem:[%s3826 + $0xe0] sm:$0xff]
        %v3856 = vld [vmem:[%s3826 + $0xe8] sm:$0xff]
        %v3857 = vld [vmem:[%s3826 + $0xf0] sm:$0xff]
        %v3858 = vld [vmem:[%s3826 + $0xf8] sm:$0xff]
        %v3891 = vunpack.c.l.b16 %v3827
        %v3892 = vunpack.c.h.b16 %v3827
        %v3893 = vunpack.c.l.b16 %v3828
        %v3894 = vunpack.c.h.b16 %v3828
        %v3895 = vunpack.c.l.b16 %v3829
        %v3896 = vunpack.c.h.b16 %v3829
        %v3897 = vunpack.c.l.b16 %v3830
        %v3898 = vunpack.c.h.b16 %v3830
        %v3899 = vunpack.c.l.b16 %v3831
        %v3900 = vunpack.c.h.b16 %v3831
        %v3901 = vunpack.c.l.b16 %v3832
        %v3902 = vunpack.c.h.b16 %v3832
        %v3903 = vunpack.c.l.b16 %v3833
        %v3904 = vunpack.c.h.b16 %v3833
        %v3905 = vunpack.c.l.b16 %v3834
        %v3906 = vunpack.c.h.b16 %v3834
        %v3907 = vunpack.c.l.b16 %v3835
        %v3908 = vunpack.c.h.b16 %v3835
        %v3909 = vunpack.c.l.b16 %v3836
        %v3910 = vunpack.c.h.b16 %v3836
        %v3911 = vunpack.c.l.b16 %v3837
        %v3912 = vunpack.c.h.b16 %v3837
        %v3913 = vunpack.c.l.b16 %v3838
        %v3914 = vunpack.c.h.b16 %v3838
        %v3915 = vunpack.c.l.b16 %v3839
        %v3916 = vunpack.c.h.b16 %v3839
        %v3917 = vunpack.c.l.b16 %v3840
        %v3918 = vunpack.c.h.b16 %v3840
        %v3919 = vunpack.c.l.b16 %v3841
        %v3920 = vunpack.c.h.b16 %v3841
        %v3921 = vunpack.c.l.b16 %v3842
        %v3922 = vunpack.c.h.b16 %v3842
        %v3923 = vunpack.c.l.b16 %v3843
        %v3924 = vunpack.c.h.b16 %v3843
        %v3925 = vunpack.c.l.b16 %v3844
        %v3926 = vunpack.c.h.b16 %v3844
        %v3927 = vunpack.c.l.b16 %v3845
        %v3928 = vunpack.c.h.b16 %v3845
        %v3929 = vunpack.c.l.b16 %v3846
        %v3930 = vunpack.c.h.b16 %v3846
        %v3931 = vunpack.c.l.b16 %v3847
        %v3932 = vunpack.c.h.b16 %v3847
        %v3933 = vunpack.c.l.b16 %v3848
        %v3934 = vunpack.c.h.b16 %v3848
        %v3935 = vunpack.c.l.b16 %v3849
        %v3936 = vunpack.c.h.b16 %v3849
        %v3937 = vunpack.c.l.b16 %v3850
        %v3938 = vunpack.c.h.b16 %v3850
        %v3939 = vunpack.c.l.b16 %v3851
        %v3940 = vunpack.c.h.b16 %v3851
        %v3941 = vunpack.c.l.b16 %v3852
        %v3942 = vunpack.c.h.b16 %v3852
        %v3943 = vunpack.c.l.b16 %v3853
        %v3944 = vunpack.c.h.b16 %v3853
        %v3945 = vunpack.c.l.b16 %v3854
        %v3946 = vunpack.c.h.b16 %v3854
        %v3947 = vunpack.c.l.b16 %v3855
        %v3948 = vunpack.c.h.b16 %v3855
        %v3949 = vunpack.c.l.b16 %v3856
        %v3950 = vunpack.c.h.b16 %v3856
        %v3951 = vunpack.c.l.b16 %v3857
        %v3952 = vunpack.c.h.b16 %v3857
        %v3953 = vunpack.c.l.b16 %v3858
        %v3954 = vunpack.c.h.b16 %v3858
        %v3955 = vpack.c.b16 %v3893, %v3891
        %v3956 = vpack.c.b16 %v3894, %v3892
        %v3957 = vpack.c.b16 %v3897, %v3895
        %v3958 = vpack.c.b16 %v3898, %v3896
        %v3959 = vpack.c.b16 %v3901, %v3899
        %v3960 = vpack.c.b16 %v3902, %v3900
        %v3961 = vpack.c.b16 %v3905, %v3903
        %v3962 = vpack.c.b16 %v3906, %v3904
        %v3963 = vpack.c.b16 %v3909, %v3907
        %v3964 = vpack.c.b16 %v3910, %v3908
        %v3965 = vpack.c.b16 %v3913, %v3911
        %v3966 = vpack.c.b16 %v3914, %v3912
        %v3967 = vpack.c.b16 %v3917, %v3915
        %v3968 = vpack.c.b16 %v3918, %v3916
        %v3969 = vpack.c.b16 %v3921, %v3919
        %v3970 = vpack.c.b16 %v3922, %v3920
        %v3971 = vpack.c.b16 %v3925, %v3923
        %v3972 = vpack.c.b16 %v3926, %v3924
        %v3973 = vpack.c.b16 %v3929, %v3927
        %v3974 = vpack.c.b16 %v3930, %v3928
        %v3975 = vpack.c.b16 %v3933, %v3931
        %v3976 = vpack.c.b16 %v3934, %v3932
        %v3977 = vpack.c.b16 %v3937, %v3935
        %v3978 = vpack.c.b16 %v3938, %v3936
        %v3979 = vpack.c.b16 %v3941, %v3939
        %v3980 = vpack.c.b16 %v3942, %v3940
        %v3981 = vpack.c.b16 %v3945, %v3943
        %v3982 = vpack.c.b16 %v3946, %v3944
        %v3983 = vpack.c.b16 %v3949, %v3947
        %v3984 = vpack.c.b16 %v3950, %v3948
        %v3985 = vpack.c.b16 %v3953, %v3951
        %v3986 = vpack.c.b16 %v3954, %v3952
        %4019 = vmatpush.bf16.msra.mxu0 %v1018
        %4020 = vmatpush.bf16.msra.mxu0 %v1017
        %4021 = vmatpush.bf16.msra.mxu0 %v1016
        %4022 = vmatpush.bf16.msra.mxu0 %v1015
        %4023 = vmatpush.bf16.msra.mxu0 %v1014
        %4024 = vmatpush.bf16.msra.mxu0 %v1013
        %4025 = vmatpush.bf16.msra.mxu0 %v1012
        %4026 = vmatpush.bf16.msra.mxu0 %v1011
        %4027 = vmatmul.bf16.gmra.mxu0 %v3955
        %v4028 = vpop.f32.mrf.mxu0
        %v4029 = vadd.f32 0.0, %v4028
        %v4030 = vpop.f32.mrf.mxu0
        %v4031 = vadd.f32 0.0, %v4030
        %4032 = vmatmul.bf16.gmra.mxu0 %v3957
        %v4033 = vpop.f32.mrf.mxu0
        %v4034 = vadd.f32 0.0, %v4033
        %v4035 = vpop.f32.mrf.mxu0
        %v4036 = vadd.f32 0.0, %v4035
        %4037 = vmatmul.bf16.gmra.mxu0 %v3959
        %v4038 = vpop.f32.mrf.mxu0
        %v4039 = vadd.f32 0.0, %v4038
        %v4040 = vpop.f32.mrf.mxu0
        %v4041 = vadd.f32 0.0, %v4040
        %4042 = vmatmul.bf16.gmra.mxu0 %v3961
        %v4043 = vpop.f32.mrf.mxu0
        %v4044 = vadd.f32 0.0, %v4043
        %v4045 = vpop.f32.mrf.mxu0
        %v4046 = vadd.f32 0.0, %v4045
        %4047 = vmatmul.bf16.gmra.mxu0 %v3963
        %v4048 = vpop.f32.mrf.mxu0
        %v4049 = vadd.f32 0.0, %v4048
        %v4050 = vpop.f32.mrf.mxu0
        %v4051 = vadd.f32 0.0, %v4050
        %4052 = vmatmul.bf16.gmra.mxu0 %v3965
        %v4053 = vpop.f32.mrf.mxu0
        %v4054 = vadd.f32 0.0, %v4053
        %v4055 = vpop.f32.mrf.mxu0
        %v4056 = vadd.f32 0.0, %v4055
        %4057 = vmatmul.bf16.gmra.mxu0 %v3967
        %v4058 = vpop.f32.mrf.mxu0
        %v4059 = vadd.f32 0.0, %v4058
        %v4060 = vpop.f32.mrf.mxu0
        %v4061 = vadd.f32 0.0, %v4060
        %4062 = vmatmul.bf16.gmra.mxu0 %v3969
        %v4063 = vpop.f32.mrf.mxu0
        %v4064 = vadd.f32 0.0, %v4063
        %v4065 = vpop.f32.mrf.mxu0
        %v4066 = vadd.f32 0.0, %v4065
        %4067 = vmatmul.bf16.gmra.mxu0 %v3971
        %v4068 = vpop.f32.mrf.mxu0
        %v4069 = vadd.f32 0.0, %v4068
        %v4070 = vpop.f32.mrf.mxu0
        %v4071 = vadd.f32 0.0, %v4070
        %4072 = vmatmul.bf16.gmra.mxu0 %v3973
        %v4073 = vpop.f32.mrf.mxu0
        %v4074 = vadd.f32 0.0, %v4073
        %v4075 = vpop.f32.mrf.mxu0
        %v4076 = vadd.f32 0.0, %v4075
        %4077 = vmatmul.bf16.gmra.mxu0 %v3975
        %v4078 = vpop.f32.mrf.mxu0
        %v4079 = vadd.f32 0.0, %v4078
        %v4080 = vpop.f32.mrf.mxu0
        %v4081 = vadd.f32 0.0, %v4080
        %4082 = vmatmul.bf16.gmra.mxu0 %v3977
        %v4083 = vpop.f32.mrf.mxu0
        %v4084 = vadd.f32 0.0, %v4083
        %v4085 = vpop.f32.mrf.mxu0
        %v4086 = vadd.f32 0.0, %v4085
        %4087 = vmatmul.bf16.gmra.mxu0 %v3979
        %v4088 = vpop.f32.mrf.mxu0
        %v4089 = vadd.f32 0.0, %v4088
        %v4090 = vpop.f32.mrf.mxu0
        %v4091 = vadd.f32 0.0, %v4090
        %4092 = vmatmul.bf16.gmra.mxu0 %v3981
        %v4093 = vpop.f32.mrf.mxu0
        %v4094 = vadd.f32 0.0, %v4093
        %v4095 = vpop.f32.mrf.mxu0
        %v4096 = vadd.f32 0.0, %v4095
        %4097 = vmatmul.bf16.gmra.mxu0 %v3983
        %v4098 = vpop.f32.mrf.mxu0
        %v4099 = vadd.f32 0.0, %v4098
        %v4100 = vpop.f32.mrf.mxu0
        %v4101 = vadd.f32 0.0, %v4100
        %4102 = vmatmul.bf16.gmra.mxu0 %v3985
        %v4103 = vpop.f32.mrf.mxu0
        %v4104 = vadd.f32 0.0, %v4103
        %v4105 = vpop.f32.mrf.mxu0
        %v4106 = vadd.f32 0.0, %v4105
        %4107 = vdwg.mxu0
        %4108 = vmatpush.bf16.msra.mxu0 %v1026
        %4109 = vmatpush.bf16.msra.mxu0 %v1025
        %4110 = vmatpush.bf16.msra.mxu0 %v1024
        %4111 = vmatpush.bf16.msra.mxu0 %v1023
        %4112 = vmatpush.bf16.msra.mxu0 %v1022
        %4113 = vmatpush.bf16.msra.mxu0 %v1021
        %4114 = vmatpush.bf16.msra.mxu0 %v1020
        %4115 = vmatpush.bf16.msra.mxu0 %v1019
        %4116 = vmatmul.bf16.gmra.mxu0 %v3956
        %v4117 = vpop.f32.mrf.mxu0
        %v4118 = vadd.f32 %v4029, %v4117
        %v4119 = vpop.f32.mrf.mxu0
        %v4120 = vadd.f32 %v4031, %v4119
        %4121 = vmatmul.bf16.gmra.mxu0 %v3958
        %v4122 = vpop.f32.mrf.mxu0
        %v4123 = vadd.f32 %v4034, %v4122
        %v4124 = vpop.f32.mrf.mxu0
        %v4125 = vadd.f32 %v4036, %v4124
        %4126 = vmatmul.bf16.gmra.mxu0 %v3960
        %v4127 = vpop.f32.mrf.mxu0
        %v4128 = vadd.f32 %v4039, %v4127
        %v4129 = vpop.f32.mrf.mxu0
        %v4130 = vadd.f32 %v4041, %v4129
        %4131 = vmatmul.bf16.gmra.mxu0 %v3962
        %v4132 = vpop.f32.mrf.mxu0
        %v4133 = vadd.f32 %v4044, %v4132
        %v4134 = vpop.f32.mrf.mxu0
        %v4135 = vadd.f32 %v4046, %v4134
        %4136 = vmatmul.bf16.gmra.mxu0 %v3964
        %v4137 = vpop.f32.mrf.mxu0
        %v4138 = vadd.f32 %v4049, %v4137
        %v4139 = vpop.f32.mrf.mxu0
        %v4140 = vadd.f32 %v4051, %v4139
        %4141 = vmatmul.bf16.gmra.mxu0 %v3966
        %v4142 = vpop.f32.mrf.mxu0
        %v4143 = vadd.f32 %v4054, %v4142
        %v4144 = vpop.f32.mrf.mxu0
        %v4145 = vadd.f32 %v4056, %v4144
        %4146 = vmatmul.bf16.gmra.mxu0 %v3968
        %v4147 = vpop.f32.mrf.mxu0
        %v4148 = vadd.f32 %v4059, %v4147
        %v4149 = vpop.f32.mrf.mxu0
        %v4150 = vadd.f32 %v4061, %v4149
        %4151 = vmatmul.bf16.gmra.mxu0 %v3970
        %v4152 = vpop.f32.mrf.mxu0
        %v4153 = vadd.f32 %v4064, %v4152
        %v4154 = vpop.f32.mrf.mxu0
        %v4155 = vadd.f32 %v4066, %v4154
        %4156 = vmatmul.bf16.gmra.mxu0 %v3972
        %v4157 = vpop.f32.mrf.mxu0
        %v4158 = vadd.f32 %v4069, %v4157
        %v4159 = vpop.f32.mrf.mxu0
        %v4160 = vadd.f32 %v4071, %v4159
        %4161 = vmatmul.bf16.gmra.mxu0 %v3974
        %v4162 = vpop.f32.mrf.mxu0
        %v4163 = vadd.f32 %v4074, %v4162
        %v4164 = vpop.f32.mrf.mxu0
        %v4165 = vadd.f32 %v4076, %v4164
        %4166 = vmatmul.bf16.gmra.mxu0 %v3976
        %v4167 = vpop.f32.mrf.mxu0
        %v4168 = vadd.f32 %v4079, %v4167
        %v4169 = vpop.f32.mrf.mxu0
        %v4170 = vadd.f32 %v4081, %v4169
        %4171 = vmatmul.bf16.gmra.mxu0 %v3978
        %v4172 = vpop.f32.mrf.mxu0
        %v4173 = vadd.f32 %v4084, %v4172
        %v4174 = vpop.f32.mrf.mxu0
        %v4175 = vadd.f32 %v4086, %v4174
        %4176 = vmatmul.bf16.gmra.mxu0 %v3980
        %v4177 = vpop.f32.mrf.mxu0
        %v4178 = vadd.f32 %v4089, %v4177
        %v4179 = vpop.f32.mrf.mxu0
        %v4180 = vadd.f32 %v4091, %v4179
        %4181 = vmatmul.bf16.gmra.mxu0 %v3982
        %v4182 = vpop.f32.mrf.mxu0
        %v4183 = vadd.f32 %v4094, %v4182
        %v4184 = vpop.f32.mrf.mxu0
        %v4185 = vadd.f32 %v4096, %v4184
        %4186 = vmatmul.bf16.gmra.mxu0 %v3984
        %v4187 = vpop.f32.mrf.mxu0
        %v4188 = vadd.f32 %v4099, %v4187
        %v4189 = vpop.f32.mrf.mxu0
        %v4190 = vadd.f32 %v4101, %v4189
        %4191 = vmatmul.bf16.gmra.mxu0 %v3986
        %v4192 = vpop.f32.mrf.mxu0
        %v4193 = vadd.f32 %v4104, %v4192
        %v4194 = vpop.f32.mrf.mxu0
        %v4195 = vadd.f32 %v4106, %v4194
        %4196 = vdwg.mxu0
        %s4197 = scalar_lea.vmem %s4, 80
        %v4198 = vld [vmem:[%s4197] sm:$0xf]
        %v4199 = vld [vmem:[%s4197 + $0x4] sm:$0xf]
        %v4200 = vld [vmem:[%s4197 + $0x8] sm:$0xf]
        %v4201 = vld [vmem:[%s4197 + $0xc] sm:$0xf]
        %v4202 = vpack.c.bf16 %v4120, %v4118
        %v4203 = vpack.c.bf16 %v4125, %v4123
        %v4204 = vpack.c.bf16 %v4130, %v4128
        %v4205 = vpack.c.bf16 %v4135, %v4133
        %v4206 = vpack.c.bf16 %v4140, %v4138
        %v4207 = vpack.c.bf16 %v4145, %v4143
        %v4208 = vpack.c.bf16 %v4150, %v4148
        %v4209 = vpack.c.bf16 %v4155, %v4153
        %v4210 = vpack.c.bf16 %v4160, %v4158
        %v4211 = vpack.c.bf16 %v4165, %v4163
        %v4212 = vpack.c.bf16 %v4170, %v4168
        %v4213 = vpack.c.bf16 %v4175, %v4173
        %v4214 = vpack.c.bf16 %v4180, %v4178
        %v4215 = vpack.c.bf16 %v4185, %v4183
        %v4216 = vpack.c.bf16 %v4190, %v4188
        %v4217 = vpack.c.bf16 %v4195, %v4193
        %v4222 = vunpack.c.l.b16 %v4198
        %v4223 = vunpack.c.l.b16 %v4199
        %v4224 = vunpack.c.l.b16 %v4200
        %v4225 = vunpack.c.l.b16 %v4201
        %v4226 = vpack.c.b16 %v4223, %v4222
        %v4227 = vpack.c.b16 %v4225, %v4224
        %v4231 = vsel %vm841, %v4202, 0
        %v4234 = vsel %vm841, %v4203, 0
        %v4237 = vsel %vm841, %v4204, 0
        %v4240 = vsel %vm841, %v4205, 0
        %v4243 = vsel %vm841, %v4206, 0
        %v4246 = vsel %vm841, %v4207, 0
        %v4249 = vsel %vm841, %v4208, 0
        %v4252 = vsel %vm841, %v4209, 0
        %v4255 = vsel %vm841, %v4210, 0
        %v4258 = vsel %vm841, %v4211, 0
        %v4261 = vsel %vm841, %v4212, 0
        %v4264 = vsel %vm841, %v4213, 0
        %v4267 = vsel %vm841, %v4214, 0
        %v4270 = vsel %vm841, %v4215, 0
        %v4273 = vsel %vm841, %v4216, 0
        %v4276 = vsel %vm841, %v4217, 0
        %4278 = vmatpush.bf16.msra.mxu0 0
        %4279 = vmatpush.bf16.msra.mxu0 0
        %4280 = vmatpush.bf16.msra.mxu0 0
        %4281 = vmatpush.bf16.msra.mxu0 0
        %4282 = vmatpush.bf16.msra.mxu0 0
        %4283 = vmatpush.bf16.msra.mxu0 0
        %4284 = vmatpush.bf16.msra.mxu0 %v4227
        %4285 = vmatpush.bf16.msra.mxu0 %v4226
        %4286 = vmatmul.bf16.gmra.mxu0 %v4231
        %v4287 = vpop.f32.mrf.mxu0
        %v4288 = vadd.f32 0.0, %v4287
        %v4289 = vpop.f32.mrf.mxu0
        %v4290 = vadd.f32 0.0, %v4289
        %4291 = vmatmul.bf16.gmra.mxu0 %v4234
        %v4292 = vpop.f32.mrf.mxu0
        %v4293 = vadd.f32 0.0, %v4292
        %v4294 = vpop.f32.mrf.mxu0
        %v4295 = vadd.f32 0.0, %v4294
        %4296 = vmatmul.bf16.gmra.mxu0 %v4237
        %v4297 = vpop.f32.mrf.mxu0
        %v4298 = vadd.f32 0.0, %v4297
        %v4299 = vpop.f32.mrf.mxu0
        %v4300 = vadd.f32 0.0, %v4299
        %4301 = vmatmul.bf16.gmra.mxu0 %v4240
        %v4302 = vpop.f32.mrf.mxu0
        %v4303 = vadd.f32 0.0, %v4302
        %v4304 = vpop.f32.mrf.mxu0
        %v4305 = vadd.f32 0.0, %v4304
        %4306 = vmatmul.bf16.gmra.mxu0 %v4243
        %v4307 = vpop.f32.mrf.mxu0
        %v4308 = vadd.f32 0.0, %v4307
        %v4309 = vpop.f32.mrf.mxu0
        %v4310 = vadd.f32 0.0, %v4309
        %4311 = vmatmul.bf16.gmra.mxu0 %v4246
        %v4312 = vpop.f32.mrf.mxu0
        %v4313 = vadd.f32 0.0, %v4312
        %v4314 = vpop.f32.mrf.mxu0
        %v4315 = vadd.f32 0.0, %v4314
        %4316 = vmatmul.bf16.gmra.mxu0 %v4249
        %v4317 = vpop.f32.mrf.mxu0
        %v4318 = vadd.f32 0.0, %v4317
        %v4319 = vpop.f32.mrf.mxu0
        %v4320 = vadd.f32 0.0, %v4319
        %4321 = vmatmul.bf16.gmra.mxu0 %v4252
        %v4322 = vpop.f32.mrf.mxu0
        %v4323 = vadd.f32 0.0, %v4322
        %v4324 = vpop.f32.mrf.mxu0
        %v4325 = vadd.f32 0.0, %v4324
        %4326 = vmatmul.bf16.gmra.mxu0 %v4255
        %v4327 = vpop.f32.mrf.mxu0
        %v4328 = vadd.f32 0.0, %v4327
        %v4329 = vpop.f32.mrf.mxu0
        %v4330 = vadd.f32 0.0, %v4329
        %4331 = vmatmul.bf16.gmra.mxu0 %v4258
        %v4332 = vpop.f32.mrf.mxu0
        %v4333 = vadd.f32 0.0, %v4332
        %v4334 = vpop.f32.mrf.mxu0
        %v4335 = vadd.f32 0.0, %v4334
        %4336 = vmatmul.bf16.gmra.mxu0 %v4261
        %v4337 = vpop.f32.mrf.mxu0
        %v4338 = vadd.f32 0.0, %v4337
        %v4339 = vpop.f32.mrf.mxu0
        %v4340 = vadd.f32 0.0, %v4339
        %4341 = vmatmul.bf16.gmra.mxu0 %v4264
        %v4342 = vpop.f32.mrf.mxu0
        %v4343 = vadd.f32 0.0, %v4342
        %v4344 = vpop.f32.mrf.mxu0
        %v4345 = vadd.f32 0.0, %v4344
        %4346 = vmatmul.bf16.gmra.mxu0 %v4267
        %v4347 = vpop.f32.mrf.mxu0
        %v4348 = vadd.f32 0.0, %v4347
        %v4349 = vpop.f32.mrf.mxu0
        %v4350 = vadd.f32 0.0, %v4349
        %4351 = vmatmul.bf16.gmra.mxu0 %v4270
        %v4352 = vpop.f32.mrf.mxu0
        %v4353 = vadd.f32 0.0, %v4352
        %v4354 = vpop.f32.mrf.mxu0
        %v4355 = vadd.f32 0.0, %v4354
        %4356 = vmatmul.bf16.gmra.mxu0 %v4273
        %v4357 = vpop.f32.mrf.mxu0
        %v4358 = vadd.f32 0.0, %v4357
        %v4359 = vpop.f32.mrf.mxu0
        %v4360 = vadd.f32 0.0, %v4359
        %4361 = vmatmul.bf16.gmra.mxu0 %v4276
        %v4362 = vpop.f32.mrf.mxu0
        %v4363 = vadd.f32 0.0, %v4362
        %v4364 = vpop.f32.mrf.mxu0
        %v4365 = vadd.f32 0.0, %v4364
        %4366 = vdwg.mxu0
        %v4367 = vadd.f32 %v3794, %v4288
        %v4368 = vadd.f32 %v3795, %v4290
        %v4369 = vadd.f32 %v3796, %v4293
        %v4370 = vadd.f32 %v3797, %v4295
        %v4371 = vadd.f32 %v3798, %v4298
        %v4372 = vadd.f32 %v3799, %v4300
        %v4373 = vadd.f32 %v3800, %v4303
        %v4374 = vadd.f32 %v3801, %v4305
        %v4375 = vadd.f32 %v3802, %v4308
        %v4376 = vadd.f32 %v3803, %v4310
        %v4377 = vadd.f32 %v3804, %v4313
        %v4378 = vadd.f32 %v3805, %v4315
        %v4379 = vadd.f32 %v3806, %v4318
        %v4380 = vadd.f32 %v3807, %v4320
        %v4381 = vadd.f32 %v3808, %v4323
        %v4382 = vadd.f32 %v3809, %v4325
        %v4383 = vadd.f32 %v3810, %v4328
        %v4384 = vadd.f32 %v3811, %v4330
        %v4385 = vadd.f32 %v3812, %v4333
        %v4386 = vadd.f32 %v3813, %v4335
        %v4387 = vadd.f32 %v3814, %v4338
        %v4388 = vadd.f32 %v3815, %v4340
        %v4389 = vadd.f32 %v3816, %v4343
        %v4390 = vadd.f32 %v3817, %v4345
        %v4391 = vadd.f32 %v3818, %v4348
        %v4392 = vadd.f32 %v3819, %v4350
        %v4393 = vadd.f32 %v3820, %v4353
        %v4394 = vadd.f32 %v3821, %v4355
        %v4395 = vadd.f32 %v3822, %v4358
        %v4396 = vadd.f32 %v3823, %v4360
        %v4397 = vadd.f32 %v3824, %v4363
        %v4398 = vadd.f32 %v3825, %v4365
        %s4399 = scalar_lea.vmem %s3, 1536
        %v4400 = vld [vmem:[%s4399] sm:$0xff]
        %v4401 = vld [vmem:[%s4399 + $0x8] sm:$0xff]
        %v4402 = vld [vmem:[%s4399 + $0x10] sm:$0xff]
        %v4403 = vld [vmem:[%s4399 + $0x18] sm:$0xff]
        %v4404 = vld [vmem:[%s4399 + $0x20] sm:$0xff]
        %v4405 = vld [vmem:[%s4399 + $0x28] sm:$0xff]
        %v4406 = vld [vmem:[%s4399 + $0x30] sm:$0xff]
        %v4407 = vld [vmem:[%s4399 + $0x38] sm:$0xff]
        %v4408 = vld [vmem:[%s4399 + $0x40] sm:$0xff]
        %v4409 = vld [vmem:[%s4399 + $0x48] sm:$0xff]
        %v4410 = vld [vmem:[%s4399 + $0x50] sm:$0xff]
        %v4411 = vld [vmem:[%s4399 + $0x58] sm:$0xff]
        %v4412 = vld [vmem:[%s4399 + $0x60] sm:$0xff]
        %v4413 = vld [vmem:[%s4399 + $0x68] sm:$0xff]
        %v4414 = vld [vmem:[%s4399 + $0x70] sm:$0xff]
        %v4415 = vld [vmem:[%s4399 + $0x78] sm:$0xff]
        %v4416 = vld [vmem:[%s4399 + $0x80] sm:$0xff]
        %v4417 = vld [vmem:[%s4399 + $0x88] sm:$0xff]
        %v4418 = vld [vmem:[%s4399 + $0x90] sm:$0xff]
        %v4419 = vld [vmem:[%s4399 + $0x98] sm:$0xff]
        %v4420 = vld [vmem:[%s4399 + $0xa0] sm:$0xff]
        %v4421 = vld [vmem:[%s4399 + $0xa8] sm:$0xff]
        %v4422 = vld [vmem:[%s4399 + $0xb0] sm:$0xff]
        %v4423 = vld [vmem:[%s4399 + $0xb8] sm:$0xff]
        %v4424 = vld [vmem:[%s4399 + $0xc0] sm:$0xff]
        %v4425 = vld [vmem:[%s4399 + $0xc8] sm:$0xff]
        %v4426 = vld [vmem:[%s4399 + $0xd0] sm:$0xff]
        %v4427 = vld [vmem:[%s4399 + $0xd8] sm:$0xff]
        %v4428 = vld [vmem:[%s4399 + $0xe0] sm:$0xff]
        %v4429 = vld [vmem:[%s4399 + $0xe8] sm:$0xff]
        %v4430 = vld [vmem:[%s4399 + $0xf0] sm:$0xff]
        %v4431 = vld [vmem:[%s4399 + $0xf8] sm:$0xff]
        %v4464 = vunpack.c.l.b16 %v4400
        %v4465 = vunpack.c.h.b16 %v4400
        %v4466 = vunpack.c.l.b16 %v4401
        %v4467 = vunpack.c.h.b16 %v4401
        %v4468 = vunpack.c.l.b16 %v4402
        %v4469 = vunpack.c.h.b16 %v4402
        %v4470 = vunpack.c.l.b16 %v4403
        %v4471 = vunpack.c.h.b16 %v4403
        %v4472 = vunpack.c.l.b16 %v4404
        %v4473 = vunpack.c.h.b16 %v4404
        %v4474 = vunpack.c.l.b16 %v4405
        %v4475 = vunpack.c.h.b16 %v4405
        %v4476 = vunpack.c.l.b16 %v4406
        %v4477 = vunpack.c.h.b16 %v4406
        %v4478 = vunpack.c.l.b16 %v4407
        %v4479 = vunpack.c.h.b16 %v4407
        %v4480 = vunpack.c.l.b16 %v4408
        %v4481 = vunpack.c.h.b16 %v4408
        %v4482 = vunpack.c.l.b16 %v4409
        %v4483 = vunpack.c.h.b16 %v4409
        %v4484 = vunpack.c.l.b16 %v4410
        %v4485 = vunpack.c.h.b16 %v4410
        %v4486 = vunpack.c.l.b16 %v4411
        %v4487 = vunpack.c.h.b16 %v4411
        %v4488 = vunpack.c.l.b16 %v4412
        %v4489 = vunpack.c.h.b16 %v4412
        %v4490 = vunpack.c.l.b16 %v4413
        %v4491 = vunpack.c.h.b16 %v4413
        %v4492 = vunpack.c.l.b16 %v4414
        %v4493 = vunpack.c.h.b16 %v4414
        %v4494 = vunpack.c.l.b16 %v4415
        %v4495 = vunpack.c.h.b16 %v4415
        %v4496 = vunpack.c.l.b16 %v4416
        %v4497 = vunpack.c.h.b16 %v4416
        %v4498 = vunpack.c.l.b16 %v4417
        %v4499 = vunpack.c.h.b16 %v4417
        %v4500 = vunpack.c.l.b16 %v4418
        %v4501 = vunpack.c.h.b16 %v4418
        %v4502 = vunpack.c.l.b16 %v4419
        %v4503 = vunpack.c.h.b16 %v4419
        %v4504 = vunpack.c.l.b16 %v4420
        %v4505 = vunpack.c.h.b16 %v4420
        %v4506 = vunpack.c.l.b16 %v4421
        %v4507 = vunpack.c.h.b16 %v4421
        %v4508 = vunpack.c.l.b16 %v4422
        %v4509 = vunpack.c.h.b16 %v4422
        %v4510 = vunpack.c.l.b16 %v4423
        %v4511 = vunpack.c.h.b16 %v4423
        %v4512 = vunpack.c.l.b16 %v4424
        %v4513 = vunpack.c.h.b16 %v4424
        %v4514 = vunpack.c.l.b16 %v4425
        %v4515 = vunpack.c.h.b16 %v4425
        %v4516 = vunpack.c.l.b16 %v4426
        %v4517 = vunpack.c.h.b16 %v4426
        %v4518 = vunpack.c.l.b16 %v4427
        %v4519 = vunpack.c.h.b16 %v4427
        %v4520 = vunpack.c.l.b16 %v4428
        %v4521 = vunpack.c.h.b16 %v4428
        %v4522 = vunpack.c.l.b16 %v4429
        %v4523 = vunpack.c.h.b16 %v4429
        %v4524 = vunpack.c.l.b16 %v4430
        %v4525 = vunpack.c.h.b16 %v4430
        %v4526 = vunpack.c.l.b16 %v4431
        %v4527 = vunpack.c.h.b16 %v4431
        %v4528 = vpack.c.b16 %v4466, %v4464
        %v4529 = vpack.c.b16 %v4467, %v4465
        %v4530 = vpack.c.b16 %v4470, %v4468
        %v4531 = vpack.c.b16 %v4471, %v4469
        %v4532 = vpack.c.b16 %v4474, %v4472
        %v4533 = vpack.c.b16 %v4475, %v4473
        %v4534 = vpack.c.b16 %v4478, %v4476
        %v4535 = vpack.c.b16 %v4479, %v4477
        %v4536 = vpack.c.b16 %v4482, %v4480
        %v4537 = vpack.c.b16 %v4483, %v4481
        %v4538 = vpack.c.b16 %v4486, %v4484
        %v4539 = vpack.c.b16 %v4487, %v4485
        %v4540 = vpack.c.b16 %v4490, %v4488
        %v4541 = vpack.c.b16 %v4491, %v4489
        %v4542 = vpack.c.b16 %v4494, %v4492
        %v4543 = vpack.c.b16 %v4495, %v4493
        %v4544 = vpack.c.b16 %v4498, %v4496
        %v4545 = vpack.c.b16 %v4499, %v4497
        %v4546 = vpack.c.b16 %v4502, %v4500
        %v4547 = vpack.c.b16 %v4503, %v4501
        %v4548 = vpack.c.b16 %v4506, %v4504
        %v4549 = vpack.c.b16 %v4507, %v4505
        %v4550 = vpack.c.b16 %v4510, %v4508
        %v4551 = vpack.c.b16 %v4511, %v4509
        %v4552 = vpack.c.b16 %v4514, %v4512
        %v4553 = vpack.c.b16 %v4515, %v4513
        %v4554 = vpack.c.b16 %v4518, %v4516
        %v4555 = vpack.c.b16 %v4519, %v4517
        %v4556 = vpack.c.b16 %v4522, %v4520
        %v4557 = vpack.c.b16 %v4523, %v4521
        %v4558 = vpack.c.b16 %v4526, %v4524
        %v4559 = vpack.c.b16 %v4527, %v4525
        %4592 = vmatpush.bf16.msra.mxu0 %v1018
        %4593 = vmatpush.bf16.msra.mxu0 %v1017
        %4594 = vmatpush.bf16.msra.mxu0 %v1016
        %4595 = vmatpush.bf16.msra.mxu0 %v1015
        %4596 = vmatpush.bf16.msra.mxu0 %v1014
        %4597 = vmatpush.bf16.msra.mxu0 %v1013
        %4598 = vmatpush.bf16.msra.mxu0 %v1012
        %4599 = vmatpush.bf16.msra.mxu0 %v1011
        %4600 = vmatmul.bf16.gmra.mxu0 %v4528
        %v4601 = vpop.f32.mrf.mxu0
        %v4602 = vadd.f32 0.0, %v4601
        %v4603 = vpop.f32.mrf.mxu0
        %v4604 = vadd.f32 0.0, %v4603
        %4605 = vmatmul.bf16.gmra.mxu0 %v4530
        %v4606 = vpop.f32.mrf.mxu0
        %v4607 = vadd.f32 0.0, %v4606
        %v4608 = vpop.f32.mrf.mxu0
        %v4609 = vadd.f32 0.0, %v4608
        %4610 = vmatmul.bf16.gmra.mxu0 %v4532
        %v4611 = vpop.f32.mrf.mxu0
        %v4612 = vadd.f32 0.0, %v4611
        %v4613 = vpop.f32.mrf.mxu0
        %v4614 = vadd.f32 0.0, %v4613
        %4615 = vmatmul.bf16.gmra.mxu0 %v4534
        %v4616 = vpop.f32.mrf.mxu0
        %v4617 = vadd.f32 0.0, %v4616
        %v4618 = vpop.f32.mrf.mxu0
        %v4619 = vadd.f32 0.0, %v4618
        %4620 = vmatmul.bf16.gmra.mxu0 %v4536
        %v4621 = vpop.f32.mrf.mxu0
        %v4622 = vadd.f32 0.0, %v4621
        %v4623 = vpop.f32.mrf.mxu0
        %v4624 = vadd.f32 0.0, %v4623
        %4625 = vmatmul.bf16.gmra.mxu0 %v4538
        %v4626 = vpop.f32.mrf.mxu0
        %v4627 = vadd.f32 0.0, %v4626
        %v4628 = vpop.f32.mrf.mxu0
        %v4629 = vadd.f32 0.0, %v4628
        %4630 = vmatmul.bf16.gmra.mxu0 %v4540
        %v4631 = vpop.f32.mrf.mxu0
        %v4632 = vadd.f32 0.0, %v4631
        %v4633 = vpop.f32.mrf.mxu0
        %v4634 = vadd.f32 0.0, %v4633
        %4635 = vmatmul.bf16.gmra.mxu0 %v4542
        %v4636 = vpop.f32.mrf.mxu0
        %v4637 = vadd.f32 0.0, %v4636
        %v4638 = vpop.f32.mrf.mxu0
        %v4639 = vadd.f32 0.0, %v4638
        %4640 = vmatmul.bf16.gmra.mxu0 %v4544
        %v4641 = vpop.f32.mrf.mxu0
        %v4642 = vadd.f32 0.0, %v4641
        %v4643 = vpop.f32.mrf.mxu0
        %v4644 = vadd.f32 0.0, %v4643
        %4645 = vmatmul.bf16.gmra.mxu0 %v4546
        %v4646 = vpop.f32.mrf.mxu0
        %v4647 = vadd.f32 0.0, %v4646
        %v4648 = vpop.f32.mrf.mxu0
        %v4649 = vadd.f32 0.0, %v4648
        %4650 = vmatmul.bf16.gmra.mxu0 %v4548
        %v4651 = vpop.f32.mrf.mxu0
        %v4652 = vadd.f32 0.0, %v4651
        %v4653 = vpop.f32.mrf.mxu0
        %v4654 = vadd.f32 0.0, %v4653
        %4655 = vmatmul.bf16.gmra.mxu0 %v4550
        %v4656 = vpop.f32.mrf.mxu0
        %v4657 = vadd.f32 0.0, %v4656
        %v4658 = vpop.f32.mrf.mxu0
        %v4659 = vadd.f32 0.0, %v4658
        %4660 = vmatmul.bf16.gmra.mxu0 %v4552
        %v4661 = vpop.f32.mrf.mxu0
        %v4662 = vadd.f32 0.0, %v4661
        %v4663 = vpop.f32.mrf.mxu0
        %v4664 = vadd.f32 0.0, %v4663
        %4665 = vmatmul.bf16.gmra.mxu0 %v4554
        %v4666 = vpop.f32.mrf.mxu0
        %v4667 = vadd.f32 0.0, %v4666
        %v4668 = vpop.f32.mrf.mxu0
        %v4669 = vadd.f32 0.0, %v4668
        %4670 = vmatmul.bf16.gmra.mxu0 %v4556
        %v4671 = vpop.f32.mrf.mxu0
        %v4672 = vadd.f32 0.0, %v4671
        %v4673 = vpop.f32.mrf.mxu0
        %v4674 = vadd.f32 0.0, %v4673
        %4675 = vmatmul.bf16.gmra.mxu0 %v4558
        %v4676 = vpop.f32.mrf.mxu0
        %v4677 = vadd.f32 0.0, %v4676
        %v4678 = vpop.f32.mrf.mxu0
        %v4679 = vadd.f32 0.0, %v4678
        %4680 = vdwg.mxu0
        %4681 = vmatpush.bf16.msra.mxu0 %v1026
        %4682 = vmatpush.bf16.msra.mxu0 %v1025
        %4683 = vmatpush.bf16.msra.mxu0 %v1024
        %4684 = vmatpush.bf16.msra.mxu0 %v1023
        %4685 = vmatpush.bf16.msra.mxu0 %v1022
        %4686 = vmatpush.bf16.msra.mxu0 %v1021
        %4687 = vmatpush.bf16.msra.mxu0 %v1020
        %4688 = vmatpush.bf16.msra.mxu0 %v1019
        %4689 = vmatmul.bf16.gmra.mxu0 %v4529
        %v4690 = vpop.f32.mrf.mxu0
        %v4691 = vadd.f32 %v4602, %v4690
        %v4692 = vpop.f32.mrf.mxu0
        %v4693 = vadd.f32 %v4604, %v4692
        %4694 = vmatmul.bf16.gmra.mxu0 %v4531
        %v4695 = vpop.f32.mrf.mxu0
        %v4696 = vadd.f32 %v4607, %v4695
        %v4697 = vpop.f32.mrf.mxu0
        %v4698 = vadd.f32 %v4609, %v4697
        %4699 = vmatmul.bf16.gmra.mxu0 %v4533
        %v4700 = vpop.f32.mrf.mxu0
        %v4701 = vadd.f32 %v4612, %v4700
        %v4702 = vpop.f32.mrf.mxu0
        %v4703 = vadd.f32 %v4614, %v4702
        %4704 = vmatmul.bf16.gmra.mxu0 %v4535
        %v4705 = vpop.f32.mrf.mxu0
        %v4706 = vadd.f32 %v4617, %v4705
        %v4707 = vpop.f32.mrf.mxu0
        %v4708 = vadd.f32 %v4619, %v4707
        %4709 = vmatmul.bf16.gmra.mxu0 %v4537
        %v4710 = vpop.f32.mrf.mxu0
        %v4711 = vadd.f32 %v4622, %v4710
        %v4712 = vpop.f32.mrf.mxu0
        %v4713 = vadd.f32 %v4624, %v4712
        %4714 = vmatmul.bf16.gmra.mxu0 %v4539
        %v4715 = vpop.f32.mrf.mxu0
        %v4716 = vadd.f32 %v4627, %v4715
        %v4717 = vpop.f32.mrf.mxu0
        %v4718 = vadd.f32 %v4629, %v4717
        %4719 = vmatmul.bf16.gmra.mxu0 %v4541
        %v4720 = vpop.f32.mrf.mxu0
        %v4721 = vadd.f32 %v4632, %v4720
        %v4722 = vpop.f32.mrf.mxu0
        %v4723 = vadd.f32 %v4634, %v4722
        %4724 = vmatmul.bf16.gmra.mxu0 %v4543
        %v4725 = vpop.f32.mrf.mxu0
        %v4726 = vadd.f32 %v4637, %v4725
        %v4727 = vpop.f32.mrf.mxu0
        %v4728 = vadd.f32 %v4639, %v4727
        %4729 = vmatmul.bf16.gmra.mxu0 %v4545
        %v4730 = vpop.f32.mrf.mxu0
        %v4731 = vadd.f32 %v4642, %v4730
        %v4732 = vpop.f32.mrf.mxu0
        %v4733 = vadd.f32 %v4644, %v4732
        %4734 = vmatmul.bf16.gmra.mxu0 %v4547
        %v4735 = vpop.f32.mrf.mxu0
        %v4736 = vadd.f32 %v4647, %v4735
        %v4737 = vpop.f32.mrf.mxu0
        %v4738 = vadd.f32 %v4649, %v4737
        %4739 = vmatmul.bf16.gmra.mxu0 %v4549
        %v4740 = vpop.f32.mrf.mxu0
        %v4741 = vadd.f32 %v4652, %v4740
        %v4742 = vpop.f32.mrf.mxu0
        %v4743 = vadd.f32 %v4654, %v4742
        %4744 = vmatmul.bf16.gmra.mxu0 %v4551
        %v4745 = vpop.f32.mrf.mxu0
        %v4746 = vadd.f32 %v4657, %v4745
        %v4747 = vpop.f32.mrf.mxu0
        %v4748 = vadd.f32 %v4659, %v4747
        %4749 = vmatmul.bf16.gmra.mxu0 %v4553
        %v4750 = vpop.f32.mrf.mxu0
        %v4751 = vadd.f32 %v4662, %v4750
        %v4752 = vpop.f32.mrf.mxu0
        %v4753 = vadd.f32 %v4664, %v4752
        %4754 = vmatmul.bf16.gmra.mxu0 %v4555
        %v4755 = vpop.f32.mrf.mxu0
        %v4756 = vadd.f32 %v4667, %v4755
        %v4757 = vpop.f32.mrf.mxu0
        %v4758 = vadd.f32 %v4669, %v4757
        %4759 = vmatmul.bf16.gmra.mxu0 %v4557
        %v4760 = vpop.f32.mrf.mxu0
        %v4761 = vadd.f32 %v4672, %v4760
        %v4762 = vpop.f32.mrf.mxu0
        %v4763 = vadd.f32 %v4674, %v4762
        %4764 = vmatmul.bf16.gmra.mxu0 %v4559
        %v4765 = vpop.f32.mrf.mxu0
        %v4766 = vadd.f32 %v4677, %v4765
        %v4767 = vpop.f32.mrf.mxu0
        %v4768 = vadd.f32 %v4679, %v4767
        %4769 = vdwg.mxu0
        %s4770 = scalar_lea.vmem %s4, 96
        %v4771 = vld [vmem:[%s4770] sm:$0xf]
        %v4772 = vld [vmem:[%s4770 + $0x4] sm:$0xf]
        %v4773 = vld [vmem:[%s4770 + $0x8] sm:$0xf]
        %v4774 = vld [vmem:[%s4770 + $0xc] sm:$0xf]
        %v4775 = vpack.c.bf16 %v4693, %v4691
        %v4776 = vpack.c.bf16 %v4698, %v4696
        %v4777 = vpack.c.bf16 %v4703, %v4701
        %v4778 = vpack.c.bf16 %v4708, %v4706
        %v4779 = vpack.c.bf16 %v4713, %v4711
        %v4780 = vpack.c.bf16 %v4718, %v4716
        %v4781 = vpack.c.bf16 %v4723, %v4721
        %v4782 = vpack.c.bf16 %v4728, %v4726
        %v4783 = vpack.c.bf16 %v4733, %v4731
        %v4784 = vpack.c.bf16 %v4738, %v4736
        %v4785 = vpack.c.bf16 %v4743, %v4741
        %v4786 = vpack.c.bf16 %v4748, %v4746
        %v4787 = vpack.c.bf16 %v4753, %v4751
        %v4788 = vpack.c.bf16 %v4758, %v4756
        %v4789 = vpack.c.bf16 %v4763, %v4761
        %v4790 = vpack.c.bf16 %v4768, %v4766
        %v4795 = vunpack.c.l.b16 %v4771
        %v4796 = vunpack.c.l.b16 %v4772
        %v4797 = vunpack.c.l.b16 %v4773
        %v4798 = vunpack.c.l.b16 %v4774
        %v4799 = vpack.c.b16 %v4796, %v4795
        %v4800 = vpack.c.b16 %v4798, %v4797
        %v4804 = vsel %vm841, %v4775, 0
        %v4807 = vsel %vm841, %v4776, 0
        %v4810 = vsel %vm841, %v4777, 0
        %v4813 = vsel %vm841, %v4778, 0
        %v4816 = vsel %vm841, %v4779, 0
        %v4819 = vsel %vm841, %v4780, 0
        %v4822 = vsel %vm841, %v4781, 0
        %v4825 = vsel %vm841, %v4782, 0
        %v4828 = vsel %vm841, %v4783, 0
        %v4831 = vsel %vm841, %v4784, 0
        %v4834 = vsel %vm841, %v4785, 0
        %v4837 = vsel %vm841, %v4786, 0
        %v4840 = vsel %vm841, %v4787, 0
        %v4843 = vsel %vm841, %v4788, 0
        %v4846 = vsel %vm841, %v4789, 0
        %v4849 = vsel %vm841, %v4790, 0
        %4851 = vmatpush.bf16.msra.mxu0 0
        %4852 = vmatpush.bf16.msra.mxu0 0
        %4853 = vmatpush.bf16.msra.mxu0 0
        %4854 = vmatpush.bf16.msra.mxu0 0
        %4855 = vmatpush.bf16.msra.mxu0 0
        %4856 = vmatpush.bf16.msra.mxu0 0
        %4857 = vmatpush.bf16.msra.mxu0 %v4800
        %4858 = vmatpush.bf16.msra.mxu0 %v4799
        %4859 = vmatmul.bf16.gmra.mxu0 %v4804
        %v4860 = vpop.f32.mrf.mxu0
        %v4861 = vadd.f32 0.0, %v4860
        %v4862 = vpop.f32.mrf.mxu0
        %v4863 = vadd.f32 0.0, %v4862
        %4864 = vmatmul.bf16.gmra.mxu0 %v4807
        %v4865 = vpop.f32.mrf.mxu0
        %v4866 = vadd.f32 0.0, %v4865
        %v4867 = vpop.f32.mrf.mxu0
        %v4868 = vadd.f32 0.0, %v4867
        %4869 = vmatmul.bf16.gmra.mxu0 %v4810
        %v4870 = vpop.f32.mrf.mxu0
        %v4871 = vadd.f32 0.0, %v4870
        %v4872 = vpop.f32.mrf.mxu0
        %v4873 = vadd.f32 0.0, %v4872
        %4874 = vmatmul.bf16.gmra.mxu0 %v4813
        %v4875 = vpop.f32.mrf.mxu0
        %v4876 = vadd.f32 0.0, %v4875
        %v4877 = vpop.f32.mrf.mxu0
        %v4878 = vadd.f32 0.0, %v4877
        %4879 = vmatmul.bf16.gmra.mxu0 %v4816
        %v4880 = vpop.f32.mrf.mxu0
        %v4881 = vadd.f32 0.0, %v4880
        %v4882 = vpop.f32.mrf.mxu0
        %v4883 = vadd.f32 0.0, %v4882
        %4884 = vmatmul.bf16.gmra.mxu0 %v4819
        %v4885 = vpop.f32.mrf.mxu0
        %v4886 = vadd.f32 0.0, %v4885
        %v4887 = vpop.f32.mrf.mxu0
        %v4888 = vadd.f32 0.0, %v4887
        %4889 = vmatmul.bf16.gmra.mxu0 %v4822
        %v4890 = vpop.f32.mrf.mxu0
        %v4891 = vadd.f32 0.0, %v4890
        %v4892 = vpop.f32.mrf.mxu0
        %v4893 = vadd.f32 0.0, %v4892
        %4894 = vmatmul.bf16.gmra.mxu0 %v4825
        %v4895 = vpop.f32.mrf.mxu0
        %v4896 = vadd.f32 0.0, %v4895
        %v4897 = vpop.f32.mrf.mxu0
        %v4898 = vadd.f32 0.0, %v4897
        %4899 = vmatmul.bf16.gmra.mxu0 %v4828
        %v4900 = vpop.f32.mrf.mxu0
        %v4901 = vadd.f32 0.0, %v4900
        %v4902 = vpop.f32.mrf.mxu0
        %v4903 = vadd.f32 0.0, %v4902
        %4904 = vmatmul.bf16.gmra.mxu0 %v4831
        %v4905 = vpop.f32.mrf.mxu0
        %v4906 = vadd.f32 0.0, %v4905
        %v4907 = vpop.f32.mrf.mxu0
        %v4908 = vadd.f32 0.0, %v4907
        %4909 = vmatmul.bf16.gmra.mxu0 %v4834
        %v4910 = vpop.f32.mrf.mxu0
        %v4911 = vadd.f32 0.0, %v4910
        %v4912 = vpop.f32.mrf.mxu0
        %v4913 = vadd.f32 0.0, %v4912
        %4914 = vmatmul.bf16.gmra.mxu0 %v4837
        %v4915 = vpop.f32.mrf.mxu0
        %v4916 = vadd.f32 0.0, %v4915
        %v4917 = vpop.f32.mrf.mxu0
        %v4918 = vadd.f32 0.0, %v4917
        %4919 = vmatmul.bf16.gmra.mxu0 %v4840
        %v4920 = vpop.f32.mrf.mxu0
        %v4921 = vadd.f32 0.0, %v4920
        %v4922 = vpop.f32.mrf.mxu0
        %v4923 = vadd.f32 0.0, %v4922
        %4924 = vmatmul.bf16.gmra.mxu0 %v4843
        %v4925 = vpop.f32.mrf.mxu0
        %v4926 = vadd.f32 0.0, %v4925
        %v4927 = vpop.f32.mrf.mxu0
        %v4928 = vadd.f32 0.0, %v4927
        %4929 = vmatmul.bf16.gmra.mxu0 %v4846
        %v4930 = vpop.f32.mrf.mxu0
        %v4931 = vadd.f32 0.0, %v4930
        %v4932 = vpop.f32.mrf.mxu0
        %v4933 = vadd.f32 0.0, %v4932
        %4934 = vmatmul.bf16.gmra.mxu0 %v4849
        %v4935 = vpop.f32.mrf.mxu0
        %v4936 = vadd.f32 0.0, %v4935
        %v4937 = vpop.f32.mrf.mxu0
        %v4938 = vadd.f32 0.0, %v4937
        %4939 = vdwg.mxu0
        %v4940 = vadd.f32 %v4367, %v4861
        %v4941 = vadd.f32 %v4368, %v4863
        %v4942 = vadd.f32 %v4369, %v4866
        %v4943 = vadd.f32 %v4370, %v4868
        %v4944 = vadd.f32 %v4371, %v4871
        %v4945 = vadd.f32 %v4372, %v4873
        %v4946 = vadd.f32 %v4373, %v4876
        %v4947 = vadd.f32 %v4374, %v4878
        %v4948 = vadd.f32 %v4375, %v4881
        %v4949 = vadd.f32 %v4376, %v4883
        %v4950 = vadd.f32 %v4377, %v4886
        %v4951 = vadd.f32 %v4378, %v4888
        %v4952 = vadd.f32 %v4379, %v4891
        %v4953 = vadd.f32 %v4380, %v4893
        %v4954 = vadd.f32 %v4381, %v4896
        %v4955 = vadd.f32 %v4382, %v4898
        %v4956 = vadd.f32 %v4383, %v4901
        %v4957 = vadd.f32 %v4384, %v4903
        %v4958 = vadd.f32 %v4385, %v4906
        %v4959 = vadd.f32 %v4386, %v4908
        %v4960 = vadd.f32 %v4387, %v4911
        %v4961 = vadd.f32 %v4388, %v4913
        %v4962 = vadd.f32 %v4389, %v4916
        %v4963 = vadd.f32 %v4390, %v4918
        %v4964 = vadd.f32 %v4391, %v4921
        %v4965 = vadd.f32 %v4392, %v4923
        %v4966 = vadd.f32 %v4393, %v4926
        %v4967 = vadd.f32 %v4394, %v4928
        %v4968 = vadd.f32 %v4395, %v4931
        %v4969 = vadd.f32 %v4396, %v4933
        %v4970 = vadd.f32 %v4397, %v4936
        %v4971 = vadd.f32 %v4398, %v4938
        %s4972 = scalar_lea.vmem %s3, 1792
        %v4973 = vld [vmem:[%s4972] sm:$0xff]
        %v4974 = vld [vmem:[%s4972 + $0x8] sm:$0xff]
        %v4975 = vld [vmem:[%s4972 + $0x10] sm:$0xff]
        %v4976 = vld [vmem:[%s4972 + $0x18] sm:$0xff]
        %v4977 = vld [vmem:[%s4972 + $0x20] sm:$0xff]
        %v4978 = vld [vmem:[%s4972 + $0x28] sm:$0xff]
        %v4979 = vld [vmem:[%s4972 + $0x30] sm:$0xff]
        %v4980 = vld [vmem:[%s4972 + $0x38] sm:$0xff]
        %v4981 = vld [vmem:[%s4972 + $0x40] sm:$0xff]
        %v4982 = vld [vmem:[%s4972 + $0x48] sm:$0xff]
        %v4983 = vld [vmem:[%s4972 + $0x50] sm:$0xff]
        %v4984 = vld [vmem:[%s4972 + $0x58] sm:$0xff]
        %v4985 = vld [vmem:[%s4972 + $0x60] sm:$0xff]
        %v4986 = vld [vmem:[%s4972 + $0x68] sm:$0xff]
        %v4987 = vld [vmem:[%s4972 + $0x70] sm:$0xff]
        %v4988 = vld [vmem:[%s4972 + $0x78] sm:$0xff]
        %v4989 = vld [vmem:[%s4972 + $0x80] sm:$0xff]
        %v4990 = vld [vmem:[%s4972 + $0x88] sm:$0xff]
        %v4991 = vld [vmem:[%s4972 + $0x90] sm:$0xff]
        %v4992 = vld [vmem:[%s4972 + $0x98] sm:$0xff]
        %v4993 = vld [vmem:[%s4972 + $0xa0] sm:$0xff]
        %v4994 = vld [vmem:[%s4972 + $0xa8] sm:$0xff]
        %v4995 = vld [vmem:[%s4972 + $0xb0] sm:$0xff]
        %v4996 = vld [vmem:[%s4972 + $0xb8] sm:$0xff]
        %v4997 = vld [vmem:[%s4972 + $0xc0] sm:$0xff]
        %v4998 = vld [vmem:[%s4972 + $0xc8] sm:$0xff]
        %v4999 = vld [vmem:[%s4972 + $0xd0] sm:$0xff]
        %v5000 = vld [vmem:[%s4972 + $0xd8] sm:$0xff]
        %v5001 = vld [vmem:[%s4972 + $0xe0] sm:$0xff]
        %v5002 = vld [vmem:[%s4972 + $0xe8] sm:$0xff]
        %v5003 = vld [vmem:[%s4972 + $0xf0] sm:$0xff]
        %v5004 = vld [vmem:[%s4972 + $0xf8] sm:$0xff]
        %v5037 = vunpack.c.l.b16 %v4973
        %v5038 = vunpack.c.h.b16 %v4973
        %v5039 = vunpack.c.l.b16 %v4974
        %v5040 = vunpack.c.h.b16 %v4974
        %v5041 = vunpack.c.l.b16 %v4975
        %v5042 = vunpack.c.h.b16 %v4975
        %v5043 = vunpack.c.l.b16 %v4976
        %v5044 = vunpack.c.h.b16 %v4976
        %v5045 = vunpack.c.l.b16 %v4977
        %v5046 = vunpack.c.h.b16 %v4977
        %v5047 = vunpack.c.l.b16 %v4978
        %v5048 = vunpack.c.h.b16 %v4978
        %v5049 = vunpack.c.l.b16 %v4979
        %v5050 = vunpack.c.h.b16 %v4979
        %v5051 = vunpack.c.l.b16 %v4980
        %v5052 = vunpack.c.h.b16 %v4980
        %v5053 = vunpack.c.l.b16 %v4981
        %v5054 = vunpack.c.h.b16 %v4981
        %v5055 = vunpack.c.l.b16 %v4982
        %v5056 = vunpack.c.h.b16 %v4982
        %v5057 = vunpack.c.l.b16 %v4983
        %v5058 = vunpack.c.h.b16 %v4983
        %v5059 = vunpack.c.l.b16 %v4984
        %v5060 = vunpack.c.h.b16 %v4984
        %v5061 = vunpack.c.l.b16 %v4985
        %v5062 = vunpack.c.h.b16 %v4985
        %v5063 = vunpack.c.l.b16 %v4986
        %v5064 = vunpack.c.h.b16 %v4986
        %v5065 = vunpack.c.l.b16 %v4987
        %v5066 = vunpack.c.h.b16 %v4987
        %v5067 = vunpack.c.l.b16 %v4988
        %v5068 = vunpack.c.h.b16 %v4988
        %v5069 = vunpack.c.l.b16 %v4989
        %v5070 = vunpack.c.h.b16 %v4989
        %v5071 = vunpack.c.l.b16 %v4990
        %v5072 = vunpack.c.h.b16 %v4990
        %v5073 = vunpack.c.l.b16 %v4991
        %v5074 = vunpack.c.h.b16 %v4991
        %v5075 = vunpack.c.l.b16 %v4992
        %v5076 = vunpack.c.h.b16 %v4992
        %v5077 = vunpack.c.l.b16 %v4993
        %v5078 = vunpack.c.h.b16 %v4993
        %v5079 = vunpack.c.l.b16 %v4994
        %v5080 = vunpack.c.h.b16 %v4994
        %v5081 = vunpack.c.l.b16 %v4995
        %v5082 = vunpack.c.h.b16 %v4995
        %v5083 = vunpack.c.l.b16 %v4996
        %v5084 = vunpack.c.h.b16 %v4996
        %v5085 = vunpack.c.l.b16 %v4997
        %v5086 = vunpack.c.h.b16 %v4997
        %v5087 = vunpack.c.l.b16 %v4998
        %v5088 = vunpack.c.h.b16 %v4998
        %v5089 = vunpack.c.l.b16 %v4999
        %v5090 = vunpack.c.h.b16 %v4999
        %v5091 = vunpack.c.l.b16 %v5000
        %v5092 = vunpack.c.h.b16 %v5000
        %v5093 = vunpack.c.l.b16 %v5001
        %v5094 = vunpack.c.h.b16 %v5001
        %v5095 = vunpack.c.l.b16 %v5002
        %v5096 = vunpack.c.h.b16 %v5002
        %v5097 = vunpack.c.l.b16 %v5003
        %v5098 = vunpack.c.h.b16 %v5003
        %v5099 = vunpack.c.l.b16 %v5004
        %v5100 = vunpack.c.h.b16 %v5004
        %v5101 = vpack.c.b16 %v5039, %v5037
        %v5102 = vpack.c.b16 %v5040, %v5038
        %v5103 = vpack.c.b16 %v5043, %v5041
        %v5104 = vpack.c.b16 %v5044, %v5042
        %v5105 = vpack.c.b16 %v5047, %v5045
        %v5106 = vpack.c.b16 %v5048, %v5046
        %v5107 = vpack.c.b16 %v5051, %v5049
        %v5108 = vpack.c.b16 %v5052, %v5050
        %v5109 = vpack.c.b16 %v5055, %v5053
        %v5110 = vpack.c.b16 %v5056, %v5054
        %v5111 = vpack.c.b16 %v5059, %v5057
        %v5112 = vpack.c.b16 %v5060, %v5058
        %v5113 = vpack.c.b16 %v5063, %v5061
        %v5114 = vpack.c.b16 %v5064, %v5062
        %v5115 = vpack.c.b16 %v5067, %v5065
        %v5116 = vpack.c.b16 %v5068, %v5066
        %v5117 = vpack.c.b16 %v5071, %v5069
        %v5118 = vpack.c.b16 %v5072, %v5070
        %v5119 = vpack.c.b16 %v5075, %v5073
        %v5120 = vpack.c.b16 %v5076, %v5074
        %v5121 = vpack.c.b16 %v5079, %v5077
        %v5122 = vpack.c.b16 %v5080, %v5078
        %v5123 = vpack.c.b16 %v5083, %v5081
        %v5124 = vpack.c.b16 %v5084, %v5082
        %v5125 = vpack.c.b16 %v5087, %v5085
        %v5126 = vpack.c.b16 %v5088, %v5086
        %v5127 = vpack.c.b16 %v5091, %v5089
        %v5128 = vpack.c.b16 %v5092, %v5090
        %v5129 = vpack.c.b16 %v5095, %v5093
        %v5130 = vpack.c.b16 %v5096, %v5094
        %v5131 = vpack.c.b16 %v5099, %v5097
        %v5132 = vpack.c.b16 %v5100, %v5098
        %5165 = vmatpush.bf16.msra.mxu0 %v1018
        %5166 = vmatpush.bf16.msra.mxu0 %v1017
        %5167 = vmatpush.bf16.msra.mxu0 %v1016
        %5168 = vmatpush.bf16.msra.mxu0 %v1015
        %5169 = vmatpush.bf16.msra.mxu0 %v1014
        %5170 = vmatpush.bf16.msra.mxu0 %v1013
        %5171 = vmatpush.bf16.msra.mxu0 %v1012
        %5172 = vmatpush.bf16.msra.mxu0 %v1011
        %5173 = vmatmul.bf16.gmra.mxu0 %v5101
        %v5174 = vpop.f32.mrf.mxu0
        %v5175 = vadd.f32 0.0, %v5174
        %v5176 = vpop.f32.mrf.mxu0
        %v5177 = vadd.f32 0.0, %v5176
        %5178 = vmatmul.bf16.gmra.mxu0 %v5103
        %v5179 = vpop.f32.mrf.mxu0
        %v5180 = vadd.f32 0.0, %v5179
        %v5181 = vpop.f32.mrf.mxu0
        %v5182 = vadd.f32 0.0, %v5181
        %5183 = vmatmul.bf16.gmra.mxu0 %v5105
        %v5184 = vpop.f32.mrf.mxu0
        %v5185 = vadd.f32 0.0, %v5184
        %v5186 = vpop.f32.mrf.mxu0
        %v5187 = vadd.f32 0.0, %v5186
        %5188 = vmatmul.bf16.gmra.mxu0 %v5107
        %v5189 = vpop.f32.mrf.mxu0
        %v5190 = vadd.f32 0.0, %v5189
        %v5191 = vpop.f32.mrf.mxu0
        %v5192 = vadd.f32 0.0, %v5191
        %5193 = vmatmul.bf16.gmra.mxu0 %v5109
        %v5194 = vpop.f32.mrf.mxu0
        %v5195 = vadd.f32 0.0, %v5194
        %v5196 = vpop.f32.mrf.mxu0
        %v5197 = vadd.f32 0.0, %v5196
        %5198 = vmatmul.bf16.gmra.mxu0 %v5111
        %v5199 = vpop.f32.mrf.mxu0
        %v5200 = vadd.f32 0.0, %v5199
        %v5201 = vpop.f32.mrf.mxu0
        %v5202 = vadd.f32 0.0, %v5201
        %5203 = vmatmul.bf16.gmra.mxu0 %v5113
        %v5204 = vpop.f32.mrf.mxu0
        %v5205 = vadd.f32 0.0, %v5204
        %v5206 = vpop.f32.mrf.mxu0
        %v5207 = vadd.f32 0.0, %v5206
        %5208 = vmatmul.bf16.gmra.mxu0 %v5115
        %v5209 = vpop.f32.mrf.mxu0
        %v5210 = vadd.f32 0.0, %v5209
        %v5211 = vpop.f32.mrf.mxu0
        %v5212 = vadd.f32 0.0, %v5211
        %5213 = vmatmul.bf16.gmra.mxu0 %v5117
        %v5214 = vpop.f32.mrf.mxu0
        %v5215 = vadd.f32 0.0, %v5214
        %v5216 = vpop.f32.mrf.mxu0
        %v5217 = vadd.f32 0.0, %v5216
        %5218 = vmatmul.bf16.gmra.mxu0 %v5119
        %v5219 = vpop.f32.mrf.mxu0
        %v5220 = vadd.f32 0.0, %v5219
        %v5221 = vpop.f32.mrf.mxu0
        %v5222 = vadd.f32 0.0, %v5221
        %5223 = vmatmul.bf16.gmra.mxu0 %v5121
        %v5224 = vpop.f32.mrf.mxu0
        %v5225 = vadd.f32 0.0, %v5224
        %v5226 = vpop.f32.mrf.mxu0
        %v5227 = vadd.f32 0.0, %v5226
        %5228 = vmatmul.bf16.gmra.mxu0 %v5123
        %v5229 = vpop.f32.mrf.mxu0
        %v5230 = vadd.f32 0.0, %v5229
        %v5231 = vpop.f32.mrf.mxu0
        %v5232 = vadd.f32 0.0, %v5231
        %5233 = vmatmul.bf16.gmra.mxu0 %v5125
        %v5234 = vpop.f32.mrf.mxu0
        %v5235 = vadd.f32 0.0, %v5234
        %v5236 = vpop.f32.mrf.mxu0
        %v5237 = vadd.f32 0.0, %v5236
        %5238 = vmatmul.bf16.gmra.mxu0 %v5127
        %v5239 = vpop.f32.mrf.mxu0
        %v5240 = vadd.f32 0.0, %v5239
        %v5241 = vpop.f32.mrf.mxu0
        %v5242 = vadd.f32 0.0, %v5241
        %5243 = vmatmul.bf16.gmra.mxu0 %v5129
        %v5244 = vpop.f32.mrf.mxu0
        %v5245 = vadd.f32 0.0, %v5244
        %v5246 = vpop.f32.mrf.mxu0
        %v5247 = vadd.f32 0.0, %v5246
        %5248 = vmatmul.bf16.gmra.mxu0 %v5131
        %v5249 = vpop.f32.mrf.mxu0
        %v5250 = vadd.f32 0.0, %v5249
        %v5251 = vpop.f32.mrf.mxu0
        %v5252 = vadd.f32 0.0, %v5251
        %5253 = vdwg.mxu0
        %5254 = vmatpush.bf16.msra.mxu0 %v1026
        %5255 = vmatpush.bf16.msra.mxu0 %v1025
        %5256 = vmatpush.bf16.msra.mxu0 %v1024
        %5257 = vmatpush.bf16.msra.mxu0 %v1023
        %5258 = vmatpush.bf16.msra.mxu0 %v1022
        %5259 = vmatpush.bf16.msra.mxu0 %v1021
        %5260 = vmatpush.bf16.msra.mxu0 %v1020
        %5261 = vmatpush.bf16.msra.mxu0 %v1019
        %5262 = vmatmul.bf16.gmra.mxu0 %v5102
        %v5263 = vpop.f32.mrf.mxu0
        %v5264 = vadd.f32 %v5175, %v5263
        %v5265 = vpop.f32.mrf.mxu0
        %v5266 = vadd.f32 %v5177, %v5265
        %5267 = vmatmul.bf16.gmra.mxu0 %v5104
        %v5268 = vpop.f32.mrf.mxu0
        %v5269 = vadd.f32 %v5180, %v5268
        %v5270 = vpop.f32.mrf.mxu0
        %v5271 = vadd.f32 %v5182, %v5270
        %5272 = vmatmul.bf16.gmra.mxu0 %v5106
        %v5273 = vpop.f32.mrf.mxu0
        %v5274 = vadd.f32 %v5185, %v5273
        %v5275 = vpop.f32.mrf.mxu0
        %v5276 = vadd.f32 %v5187, %v5275
        %5277 = vmatmul.bf16.gmra.mxu0 %v5108
        %v5278 = vpop.f32.mrf.mxu0
        %v5279 = vadd.f32 %v5190, %v5278
        %v5280 = vpop.f32.mrf.mxu0
        %v5281 = vadd.f32 %v5192, %v5280
        %5282 = vmatmul.bf16.gmra.mxu0 %v5110
        %v5283 = vpop.f32.mrf.mxu0
        %v5284 = vadd.f32 %v5195, %v5283
        %v5285 = vpop.f32.mrf.mxu0
        %v5286 = vadd.f32 %v5197, %v5285
        %5287 = vmatmul.bf16.gmra.mxu0 %v5112
        %v5288 = vpop.f32.mrf.mxu0
        %v5289 = vadd.f32 %v5200, %v5288
        %v5290 = vpop.f32.mrf.mxu0
        %v5291 = vadd.f32 %v5202, %v5290
        %5292 = vmatmul.bf16.gmra.mxu0 %v5114
        %v5293 = vpop.f32.mrf.mxu0
        %v5294 = vadd.f32 %v5205, %v5293
        %v5295 = vpop.f32.mrf.mxu0
        %v5296 = vadd.f32 %v5207, %v5295
        %5297 = vmatmul.bf16.gmra.mxu0 %v5116
        %v5298 = vpop.f32.mrf.mxu0
        %v5299 = vadd.f32 %v5210, %v5298
        %v5300 = vpop.f32.mrf.mxu0
        %v5301 = vadd.f32 %v5212, %v5300
        %5302 = vmatmul.bf16.gmra.mxu0 %v5118
        %v5303 = vpop.f32.mrf.mxu0
        %v5304 = vadd.f32 %v5215, %v5303
        %v5305 = vpop.f32.mrf.mxu0
        %v5306 = vadd.f32 %v5217, %v5305
        %5307 = vmatmul.bf16.gmra.mxu0 %v5120
        %v5308 = vpop.f32.mrf.mxu0
        %v5309 = vadd.f32 %v5220, %v5308
        %v5310 = vpop.f32.mrf.mxu0
        %v5311 = vadd.f32 %v5222, %v5310
        %5312 = vmatmul.bf16.gmra.mxu0 %v5122
        %v5313 = vpop.f32.mrf.mxu0
        %v5314 = vadd.f32 %v5225, %v5313
        %v5315 = vpop.f32.mrf.mxu0
        %v5316 = vadd.f32 %v5227, %v5315
        %5317 = vmatmul.bf16.gmra.mxu0 %v5124
        %v5318 = vpop.f32.mrf.mxu0
        %v5319 = vadd.f32 %v5230, %v5318
        %v5320 = vpop.f32.mrf.mxu0
        %v5321 = vadd.f32 %v5232, %v5320
        %5322 = vmatmul.bf16.gmra.mxu0 %v5126
        %v5323 = vpop.f32.mrf.mxu0
        %v5324 = vadd.f32 %v5235, %v5323
        %v5325 = vpop.f32.mrf.mxu0
        %v5326 = vadd.f32 %v5237, %v5325
        %5327 = vmatmul.bf16.gmra.mxu0 %v5128
        %v5328 = vpop.f32.mrf.mxu0
        %v5329 = vadd.f32 %v5240, %v5328
        %v5330 = vpop.f32.mrf.mxu0
        %v5331 = vadd.f32 %v5242, %v5330
        %5332 = vmatmul.bf16.gmra.mxu0 %v5130
        %v5333 = vpop.f32.mrf.mxu0
        %v5334 = vadd.f32 %v5245, %v5333
        %v5335 = vpop.f32.mrf.mxu0
        %v5336 = vadd.f32 %v5247, %v5335
        %5337 = vmatmul.bf16.gmra.mxu0 %v5132
        %v5338 = vpop.f32.mrf.mxu0
        %v5339 = vadd.f32 %v5250, %v5338
        %v5340 = vpop.f32.mrf.mxu0
        %v5341 = vadd.f32 %v5252, %v5340
        %5342 = vdwg.mxu0
        %s5343 = scalar_lea.vmem %s4, 112
        %v5344 = vld [vmem:[%s5343] sm:$0xf]
        %v5345 = vld [vmem:[%s5343 + $0x4] sm:$0xf]
        %v5346 = vld [vmem:[%s5343 + $0x8] sm:$0xf]
        %v5347 = vld [vmem:[%s5343 + $0xc] sm:$0xf]
        %v5348 = vpack.c.bf16 %v5266, %v5264
        %v5349 = vpack.c.bf16 %v5271, %v5269
        %v5350 = vpack.c.bf16 %v5276, %v5274
        %v5351 = vpack.c.bf16 %v5281, %v5279
        %v5352 = vpack.c.bf16 %v5286, %v5284
        %v5353 = vpack.c.bf16 %v5291, %v5289
        %v5354 = vpack.c.bf16 %v5296, %v5294
        %v5355 = vpack.c.bf16 %v5301, %v5299
        %v5356 = vpack.c.bf16 %v5306, %v5304
        %v5357 = vpack.c.bf16 %v5311, %v5309
        %v5358 = vpack.c.bf16 %v5316, %v5314
        %v5359 = vpack.c.bf16 %v5321, %v5319
        %v5360 = vpack.c.bf16 %v5326, %v5324
        %v5361 = vpack.c.bf16 %v5331, %v5329
        %v5362 = vpack.c.bf16 %v5336, %v5334
        %v5363 = vpack.c.bf16 %v5341, %v5339
        %v5368 = vunpack.c.l.b16 %v5344
        %v5369 = vunpack.c.l.b16 %v5345
        %v5370 = vunpack.c.l.b16 %v5346
        %v5371 = vunpack.c.l.b16 %v5347
        %v5372 = vpack.c.b16 %v5369, %v5368
        %v5373 = vpack.c.b16 %v5371, %v5370
        %v5377 = vsel %vm841, %v5348, 0
        %v5380 = vsel %vm841, %v5349, 0
        %v5383 = vsel %vm841, %v5350, 0
        %v5386 = vsel %vm841, %v5351, 0
        %v5389 = vsel %vm841, %v5352, 0
        %v5392 = vsel %vm841, %v5353, 0
        %v5395 = vsel %vm841, %v5354, 0
        %v5398 = vsel %vm841, %v5355, 0
        %v5401 = vsel %vm841, %v5356, 0
        %v5404 = vsel %vm841, %v5357, 0
        %v5407 = vsel %vm841, %v5358, 0
        %v5410 = vsel %vm841, %v5359, 0
        %v5413 = vsel %vm841, %v5360, 0
        %v5416 = vsel %vm841, %v5361, 0
        %v5419 = vsel %vm841, %v5362, 0
        %v5422 = vsel %vm841, %v5363, 0
        %5424 = vmatpush.bf16.msra.mxu0 0
        %5425 = vmatpush.bf16.msra.mxu0 0
        %5426 = vmatpush.bf16.msra.mxu0 0
        %5427 = vmatpush.bf16.msra.mxu0 0
        %5428 = vmatpush.bf16.msra.mxu0 0
        %5429 = vmatpush.bf16.msra.mxu0 0
        %5430 = vmatpush.bf16.msra.mxu0 %v5373
        %5431 = vmatpush.bf16.msra.mxu0 %v5372
        %5432 = vmatmul.bf16.gmra.mxu0 %v5377
        %v5433 = vpop.f32.mrf.mxu0
        %v5434 = vadd.f32 0.0, %v5433
        %v5435 = vpop.f32.mrf.mxu0
        %v5436 = vadd.f32 0.0, %v5435
        %5437 = vmatmul.bf16.gmra.mxu0 %v5380
        %v5438 = vpop.f32.mrf.mxu0
        %v5439 = vadd.f32 0.0, %v5438
        %v5440 = vpop.f32.mrf.mxu0
        %v5441 = vadd.f32 0.0, %v5440
        %5442 = vmatmul.bf16.gmra.mxu0 %v5383
        %v5443 = vpop.f32.mrf.mxu0
        %v5444 = vadd.f32 0.0, %v5443
        %v5445 = vpop.f32.mrf.mxu0
        %v5446 = vadd.f32 0.0, %v5445
        %5447 = vmatmul.bf16.gmra.mxu0 %v5386
        %v5448 = vpop.f32.mrf.mxu0
        %v5449 = vadd.f32 0.0, %v5448
        %v5450 = vpop.f32.mrf.mxu0
        %v5451 = vadd.f32 0.0, %v5450
        %5452 = vmatmul.bf16.gmra.mxu0 %v5389
        %v5453 = vpop.f32.mrf.mxu0
        %v5454 = vadd.f32 0.0, %v5453
        %v5455 = vpop.f32.mrf.mxu0
        %v5456 = vadd.f32 0.0, %v5455
        %5457 = vmatmul.bf16.gmra.mxu0 %v5392
        %v5458 = vpop.f32.mrf.mxu0
        %v5459 = vadd.f32 0.0, %v5458
        %v5460 = vpop.f32.mrf.mxu0
        %v5461 = vadd.f32 0.0, %v5460
        %5462 = vmatmul.bf16.gmra.mxu0 %v5395
        %v5463 = vpop.f32.mrf.mxu0
        %v5464 = vadd.f32 0.0, %v5463
        %v5465 = vpop.f32.mrf.mxu0
        %v5466 = vadd.f32 0.0, %v5465
        %5467 = vmatmul.bf16.gmra.mxu0 %v5398
        %v5468 = vpop.f32.mrf.mxu0
        %v5469 = vadd.f32 0.0, %v5468
        %v5470 = vpop.f32.mrf.mxu0
        %v5471 = vadd.f32 0.0, %v5470
        %5472 = vmatmul.bf16.gmra.mxu0 %v5401
        %v5473 = vpop.f32.mrf.mxu0
        %v5474 = vadd.f32 0.0, %v5473
        %v5475 = vpop.f32.mrf.mxu0
        %v5476 = vadd.f32 0.0, %v5475
        %5477 = vmatmul.bf16.gmra.mxu0 %v5404
        %v5478 = vpop.f32.mrf.mxu0
        %v5479 = vadd.f32 0.0, %v5478
        %v5480 = vpop.f32.mrf.mxu0
        %v5481 = vadd.f32 0.0, %v5480
        %5482 = vmatmul.bf16.gmra.mxu0 %v5407
        %v5483 = vpop.f32.mrf.mxu0
        %v5484 = vadd.f32 0.0, %v5483
        %v5485 = vpop.f32.mrf.mxu0
        %v5486 = vadd.f32 0.0, %v5485
        %5487 = vmatmul.bf16.gmra.mxu0 %v5410
        %v5488 = vpop.f32.mrf.mxu0
        %v5489 = vadd.f32 0.0, %v5488
        %v5490 = vpop.f32.mrf.mxu0
        %v5491 = vadd.f32 0.0, %v5490
        %5492 = vmatmul.bf16.gmra.mxu0 %v5413
        %v5493 = vpop.f32.mrf.mxu0
        %v5494 = vadd.f32 0.0, %v5493
        %v5495 = vpop.f32.mrf.mxu0
        %v5496 = vadd.f32 0.0, %v5495
        %5497 = vmatmul.bf16.gmra.mxu0 %v5416
        %v5498 = vpop.f32.mrf.mxu0
        %v5499 = vadd.f32 0.0, %v5498
        %v5500 = vpop.f32.mrf.mxu0
        %v5501 = vadd.f32 0.0, %v5500
        %5502 = vmatmul.bf16.gmra.mxu0 %v5419
        %v5503 = vpop.f32.mrf.mxu0
        %v5504 = vadd.f32 0.0, %v5503
        %v5505 = vpop.f32.mrf.mxu0
        %v5506 = vadd.f32 0.0, %v5505
        %5507 = vmatmul.bf16.gmra.mxu0 %v5422
        %v5508 = vpop.f32.mrf.mxu0
        %v5509 = vadd.f32 0.0, %v5508
        %v5510 = vpop.f32.mrf.mxu0
        %v5511 = vadd.f32 0.0, %v5510
        %5512 = vdwg.mxu0
        %v5513 = vadd.f32 %v4940, %v5434
        %v5514 = vadd.f32 %v4941, %v5436
        %v5515 = vadd.f32 %v4942, %v5439
        %v5516 = vadd.f32 %v4943, %v5441
        %v5517 = vadd.f32 %v4944, %v5444
        %v5518 = vadd.f32 %v4945, %v5446
        %v5519 = vadd.f32 %v4946, %v5449
        %v5520 = vadd.f32 %v4947, %v5451
        %v5521 = vadd.f32 %v4948, %v5454
        %v5522 = vadd.f32 %v4949, %v5456
        %v5523 = vadd.f32 %v4950, %v5459
        %v5524 = vadd.f32 %v4951, %v5461
        %v5525 = vadd.f32 %v4952, %v5464
        %v5526 = vadd.f32 %v4953, %v5466
        %v5527 = vadd.f32 %v4954, %v5469
        %v5528 = vadd.f32 %v4955, %v5471
        %v5529 = vadd.f32 %v4956, %v5474
        %v5530 = vadd.f32 %v4957, %v5476
        %v5531 = vadd.f32 %v4958, %v5479
        %v5532 = vadd.f32 %v4959, %v5481
        %v5533 = vadd.f32 %v4960, %v5484
        %v5534 = vadd.f32 %v4961, %v5486
        %v5535 = vadd.f32 %v4962, %v5489
        %v5536 = vadd.f32 %v4963, %v5491
        %v5537 = vadd.f32 %v4964, %v5494
        %v5538 = vadd.f32 %v4965, %v5496
        %v5539 = vadd.f32 %v4966, %v5499
        %v5540 = vadd.f32 %v4967, %v5501
        %v5541 = vadd.f32 %v4968, %v5504
        %v5542 = vadd.f32 %v4969, %v5506
        %v5543 = vadd.f32 %v4970, %v5509
        %v5544 = vadd.f32 %v4971, %v5511
        %s5545 = scalar_lea.vmem %s3, 2048
        %v5546 = vld [vmem:[%s5545] sm:$0xff]
        %v5547 = vld [vmem:[%s5545 + $0x8] sm:$0xff]
        %v5548 = vld [vmem:[%s5545 + $0x10] sm:$0xff]
        %v5549 = vld [vmem:[%s5545 + $0x18] sm:$0xff]
        %v5550 = vld [vmem:[%s5545 + $0x20] sm:$0xff]
        %v5551 = vld [vmem:[%s5545 + $0x28] sm:$0xff]
        %v5552 = vld [vmem:[%s5545 + $0x30] sm:$0xff]
        %v5553 = vld [vmem:[%s5545 + $0x38] sm:$0xff]
        %v5554 = vld [vmem:[%s5545 + $0x40] sm:$0xff]
        %v5555 = vld [vmem:[%s5545 + $0x48] sm:$0xff]
        %v5556 = vld [vmem:[%s5545 + $0x50] sm:$0xff]
        %v5557 = vld [vmem:[%s5545 + $0x58] sm:$0xff]
        %v5558 = vld [vmem:[%s5545 + $0x60] sm:$0xff]
        %v5559 = vld [vmem:[%s5545 + $0x68] sm:$0xff]
        %v5560 = vld [vmem:[%s5545 + $0x70] sm:$0xff]
        %v5561 = vld [vmem:[%s5545 + $0x78] sm:$0xff]
        %v5562 = vld [vmem:[%s5545 + $0x80] sm:$0xff]
        %v5563 = vld [vmem:[%s5545 + $0x88] sm:$0xff]
        %v5564 = vld [vmem:[%s5545 + $0x90] sm:$0xff]
        %v5565 = vld [vmem:[%s5545 + $0x98] sm:$0xff]
        %v5566 = vld [vmem:[%s5545 + $0xa0] sm:$0xff]
        %v5567 = vld [vmem:[%s5545 + $0xa8] sm:$0xff]
        %v5568 = vld [vmem:[%s5545 + $0xb0] sm:$0xff]
        %v5569 = vld [vmem:[%s5545 + $0xb8] sm:$0xff]
        %v5570 = vld [vmem:[%s5545 + $0xc0] sm:$0xff]
        %v5571 = vld [vmem:[%s5545 + $0xc8] sm:$0xff]
        %v5572 = vld [vmem:[%s5545 + $0xd0] sm:$0xff]
        %v5573 = vld [vmem:[%s5545 + $0xd8] sm:$0xff]
        %v5574 = vld [vmem:[%s5545 + $0xe0] sm:$0xff]
        %v5575 = vld [vmem:[%s5545 + $0xe8] sm:$0xff]
        %v5576 = vld [vmem:[%s5545 + $0xf0] sm:$0xff]
        %v5577 = vld [vmem:[%s5545 + $0xf8] sm:$0xff]
        %v5610 = vunpack.c.l.b16 %v5546
        %v5611 = vunpack.c.h.b16 %v5546
        %v5612 = vunpack.c.l.b16 %v5547
        %v5613 = vunpack.c.h.b16 %v5547
        %v5614 = vunpack.c.l.b16 %v5548
        %v5615 = vunpack.c.h.b16 %v5548
        %v5616 = vunpack.c.l.b16 %v5549
        %v5617 = vunpack.c.h.b16 %v5549
        %v5618 = vunpack.c.l.b16 %v5550
        %v5619 = vunpack.c.h.b16 %v5550
        %v5620 = vunpack.c.l.b16 %v5551
        %v5621 = vunpack.c.h.b16 %v5551
        %v5622 = vunpack.c.l.b16 %v5552
        %v5623 = vunpack.c.h.b16 %v5552
        %v5624 = vunpack.c.l.b16 %v5553
        %v5625 = vunpack.c.h.b16 %v5553
        %v5626 = vunpack.c.l.b16 %v5554
        %v5627 = vunpack.c.h.b16 %v5554
        %v5628 = vunpack.c.l.b16 %v5555
        %v5629 = vunpack.c.h.b16 %v5555
        %v5630 = vunpack.c.l.b16 %v5556
        %v5631 = vunpack.c.h.b16 %v5556
        %v5632 = vunpack.c.l.b16 %v5557
        %v5633 = vunpack.c.h.b16 %v5557
        %v5634 = vunpack.c.l.b16 %v5558
        %v5635 = vunpack.c.h.b16 %v5558
        %v5636 = vunpack.c.l.b16 %v5559
        %v5637 = vunpack.c.h.b16 %v5559
        %v5638 = vunpack.c.l.b16 %v5560
        %v5639 = vunpack.c.h.b16 %v5560
        %v5640 = vunpack.c.l.b16 %v5561
        %v5641 = vunpack.c.h.b16 %v5561
        %v5642 = vunpack.c.l.b16 %v5562
        %v5643 = vunpack.c.h.b16 %v5562
        %v5644 = vunpack.c.l.b16 %v5563
        %v5645 = vunpack.c.h.b16 %v5563
        %v5646 = vunpack.c.l.b16 %v5564
        %v5647 = vunpack.c.h.b16 %v5564
        %v5648 = vunpack.c.l.b16 %v5565
        %v5649 = vunpack.c.h.b16 %v5565
        %v5650 = vunpack.c.l.b16 %v5566
        %v5651 = vunpack.c.h.b16 %v5566
        %v5652 = vunpack.c.l.b16 %v5567
        %v5653 = vunpack.c.h.b16 %v5567
        %v5654 = vunpack.c.l.b16 %v5568
        %v5655 = vunpack.c.h.b16 %v5568
        %v5656 = vunpack.c.l.b16 %v5569
        %v5657 = vunpack.c.h.b16 %v5569
        %v5658 = vunpack.c.l.b16 %v5570
        %v5659 = vunpack.c.h.b16 %v5570
        %v5660 = vunpack.c.l.b16 %v5571
        %v5661 = vunpack.c.h.b16 %v5571
        %v5662 = vunpack.c.l.b16 %v5572
        %v5663 = vunpack.c.h.b16 %v5572
        %v5664 = vunpack.c.l.b16 %v5573
        %v5665 = vunpack.c.h.b16 %v5573
        %v5666 = vunpack.c.l.b16 %v5574
        %v5667 = vunpack.c.h.b16 %v5574
        %v5668 = vunpack.c.l.b16 %v5575
        %v5669 = vunpack.c.h.b16 %v5575
        %v5670 = vunpack.c.l.b16 %v5576
        %v5671 = vunpack.c.h.b16 %v5576
        %v5672 = vunpack.c.l.b16 %v5577
        %v5673 = vunpack.c.h.b16 %v5577
        %v5674 = vpack.c.b16 %v5612, %v5610
        %v5675 = vpack.c.b16 %v5613, %v5611
        %v5676 = vpack.c.b16 %v5616, %v5614
        %v5677 = vpack.c.b16 %v5617, %v5615
        %v5678 = vpack.c.b16 %v5620, %v5618
        %v5679 = vpack.c.b16 %v5621, %v5619
        %v5680 = vpack.c.b16 %v5624, %v5622
        %v5681 = vpack.c.b16 %v5625, %v5623
        %v5682 = vpack.c.b16 %v5628, %v5626
        %v5683 = vpack.c.b16 %v5629, %v5627
        %v5684 = vpack.c.b16 %v5632, %v5630
        %v5685 = vpack.c.b16 %v5633, %v5631
        %v5686 = vpack.c.b16 %v5636, %v5634
        %v5687 = vpack.c.b16 %v5637, %v5635
        %v5688 = vpack.c.b16 %v5640, %v5638
        %v5689 = vpack.c.b16 %v5641, %v5639
        %v5690 = vpack.c.b16 %v5644, %v5642
        %v5691 = vpack.c.b16 %v5645, %v5643
        %v5692 = vpack.c.b16 %v5648, %v5646
        %v5693 = vpack.c.b16 %v5649, %v5647
        %v5694 = vpack.c.b16 %v5652, %v5650
        %v5695 = vpack.c.b16 %v5653, %v5651
        %v5696 = vpack.c.b16 %v5656, %v5654
        %v5697 = vpack.c.b16 %v5657, %v5655
        %v5698 = vpack.c.b16 %v5660, %v5658
        %v5699 = vpack.c.b16 %v5661, %v5659
        %v5700 = vpack.c.b16 %v5664, %v5662
        %v5701 = vpack.c.b16 %v5665, %v5663
        %v5702 = vpack.c.b16 %v5668, %v5666
        %v5703 = vpack.c.b16 %v5669, %v5667
        %v5704 = vpack.c.b16 %v5672, %v5670
        %v5705 = vpack.c.b16 %v5673, %v5671
        %5738 = vmatpush.bf16.msra.mxu0 %v1018
        %5739 = vmatpush.bf16.msra.mxu0 %v1017
        %5740 = vmatpush.bf16.msra.mxu0 %v1016
        %5741 = vmatpush.bf16.msra.mxu0 %v1015
        %5742 = vmatpush.bf16.msra.mxu0 %v1014
        %5743 = vmatpush.bf16.msra.mxu0 %v1013
        %5744 = vmatpush.bf16.msra.mxu0 %v1012
        %5745 = vmatpush.bf16.msra.mxu0 %v1011
        %5746 = vmatmul.bf16.gmra.mxu0 %v5674
        %v5747 = vpop.f32.mrf.mxu0
        %v5748 = vadd.f32 0.0, %v5747
        %v5749 = vpop.f32.mrf.mxu0
        %v5750 = vadd.f32 0.0, %v5749
        %5751 = vmatmul.bf16.gmra.mxu0 %v5676
        %v5752 = vpop.f32.mrf.mxu0
        %v5753 = vadd.f32 0.0, %v5752
        %v5754 = vpop.f32.mrf.mxu0
        %v5755 = vadd.f32 0.0, %v5754
        %5756 = vmatmul.bf16.gmra.mxu0 %v5678
        %v5757 = vpop.f32.mrf.mxu0
        %v5758 = vadd.f32 0.0, %v5757
        %v5759 = vpop.f32.mrf.mxu0
        %v5760 = vadd.f32 0.0, %v5759
        %5761 = vmatmul.bf16.gmra.mxu0 %v5680
        %v5762 = vpop.f32.mrf.mxu0
        %v5763 = vadd.f32 0.0, %v5762
        %v5764 = vpop.f32.mrf.mxu0
        %v5765 = vadd.f32 0.0, %v5764
        %5766 = vmatmul.bf16.gmra.mxu0 %v5682
        %v5767 = vpop.f32.mrf.mxu0
        %v5768 = vadd.f32 0.0, %v5767
        %v5769 = vpop.f32.mrf.mxu0
        %v5770 = vadd.f32 0.0, %v5769
        %5771 = vmatmul.bf16.gmra.mxu0 %v5684
        %v5772 = vpop.f32.mrf.mxu0
        %v5773 = vadd.f32 0.0, %v5772
        %v5774 = vpop.f32.mrf.mxu0
        %v5775 = vadd.f32 0.0, %v5774
        %5776 = vmatmul.bf16.gmra.mxu0 %v5686
        %v5777 = vpop.f32.mrf.mxu0
        %v5778 = vadd.f32 0.0, %v5777
        %v5779 = vpop.f32.mrf.mxu0
        %v5780 = vadd.f32 0.0, %v5779
        %5781 = vmatmul.bf16.gmra.mxu0 %v5688
        %v5782 = vpop.f32.mrf.mxu0
        %v5783 = vadd.f32 0.0, %v5782
        %v5784 = vpop.f32.mrf.mxu0
        %v5785 = vadd.f32 0.0, %v5784
        %5786 = vmatmul.bf16.gmra.mxu0 %v5690
        %v5787 = vpop.f32.mrf.mxu0
        %v5788 = vadd.f32 0.0, %v5787
        %v5789 = vpop.f32.mrf.mxu0
        %v5790 = vadd.f32 0.0, %v5789
        %5791 = vmatmul.bf16.gmra.mxu0 %v5692
        %v5792 = vpop.f32.mrf.mxu0
        %v5793 = vadd.f32 0.0, %v5792
        %v5794 = vpop.f32.mrf.mxu0
        %v5795 = vadd.f32 0.0, %v5794
        %5796 = vmatmul.bf16.gmra.mxu0 %v5694
        %v5797 = vpop.f32.mrf.mxu0
        %v5798 = vadd.f32 0.0, %v5797
        %v5799 = vpop.f32.mrf.mxu0
        %v5800 = vadd.f32 0.0, %v5799
        %5801 = vmatmul.bf16.gmra.mxu0 %v5696
        %v5802 = vpop.f32.mrf.mxu0
        %v5803 = vadd.f32 0.0, %v5802
        %v5804 = vpop.f32.mrf.mxu0
        %v5805 = vadd.f32 0.0, %v5804
        %5806 = vmatmul.bf16.gmra.mxu0 %v5698
        %v5807 = vpop.f32.mrf.mxu0
        %v5808 = vadd.f32 0.0, %v5807
        %v5809 = vpop.f32.mrf.mxu0
        %v5810 = vadd.f32 0.0, %v5809
        %5811 = vmatmul.bf16.gmra.mxu0 %v5700
        %v5812 = vpop.f32.mrf.mxu0
        %v5813 = vadd.f32 0.0, %v5812
        %v5814 = vpop.f32.mrf.mxu0
        %v5815 = vadd.f32 0.0, %v5814
        %5816 = vmatmul.bf16.gmra.mxu0 %v5702
        %v5817 = vpop.f32.mrf.mxu0
        %v5818 = vadd.f32 0.0, %v5817
        %v5819 = vpop.f32.mrf.mxu0
        %v5820 = vadd.f32 0.0, %v5819
        %5821 = vmatmul.bf16.gmra.mxu0 %v5704
        %v5822 = vpop.f32.mrf.mxu0
        %v5823 = vadd.f32 0.0, %v5822
        %v5824 = vpop.f32.mrf.mxu0
        %v5825 = vadd.f32 0.0, %v5824
        %5826 = vdwg.mxu0
        %5827 = vmatpush.bf16.msra.mxu0 %v1026
        %5828 = vmatpush.bf16.msra.mxu0 %v1025
        %5829 = vmatpush.bf16.msra.mxu0 %v1024
        %5830 = vmatpush.bf16.msra.mxu0 %v1023
        %5831 = vmatpush.bf16.msra.mxu0 %v1022
        %5832 = vmatpush.bf16.msra.mxu0 %v1021
        %5833 = vmatpush.bf16.msra.mxu0 %v1020
        %5834 = vmatpush.bf16.msra.mxu0 %v1019
        %5835 = vmatmul.bf16.gmra.mxu0 %v5675
        %v5836 = vpop.f32.mrf.mxu0
        %v5837 = vadd.f32 %v5748, %v5836
        %v5838 = vpop.f32.mrf.mxu0
        %v5839 = vadd.f32 %v5750, %v5838
        %5840 = vmatmul.bf16.gmra.mxu0 %v5677
        %v5841 = vpop.f32.mrf.mxu0
        %v5842 = vadd.f32 %v5753, %v5841
        %v5843 = vpop.f32.mrf.mxu0
        %v5844 = vadd.f32 %v5755, %v5843
        %5845 = vmatmul.bf16.gmra.mxu0 %v5679
        %v5846 = vpop.f32.mrf.mxu0
        %v5847 = vadd.f32 %v5758, %v5846
        %v5848 = vpop.f32.mrf.mxu0
        %v5849 = vadd.f32 %v5760, %v5848
        %5850 = vmatmul.bf16.gmra.mxu0 %v5681
        %v5851 = vpop.f32.mrf.mxu0
        %v5852 = vadd.f32 %v5763, %v5851
        %v5853 = vpop.f32.mrf.mxu0
        %v5854 = vadd.f32 %v5765, %v5853
        %5855 = vmatmul.bf16.gmra.mxu0 %v5683
        %v5856 = vpop.f32.mrf.mxu0
        %v5857 = vadd.f32 %v5768, %v5856
        %v5858 = vpop.f32.mrf.mxu0
        %v5859 = vadd.f32 %v5770, %v5858
        %5860 = vmatmul.bf16.gmra.mxu0 %v5685
        %v5861 = vpop.f32.mrf.mxu0
        %v5862 = vadd.f32 %v5773, %v5861
        %v5863 = vpop.f32.mrf.mxu0
        %v5864 = vadd.f32 %v5775, %v5863
        %5865 = vmatmul.bf16.gmra.mxu0 %v5687
        %v5866 = vpop.f32.mrf.mxu0
        %v5867 = vadd.f32 %v5778, %v5866
        %v5868 = vpop.f32.mrf.mxu0
        %v5869 = vadd.f32 %v5780, %v5868
        %5870 = vmatmul.bf16.gmra.mxu0 %v5689
        %v5871 = vpop.f32.mrf.mxu0
        %v5872 = vadd.f32 %v5783, %v5871
        %v5873 = vpop.f32.mrf.mxu0
        %v5874 = vadd.f32 %v5785, %v5873
        %5875 = vmatmul.bf16.gmra.mxu0 %v5691
        %v5876 = vpop.f32.mrf.mxu0
        %v5877 = vadd.f32 %v5788, %v5876
        %v5878 = vpop.f32.mrf.mxu0
        %v5879 = vadd.f32 %v5790, %v5878
        %5880 = vmatmul.bf16.gmra.mxu0 %v5693
        %v5881 = vpop.f32.mrf.mxu0
        %v5882 = vadd.f32 %v5793, %v5881
        %v5883 = vpop.f32.mrf.mxu0
        %v5884 = vadd.f32 %v5795, %v5883
        %5885 = vmatmul.bf16.gmra.mxu0 %v5695
        %v5886 = vpop.f32.mrf.mxu0
        %v5887 = vadd.f32 %v5798, %v5886
        %v5888 = vpop.f32.mrf.mxu0
        %v5889 = vadd.f32 %v5800, %v5888
        %5890 = vmatmul.bf16.gmra.mxu0 %v5697
        %v5891 = vpop.f32.mrf.mxu0
        %v5892 = vadd.f32 %v5803, %v5891
        %v5893 = vpop.f32.mrf.mxu0
        %v5894 = vadd.f32 %v5805, %v5893
        %5895 = vmatmul.bf16.gmra.mxu0 %v5699
        %v5896 = vpop.f32.mrf.mxu0
        %v5897 = vadd.f32 %v5808, %v5896
        %v5898 = vpop.f32.mrf.mxu0
        %v5899 = vadd.f32 %v5810, %v5898
        %5900 = vmatmul.bf16.gmra.mxu0 %v5701
        %v5901 = vpop.f32.mrf.mxu0
        %v5902 = vadd.f32 %v5813, %v5901
        %v5903 = vpop.f32.mrf.mxu0
        %v5904 = vadd.f32 %v5815, %v5903
        %5905 = vmatmul.bf16.gmra.mxu0 %v5703
        %v5906 = vpop.f32.mrf.mxu0
        %v5907 = vadd.f32 %v5818, %v5906
        %v5908 = vpop.f32.mrf.mxu0
        %v5909 = vadd.f32 %v5820, %v5908
        %5910 = vmatmul.bf16.gmra.mxu0 %v5705
        %v5911 = vpop.f32.mrf.mxu0
        %v5912 = vadd.f32 %v5823, %v5911
        %v5913 = vpop.f32.mrf.mxu0
        %v5914 = vadd.f32 %v5825, %v5913
        %5915 = vdwg.mxu0
        %s5916 = scalar_lea.vmem %s4, 128
        %v5917 = vld [vmem:[%s5916] sm:$0xf]
        %v5918 = vld [vmem:[%s5916 + $0x4] sm:$0xf]
        %v5919 = vld [vmem:[%s5916 + $0x8] sm:$0xf]
        %v5920 = vld [vmem:[%s5916 + $0xc] sm:$0xf]
        %v5921 = vpack.c.bf16 %v5839, %v5837
        %v5922 = vpack.c.bf16 %v5844, %v5842
        %v5923 = vpack.c.bf16 %v5849, %v5847
        %v5924 = vpack.c.bf16 %v5854, %v5852
        %v5925 = vpack.c.bf16 %v5859, %v5857
        %v5926 = vpack.c.bf16 %v5864, %v5862
        %v5927 = vpack.c.bf16 %v5869, %v5867
        %v5928 = vpack.c.bf16 %v5874, %v5872
        %v5929 = vpack.c.bf16 %v5879, %v5877
        %v5930 = vpack.c.bf16 %v5884, %v5882
        %v5931 = vpack.c.bf16 %v5889, %v5887
        %v5932 = vpack.c.bf16 %v5894, %v5892
        %v5933 = vpack.c.bf16 %v5899, %v5897
        %v5934 = vpack.c.bf16 %v5904, %v5902
        %v5935 = vpack.c.bf16 %v5909, %v5907
        %v5936 = vpack.c.bf16 %v5914, %v5912
        %v5941 = vunpack.c.l.b16 %v5917
        %v5942 = vunpack.c.l.b16 %v5918
        %v5943 = vunpack.c.l.b16 %v5919
        %v5944 = vunpack.c.l.b16 %v5920
        %v5945 = vpack.c.b16 %v5942, %v5941
        %v5946 = vpack.c.b16 %v5944, %v5943
        %v5950 = vsel %vm841, %v5921, 0
        %v5953 = vsel %vm841, %v5922, 0
        %v5956 = vsel %vm841, %v5923, 0
        %v5959 = vsel %vm841, %v5924, 0
        %v5962 = vsel %vm841, %v5925, 0
        %v5965 = vsel %vm841, %v5926, 0
        %v5968 = vsel %vm841, %v5927, 0
        %v5971 = vsel %vm841, %v5928, 0
        %v5974 = vsel %vm841, %v5929, 0
        %v5977 = vsel %vm841, %v5930, 0
        %v5980 = vsel %vm841, %v5931, 0
        %v5983 = vsel %vm841, %v5932, 0
        %v5986 = vsel %vm841, %v5933, 0
        %v5989 = vsel %vm841, %v5934, 0
        %v5992 = vsel %vm841, %v5935, 0
        %v5995 = vsel %vm841, %v5936, 0
        %5997 = vmatpush.bf16.msra.mxu0 0
        %5998 = vmatpush.bf16.msra.mxu0 0
        %5999 = vmatpush.bf16.msra.mxu0 0
        %6000 = vmatpush.bf16.msra.mxu0 0
        %6001 = vmatpush.bf16.msra.mxu0 0
        %6002 = vmatpush.bf16.msra.mxu0 0
        %6003 = vmatpush.bf16.msra.mxu0 %v5946
        %6004 = vmatpush.bf16.msra.mxu0 %v5945
        %6005 = vmatmul.bf16.gmra.mxu0 %v5950
        %v6006 = vpop.f32.mrf.mxu0
        %v6007 = vadd.f32 0.0, %v6006
        %v6008 = vpop.f32.mrf.mxu0
        %v6009 = vadd.f32 0.0, %v6008
        %6010 = vmatmul.bf16.gmra.mxu0 %v5953
        %v6011 = vpop.f32.mrf.mxu0
        %v6012 = vadd.f32 0.0, %v6011
        %v6013 = vpop.f32.mrf.mxu0
        %v6014 = vadd.f32 0.0, %v6013
        %6015 = vmatmul.bf16.gmra.mxu0 %v5956
        %v6016 = vpop.f32.mrf.mxu0
        %v6017 = vadd.f32 0.0, %v6016
        %v6018 = vpop.f32.mrf.mxu0
        %v6019 = vadd.f32 0.0, %v6018
        %6020 = vmatmul.bf16.gmra.mxu0 %v5959
        %v6021 = vpop.f32.mrf.mxu0
        %v6022 = vadd.f32 0.0, %v6021
        %v6023 = vpop.f32.mrf.mxu0
        %v6024 = vadd.f32 0.0, %v6023
        %6025 = vmatmul.bf16.gmra.mxu0 %v5962
        %v6026 = vpop.f32.mrf.mxu0
        %v6027 = vadd.f32 0.0, %v6026
        %v6028 = vpop.f32.mrf.mxu0
        %v6029 = vadd.f32 0.0, %v6028
        %6030 = vmatmul.bf16.gmra.mxu0 %v5965
        %v6031 = vpop.f32.mrf.mxu0
        %v6032 = vadd.f32 0.0, %v6031
        %v6033 = vpop.f32.mrf.mxu0
        %v6034 = vadd.f32 0.0, %v6033
        %6035 = vmatmul.bf16.gmra.mxu0 %v5968
        %v6036 = vpop.f32.mrf.mxu0
        %v6037 = vadd.f32 0.0, %v6036
        %v6038 = vpop.f32.mrf.mxu0
        %v6039 = vadd.f32 0.0, %v6038
        %6040 = vmatmul.bf16.gmra.mxu0 %v5971
        %v6041 = vpop.f32.mrf.mxu0
        %v6042 = vadd.f32 0.0, %v6041
        %v6043 = vpop.f32.mrf.mxu0
        %v6044 = vadd.f32 0.0, %v6043
        %6045 = vmatmul.bf16.gmra.mxu0 %v5974
        %v6046 = vpop.f32.mrf.mxu0
        %v6047 = vadd.f32 0.0, %v6046
        %v6048 = vpop.f32.mrf.mxu0
        %v6049 = vadd.f32 0.0, %v6048
        %6050 = vmatmul.bf16.gmra.mxu0 %v5977
        %v6051 = vpop.f32.mrf.mxu0
        %v6052 = vadd.f32 0.0, %v6051
        %v6053 = vpop.f32.mrf.mxu0
        %v6054 = vadd.f32 0.0, %v6053
        %6055 = vmatmul.bf16.gmra.mxu0 %v5980
        %v6056 = vpop.f32.mrf.mxu0
        %v6057 = vadd.f32 0.0, %v6056
        %v6058 = vpop.f32.mrf.mxu0
        %v6059 = vadd.f32 0.0, %v6058
        %6060 = vmatmul.bf16.gmra.mxu0 %v5983
        %v6061 = vpop.f32.mrf.mxu0
        %v6062 = vadd.f32 0.0, %v6061
        %v6063 = vpop.f32.mrf.mxu0
        %v6064 = vadd.f32 0.0, %v6063
        %6065 = vmatmul.bf16.gmra.mxu0 %v5986
        %v6066 = vpop.f32.mrf.mxu0
        %v6067 = vadd.f32 0.0, %v6066
        %v6068 = vpop.f32.mrf.mxu0
        %v6069 = vadd.f32 0.0, %v6068
        %6070 = vmatmul.bf16.gmra.mxu0 %v5989
        %v6071 = vpop.f32.mrf.mxu0
        %v6072 = vadd.f32 0.0, %v6071
        %v6073 = vpop.f32.mrf.mxu0
        %v6074 = vadd.f32 0.0, %v6073
        %6075 = vmatmul.bf16.gmra.mxu0 %v5992
        %v6076 = vpop.f32.mrf.mxu0
        %v6077 = vadd.f32 0.0, %v6076
        %v6078 = vpop.f32.mrf.mxu0
        %v6079 = vadd.f32 0.0, %v6078
        %6080 = vmatmul.bf16.gmra.mxu0 %v5995
        %v6081 = vpop.f32.mrf.mxu0
        %v6082 = vadd.f32 0.0, %v6081
        %v6083 = vpop.f32.mrf.mxu0
        %v6084 = vadd.f32 0.0, %v6083
        %6085 = vdwg.mxu0
        %v6086 = vadd.f32 %v5513, %v6007
        %v6087 = vadd.f32 %v5514, %v6009
        %v6088 = vadd.f32 %v5515, %v6012
        %v6089 = vadd.f32 %v5516, %v6014
        %v6090 = vadd.f32 %v5517, %v6017
        %v6091 = vadd.f32 %v5518, %v6019
        %v6092 = vadd.f32 %v5519, %v6022
        %v6093 = vadd.f32 %v5520, %v6024
        %v6094 = vadd.f32 %v5521, %v6027
        %v6095 = vadd.f32 %v5522, %v6029
        %v6096 = vadd.f32 %v5523, %v6032
        %v6097 = vadd.f32 %v5524, %v6034
        %v6098 = vadd.f32 %v5525, %v6037
        %v6099 = vadd.f32 %v5526, %v6039
        %v6100 = vadd.f32 %v5527, %v6042
        %v6101 = vadd.f32 %v5528, %v6044
        %v6102 = vadd.f32 %v5529, %v6047
        %v6103 = vadd.f32 %v5530, %v6049
        %v6104 = vadd.f32 %v5531, %v6052
        %v6105 = vadd.f32 %v5532, %v6054
        %v6106 = vadd.f32 %v5533, %v6057
        %v6107 = vadd.f32 %v5534, %v6059
        %v6108 = vadd.f32 %v5535, %v6062
        %v6109 = vadd.f32 %v5536, %v6064
        %v6110 = vadd.f32 %v5537, %v6067
        %v6111 = vadd.f32 %v5538, %v6069
        %v6112 = vadd.f32 %v5539, %v6072
        %v6113 = vadd.f32 %v5540, %v6074
        %v6114 = vadd.f32 %v5541, %v6077
        %v6115 = vadd.f32 %v5542, %v6079
        %v6116 = vadd.f32 %v5543, %v6082
        %v6117 = vadd.f32 %v5544, %v6084
        %v6118 = vld [vmem:[%s5] sm:$0x1]
        %v6120 = vperm.slane %v6118, 0
        %v6122 = vadd.f32 %v6086, %v6120
        %v6123 = vadd.f32 %v6087, %v6120
        %v6124 = vadd.f32 %v6088, %v6120
        %v6125 = vadd.f32 %v6089, %v6120
        %v6126 = vadd.f32 %v6090, %v6120
        %v6127 = vadd.f32 %v6091, %v6120
        %v6128 = vadd.f32 %v6092, %v6120
        %v6129 = vadd.f32 %v6093, %v6120
        %v6130 = vadd.f32 %v6094, %v6120
        %v6131 = vadd.f32 %v6095, %v6120
        %v6132 = vadd.f32 %v6096, %v6120
        %v6133 = vadd.f32 %v6097, %v6120
        %v6134 = vadd.f32 %v6098, %v6120
        %v6135 = vadd.f32 %v6099, %v6120
        %v6136 = vadd.f32 %v6100, %v6120
        %v6137 = vadd.f32 %v6101, %v6120
        %v6138 = vadd.f32 %v6102, %v6120
        %v6139 = vadd.f32 %v6103, %v6120
        %v6140 = vadd.f32 %v6104, %v6120
        %v6141 = vadd.f32 %v6105, %v6120
        %v6142 = vadd.f32 %v6106, %v6120
        %v6143 = vadd.f32 %v6107, %v6120
        %v6144 = vadd.f32 %v6108, %v6120
        %v6145 = vadd.f32 %v6109, %v6120
        %v6146 = vadd.f32 %v6110, %v6120
        %v6147 = vadd.f32 %v6111, %v6120
        %v6148 = vadd.f32 %v6112, %v6120
        %v6149 = vadd.f32 %v6113, %v6120
        %v6150 = vadd.f32 %v6114, %v6120
        %v6151 = vadd.f32 %v6115, %v6120
        %v6152 = vadd.f32 %v6116, %v6120
        %v6153 = vadd.f32 %v6117, %v6120
        %v6154 = vmax.f32 %v6122, 0.0
        %v6155 = vmax.f32 %v6123, 0.0
        %v6156 = vmax.f32 %v6124, 0.0
        %v6157 = vmax.f32 %v6125, 0.0
        %v6158 = vmax.f32 %v6126, 0.0
        %v6159 = vmax.f32 %v6127, 0.0
        %v6160 = vmax.f32 %v6128, 0.0
        %v6161 = vmax.f32 %v6129, 0.0
        %v6162 = vmax.f32 %v6130, 0.0
        %v6163 = vmax.f32 %v6131, 0.0
        %v6164 = vmax.f32 %v6132, 0.0
        %v6165 = vmax.f32 %v6133, 0.0
        %v6166 = vmax.f32 %v6134, 0.0
        %v6167 = vmax.f32 %v6135, 0.0
        %v6168 = vmax.f32 %v6136, 0.0
        %v6169 = vmax.f32 %v6137, 0.0
        %v6170 = vmax.f32 %v6138, 0.0
        %v6171 = vmax.f32 %v6139, 0.0
        %v6172 = vmax.f32 %v6140, 0.0
        %v6173 = vmax.f32 %v6141, 0.0
        %v6174 = vmax.f32 %v6142, 0.0
        %v6175 = vmax.f32 %v6143, 0.0
        %v6176 = vmax.f32 %v6144, 0.0
        %v6177 = vmax.f32 %v6145, 0.0
        %v6178 = vmax.f32 %v6146, 0.0
        %v6179 = vmax.f32 %v6147, 0.0
        %v6180 = vmax.f32 %v6148, 0.0
        %v6181 = vmax.f32 %v6149, 0.0
        %v6182 = vmax.f32 %v6150, 0.0
        %v6183 = vmax.f32 %v6151, 0.0
        %v6184 = vmax.f32 %v6152, 0.0
        %v6185 = vmax.f32 %v6153, 0.0
        %v6186 = vpack.c.bf16 %v6155, %v6154
        %v6187 = vpack.c.bf16 %v6157, %v6156
        %v6188 = vpack.c.bf16 %v6159, %v6158
        %v6189 = vpack.c.bf16 %v6161, %v6160
        %v6190 = vpack.c.bf16 %v6163, %v6162
        %v6191 = vpack.c.bf16 %v6165, %v6164
        %v6192 = vpack.c.bf16 %v6167, %v6166
        %v6193 = vpack.c.bf16 %v6169, %v6168
        %v6194 = vpack.c.bf16 %v6171, %v6170
        %v6195 = vpack.c.bf16 %v6173, %v6172
        %v6196 = vpack.c.bf16 %v6175, %v6174
        %v6197 = vpack.c.bf16 %v6177, %v6176
        %v6198 = vpack.c.bf16 %v6179, %v6178
        %v6199 = vpack.c.bf16 %v6181, %v6180
        %v6200 = vpack.c.bf16 %v6183, %v6182
        %v6201 = vpack.c.bf16 %v6185, %v6184
        %v6202 = vld [vmem:[%s6] sm:$0xff]
        %v6203 = vld [vmem:[%s6 + $0x8] sm:$0xff]
        %v6204 = vld [vmem:[%s6 + $0x10] sm:$0xff]
        %v6205 = vld [vmem:[%s6 + $0x18] sm:$0xff]
        %v6206 = vld [vmem:[%s6 + $0x20] sm:$0xff]
        %v6207 = vld [vmem:[%s6 + $0x28] sm:$0xff]
        %v6208 = vld [vmem:[%s6 + $0x30] sm:$0xff]
        %v6209 = vld [vmem:[%s6 + $0x38] sm:$0xff]
        %v6218 = vunpack.c.l.b16 %v6202
        %v6219 = vunpack.c.h.b16 %v6202
        %v6220 = vunpack.c.l.b16 %v6203
        %v6221 = vunpack.c.h.b16 %v6203
        %v6222 = vunpack.c.l.b16 %v6204
        %v6223 = vunpack.c.h.b16 %v6204
        %v6224 = vunpack.c.l.b16 %v6205
        %v6225 = vunpack.c.h.b16 %v6205
        %v6226 = vunpack.c.l.b16 %v6206
        %v6227 = vunpack.c.h.b16 %v6206
        %v6228 = vunpack.c.l.b16 %v6207
        %v6229 = vunpack.c.h.b16 %v6207
        %v6230 = vunpack.c.l.b16 %v6208
        %v6231 = vunpack.c.h.b16 %v6208
        %v6232 = vunpack.c.l.b16 %v6209
        %v6233 = vunpack.c.h.b16 %v6209
        %v6234 = vpack.c.b16 %v6220, %v6218
        %v6235 = vpack.c.b16 %v6221, %v6219
        %v6236 = vpack.c.b16 %v6224, %v6222
        %v6237 = vpack.c.b16 %v6225, %v6223
        %v6238 = vpack.c.b16 %v6228, %v6226
        %v6239 = vpack.c.b16 %v6229, %v6227
        %v6240 = vpack.c.b16 %v6232, %v6230
        %v6241 = vpack.c.b16 %v6233, %v6231
        %6250 = vmatpush.bf16.msra.mxu0 %v6193
        %6251 = vmatpush.bf16.msra.mxu0 %v6192
        %6252 = vmatpush.bf16.msra.mxu0 %v6191
        %6253 = vmatpush.bf16.msra.mxu0 %v6190
        %6254 = vmatpush.bf16.msra.mxu0 %v6189
        %6255 = vmatpush.bf16.msra.mxu0 %v6188
        %6256 = vmatpush.bf16.msra.mxu0 %v6187
        %6257 = vmatpush.bf16.msra.mxu0 %v6186
        %6258 = vmatmul.bf16.gmra.mxu0 %v6234
        %v6259 = vpop.f32.mrf.mxu0
        %v6260 = vadd.f32 0.0, %v6259
        %v6261 = vpop.f32.mrf.mxu0
        %v6262 = vadd.f32 0.0, %v6261
        %6263 = vmatmul.bf16.gmra.mxu0 %v6236
        %v6264 = vpop.f32.mrf.mxu0
        %v6265 = vadd.f32 0.0, %v6264
        %v6266 = vpop.f32.mrf.mxu0
        %v6267 = vadd.f32 0.0, %v6266
        %6268 = vmatmul.bf16.gmra.mxu0 %v6238
        %v6269 = vpop.f32.mrf.mxu0
        %v6270 = vadd.f32 0.0, %v6269
        %v6271 = vpop.f32.mrf.mxu0
        %v6272 = vadd.f32 0.0, %v6271
        %6273 = vmatmul.bf16.gmra.mxu0 %v6240
        %v6274 = vpop.f32.mrf.mxu0
        %v6275 = vadd.f32 0.0, %v6274
        %v6276 = vpop.f32.mrf.mxu0
        %v6277 = vadd.f32 0.0, %v6276
        %6278 = vdwg.mxu0
        %6279 = vmatpush.bf16.msra.mxu0 %v6201
        %6280 = vmatpush.bf16.msra.mxu0 %v6200
        %6281 = vmatpush.bf16.msra.mxu0 %v6199
        %6282 = vmatpush.bf16.msra.mxu0 %v6198
        %6283 = vmatpush.bf16.msra.mxu0 %v6197
        %6284 = vmatpush.bf16.msra.mxu0 %v6196
        %6285 = vmatpush.bf16.msra.mxu0 %v6195
        %6286 = vmatpush.bf16.msra.mxu0 %v6194
        %6287 = vmatmul.bf16.gmra.mxu0 %v6235
        %v6288 = vpop.f32.mrf.mxu0
        %v6289 = vadd.f32 %v6260, %v6288
        %v6290 = vpop.f32.mrf.mxu0
        %v6291 = vadd.f32 %v6262, %v6290
        %6292 = vmatmul.bf16.gmra.mxu0 %v6237
        %v6293 = vpop.f32.mrf.mxu0
        %v6294 = vadd.f32 %v6265, %v6293
        %v6295 = vpop.f32.mrf.mxu0
        %v6296 = vadd.f32 %v6267, %v6295
        %6297 = vmatmul.bf16.gmra.mxu0 %v6239
        %v6298 = vpop.f32.mrf.mxu0
        %v6299 = vadd.f32 %v6270, %v6298
        %v6300 = vpop.f32.mrf.mxu0
        %v6301 = vadd.f32 %v6272, %v6300
        %6302 = vmatmul.bf16.gmra.mxu0 %v6241
        %v6303 = vpop.f32.mrf.mxu0
        %v6304 = vadd.f32 %v6275, %v6303
        %v6305 = vpop.f32.mrf.mxu0
        %v6306 = vadd.f32 %v6277, %v6305
        %6307 = vdwg.mxu0
        %v6308 = vld [vmem:[%s7] sm:$0x1]
        %v6310 = vperm.slane %v6308, 0
        %v6312 = vmul.f32 %v6289, %v6310
        %v6313 = vmul.f32 %v6291, %v6310
        %v6314 = vmul.f32 %v6294, %v6310
        %v6315 = vmul.f32 %v6296, %v6310
        %v6316 = vmul.f32 %v6299, %v6310
        %v6317 = vmul.f32 %v6301, %v6310
        %v6318 = vmul.f32 %v6304, %v6310
        %v6319 = vmul.f32 %v6306, %v6310
        %v6320 = vadd.f32 %v6312, 0.0
        %v6321 = vadd.f32 %v6313, 0.0
        %v6322 = vadd.f32 %v6314, 0.0
        %v6323 = vadd.f32 %v6315, 0.0
        %v6324 = vadd.f32 %v6316, 0.0
        %v6325 = vadd.f32 %v6317, 0.0
        %v6326 = vadd.f32 %v6318, 0.0
        %v6327 = vadd.f32 %v6319, 0.0
        %s6328 = scalar_lea.vmem %s6, 64
        %v6329 = vld [vmem:[%s6328] sm:$0xff]
        %v6330 = vld [vmem:[%s6328 + $0x8] sm:$0xff]
        %v6331 = vld [vmem:[%s6328 + $0x10] sm:$0xff]
        %v6332 = vld [vmem:[%s6328 + $0x18] sm:$0xff]
        %v6333 = vld [vmem:[%s6328 + $0x20] sm:$0xff]
        %v6334 = vld [vmem:[%s6328 + $0x28] sm:$0xff]
        %v6335 = vld [vmem:[%s6328 + $0x30] sm:$0xff]
        %v6336 = vld [vmem:[%s6328 + $0x38] sm:$0xff]
        %v6345 = vunpack.c.l.b16 %v6329
        %v6346 = vunpack.c.h.b16 %v6329
        %v6347 = vunpack.c.l.b16 %v6330
        %v6348 = vunpack.c.h.b16 %v6330
        %v6349 = vunpack.c.l.b16 %v6331
        %v6350 = vunpack.c.h.b16 %v6331
        %v6351 = vunpack.c.l.b16 %v6332
        %v6352 = vunpack.c.h.b16 %v6332
        %v6353 = vunpack.c.l.b16 %v6333
        %v6354 = vunpack.c.h.b16 %v6333
        %v6355 = vunpack.c.l.b16 %v6334
        %v6356 = vunpack.c.h.b16 %v6334
        %v6357 = vunpack.c.l.b16 %v6335
        %v6358 = vunpack.c.h.b16 %v6335
        %v6359 = vunpack.c.l.b16 %v6336
        %v6360 = vunpack.c.h.b16 %v6336
        %v6361 = vpack.c.b16 %v6347, %v6345
        %v6362 = vpack.c.b16 %v6348, %v6346
        %v6363 = vpack.c.b16 %v6351, %v6349
        %v6364 = vpack.c.b16 %v6352, %v6350
        %v6365 = vpack.c.b16 %v6355, %v6353
        %v6366 = vpack.c.b16 %v6356, %v6354
        %v6367 = vpack.c.b16 %v6359, %v6357
        %v6368 = vpack.c.b16 %v6360, %v6358
        %6377 = vmatpush.bf16.msra.mxu0 %v6193
        %6378 = vmatpush.bf16.msra.mxu0 %v6192
        %6379 = vmatpush.bf16.msra.mxu0 %v6191
        %6380 = vmatpush.bf16.msra.mxu0 %v6190
        %6381 = vmatpush.bf16.msra.mxu0 %v6189
        %6382 = vmatpush.bf16.msra.mxu0 %v6188
        %6383 = vmatpush.bf16.msra.mxu0 %v6187
        %6384 = vmatpush.bf16.msra.mxu0 %v6186
        %6385 = vmatmul.bf16.gmra.mxu0 %v6361
        %v6386 = vpop.f32.mrf.mxu0
        %v6387 = vadd.f32 0.0, %v6386
        %v6388 = vpop.f32.mrf.mxu0
        %v6389 = vadd.f32 0.0, %v6388
        %6390 = vmatmul.bf16.gmra.mxu0 %v6363
        %v6391 = vpop.f32.mrf.mxu0
        %v6392 = vadd.f32 0.0, %v6391
        %v6393 = vpop.f32.mrf.mxu0
        %v6394 = vadd.f32 0.0, %v6393
        %6395 = vmatmul.bf16.gmra.mxu0 %v6365
        %v6396 = vpop.f32.mrf.mxu0
        %v6397 = vadd.f32 0.0, %v6396
        %v6398 = vpop.f32.mrf.mxu0
        %v6399 = vadd.f32 0.0, %v6398
        %6400 = vmatmul.bf16.gmra.mxu0 %v6367
        %v6401 = vpop.f32.mrf.mxu0
        %v6402 = vadd.f32 0.0, %v6401
        %v6403 = vpop.f32.mrf.mxu0
        %v6404 = vadd.f32 0.0, %v6403
        %6405 = vdwg.mxu0
        %6406 = vmatpush.bf16.msra.mxu0 %v6201
        %6407 = vmatpush.bf16.msra.mxu0 %v6200
        %6408 = vmatpush.bf16.msra.mxu0 %v6199
        %6409 = vmatpush.bf16.msra.mxu0 %v6198
        %6410 = vmatpush.bf16.msra.mxu0 %v6197
        %6411 = vmatpush.bf16.msra.mxu0 %v6196
        %6412 = vmatpush.bf16.msra.mxu0 %v6195
        %6413 = vmatpush.bf16.msra.mxu0 %v6194
        %6414 = vmatmul.bf16.gmra.mxu0 %v6362
        %v6415 = vpop.f32.mrf.mxu0
        %v6416 = vadd.f32 %v6387, %v6415
        %v6417 = vpop.f32.mrf.mxu0
        %v6418 = vadd.f32 %v6389, %v6417
        %6419 = vmatmul.bf16.gmra.mxu0 %v6364
        %v6420 = vpop.f32.mrf.mxu0
        %v6421 = vadd.f32 %v6392, %v6420
        %v6422 = vpop.f32.mrf.mxu0
        %v6423 = vadd.f32 %v6394, %v6422
        %6424 = vmatmul.bf16.gmra.mxu0 %v6366
        %v6425 = vpop.f32.mrf.mxu0
        %v6426 = vadd.f32 %v6397, %v6425
        %v6427 = vpop.f32.mrf.mxu0
        %v6428 = vadd.f32 %v6399, %v6427
        %6429 = vmatmul.bf16.gmra.mxu0 %v6368
        %v6430 = vpop.f32.mrf.mxu0
        %v6431 = vadd.f32 %v6402, %v6430
        %v6432 = vpop.f32.mrf.mxu0
        %v6433 = vadd.f32 %v6404, %v6432
        %6434 = vdwg.mxu0
        %s6435 = scalar_lea.vmem %s7, 1
        %v6436 = vld [vmem:[%s6435] sm:$0x1]
        %v6438 = vperm.slane %v6436, 0
        %v6440 = vmul.f32 %v6416, %v6438
        %v6441 = vmul.f32 %v6418, %v6438
        %v6442 = vmul.f32 %v6421, %v6438
        %v6443 = vmul.f32 %v6423, %v6438
        %v6444 = vmul.f32 %v6426, %v6438
        %v6445 = vmul.f32 %v6428, %v6438
        %v6446 = vmul.f32 %v6431, %v6438
        %v6447 = vmul.f32 %v6433, %v6438
        %v6448 = vadd.f32 %v6320, %v6440
        %v6449 = vadd.f32 %v6321, %v6441
        %v6450 = vadd.f32 %v6322, %v6442
        %v6451 = vadd.f32 %v6323, %v6443
        %v6452 = vadd.f32 %v6324, %v6444
        %v6453 = vadd.f32 %v6325, %v6445
        %v6454 = vadd.f32 %v6326, %v6446
        %v6455 = vadd.f32 %v6327, %v6447
        %s6456 = scalar_lea.vmem %s6, 128
        %v6457 = vld [vmem:[%s6456] sm:$0xff]
        %v6458 = vld [vmem:[%s6456 + $0x8] sm:$0xff]
        %v6459 = vld [vmem:[%s6456 + $0x10] sm:$0xff]
        %v6460 = vld [vmem:[%s6456 + $0x18] sm:$0xff]
        %v6461 = vld [vmem:[%s6456 + $0x20] sm:$0xff]
        %v6462 = vld [vmem:[%s6456 + $0x28] sm:$0xff]
        %v6463 = vld [vmem:[%s6456 + $0x30] sm:$0xff]
        %v6464 = vld [vmem:[%s6456 + $0x38] sm:$0xff]
        %v6473 = vunpack.c.l.b16 %v6457
        %v6474 = vunpack.c.h.b16 %v6457
        %v6475 = vunpack.c.l.b16 %v6458
        %v6476 = vunpack.c.h.b16 %v6458
        %v6477 = vunpack.c.l.b16 %v6459
        %v6478 = vunpack.c.h.b16 %v6459
        %v6479 = vunpack.c.l.b16 %v6460
        %v6480 = vunpack.c.h.b16 %v6460
        %v6481 = vunpack.c.l.b16 %v6461
        %v6482 = vunpack.c.h.b16 %v6461
        %v6483 = vunpack.c.l.b16 %v6462
        %v6484 = vunpack.c.h.b16 %v6462
        %v6485 = vunpack.c.l.b16 %v6463
        %v6486 = vunpack.c.h.b16 %v6463
        %v6487 = vunpack.c.l.b16 %v6464
        %v6488 = vunpack.c.h.b16 %v6464
        %v6489 = vpack.c.b16 %v6475, %v6473
        %v6490 = vpack.c.b16 %v6476, %v6474
        %v6491 = vpack.c.b16 %v6479, %v6477
        %v6492 = vpack.c.b16 %v6480, %v6478
        %v6493 = vpack.c.b16 %v6483, %v6481
        %v6494 = vpack.c.b16 %v6484, %v6482
        %v6495 = vpack.c.b16 %v6487, %v6485
        %v6496 = vpack.c.b16 %v6488, %v6486
        %6505 = vmatpush.bf16.msra.mxu0 %v6193
        %6506 = vmatpush.bf16.msra.mxu0 %v6192
        %6507 = vmatpush.bf16.msra.mxu0 %v6191
        %6508 = vmatpush.bf16.msra.mxu0 %v6190
        %6509 = vmatpush.bf16.msra.mxu0 %v6189
        %6510 = vmatpush.bf16.msra.mxu0 %v6188
        %6511 = vmatpush.bf16.msra.mxu0 %v6187
        %6512 = vmatpush.bf16.msra.mxu0 %v6186
        %6513 = vmatmul.bf16.gmra.mxu0 %v6489
        %v6514 = vpop.f32.mrf.mxu0
        %v6515 = vadd.f32 0.0, %v6514
        %v6516 = vpop.f32.mrf.mxu0
        %v6517 = vadd.f32 0.0, %v6516
        %6518 = vmatmul.bf16.gmra.mxu0 %v6491
        %v6519 = vpop.f32.mrf.mxu0
        %v6520 = vadd.f32 0.0, %v6519
        %v6521 = vpop.f32.mrf.mxu0
        %v6522 = vadd.f32 0.0, %v6521
        %6523 = vmatmul.bf16.gmra.mxu0 %v6493
        %v6524 = vpop.f32.mrf.mxu0
        %v6525 = vadd.f32 0.0, %v6524
        %v6526 = vpop.f32.mrf.mxu0
        %v6527 = vadd.f32 0.0, %v6526
        %6528 = vmatmul.bf16.gmra.mxu0 %v6495
        %v6529 = vpop.f32.mrf.mxu0
        %v6530 = vadd.f32 0.0, %v6529
        %v6531 = vpop.f32.mrf.mxu0
        %v6532 = vadd.f32 0.0, %v6531
        %6533 = vdwg.mxu0
        %6534 = vmatpush.bf16.msra.mxu0 %v6201
        %6535 = vmatpush.bf16.msra.mxu0 %v6200
        %6536 = vmatpush.bf16.msra.mxu0 %v6199
        %6537 = vmatpush.bf16.msra.mxu0 %v6198
        %6538 = vmatpush.bf16.msra.mxu0 %v6197
        %6539 = vmatpush.bf16.msra.mxu0 %v6196
        %6540 = vmatpush.bf16.msra.mxu0 %v6195
        %6541 = vmatpush.bf16.msra.mxu0 %v6194
        %6542 = vmatmul.bf16.gmra.mxu0 %v6490
        %v6543 = vpop.f32.mrf.mxu0
        %v6544 = vadd.f32 %v6515, %v6543
        %v6545 = vpop.f32.mrf.mxu0
        %v6546 = vadd.f32 %v6517, %v6545
        %6547 = vmatmul.bf16.gmra.mxu0 %v6492
        %v6548 = vpop.f32.mrf.mxu0
        %v6549 = vadd.f32 %v6520, %v6548
        %v6550 = vpop.f32.mrf.mxu0
        %v6551 = vadd.f32 %v6522, %v6550
        %6552 = vmatmul.bf16.gmra.mxu0 %v6494
        %v6553 = vpop.f32.mrf.mxu0
        %v6554 = vadd.f32 %v6525, %v6553
        %v6555 = vpop.f32.mrf.mxu0
        %v6556 = vadd.f32 %v6527, %v6555
        %6557 = vmatmul.bf16.gmra.mxu0 %v6496
        %v6558 = vpop.f32.mrf.mxu0
        %v6559 = vadd.f32 %v6530, %v6558
        %v6560 = vpop.f32.mrf.mxu0
        %v6561 = vadd.f32 %v6532, %v6560
        %6562 = vdwg.mxu0
        %s6563 = scalar_lea.vmem %s7, 2
        %v6564 = vld [vmem:[%s6563] sm:$0x1]
        %v6566 = vperm.slane %v6564, 0
        %v6568 = vmul.f32 %v6544, %v6566
        %v6569 = vmul.f32 %v6546, %v6566
        %v6570 = vmul.f32 %v6549, %v6566
        %v6571 = vmul.f32 %v6551, %v6566
        %v6572 = vmul.f32 %v6554, %v6566
        %v6573 = vmul.f32 %v6556, %v6566
        %v6574 = vmul.f32 %v6559, %v6566
        %v6575 = vmul.f32 %v6561, %v6566
        %v6576 = vadd.f32 %v6448, %v6568
        %v6577 = vadd.f32 %v6449, %v6569
        %v6578 = vadd.f32 %v6450, %v6570
        %v6579 = vadd.f32 %v6451, %v6571
        %v6580 = vadd.f32 %v6452, %v6572
        %v6581 = vadd.f32 %v6453, %v6573
        %v6582 = vadd.f32 %v6454, %v6574
        %v6583 = vadd.f32 %v6455, %v6575
        %s6584 = scalar_lea.vmem %s6, 192
        %v6585 = vld [vmem:[%s6584] sm:$0xff]
        %v6586 = vld [vmem:[%s6584 + $0x8] sm:$0xff]
        %v6587 = vld [vmem:[%s6584 + $0x10] sm:$0xff]
        %v6588 = vld [vmem:[%s6584 + $0x18] sm:$0xff]
        %v6589 = vld [vmem:[%s6584 + $0x20] sm:$0xff]
        %v6590 = vld [vmem:[%s6584 + $0x28] sm:$0xff]
        %v6591 = vld [vmem:[%s6584 + $0x30] sm:$0xff]
        %v6592 = vld [vmem:[%s6584 + $0x38] sm:$0xff]
        %v6601 = vunpack.c.l.b16 %v6585
        %v6602 = vunpack.c.h.b16 %v6585
        %v6603 = vunpack.c.l.b16 %v6586
        %v6604 = vunpack.c.h.b16 %v6586
        %v6605 = vunpack.c.l.b16 %v6587
        %v6606 = vunpack.c.h.b16 %v6587
        %v6607 = vunpack.c.l.b16 %v6588
        %v6608 = vunpack.c.h.b16 %v6588
        %v6609 = vunpack.c.l.b16 %v6589
        %v6610 = vunpack.c.h.b16 %v6589
        %v6611 = vunpack.c.l.b16 %v6590
        %v6612 = vunpack.c.h.b16 %v6590
        %v6613 = vunpack.c.l.b16 %v6591
        %v6614 = vunpack.c.h.b16 %v6591
        %v6615 = vunpack.c.l.b16 %v6592
        %v6616 = vunpack.c.h.b16 %v6592
        %v6617 = vpack.c.b16 %v6603, %v6601
        %v6618 = vpack.c.b16 %v6604, %v6602
        %v6619 = vpack.c.b16 %v6607, %v6605
        %v6620 = vpack.c.b16 %v6608, %v6606
        %v6621 = vpack.c.b16 %v6611, %v6609
        %v6622 = vpack.c.b16 %v6612, %v6610
        %v6623 = vpack.c.b16 %v6615, %v6613
        %v6624 = vpack.c.b16 %v6616, %v6614
        %6633 = vmatpush.bf16.msra.mxu0 %v6193
        %6634 = vmatpush.bf16.msra.mxu0 %v6192
        %6635 = vmatpush.bf16.msra.mxu0 %v6191
        %6636 = vmatpush.bf16.msra.mxu0 %v6190
        %6637 = vmatpush.bf16.msra.mxu0 %v6189
        %6638 = vmatpush.bf16.msra.mxu0 %v6188
        %6639 = vmatpush.bf16.msra.mxu0 %v6187
        %6640 = vmatpush.bf16.msra.mxu0 %v6186
        %6641 = vmatmul.bf16.gmra.mxu0 %v6617
        %v6642 = vpop.f32.mrf.mxu0
        %v6643 = vadd.f32 0.0, %v6642
        %v6644 = vpop.f32.mrf.mxu0
        %v6645 = vadd.f32 0.0, %v6644
        %6646 = vmatmul.bf16.gmra.mxu0 %v6619
        %v6647 = vpop.f32.mrf.mxu0
        %v6648 = vadd.f32 0.0, %v6647
        %v6649 = vpop.f32.mrf.mxu0
        %v6650 = vadd.f32 0.0, %v6649
        %6651 = vmatmul.bf16.gmra.mxu0 %v6621
        %v6652 = vpop.f32.mrf.mxu0
        %v6653 = vadd.f32 0.0, %v6652
        %v6654 = vpop.f32.mrf.mxu0
        %v6655 = vadd.f32 0.0, %v6654
        %6656 = vmatmul.bf16.gmra.mxu0 %v6623
        %v6657 = vpop.f32.mrf.mxu0
        %v6658 = vadd.f32 0.0, %v6657
        %v6659 = vpop.f32.mrf.mxu0
        %v6660 = vadd.f32 0.0, %v6659
        %6661 = vdwg.mxu0
        %6662 = vmatpush.bf16.msra.mxu0 %v6201
        %6663 = vmatpush.bf16.msra.mxu0 %v6200
        %6664 = vmatpush.bf16.msra.mxu0 %v6199
        %6665 = vmatpush.bf16.msra.mxu0 %v6198
        %6666 = vmatpush.bf16.msra.mxu0 %v6197
        %6667 = vmatpush.bf16.msra.mxu0 %v6196
        %6668 = vmatpush.bf16.msra.mxu0 %v6195
        %6669 = vmatpush.bf16.msra.mxu0 %v6194
        %6670 = vmatmul.bf16.gmra.mxu0 %v6618
        %v6671 = vpop.f32.mrf.mxu0
        %v6672 = vadd.f32 %v6643, %v6671
        %v6673 = vpop.f32.mrf.mxu0
        %v6674 = vadd.f32 %v6645, %v6673
        %6675 = vmatmul.bf16.gmra.mxu0 %v6620
        %v6676 = vpop.f32.mrf.mxu0
        %v6677 = vadd.f32 %v6648, %v6676
        %v6678 = vpop.f32.mrf.mxu0
        %v6679 = vadd.f32 %v6650, %v6678
        %6680 = vmatmul.bf16.gmra.mxu0 %v6622
        %v6681 = vpop.f32.mrf.mxu0
        %v6682 = vadd.f32 %v6653, %v6681
        %v6683 = vpop.f32.mrf.mxu0
        %v6684 = vadd.f32 %v6655, %v6683
        %6685 = vmatmul.bf16.gmra.mxu0 %v6624
        %v6686 = vpop.f32.mrf.mxu0
        %v6687 = vadd.f32 %v6658, %v6686
        %v6688 = vpop.f32.mrf.mxu0
        %v6689 = vadd.f32 %v6660, %v6688
        %6690 = vdwg.mxu0
        %s6691 = scalar_lea.vmem %s7, 3
        %v6692 = vld [vmem:[%s6691] sm:$0x1]
        %v6694 = vperm.slane %v6692, 0
        %v6696 = vmul.f32 %v6672, %v6694
        %v6697 = vmul.f32 %v6674, %v6694
        %v6698 = vmul.f32 %v6677, %v6694
        %v6699 = vmul.f32 %v6679, %v6694
        %v6700 = vmul.f32 %v6682, %v6694
        %v6701 = vmul.f32 %v6684, %v6694
        %v6702 = vmul.f32 %v6687, %v6694
        %v6703 = vmul.f32 %v6689, %v6694
        %v6704 = vadd.f32 %v6576, %v6696
        %v6705 = vadd.f32 %v6577, %v6697
        %v6706 = vadd.f32 %v6578, %v6698
        %v6707 = vadd.f32 %v6579, %v6699
        %v6708 = vadd.f32 %v6580, %v6700
        %v6709 = vadd.f32 %v6581, %v6701
        %v6710 = vadd.f32 %v6582, %v6702
        %v6711 = vadd.f32 %v6583, %v6703
        %s6712 = scalar_lea.vmem %s6, 256
        %v6713 = vld [vmem:[%s6712] sm:$0xff]
        %v6714 = vld [vmem:[%s6712 + $0x8] sm:$0xff]
        %v6715 = vld [vmem:[%s6712 + $0x10] sm:$0xff]
        %v6716 = vld [vmem:[%s6712 + $0x18] sm:$0xff]
        %v6717 = vld [vmem:[%s6712 + $0x20] sm:$0xff]
        %v6718 = vld [vmem:[%s6712 + $0x28] sm:$0xff]
        %v6719 = vld [vmem:[%s6712 + $0x30] sm:$0xff]
        %v6720 = vld [vmem:[%s6712 + $0x38] sm:$0xff]
        %v6729 = vunpack.c.l.b16 %v6713
        %v6730 = vunpack.c.h.b16 %v6713
        %v6731 = vunpack.c.l.b16 %v6714
        %v6732 = vunpack.c.h.b16 %v6714
        %v6733 = vunpack.c.l.b16 %v6715
        %v6734 = vunpack.c.h.b16 %v6715
        %v6735 = vunpack.c.l.b16 %v6716
        %v6736 = vunpack.c.h.b16 %v6716
        %v6737 = vunpack.c.l.b16 %v6717
        %v6738 = vunpack.c.h.b16 %v6717
        %v6739 = vunpack.c.l.b16 %v6718
        %v6740 = vunpack.c.h.b16 %v6718
        %v6741 = vunpack.c.l.b16 %v6719
        %v6742 = vunpack.c.h.b16 %v6719
        %v6743 = vunpack.c.l.b16 %v6720
        %v6744 = vunpack.c.h.b16 %v6720
        %v6745 = vpack.c.b16 %v6731, %v6729
        %v6746 = vpack.c.b16 %v6732, %v6730
        %v6747 = vpack.c.b16 %v6735, %v6733
        %v6748 = vpack.c.b16 %v6736, %v6734
        %v6749 = vpack.c.b16 %v6739, %v6737
        %v6750 = vpack.c.b16 %v6740, %v6738
        %v6751 = vpack.c.b16 %v6743, %v6741
        %v6752 = vpack.c.b16 %v6744, %v6742
        %6761 = vmatpush.bf16.msra.mxu0 %v6193
        %6762 = vmatpush.bf16.msra.mxu0 %v6192
        %6763 = vmatpush.bf16.msra.mxu0 %v6191
        %6764 = vmatpush.bf16.msra.mxu0 %v6190
        %6765 = vmatpush.bf16.msra.mxu0 %v6189
        %6766 = vmatpush.bf16.msra.mxu0 %v6188
        %6767 = vmatpush.bf16.msra.mxu0 %v6187
        %6768 = vmatpush.bf16.msra.mxu0 %v6186
        %6769 = vmatmul.bf16.gmra.mxu0 %v6745
        %v6770 = vpop.f32.mrf.mxu0
        %v6771 = vadd.f32 0.0, %v6770
        %v6772 = vpop.f32.mrf.mxu0
        %v6773 = vadd.f32 0.0, %v6772
        %6774 = vmatmul.bf16.gmra.mxu0 %v6747
        %v6775 = vpop.f32.mrf.mxu0
        %v6776 = vadd.f32 0.0, %v6775
        %v6777 = vpop.f32.mrf.mxu0
        %v6778 = vadd.f32 0.0, %v6777
        %6779 = vmatmul.bf16.gmra.mxu0 %v6749
        %v6780 = vpop.f32.mrf.mxu0
        %v6781 = vadd.f32 0.0, %v6780
        %v6782 = vpop.f32.mrf.mxu0
        %v6783 = vadd.f32 0.0, %v6782
        %6784 = vmatmul.bf16.gmra.mxu0 %v6751
        %v6785 = vpop.f32.mrf.mxu0
        %v6786 = vadd.f32 0.0, %v6785
        %v6787 = vpop.f32.mrf.mxu0
        %v6788 = vadd.f32 0.0, %v6787
        %6789 = vdwg.mxu0
        %6790 = vmatpush.bf16.msra.mxu0 %v6201
        %6791 = vmatpush.bf16.msra.mxu0 %v6200
        %6792 = vmatpush.bf16.msra.mxu0 %v6199
        %6793 = vmatpush.bf16.msra.mxu0 %v6198
        %6794 = vmatpush.bf16.msra.mxu0 %v6197
        %6795 = vmatpush.bf16.msra.mxu0 %v6196
        %6796 = vmatpush.bf16.msra.mxu0 %v6195
        %6797 = vmatpush.bf16.msra.mxu0 %v6194
        %6798 = vmatmul.bf16.gmra.mxu0 %v6746
        %v6799 = vpop.f32.mrf.mxu0
        %v6800 = vadd.f32 %v6771, %v6799
        %v6801 = vpop.f32.mrf.mxu0
        %v6802 = vadd.f32 %v6773, %v6801
        %6803 = vmatmul.bf16.gmra.mxu0 %v6748
        %v6804 = vpop.f32.mrf.mxu0
        %v6805 = vadd.f32 %v6776, %v6804
        %v6806 = vpop.f32.mrf.mxu0
        %v6807 = vadd.f32 %v6778, %v6806
        %6808 = vmatmul.bf16.gmra.mxu0 %v6750
        %v6809 = vpop.f32.mrf.mxu0
        %v6810 = vadd.f32 %v6781, %v6809
        %v6811 = vpop.f32.mrf.mxu0
        %v6812 = vadd.f32 %v6783, %v6811
        %6813 = vmatmul.bf16.gmra.mxu0 %v6752
        %v6814 = vpop.f32.mrf.mxu0
        %v6815 = vadd.f32 %v6786, %v6814
        %v6816 = vpop.f32.mrf.mxu0
        %v6817 = vadd.f32 %v6788, %v6816
        %6818 = vdwg.mxu0
        %s6819 = scalar_lea.vmem %s7, 4
        %v6820 = vld [vmem:[%s6819] sm:$0x1]
        %v6822 = vperm.slane %v6820, 0
        %v6824 = vmul.f32 %v6800, %v6822
        %v6825 = vmul.f32 %v6802, %v6822
        %v6826 = vmul.f32 %v6805, %v6822
        %v6827 = vmul.f32 %v6807, %v6822
        %v6828 = vmul.f32 %v6810, %v6822
        %v6829 = vmul.f32 %v6812, %v6822
        %v6830 = vmul.f32 %v6815, %v6822
        %v6831 = vmul.f32 %v6817, %v6822
        %v6832 = vadd.f32 %v6704, %v6824
        %v6833 = vadd.f32 %v6705, %v6825
        %v6834 = vadd.f32 %v6706, %v6826
        %v6835 = vadd.f32 %v6707, %v6827
        %v6836 = vadd.f32 %v6708, %v6828
        %v6837 = vadd.f32 %v6709, %v6829
        %v6838 = vadd.f32 %v6710, %v6830
        %v6839 = vadd.f32 %v6711, %v6831
        %s6840 = scalar_lea.vmem %s6, 320
        %v6841 = vld [vmem:[%s6840] sm:$0xff]
        %v6842 = vld [vmem:[%s6840 + $0x8] sm:$0xff]
        %v6843 = vld [vmem:[%s6840 + $0x10] sm:$0xff]
        %v6844 = vld [vmem:[%s6840 + $0x18] sm:$0xff]
        %v6845 = vld [vmem:[%s6840 + $0x20] sm:$0xff]
        %v6846 = vld [vmem:[%s6840 + $0x28] sm:$0xff]
        %v6847 = vld [vmem:[%s6840 + $0x30] sm:$0xff]
        %v6848 = vld [vmem:[%s6840 + $0x38] sm:$0xff]
        %v6857 = vunpack.c.l.b16 %v6841
        %v6858 = vunpack.c.h.b16 %v6841
        %v6859 = vunpack.c.l.b16 %v6842
        %v6860 = vunpack.c.h.b16 %v6842
        %v6861 = vunpack.c.l.b16 %v6843
        %v6862 = vunpack.c.h.b16 %v6843
        %v6863 = vunpack.c.l.b16 %v6844
        %v6864 = vunpack.c.h.b16 %v6844
        %v6865 = vunpack.c.l.b16 %v6845
        %v6866 = vunpack.c.h.b16 %v6845
        %v6867 = vunpack.c.l.b16 %v6846
        %v6868 = vunpack.c.h.b16 %v6846
        %v6869 = vunpack.c.l.b16 %v6847
        %v6870 = vunpack.c.h.b16 %v6847
        %v6871 = vunpack.c.l.b16 %v6848
        %v6872 = vunpack.c.h.b16 %v6848
        %v6873 = vpack.c.b16 %v6859, %v6857
        %v6874 = vpack.c.b16 %v6860, %v6858
        %v6875 = vpack.c.b16 %v6863, %v6861
        %v6876 = vpack.c.b16 %v6864, %v6862
        %v6877 = vpack.c.b16 %v6867, %v6865
        %v6878 = vpack.c.b16 %v6868, %v6866
        %v6879 = vpack.c.b16 %v6871, %v6869
        %v6880 = vpack.c.b16 %v6872, %v6870
        %6889 = vmatpush.bf16.msra.mxu0 %v6193
        %6890 = vmatpush.bf16.msra.mxu0 %v6192
        %6891 = vmatpush.bf16.msra.mxu0 %v6191
        %6892 = vmatpush.bf16.msra.mxu0 %v6190
        %6893 = vmatpush.bf16.msra.mxu0 %v6189
        %6894 = vmatpush.bf16.msra.mxu0 %v6188
        %6895 = vmatpush.bf16.msra.mxu0 %v6187
        %6896 = vmatpush.bf16.msra.mxu0 %v6186
        %6897 = vmatmul.bf16.gmra.mxu0 %v6873
        %v6898 = vpop.f32.mrf.mxu0
        %v6899 = vadd.f32 0.0, %v6898
        %v6900 = vpop.f32.mrf.mxu0
        %v6901 = vadd.f32 0.0, %v6900
        %6902 = vmatmul.bf16.gmra.mxu0 %v6875
        %v6903 = vpop.f32.mrf.mxu0
        %v6904 = vadd.f32 0.0, %v6903
        %v6905 = vpop.f32.mrf.mxu0
        %v6906 = vadd.f32 0.0, %v6905
        %6907 = vmatmul.bf16.gmra.mxu0 %v6877
        %v6908 = vpop.f32.mrf.mxu0
        %v6909 = vadd.f32 0.0, %v6908
        %v6910 = vpop.f32.mrf.mxu0
        %v6911 = vadd.f32 0.0, %v6910
        %6912 = vmatmul.bf16.gmra.mxu0 %v6879
        %v6913 = vpop.f32.mrf.mxu0
        %v6914 = vadd.f32 0.0, %v6913
        %v6915 = vpop.f32.mrf.mxu0
        %v6916 = vadd.f32 0.0, %v6915
        %6917 = vdwg.mxu0
        %6918 = vmatpush.bf16.msra.mxu0 %v6201
        %6919 = vmatpush.bf16.msra.mxu0 %v6200
        %6920 = vmatpush.bf16.msra.mxu0 %v6199
        %6921 = vmatpush.bf16.msra.mxu0 %v6198
        %6922 = vmatpush.bf16.msra.mxu0 %v6197
        %6923 = vmatpush.bf16.msra.mxu0 %v6196
        %6924 = vmatpush.bf16.msra.mxu0 %v6195
        %6925 = vmatpush.bf16.msra.mxu0 %v6194
        %6926 = vmatmul.bf16.gmra.mxu0 %v6874
        %v6927 = vpop.f32.mrf.mxu0
        %v6928 = vadd.f32 %v6899, %v6927
        %v6929 = vpop.f32.mrf.mxu0
        %v6930 = vadd.f32 %v6901, %v6929
        %6931 = vmatmul.bf16.gmra.mxu0 %v6876
        %v6932 = vpop.f32.mrf.mxu0
        %v6933 = vadd.f32 %v6904, %v6932
        %v6934 = vpop.f32.mrf.mxu0
        %v6935 = vadd.f32 %v6906, %v6934
        %6936 = vmatmul.bf16.gmra.mxu0 %v6878
        %v6937 = vpop.f32.mrf.mxu0
        %v6938 = vadd.f32 %v6909, %v6937
        %v6939 = vpop.f32.mrf.mxu0
        %v6940 = vadd.f32 %v6911, %v6939
        %6941 = vmatmul.bf16.gmra.mxu0 %v6880
        %v6942 = vpop.f32.mrf.mxu0
        %v6943 = vadd.f32 %v6914, %v6942
        %v6944 = vpop.f32.mrf.mxu0
        %v6945 = vadd.f32 %v6916, %v6944
        %6946 = vdwg.mxu0
        %s6947 = scalar_lea.vmem %s7, 5
        %v6948 = vld [vmem:[%s6947] sm:$0x1]
        %v6950 = vperm.slane %v6948, 0
        %v6952 = vmul.f32 %v6928, %v6950
        %v6953 = vmul.f32 %v6930, %v6950
        %v6954 = vmul.f32 %v6933, %v6950
        %v6955 = vmul.f32 %v6935, %v6950
        %v6956 = vmul.f32 %v6938, %v6950
        %v6957 = vmul.f32 %v6940, %v6950
        %v6958 = vmul.f32 %v6943, %v6950
        %v6959 = vmul.f32 %v6945, %v6950
        %v6960 = vadd.f32 %v6832, %v6952
        %v6961 = vadd.f32 %v6833, %v6953
        %v6962 = vadd.f32 %v6834, %v6954
        %v6963 = vadd.f32 %v6835, %v6955
        %v6964 = vadd.f32 %v6836, %v6956
        %v6965 = vadd.f32 %v6837, %v6957
        %v6966 = vadd.f32 %v6838, %v6958
        %v6967 = vadd.f32 %v6839, %v6959
        %s6968 = scalar_lea.vmem %s6, 384
        %v6969 = vld [vmem:[%s6968] sm:$0xff]
        %v6970 = vld [vmem:[%s6968 + $0x8] sm:$0xff]
        %v6971 = vld [vmem:[%s6968 + $0x10] sm:$0xff]
        %v6972 = vld [vmem:[%s6968 + $0x18] sm:$0xff]
        %v6973 = vld [vmem:[%s6968 + $0x20] sm:$0xff]
        %v6974 = vld [vmem:[%s6968 + $0x28] sm:$0xff]
        %v6975 = vld [vmem:[%s6968 + $0x30] sm:$0xff]
        %v6976 = vld [vmem:[%s6968 + $0x38] sm:$0xff]
        %v6985 = vunpack.c.l.b16 %v6969
        %v6986 = vunpack.c.h.b16 %v6969
        %v6987 = vunpack.c.l.b16 %v6970
        %v6988 = vunpack.c.h.b16 %v6970
        %v6989 = vunpack.c.l.b16 %v6971
        %v6990 = vunpack.c.h.b16 %v6971
        %v6991 = vunpack.c.l.b16 %v6972
        %v6992 = vunpack.c.h.b16 %v6972
        %v6993 = vunpack.c.l.b16 %v6973
        %v6994 = vunpack.c.h.b16 %v6973
        %v6995 = vunpack.c.l.b16 %v6974
        %v6996 = vunpack.c.h.b16 %v6974
        %v6997 = vunpack.c.l.b16 %v6975
        %v6998 = vunpack.c.h.b16 %v6975
        %v6999 = vunpack.c.l.b16 %v6976
        %v7000 = vunpack.c.h.b16 %v6976
        %v7001 = vpack.c.b16 %v6987, %v6985
        %v7002 = vpack.c.b16 %v6988, %v6986
        %v7003 = vpack.c.b16 %v6991, %v6989
        %v7004 = vpack.c.b16 %v6992, %v6990
        %v7005 = vpack.c.b16 %v6995, %v6993
        %v7006 = vpack.c.b16 %v6996, %v6994
        %v7007 = vpack.c.b16 %v6999, %v6997
        %v7008 = vpack.c.b16 %v7000, %v6998
        %7017 = vmatpush.bf16.msra.mxu0 %v6193
        %7018 = vmatpush.bf16.msra.mxu0 %v6192
        %7019 = vmatpush.bf16.msra.mxu0 %v6191
        %7020 = vmatpush.bf16.msra.mxu0 %v6190
        %7021 = vmatpush.bf16.msra.mxu0 %v6189
        %7022 = vmatpush.bf16.msra.mxu0 %v6188
        %7023 = vmatpush.bf16.msra.mxu0 %v6187
        %7024 = vmatpush.bf16.msra.mxu0 %v6186
        %7025 = vmatmul.bf16.gmra.mxu0 %v7001
        %v7026 = vpop.f32.mrf.mxu0
        %v7027 = vadd.f32 0.0, %v7026
        %v7028 = vpop.f32.mrf.mxu0
        %v7029 = vadd.f32 0.0, %v7028
        %7030 = vmatmul.bf16.gmra.mxu0 %v7003
        %v7031 = vpop.f32.mrf.mxu0
        %v7032 = vadd.f32 0.0, %v7031
        %v7033 = vpop.f32.mrf.mxu0
        %v7034 = vadd.f32 0.0, %v7033
        %7035 = vmatmul.bf16.gmra.mxu0 %v7005
        %v7036 = vpop.f32.mrf.mxu0
        %v7037 = vadd.f32 0.0, %v7036
        %v7038 = vpop.f32.mrf.mxu0
        %v7039 = vadd.f32 0.0, %v7038
        %7040 = vmatmul.bf16.gmra.mxu0 %v7007
        %v7041 = vpop.f32.mrf.mxu0
        %v7042 = vadd.f32 0.0, %v7041
        %v7043 = vpop.f32.mrf.mxu0
        %v7044 = vadd.f32 0.0, %v7043
        %7045 = vdwg.mxu0
        %7046 = vmatpush.bf16.msra.mxu0 %v6201
        %7047 = vmatpush.bf16.msra.mxu0 %v6200
        %7048 = vmatpush.bf16.msra.mxu0 %v6199
        %7049 = vmatpush.bf16.msra.mxu0 %v6198
        %7050 = vmatpush.bf16.msra.mxu0 %v6197
        %7051 = vmatpush.bf16.msra.mxu0 %v6196
        %7052 = vmatpush.bf16.msra.mxu0 %v6195
        %7053 = vmatpush.bf16.msra.mxu0 %v6194
        %7054 = vmatmul.bf16.gmra.mxu0 %v7002
        %v7055 = vpop.f32.mrf.mxu0
        %v7056 = vadd.f32 %v7027, %v7055
        %v7057 = vpop.f32.mrf.mxu0
        %v7058 = vadd.f32 %v7029, %v7057
        %7059 = vmatmul.bf16.gmra.mxu0 %v7004
        %v7060 = vpop.f32.mrf.mxu0
        %v7061 = vadd.f32 %v7032, %v7060
        %v7062 = vpop.f32.mrf.mxu0
        %v7063 = vadd.f32 %v7034, %v7062
        %7064 = vmatmul.bf16.gmra.mxu0 %v7006
        %v7065 = vpop.f32.mrf.mxu0
        %v7066 = vadd.f32 %v7037, %v7065
        %v7067 = vpop.f32.mrf.mxu0
        %v7068 = vadd.f32 %v7039, %v7067
        %7069 = vmatmul.bf16.gmra.mxu0 %v7008
        %v7070 = vpop.f32.mrf.mxu0
        %v7071 = vadd.f32 %v7042, %v7070
        %v7072 = vpop.f32.mrf.mxu0
        %v7073 = vadd.f32 %v7044, %v7072
        %7074 = vdwg.mxu0
        %s7075 = scalar_lea.vmem %s7, 6
        %v7076 = vld [vmem:[%s7075] sm:$0x1]
        %v7078 = vperm.slane %v7076, 0
        %v7080 = vmul.f32 %v7056, %v7078
        %v7081 = vmul.f32 %v7058, %v7078
        %v7082 = vmul.f32 %v7061, %v7078
        %v7083 = vmul.f32 %v7063, %v7078
        %v7084 = vmul.f32 %v7066, %v7078
        %v7085 = vmul.f32 %v7068, %v7078
        %v7086 = vmul.f32 %v7071, %v7078
        %v7087 = vmul.f32 %v7073, %v7078
        %v7088 = vadd.f32 %v6960, %v7080
        %v7089 = vadd.f32 %v6961, %v7081
        %v7090 = vadd.f32 %v6962, %v7082
        %v7091 = vadd.f32 %v6963, %v7083
        %v7092 = vadd.f32 %v6964, %v7084
        %v7093 = vadd.f32 %v6965, %v7085
        %v7094 = vadd.f32 %v6966, %v7086
        %v7095 = vadd.f32 %v6967, %v7087
        %s7096 = scalar_lea.vmem %s6, 448
        %v7097 = vld [vmem:[%s7096] sm:$0xff]
        %v7098 = vld [vmem:[%s7096 + $0x8] sm:$0xff]
        %v7099 = vld [vmem:[%s7096 + $0x10] sm:$0xff]
        %v7100 = vld [vmem:[%s7096 + $0x18] sm:$0xff]
        %v7101 = vld [vmem:[%s7096 + $0x20] sm:$0xff]
        %v7102 = vld [vmem:[%s7096 + $0x28] sm:$0xff]
        %v7103 = vld [vmem:[%s7096 + $0x30] sm:$0xff]
        %v7104 = vld [vmem:[%s7096 + $0x38] sm:$0xff]
        %v7113 = vunpack.c.l.b16 %v7097
        %v7114 = vunpack.c.h.b16 %v7097
        %v7115 = vunpack.c.l.b16 %v7098
        %v7116 = vunpack.c.h.b16 %v7098
        %v7117 = vunpack.c.l.b16 %v7099
        %v7118 = vunpack.c.h.b16 %v7099
        %v7119 = vunpack.c.l.b16 %v7100
        %v7120 = vunpack.c.h.b16 %v7100
        %v7121 = vunpack.c.l.b16 %v7101
        %v7122 = vunpack.c.h.b16 %v7101
        %v7123 = vunpack.c.l.b16 %v7102
        %v7124 = vunpack.c.h.b16 %v7102
        %v7125 = vunpack.c.l.b16 %v7103
        %v7126 = vunpack.c.h.b16 %v7103
        %v7127 = vunpack.c.l.b16 %v7104
        %v7128 = vunpack.c.h.b16 %v7104
        %v7129 = vpack.c.b16 %v7115, %v7113
        %v7130 = vpack.c.b16 %v7116, %v7114
        %v7131 = vpack.c.b16 %v7119, %v7117
        %v7132 = vpack.c.b16 %v7120, %v7118
        %v7133 = vpack.c.b16 %v7123, %v7121
        %v7134 = vpack.c.b16 %v7124, %v7122
        %v7135 = vpack.c.b16 %v7127, %v7125
        %v7136 = vpack.c.b16 %v7128, %v7126
        %7145 = vmatpush.bf16.msra.mxu0 %v6193
        %7146 = vmatpush.bf16.msra.mxu0 %v6192
        %7147 = vmatpush.bf16.msra.mxu0 %v6191
        %7148 = vmatpush.bf16.msra.mxu0 %v6190
        %7149 = vmatpush.bf16.msra.mxu0 %v6189
        %7150 = vmatpush.bf16.msra.mxu0 %v6188
        %7151 = vmatpush.bf16.msra.mxu0 %v6187
        %7152 = vmatpush.bf16.msra.mxu0 %v6186
        %7153 = vmatmul.bf16.gmra.mxu0 %v7129
        %v7154 = vpop.f32.mrf.mxu0
        %v7155 = vadd.f32 0.0, %v7154
        %v7156 = vpop.f32.mrf.mxu0
        %v7157 = vadd.f32 0.0, %v7156
        %7158 = vmatmul.bf16.gmra.mxu0 %v7131
        %v7159 = vpop.f32.mrf.mxu0
        %v7160 = vadd.f32 0.0, %v7159
        %v7161 = vpop.f32.mrf.mxu0
        %v7162 = vadd.f32 0.0, %v7161
        %7163 = vmatmul.bf16.gmra.mxu0 %v7133
        %v7164 = vpop.f32.mrf.mxu0
        %v7165 = vadd.f32 0.0, %v7164
        %v7166 = vpop.f32.mrf.mxu0
        %v7167 = vadd.f32 0.0, %v7166
        %7168 = vmatmul.bf16.gmra.mxu0 %v7135
        %v7169 = vpop.f32.mrf.mxu0
        %v7170 = vadd.f32 0.0, %v7169
        %v7171 = vpop.f32.mrf.mxu0
        %v7172 = vadd.f32 0.0, %v7171
        %7173 = vdwg.mxu0
        %7174 = vmatpush.bf16.msra.mxu0 %v6201
        %7175 = vmatpush.bf16.msra.mxu0 %v6200
        %7176 = vmatpush.bf16.msra.mxu0 %v6199
        %7177 = vmatpush.bf16.msra.mxu0 %v6198
        %7178 = vmatpush.bf16.msra.mxu0 %v6197
        %7179 = vmatpush.bf16.msra.mxu0 %v6196
        %7180 = vmatpush.bf16.msra.mxu0 %v6195
        %7181 = vmatpush.bf16.msra.mxu0 %v6194
        %7182 = vmatmul.bf16.gmra.mxu0 %v7130
        %v7183 = vpop.f32.mrf.mxu0
        %v7184 = vadd.f32 %v7155, %v7183
        %v7185 = vpop.f32.mrf.mxu0
        %v7186 = vadd.f32 %v7157, %v7185
        %7187 = vmatmul.bf16.gmra.mxu0 %v7132
        %v7188 = vpop.f32.mrf.mxu0
        %v7189 = vadd.f32 %v7160, %v7188
        %v7190 = vpop.f32.mrf.mxu0
        %v7191 = vadd.f32 %v7162, %v7190
        %7192 = vmatmul.bf16.gmra.mxu0 %v7134
        %v7193 = vpop.f32.mrf.mxu0
        %v7194 = vadd.f32 %v7165, %v7193
        %v7195 = vpop.f32.mrf.mxu0
        %v7196 = vadd.f32 %v7167, %v7195
        %7197 = vmatmul.bf16.gmra.mxu0 %v7136
        %v7198 = vpop.f32.mrf.mxu0
        %v7199 = vadd.f32 %v7170, %v7198
        %v7200 = vpop.f32.mrf.mxu0
        %v7201 = vadd.f32 %v7172, %v7200
        %7202 = vdwg.mxu0
        %s7203 = scalar_lea.vmem %s7, 7
        %v7204 = vld [vmem:[%s7203] sm:$0x1]
        %v7206 = vperm.slane %v7204, 0
        %v7208 = vmul.f32 %v7184, %v7206
        %v7209 = vmul.f32 %v7186, %v7206
        %v7210 = vmul.f32 %v7189, %v7206
        %v7211 = vmul.f32 %v7191, %v7206
        %v7212 = vmul.f32 %v7194, %v7206
        %v7213 = vmul.f32 %v7196, %v7206
        %v7214 = vmul.f32 %v7199, %v7206
        %v7215 = vmul.f32 %v7201, %v7206
        %v7216 = vadd.f32 %v7088, %v7208
        %v7217 = vadd.f32 %v7089, %v7209
        %v7218 = vadd.f32 %v7090, %v7210
        %v7219 = vadd.f32 %v7091, %v7211
        %v7220 = vadd.f32 %v7092, %v7212
        %v7221 = vadd.f32 %v7093, %v7213
        %v7222 = vadd.f32 %v7094, %v7214
        %v7223 = vadd.f32 %v7095, %v7215
        %s7224 = scalar_lea.vmem %s6, 512
        %v7225 = vld [vmem:[%s7224] sm:$0xff]
        %v7226 = vld [vmem:[%s7224 + $0x8] sm:$0xff]
        %v7227 = vld [vmem:[%s7224 + $0x10] sm:$0xff]
        %v7228 = vld [vmem:[%s7224 + $0x18] sm:$0xff]
        %v7229 = vld [vmem:[%s7224 + $0x20] sm:$0xff]
        %v7230 = vld [vmem:[%s7224 + $0x28] sm:$0xff]
        %v7231 = vld [vmem:[%s7224 + $0x30] sm:$0xff]
        %v7232 = vld [vmem:[%s7224 + $0x38] sm:$0xff]
        %v7241 = vunpack.c.l.b16 %v7225
        %v7242 = vunpack.c.h.b16 %v7225
        %v7243 = vunpack.c.l.b16 %v7226
        %v7244 = vunpack.c.h.b16 %v7226
        %v7245 = vunpack.c.l.b16 %v7227
        %v7246 = vunpack.c.h.b16 %v7227
        %v7247 = vunpack.c.l.b16 %v7228
        %v7248 = vunpack.c.h.b16 %v7228
        %v7249 = vunpack.c.l.b16 %v7229
        %v7250 = vunpack.c.h.b16 %v7229
        %v7251 = vunpack.c.l.b16 %v7230
        %v7252 = vunpack.c.h.b16 %v7230
        %v7253 = vunpack.c.l.b16 %v7231
        %v7254 = vunpack.c.h.b16 %v7231
        %v7255 = vunpack.c.l.b16 %v7232
        %v7256 = vunpack.c.h.b16 %v7232
        %v7257 = vpack.c.b16 %v7243, %v7241
        %v7258 = vpack.c.b16 %v7244, %v7242
        %v7259 = vpack.c.b16 %v7247, %v7245
        %v7260 = vpack.c.b16 %v7248, %v7246
        %v7261 = vpack.c.b16 %v7251, %v7249
        %v7262 = vpack.c.b16 %v7252, %v7250
        %v7263 = vpack.c.b16 %v7255, %v7253
        %v7264 = vpack.c.b16 %v7256, %v7254
        %7273 = vmatpush.bf16.msra.mxu0 %v6193
        %7274 = vmatpush.bf16.msra.mxu0 %v6192
        %7275 = vmatpush.bf16.msra.mxu0 %v6191
        %7276 = vmatpush.bf16.msra.mxu0 %v6190
        %7277 = vmatpush.bf16.msra.mxu0 %v6189
        %7278 = vmatpush.bf16.msra.mxu0 %v6188
        %7279 = vmatpush.bf16.msra.mxu0 %v6187
        %7280 = vmatpush.bf16.msra.mxu0 %v6186
        %7281 = vmatmul.bf16.gmra.mxu0 %v7257
        %v7282 = vpop.f32.mrf.mxu0
        %v7283 = vadd.f32 0.0, %v7282
        %v7284 = vpop.f32.mrf.mxu0
        %v7285 = vadd.f32 0.0, %v7284
        %7286 = vmatmul.bf16.gmra.mxu0 %v7259
        %v7287 = vpop.f32.mrf.mxu0
        %v7288 = vadd.f32 0.0, %v7287
        %v7289 = vpop.f32.mrf.mxu0
        %v7290 = vadd.f32 0.0, %v7289
        %7291 = vmatmul.bf16.gmra.mxu0 %v7261
        %v7292 = vpop.f32.mrf.mxu0
        %v7293 = vadd.f32 0.0, %v7292
        %v7294 = vpop.f32.mrf.mxu0
        %v7295 = vadd.f32 0.0, %v7294
        %7296 = vmatmul.bf16.gmra.mxu0 %v7263
        %v7297 = vpop.f32.mrf.mxu0
        %v7298 = vadd.f32 0.0, %v7297
        %v7299 = vpop.f32.mrf.mxu0
        %v7300 = vadd.f32 0.0, %v7299
        %7301 = vdwg.mxu0
        %7302 = vmatpush.bf16.msra.mxu0 %v6201
        %7303 = vmatpush.bf16.msra.mxu0 %v6200
        %7304 = vmatpush.bf16.msra.mxu0 %v6199
        %7305 = vmatpush.bf16.msra.mxu0 %v6198
        %7306 = vmatpush.bf16.msra.mxu0 %v6197
        %7307 = vmatpush.bf16.msra.mxu0 %v6196
        %7308 = vmatpush.bf16.msra.mxu0 %v6195
        %7309 = vmatpush.bf16.msra.mxu0 %v6194
        %7310 = vmatmul.bf16.gmra.mxu0 %v7258
        %v7311 = vpop.f32.mrf.mxu0
        %v7312 = vadd.f32 %v7283, %v7311
        %v7313 = vpop.f32.mrf.mxu0
        %v7314 = vadd.f32 %v7285, %v7313
        %7315 = vmatmul.bf16.gmra.mxu0 %v7260
        %v7316 = vpop.f32.mrf.mxu0
        %v7317 = vadd.f32 %v7288, %v7316
        %v7318 = vpop.f32.mrf.mxu0
        %v7319 = vadd.f32 %v7290, %v7318
        %7320 = vmatmul.bf16.gmra.mxu0 %v7262
        %v7321 = vpop.f32.mrf.mxu0
        %v7322 = vadd.f32 %v7293, %v7321
        %v7323 = vpop.f32.mrf.mxu0
        %v7324 = vadd.f32 %v7295, %v7323
        %7325 = vmatmul.bf16.gmra.mxu0 %v7264
        %v7326 = vpop.f32.mrf.mxu0
        %v7327 = vadd.f32 %v7298, %v7326
        %v7328 = vpop.f32.mrf.mxu0
        %v7329 = vadd.f32 %v7300, %v7328
        %7330 = vdwg.mxu0
        %s7331 = scalar_lea.vmem %s7, 8
        %v7332 = vld [vmem:[%s7331] sm:$0x1]
        %v7334 = vperm.slane %v7332, 0
        %v7336 = vmul.f32 %v7312, %v7334
        %v7337 = vmul.f32 %v7314, %v7334
        %v7338 = vmul.f32 %v7317, %v7334
        %v7339 = vmul.f32 %v7319, %v7334
        %v7340 = vmul.f32 %v7322, %v7334
        %v7341 = vmul.f32 %v7324, %v7334
        %v7342 = vmul.f32 %v7327, %v7334
        %v7343 = vmul.f32 %v7329, %v7334
        %v7344 = vadd.f32 %v7216, %v7336
        %v7345 = vadd.f32 %v7217, %v7337
        %v7346 = vadd.f32 %v7218, %v7338
        %v7347 = vadd.f32 %v7219, %v7339
        %v7348 = vadd.f32 %v7220, %v7340
        %v7349 = vadd.f32 %v7221, %v7341
        %v7350 = vadd.f32 %v7222, %v7342
        %v7351 = vadd.f32 %v7223, %v7343
        %v7352 = vld [vmem:[%s8] sm:$0x1]
        %v7354 = vperm.slane %v7352, 0
        %v7356 = vadd.f32 %v7344, %v7354
        %v7357 = vadd.f32 %v7345, %v7354
        %v7358 = vadd.f32 %v7346, %v7354
        %v7359 = vadd.f32 %v7347, %v7354
        %v7360 = vadd.f32 %v7348, %v7354
        %v7361 = vadd.f32 %v7349, %v7354
        %v7362 = vadd.f32 %v7350, %v7354
        %v7363 = vadd.f32 %v7351, %v7354
        %v7364 = vmax.f32 %v7356, 0.0
        %v7365 = vmax.f32 %v7357, 0.0
        %v7366 = vmax.f32 %v7358, 0.0
        %v7367 = vmax.f32 %v7359, 0.0
        %v7368 = vmax.f32 %v7360, 0.0
        %v7369 = vmax.f32 %v7361, 0.0
        %v7370 = vmax.f32 %v7362, 0.0
        %v7371 = vmax.f32 %v7363, 0.0
        %v7372 = vld [vmem:[%s9] sm:$0xf]
        %v7373 = vld [vmem:[%s9 + $0x4] sm:$0xf]
        %v7374 = vld [vmem:[%s9 + $0x8] sm:$0xf]
        %v7375 = vld [vmem:[%s9 + $0xc] sm:$0xf]
        %v7376 = vld [vmem:[%s9 + $0x10] sm:$0xf]
        %v7377 = vld [vmem:[%s9 + $0x14] sm:$0xf]
        %v7378 = vld [vmem:[%s9 + $0x18] sm:$0xf]
        %v7379 = vld [vmem:[%s9 + $0x1c] sm:$0xf]
        %v7380 = vpack.c.bf16 %v7365, %v7364
        %v7381 = vpack.c.bf16 %v7367, %v7366
        %v7382 = vpack.c.bf16 %v7369, %v7368
        %v7383 = vpack.c.bf16 %v7371, %v7370
        %v7384 = vld [vmem:[%s10] sm:$0x1]
        %v7386 = vperm.slane %v7384, 0
        %v7396 = vunpack.c.l.b16 %v7372
        %v7397 = vunpack.c.l.b16 %v7373
        %v7398 = vunpack.c.l.b16 %v7374
        %v7399 = vunpack.c.l.b16 %v7375
        %v7400 = vunpack.c.l.b16 %v7376
        %v7401 = vunpack.c.l.b16 %v7377
        %v7402 = vunpack.c.l.b16 %v7378
        %v7403 = vunpack.c.l.b16 %v7379
        %v7404 = vpack.c.b16 %v7397, %v7396
        %v7405 = vpack.c.b16 %v7399, %v7398
        %v7406 = vpack.c.b16 %v7401, %v7400
        %v7407 = vpack.c.b16 %v7403, %v7402
        %vm7412 = vcmask 523264
        %v7414 = vsel %vm7412, %v7380, 0
        %v7417 = vsel %vm7412, %v7381, 0
        %v7420 = vsel %vm7412, %v7382, 0
        %v7423 = vsel %vm7412, %v7383, 0
        %7425 = vmatpush.bf16.msra.mxu0 0
        %7426 = vmatpush.bf16.msra.mxu0 0
        %7427 = vmatpush.bf16.msra.mxu0 0
        %7428 = vmatpush.bf16.msra.mxu0 0
        %7429 = vmatpush.bf16.msra.mxu0 %v7407
        %7430 = vmatpush.bf16.msra.mxu0 %v7406
        %7431 = vmatpush.bf16.msra.mxu0 %v7405
        %7432 = vmatpush.bf16.msra.mxu0 %v7404
        %7433 = vmatmul.bf16.gmra.mxu0 %v7414
        %v7434 = vpop.f32.mrf.mxu0
        %v7435 = vadd.f32 %v7386, %v7434
        %v7436 = vpop.f32.mrf.mxu0
        %v7437 = vadd.f32 %v7386, %v7436
        %7438 = vmatmul.bf16.gmra.mxu0 %v7417
        %v7439 = vpop.f32.mrf.mxu0
        %v7440 = vadd.f32 %v7386, %v7439
        %v7441 = vpop.f32.mrf.mxu0
        %v7442 = vadd.f32 %v7386, %v7441
        %7443 = vmatmul.bf16.gmra.mxu0 %v7420
        %v7444 = vpop.f32.mrf.mxu0
        %v7445 = vadd.f32 %v7386, %v7444
        %v7446 = vpop.f32.mrf.mxu0
        %v7447 = vadd.f32 %v7386, %v7446
        %7448 = vmatmul.bf16.gmra.mxu0 %v7423
        %v7449 = vpop.f32.mrf.mxu0
        %v7450 = vadd.f32 %v7386, %v7449
        %v7451 = vpop.f32.mrf.mxu0
        %v7452 = vadd.f32 %v7386, %v7451
        %7453 = vdwg.mxu0
        %v7454 = vmax.f32 %v7435, 0.0
        %v7455 = vmax.f32 %v7437, 0.0
        %v7456 = vmax.f32 %v7440, 0.0
        %v7457 = vmax.f32 %v7442, 0.0
        %v7458 = vmax.f32 %v7445, 0.0
        %v7459 = vmax.f32 %v7447, 0.0
        %v7460 = vmax.f32 %v7450, 0.0
        %v7461 = vmax.f32 %v7452, 0.0
        %v7462 = vpack.c.bf16 %v7455, %v7454
        %v7463 = vpack.c.bf16 %v7457, %v7456
        %v7464 = vpack.c.bf16 %v7459, %v7458
        %v7465 = vpack.c.bf16 %v7461, %v7460
        %v7466 = vld [vmem:[%s11] sm:$0xf]
        %v7467 = vld [vmem:[%s11 + $0x4] sm:$0xf]
        %v7470 = vunpack.c.l.b16 %v7466
        %v7471 = vunpack.c.l.b16 %v7467
        %v7472 = vpack.c.b16 %v7471, %v7470
        %v7474 = vsel %vm7412, %v7472, 0
        %7476 = vmatpush.bf16.msra.mxu0 0
        %7477 = vmatpush.bf16.msra.mxu0 0
        %7478 = vmatpush.bf16.msra.mxu0 0
        %7479 = vmatpush.bf16.msra.mxu0 0
        %7480 = vmatpush.bf16.msra.mxu0 %v7465
        %7481 = vmatpush.bf16.msra.mxu0 %v7464
        %7482 = vmatpush.bf16.msra.mxu0 %v7463
        %7483 = vmatpush.bf16.msra.mxu0 %v7462
        %7484 = vmatmul.bf16.gmra.mxu0 %v7474
        %v7485 = vpop.f32.mrf.mxu0
        %v7486 = vadd.f32 0.0, %v7485
        %v7487 = vpop.f32.mrf.mxu0
        %v7488 = vadd.f32 0.0, %v7487
        %7489 = vdwg.mxu0
        %v7490 = vld [vmem:[%s12] sm:$0x1]
        %v7492 = vperm.slane %v7490, 0
        %v7494 = vmul.f32 %v7486, %v7492
        %v7495 = vmul.f32 %v7488, %v7492
        %v7496 = vadd.f32 %v7494, 0.0
        %v7497 = vadd.f32 %v7495, 0.0
        %s7498 = scalar_lea.vmem %s11, 8
        %v7499 = vld [vmem:[%s7498] sm:$0xf]
        %v7500 = vld [vmem:[%s7498 + $0x4] sm:$0xf]
        %v7503 = vunpack.c.l.b16 %v7499
        %v7504 = vunpack.c.l.b16 %v7500
        %v7505 = vpack.c.b16 %v7504, %v7503
        %v7507 = vsel %vm7412, %v7505, 0
        %7509 = vmatpush.bf16.msra.mxu0 0
        %7510 = vmatpush.bf16.msra.mxu0 0
        %7511 = vmatpush.bf16.msra.mxu0 0
        %7512 = vmatpush.bf16.msra.mxu0 0
        %7513 = vmatpush.bf16.msra.mxu0 %v7465
        %7514 = vmatpush.bf16.msra.mxu0 %v7464
        %7515 = vmatpush.bf16.msra.mxu0 %v7463
        %7516 = vmatpush.bf16.msra.mxu0 %v7462
        %7517 = vmatmul.bf16.gmra.mxu0 %v7507
        %v7518 = vpop.f32.mrf.mxu0
        %v7519 = vadd.f32 0.0, %v7518
        %v7520 = vpop.f32.mrf.mxu0
        %v7521 = vadd.f32 0.0, %v7520
        %7522 = vdwg.mxu0
        %s7523 = scalar_lea.vmem %s12, 1
        %v7524 = vld [vmem:[%s7523] sm:$0x1]
        %v7526 = vperm.slane %v7524, 0
        %v7528 = vmul.f32 %v7519, %v7526
        %v7529 = vmul.f32 %v7521, %v7526
        %v7530 = vadd.f32 %v7496, %v7528
        %v7531 = vadd.f32 %v7497, %v7529
        %s7532 = scalar_lea.vmem %s11, 16
        %v7533 = vld [vmem:[%s7532] sm:$0xf]
        %v7534 = vld [vmem:[%s7532 + $0x4] sm:$0xf]
        %v7537 = vunpack.c.l.b16 %v7533
        %v7538 = vunpack.c.l.b16 %v7534
        %v7539 = vpack.c.b16 %v7538, %v7537
        %v7541 = vsel %vm7412, %v7539, 0
        %7543 = vmatpush.bf16.msra.mxu0 0
        %7544 = vmatpush.bf16.msra.mxu0 0
        %7545 = vmatpush.bf16.msra.mxu0 0
        %7546 = vmatpush.bf16.msra.mxu0 0
        %7547 = vmatpush.bf16.msra.mxu0 %v7465
        %7548 = vmatpush.bf16.msra.mxu0 %v7464
        %7549 = vmatpush.bf16.msra.mxu0 %v7463
        %7550 = vmatpush.bf16.msra.mxu0 %v7462
        %7551 = vmatmul.bf16.gmra.mxu0 %v7541
        %v7552 = vpop.f32.mrf.mxu0
        %v7553 = vadd.f32 0.0, %v7552
        %v7554 = vpop.f32.mrf.mxu0
        %v7555 = vadd.f32 0.0, %v7554
        %7556 = vdwg.mxu0
        %s7557 = scalar_lea.vmem %s12, 2
        %v7558 = vld [vmem:[%s7557] sm:$0x1]
        %v7560 = vperm.slane %v7558, 0
        %v7562 = vmul.f32 %v7553, %v7560
        %v7563 = vmul.f32 %v7555, %v7560
        %v7564 = vadd.f32 %v7530, %v7562
        %v7565 = vadd.f32 %v7531, %v7563
        %s7566 = scalar_lea.vmem %s11, 24
        %v7567 = vld [vmem:[%s7566] sm:$0xf]
        %v7568 = vld [vmem:[%s7566 + $0x4] sm:$0xf]
        %v7571 = vunpack.c.l.b16 %v7567
        %v7572 = vunpack.c.l.b16 %v7568
        %v7573 = vpack.c.b16 %v7572, %v7571
        %v7575 = vsel %vm7412, %v7573, 0
        %7577 = vmatpush.bf16.msra.mxu0 0
        %7578 = vmatpush.bf16.msra.mxu0 0
        %7579 = vmatpush.bf16.msra.mxu0 0
        %7580 = vmatpush.bf16.msra.mxu0 0
        %7581 = vmatpush.bf16.msra.mxu0 %v7465
        %7582 = vmatpush.bf16.msra.mxu0 %v7464
        %7583 = vmatpush.bf16.msra.mxu0 %v7463
        %7584 = vmatpush.bf16.msra.mxu0 %v7462
        %7585 = vmatmul.bf16.gmra.mxu0 %v7575
        %v7586 = vpop.f32.mrf.mxu0
        %v7587 = vadd.f32 0.0, %v7586
        %v7588 = vpop.f32.mrf.mxu0
        %v7589 = vadd.f32 0.0, %v7588
        %7590 = vdwg.mxu0
        %s7591 = scalar_lea.vmem %s12, 3
        %v7592 = vld [vmem:[%s7591] sm:$0x1]
        %v7594 = vperm.slane %v7592, 0
        %v7596 = vmul.f32 %v7587, %v7594
        %v7597 = vmul.f32 %v7589, %v7594
        %v7598 = vadd.f32 %v7564, %v7596
        %v7599 = vadd.f32 %v7565, %v7597
        %s7600 = scalar_lea.vmem %s11, 32
        %v7601 = vld [vmem:[%s7600] sm:$0xf]
        %v7602 = vld [vmem:[%s7600 + $0x4] sm:$0xf]
        %v7605 = vunpack.c.l.b16 %v7601
        %v7606 = vunpack.c.l.b16 %v7602
        %v7607 = vpack.c.b16 %v7606, %v7605
        %v7609 = vsel %vm7412, %v7607, 0
        %7611 = vmatpush.bf16.msra.mxu0 0
        %7612 = vmatpush.bf16.msra.mxu0 0
        %7613 = vmatpush.bf16.msra.mxu0 0
        %7614 = vmatpush.bf16.msra.mxu0 0
        %7615 = vmatpush.bf16.msra.mxu0 %v7465
        %7616 = vmatpush.bf16.msra.mxu0 %v7464
        %7617 = vmatpush.bf16.msra.mxu0 %v7463
        %7618 = vmatpush.bf16.msra.mxu0 %v7462
        %7619 = vmatmul.bf16.gmra.mxu0 %v7609
        %v7620 = vpop.f32.mrf.mxu0
        %v7621 = vadd.f32 0.0, %v7620
        %v7622 = vpop.f32.mrf.mxu0
        %v7623 = vadd.f32 0.0, %v7622
        %7624 = vdwg.mxu0
        %s7625 = scalar_lea.vmem %s12, 4
        %v7626 = vld [vmem:[%s7625] sm:$0x1]
        %v7628 = vperm.slane %v7626, 0
        %v7630 = vmul.f32 %v7621, %v7628
        %v7631 = vmul.f32 %v7623, %v7628
        %v7632 = vadd.f32 %v7598, %v7630
        %v7633 = vadd.f32 %v7599, %v7631
        %s7634 = scalar_lea.vmem %s11, 40
        %v7635 = vld [vmem:[%s7634] sm:$0xf]
        %v7636 = vld [vmem:[%s7634 + $0x4] sm:$0xf]
        %v7639 = vunpack.c.l.b16 %v7635
        %v7640 = vunpack.c.l.b16 %v7636
        %v7641 = vpack.c.b16 %v7640, %v7639
        %v7643 = vsel %vm7412, %v7641, 0
        %7645 = vmatpush.bf16.msra.mxu0 0
        %7646 = vmatpush.bf16.msra.mxu0 0
        %7647 = vmatpush.bf16.msra.mxu0 0
        %7648 = vmatpush.bf16.msra.mxu0 0
        %7649 = vmatpush.bf16.msra.mxu0 %v7465
        %7650 = vmatpush.bf16.msra.mxu0 %v7464
        %7651 = vmatpush.bf16.msra.mxu0 %v7463
        %7652 = vmatpush.bf16.msra.mxu0 %v7462
        %7653 = vmatmul.bf16.gmra.mxu0 %v7643
        %v7654 = vpop.f32.mrf.mxu0
        %v7655 = vadd.f32 0.0, %v7654
        %v7656 = vpop.f32.mrf.mxu0
        %v7657 = vadd.f32 0.0, %v7656
        %7658 = vdwg.mxu0
        %s7659 = scalar_lea.vmem %s12, 5
        %v7660 = vld [vmem:[%s7659] sm:$0x1]
        %v7662 = vperm.slane %v7660, 0
        %v7664 = vmul.f32 %v7655, %v7662
        %v7665 = vmul.f32 %v7657, %v7662
        %v7666 = vadd.f32 %v7632, %v7664
        %v7667 = vadd.f32 %v7633, %v7665
        %s7668 = scalar_lea.vmem %s11, 48
        %v7669 = vld [vmem:[%s7668] sm:$0xf]
        %v7670 = vld [vmem:[%s7668 + $0x4] sm:$0xf]
        %v7673 = vunpack.c.l.b16 %v7669
        %v7674 = vunpack.c.l.b16 %v7670
        %v7675 = vpack.c.b16 %v7674, %v7673
        %v7677 = vsel %vm7412, %v7675, 0
        %7679 = vmatpush.bf16.msra.mxu0 0
        %7680 = vmatpush.bf16.msra.mxu0 0
        %7681 = vmatpush.bf16.msra.mxu0 0
        %7682 = vmatpush.bf16.msra.mxu0 0
        %7683 = vmatpush.bf16.msra.mxu0 %v7465
        %7684 = vmatpush.bf16.msra.mxu0 %v7464
        %7685 = vmatpush.bf16.msra.mxu0 %v7463
        %7686 = vmatpush.bf16.msra.mxu0 %v7462
        %7687 = vmatmul.bf16.gmra.mxu0 %v7677
        %v7688 = vpop.f32.mrf.mxu0
        %v7689 = vadd.f32 0.0, %v7688
        %v7690 = vpop.f32.mrf.mxu0
        %v7691 = vadd.f32 0.0, %v7690
        %7692 = vdwg.mxu0
        %s7693 = scalar_lea.vmem %s12, 6
        %v7694 = vld [vmem:[%s7693] sm:$0x1]
        %v7696 = vperm.slane %v7694, 0
        %v7698 = vmul.f32 %v7689, %v7696
        %v7699 = vmul.f32 %v7691, %v7696
        %v7700 = vadd.f32 %v7666, %v7698
        %v7701 = vadd.f32 %v7667, %v7699
        %s7702 = scalar_lea.vmem %s11, 56
        %v7703 = vld [vmem:[%s7702] sm:$0xf]
        %v7704 = vld [vmem:[%s7702 + $0x4] sm:$0xf]
        %v7707 = vunpack.c.l.b16 %v7703
        %v7708 = vunpack.c.l.b16 %v7704
        %v7709 = vpack.c.b16 %v7708, %v7707
        %v7711 = vsel %vm7412, %v7709, 0
        %7713 = vmatpush.bf16.msra.mxu0 0
        %7714 = vmatpush.bf16.msra.mxu0 0
        %7715 = vmatpush.bf16.msra.mxu0 0
        %7716 = vmatpush.bf16.msra.mxu0 0
        %7717 = vmatpush.bf16.msra.mxu0 %v7465
        %7718 = vmatpush.bf16.msra.mxu0 %v7464
        %7719 = vmatpush.bf16.msra.mxu0 %v7463
        %7720 = vmatpush.bf16.msra.mxu0 %v7462
        %7721 = vmatmul.bf16.gmra.mxu0 %v7711
        %v7722 = vpop.f32.mrf.mxu0
        %v7723 = vadd.f32 0.0, %v7722
        %v7724 = vpop.f32.mrf.mxu0
        %v7725 = vadd.f32 0.0, %v7724
        %7726 = vdwg.mxu0
        %s7727 = scalar_lea.vmem %s12, 7
        %v7728 = vld [vmem:[%s7727] sm:$0x1]
        %v7730 = vperm.slane %v7728, 0
        %v7732 = vmul.f32 %v7723, %v7730
        %v7733 = vmul.f32 %v7725, %v7730
        %v7734 = vadd.f32 %v7700, %v7732
        %v7735 = vadd.f32 %v7701, %v7733
        %s7736 = scalar_lea.vmem %s11, 64
        %v7737 = vld [vmem:[%s7736] sm:$0xf]
        %v7738 = vld [vmem:[%s7736 + $0x4] sm:$0xf]
        %v7741 = vunpack.c.l.b16 %v7737
        %v7742 = vunpack.c.l.b16 %v7738
        %v7743 = vpack.c.b16 %v7742, %v7741
        %v7745 = vsel %vm7412, %v7743, 0
        %7747 = vmatpush.bf16.msra.mxu0 0
        %7748 = vmatpush.bf16.msra.mxu0 0
        %7749 = vmatpush.bf16.msra.mxu0 0
        %7750 = vmatpush.bf16.msra.mxu0 0
        %7751 = vmatpush.bf16.msra.mxu0 %v7465
        %7752 = vmatpush.bf16.msra.mxu0 %v7464
        %7753 = vmatpush.bf16.msra.mxu0 %v7463
        %7754 = vmatpush.bf16.msra.mxu0 %v7462
        %7755 = vmatmul.bf16.gmra.mxu0 %v7745
        %v7756 = vpop.f32.mrf.mxu0
        %v7757 = vadd.f32 0.0, %v7756
        %v7758 = vpop.f32.mrf.mxu0
        %v7759 = vadd.f32 0.0, %v7758
        %7760 = vdwg.mxu0
        %s7761 = scalar_lea.vmem %s12, 8
        %v7762 = vld [vmem:[%s7761] sm:$0x1]
        %v7764 = vperm.slane %v7762, 0
        %v7766 = vmul.f32 %v7757, %v7764
        %v7767 = vmul.f32 %v7759, %v7764
        %v7768 = vadd.f32 %v7734, %v7766
        %v7769 = vadd.f32 %v7735, %v7767
        %v7770 = vld [vmem:[%s13] sm:$0x1]
        %v7772 = vperm.slane %v7770, 0
        %v7774 = vadd.f32 %v7768, %v7772
        %v7775 = vadd.f32 %v7769, %v7772
        %v7776 = vmax.f32 %v7774, 0.0
        %v7777 = vmax.f32 %v7775, 0.0
        %v7778 = vld [vmem:[%s14] sm:$0xff]
        %v7779 = vld [vmem:[%s14 + $0x8] sm:$0xff]
        %v7780 = vld [vmem:[%s14 + $0x10] sm:$0xff]
        %v7781 = vld [vmem:[%s14 + $0x18] sm:$0xff]
        %v7782 = vld [vmem:[%s14 + $0x20] sm:$0xff]
        %v7783 = vld [vmem:[%s14 + $0x28] sm:$0xff]
        %v7784 = vld [vmem:[%s14 + $0x30] sm:$0xff]
        %v7785 = vld [vmem:[%s14 + $0x38] sm:$0xff]
        %v7786 = vld [vmem:[%s14 + $0x40] sm:$0xff]
        %v7787 = vld [vmem:[%s14 + $0x48] sm:$0xff]
        %v7788 = vld [vmem:[%s14 + $0x50] sm:$0xff]
        %v7789 = vld [vmem:[%s14 + $0x58] sm:$0xff]
        %v7790 = vld [vmem:[%s14 + $0x60] sm:$0xff]
        %v7791 = vld [vmem:[%s14 + $0x68] sm:$0xff]
        %v7792 = vld [vmem:[%s14 + $0x70] sm:$0xff]
        %v7793 = vld [vmem:[%s14 + $0x78] sm:$0xff]
        %v7794 = vpack.c.bf16 %v7777, %v7776
        %v7795 = vld [vmem:[%s15] sm:$0x3]
        %v7797 = vperm.slane %v7795, 0
        %v7798 = vperm.slane %v7795, 1
        %v7817 = vunpack.c.l.b16 %v7778
        %v7818 = vunpack.c.h.b16 %v7778
        %v7819 = vunpack.c.l.b16 %v7779
        %v7820 = vunpack.c.h.b16 %v7779
        %v7821 = vunpack.c.l.b16 %v7780
        %v7822 = vunpack.c.h.b16 %v7780
        %v7823 = vunpack.c.l.b16 %v7781
        %v7824 = vunpack.c.h.b16 %v7781
        %v7825 = vunpack.c.l.b16 %v7782
        %v7826 = vunpack.c.h.b16 %v7782
        %v7827 = vunpack.c.l.b16 %v7783
        %v7828 = vunpack.c.h.b16 %v7783
        %v7829 = vunpack.c.l.b16 %v7784
        %v7830 = vunpack.c.h.b16 %v7784
        %v7831 = vunpack.c.l.b16 %v7785
        %v7832 = vunpack.c.h.b16 %v7785
        %v7833 = vunpack.c.l.b16 %v7786
        %v7834 = vunpack.c.h.b16 %v7786
        %v7835 = vunpack.c.l.b16 %v7787
        %v7836 = vunpack.c.h.b16 %v7787
        %v7837 = vunpack.c.l.b16 %v7788
        %v7838 = vunpack.c.h.b16 %v7788
        %v7839 = vunpack.c.l.b16 %v7789
        %v7840 = vunpack.c.h.b16 %v7789
        %v7841 = vunpack.c.l.b16 %v7790
        %v7842 = vunpack.c.h.b16 %v7790
        %v7843 = vunpack.c.l.b16 %v7791
        %v7844 = vunpack.c.h.b16 %v7791
        %v7845 = vunpack.c.l.b16 %v7792
        %v7846 = vunpack.c.h.b16 %v7792
        %v7847 = vunpack.c.l.b16 %v7793
        %v7848 = vunpack.c.h.b16 %v7793
        %v7849 = vpack.c.b16 %v7819, %v7817
        %v7850 = vpack.c.b16 %v7820, %v7818
        %v7851 = vpack.c.b16 %v7823, %v7821
        %v7852 = vpack.c.b16 %v7824, %v7822
        %v7853 = vpack.c.b16 %v7827, %v7825
        %v7854 = vpack.c.b16 %v7828, %v7826
        %v7855 = vpack.c.b16 %v7831, %v7829
        %v7856 = vpack.c.b16 %v7832, %v7830
        %v7857 = vpack.c.b16 %v7835, %v7833
        %v7858 = vpack.c.b16 %v7836, %v7834
        %v7859 = vpack.c.b16 %v7839, %v7837
        %v7860 = vpack.c.b16 %v7840, %v7838
        %v7861 = vpack.c.b16 %v7843, %v7841
        %v7862 = vpack.c.b16 %v7844, %v7842
        %v7863 = vpack.c.b16 %v7847, %v7845
        %v7864 = vpack.c.b16 %v7848, %v7846
        %7881 = vmatpush.bf16.msra.mxu0 %v7863
        %7882 = vmatpush.bf16.msra.mxu0 %v7861
        %7883 = vmatpush.bf16.msra.mxu0 %v7859
        %7884 = vmatpush.bf16.msra.mxu0 %v7857
        %7885 = vmatpush.bf16.msra.mxu0 %v7855
        %7886 = vmatpush.bf16.msra.mxu0 %v7853
        %7887 = vmatpush.bf16.msra.mxu0 %v7851
        %7888 = vmatpush.bf16.msra.mxu0 %v7849
        %7889 = vmatmul.bf16.gmra.mxu0 %v7794
        %v7890 = vpop.f32.mrf.mxu0
        %v7891 = vadd.f32 %v7797, %v7890
        %v7892 = vpop.f32.mrf.mxu0
        %v7893 = vadd.f32 %v7797, %v7892
        %7894 = vdwg.mxu0
        %7895 = vmatpush.bf16.msra.mxu0 %v7864
        %7896 = vmatpush.bf16.msra.mxu0 %v7862
        %7897 = vmatpush.bf16.msra.mxu0 %v7860
        %7898 = vmatpush.bf16.msra.mxu0 %v7858
        %7899 = vmatpush.bf16.msra.mxu0 %v7856
        %7900 = vmatpush.bf16.msra.mxu0 %v7854
        %7901 = vmatpush.bf16.msra.mxu0 %v7852
        %7902 = vmatpush.bf16.msra.mxu0 %v7850
        %7903 = vmatmul.bf16.gmra.mxu0 %v7794
        %v7904 = vpop.f32.mrf.mxu0
        %v7905 = vadd.f32 %v7798, %v7904
        %v7906 = vpop.f32.mrf.mxu0
        %v7907 = vadd.f32 %v7798, %v7906
        %7908 = vdwg.mxu0
        %v7909 = vmax.f32 %v7891, 0.0
        %v7910 = vmax.f32 %v7905, 0.0
        %v7911 = vmax.f32 %v7893, 0.0
        %v7912 = vmax.f32 %v7907, 0.0
        %v7913 = vpack.c.bf16 %v7911, %v7909
        %v7914 = vpack.c.bf16 %v7912, %v7910
        %v7915 = vld [vmem:[%s16] sm:$0x3]
        %vm7916 = vcmask 130048
        %v7918 = vsel %vm7916, %v7915, 0
        %7920 = vmatpush.bf16.msra.mxu0 0
        %7921 = vmatpush.bf16.msra.mxu0 0
        %7922 = vmatpush.bf16.msra.mxu0 0
        %7923 = vmatpush.bf16.msra.mxu0 0
        %7924 = vmatpush.bf16.msra.mxu0 0
        %7925 = vmatpush.bf16.msra.mxu0 0
        %7926 = vmatpush.bf16.msra.mxu0 0
        %7927 = vmatpush.bf16.msra.mxu0 %v7913
        %7928 = vmatmul.bf16.gmra.mxu0 %v7918
        %v7929 = vpop.f32.mrf.mxu0
        %v7930 = vadd.f32 0.0, %v7929
        %v7931 = vpop.f32.mrf.mxu0
        %7932 = vdwg.mxu0
        %7933 = vmatpush.bf16.msra.mxu0 0
        %7934 = vmatpush.bf16.msra.mxu0 0
        %7935 = vmatpush.bf16.msra.mxu0 0
        %7936 = vmatpush.bf16.msra.mxu0 0
        %7937 = vmatpush.bf16.msra.mxu0 0
        %7938 = vmatpush.bf16.msra.mxu0 0
        %7939 = vmatpush.bf16.msra.mxu0 0
        %7940 = vmatpush.bf16.msra.mxu0 %v7914
        %7941 = vmatmul.bf16.gmra.mxu0 %v7918
        %v7942 = vpop.f32.mrf.mxu0
        %v7943 = vadd.f32 0.0, %v7942
        %v7944 = vpop.f32.mrf.mxu0
        %7945 = vdwg.mxu0
        %v7946 = vld [vmem:[%s17] sm:$0x3]
        %v7948 = vperm.slane %v7946, 0
        %v7949 = vperm.slane %v7946, 1
        %v7952 = vmul.f32 %v7930, %v7948
        %v7953 = vmul.f32 %v7943, %v7949
        %v7954 = vadd.f32 %v7952, 0.0
        %v7955 = vadd.f32 %v7953, 0.0
        %s7956 = scalar_lea.vmem %s16, 2
        %v7957 = vld [vmem:[%s7956] sm:$0x3]
        %v7959 = vsel %vm7916, %v7957, 0
        %7961 = vmatpush.bf16.msra.mxu0 0
        %7962 = vmatpush.bf16.msra.mxu0 0
        %7963 = vmatpush.bf16.msra.mxu0 0
        %7964 = vmatpush.bf16.msra.mxu0 0
        %7965 = vmatpush.bf16.msra.mxu0 0
        %7966 = vmatpush.bf16.msra.mxu0 0
        %7967 = vmatpush.bf16.msra.mxu0 0
        %7968 = vmatpush.bf16.msra.mxu0 %v7913
        %7969 = vmatmul.bf16.gmra.mxu0 %v7959
        %v7970 = vpop.f32.mrf.mxu0
        %v7971 = vadd.f32 0.0, %v7970
        %v7972 = vpop.f32.mrf.mxu0
        %7973 = vdwg.mxu0
        %7974 = vmatpush.bf16.msra.mxu0 0
        %7975 = vmatpush.bf16.msra.mxu0 0
        %7976 = vmatpush.bf16.msra.mxu0 0
        %7977 = vmatpush.bf16.msra.mxu0 0
        %7978 = vmatpush.bf16.msra.mxu0 0
        %7979 = vmatpush.bf16.msra.mxu0 0
        %7980 = vmatpush.bf16.msra.mxu0 0
        %7981 = vmatpush.bf16.msra.mxu0 %v7914
        %7982 = vmatmul.bf16.gmra.mxu0 %v7959
        %v7983 = vpop.f32.mrf.mxu0
        %v7984 = vadd.f32 0.0, %v7983
        %v7985 = vpop.f32.mrf.mxu0
        %7986 = vdwg.mxu0
        %s7987 = scalar_lea.vmem %s17, 2
        %v7988 = vld [vmem:[%s7987] sm:$0x3]
        %v7990 = vperm.slane %v7988, 0
        %v7991 = vperm.slane %v7988, 1
        %v7994 = vmul.f32 %v7971, %v7990
        %v7995 = vmul.f32 %v7984, %v7991
        %v7996 = vadd.f32 %v7954, %v7994
        %v7997 = vadd.f32 %v7955, %v7995
        %s7998 = scalar_lea.vmem %s16, 4
        %v7999 = vld [vmem:[%s7998] sm:$0x3]
        %v8001 = vsel %vm7916, %v7999, 0
        %8003 = vmatpush.bf16.msra.mxu0 0
        %8004 = vmatpush.bf16.msra.mxu0 0
        %8005 = vmatpush.bf16.msra.mxu0 0
        %8006 = vmatpush.bf16.msra.mxu0 0
        %8007 = vmatpush.bf16.msra.mxu0 0
        %8008 = vmatpush.bf16.msra.mxu0 0
        %8009 = vmatpush.bf16.msra.mxu0 0
        %8010 = vmatpush.bf16.msra.mxu0 %v7913
        %8011 = vmatmul.bf16.gmra.mxu0 %v8001
        %v8012 = vpop.f32.mrf.mxu0
        %v8013 = vadd.f32 0.0, %v8012
        %v8014 = vpop.f32.mrf.mxu0
        %8015 = vdwg.mxu0
        %8016 = vmatpush.bf16.msra.mxu0 0
        %8017 = vmatpush.bf16.msra.mxu0 0
        %8018 = vmatpush.bf16.msra.mxu0 0
        %8019 = vmatpush.bf16.msra.mxu0 0
        %8020 = vmatpush.bf16.msra.mxu0 0
        %8021 = vmatpush.bf16.msra.mxu0 0
        %8022 = vmatpush.bf16.msra.mxu0 0
        %8023 = vmatpush.bf16.msra.mxu0 %v7914
        %8024 = vmatmul.bf16.gmra.mxu0 %v8001
        %v8025 = vpop.f32.mrf.mxu0
        %v8026 = vadd.f32 0.0, %v8025
        %v8027 = vpop.f32.mrf.mxu0
        %8028 = vdwg.mxu0
        %s8029 = scalar_lea.vmem %s17, 4
        %v8030 = vld [vmem:[%s8029] sm:$0x3]
        %v8032 = vperm.slane %v8030, 0
        %v8033 = vperm.slane %v8030, 1
        %v8036 = vmul.f32 %v8013, %v8032
        %v8037 = vmul.f32 %v8026, %v8033
        %v8038 = vadd.f32 %v7996, %v8036
        %v8039 = vadd.f32 %v7997, %v8037
        %s8040 = scalar_lea.vmem %s16, 6
        %v8041 = vld [vmem:[%s8040] sm:$0x3]
        %v8043 = vsel %vm7916, %v8041, 0
        %8045 = vmatpush.bf16.msra.mxu0 0
        %8046 = vmatpush.bf16.msra.mxu0 0
        %8047 = vmatpush.bf16.msra.mxu0 0
        %8048 = vmatpush.bf16.msra.mxu0 0
        %8049 = vmatpush.bf16.msra.mxu0 0
        %8050 = vmatpush.bf16.msra.mxu0 0
        %8051 = vmatpush.bf16.msra.mxu0 0
        %8052 = vmatpush.bf16.msra.mxu0 %v7913
        %8053 = vmatmul.bf16.gmra.mxu0 %v8043
        %v8054 = vpop.f32.mrf.mxu0
        %v8055 = vadd.f32 0.0, %v8054
        %v8056 = vpop.f32.mrf.mxu0
        %8057 = vdwg.mxu0
        %8058 = vmatpush.bf16.msra.mxu0 0
        %8059 = vmatpush.bf16.msra.mxu0 0
        %8060 = vmatpush.bf16.msra.mxu0 0
        %8061 = vmatpush.bf16.msra.mxu0 0
        %8062 = vmatpush.bf16.msra.mxu0 0
        %8063 = vmatpush.bf16.msra.mxu0 0
        %8064 = vmatpush.bf16.msra.mxu0 0
        %8065 = vmatpush.bf16.msra.mxu0 %v7914
        %8066 = vmatmul.bf16.gmra.mxu0 %v8043
        %v8067 = vpop.f32.mrf.mxu0
        %v8068 = vadd.f32 0.0, %v8067
        %v8069 = vpop.f32.mrf.mxu0
        %8070 = vdwg.mxu0
        %s8071 = scalar_lea.vmem %s17, 6
        %v8072 = vld [vmem:[%s8071] sm:$0x3]
        %v8074 = vperm.slane %v8072, 0
        %v8075 = vperm.slane %v8072, 1
        %v8078 = vmul.f32 %v8055, %v8074
        %v8079 = vmul.f32 %v8068, %v8075
        %v8080 = vadd.f32 %v8038, %v8078
        %v8081 = vadd.f32 %v8039, %v8079
        %s8082 = scalar_lea.vmem %s16, 8
        %v8083 = vld [vmem:[%s8082] sm:$0x3]
        %v8085 = vsel %vm7916, %v8083, 0
        %8087 = vmatpush.bf16.msra.mxu0 0
        %8088 = vmatpush.bf16.msra.mxu0 0
        %8089 = vmatpush.bf16.msra.mxu0 0
        %8090 = vmatpush.bf16.msra.mxu0 0
        %8091 = vmatpush.bf16.msra.mxu0 0
        %8092 = vmatpush.bf16.msra.mxu0 0
        %8093 = vmatpush.bf16.msra.mxu0 0
        %8094 = vmatpush.bf16.msra.mxu0 %v7913
        %8095 = vmatmul.bf16.gmra.mxu0 %v8085
        %v8096 = vpop.f32.mrf.mxu0
        %v8097 = vadd.f32 0.0, %v8096
        %v8098 = vpop.f32.mrf.mxu0
        %8099 = vdwg.mxu0
        %8100 = vmatpush.bf16.msra.mxu0 0
        %8101 = vmatpush.bf16.msra.mxu0 0
        %8102 = vmatpush.bf16.msra.mxu0 0
        %8103 = vmatpush.bf16.msra.mxu0 0
        %8104 = vmatpush.bf16.msra.mxu0 0
        %8105 = vmatpush.bf16.msra.mxu0 0
        %8106 = vmatpush.bf16.msra.mxu0 0
        %8107 = vmatpush.bf16.msra.mxu0 %v7914
        %8108 = vmatmul.bf16.gmra.mxu0 %v8085
        %v8109 = vpop.f32.mrf.mxu0
        %v8110 = vadd.f32 0.0, %v8109
        %v8111 = vpop.f32.mrf.mxu0
        %8112 = vdwg.mxu0
        %s8113 = scalar_lea.vmem %s17, 8
        %v8114 = vld [vmem:[%s8113] sm:$0x3]
        %v8116 = vperm.slane %v8114, 0
        %v8117 = vperm.slane %v8114, 1
        %v8120 = vmul.f32 %v8097, %v8116
        %v8121 = vmul.f32 %v8110, %v8117
        %v8122 = vadd.f32 %v8080, %v8120
        %v8123 = vadd.f32 %v8081, %v8121
        %s8124 = scalar_lea.vmem %s16, 10
        %v8125 = vld [vmem:[%s8124] sm:$0x3]
        %v8127 = vsel %vm7916, %v8125, 0
        %8129 = vmatpush.bf16.msra.mxu0 0
        %8130 = vmatpush.bf16.msra.mxu0 0
        %8131 = vmatpush.bf16.msra.mxu0 0
        %8132 = vmatpush.bf16.msra.mxu0 0
        %8133 = vmatpush.bf16.msra.mxu0 0
        %8134 = vmatpush.bf16.msra.mxu0 0
        %8135 = vmatpush.bf16.msra.mxu0 0
        %8136 = vmatpush.bf16.msra.mxu0 %v7913
        %8137 = vmatmul.bf16.gmra.mxu0 %v8127
        %v8138 = vpop.f32.mrf.mxu0
        %v8139 = vadd.f32 0.0, %v8138
        %v8140 = vpop.f32.mrf.mxu0
        %8141 = vdwg.mxu0
        %8142 = vmatpush.bf16.msra.mxu0 0
        %8143 = vmatpush.bf16.msra.mxu0 0
        %8144 = vmatpush.bf16.msra.mxu0 0
        %8145 = vmatpush.bf16.msra.mxu0 0
        %8146 = vmatpush.bf16.msra.mxu0 0
        %8147 = vmatpush.bf16.msra.mxu0 0
        %8148 = vmatpush.bf16.msra.mxu0 0
        %8149 = vmatpush.bf16.msra.mxu0 %v7914
        %8150 = vmatmul.bf16.gmra.mxu0 %v8127
        %v8151 = vpop.f32.mrf.mxu0
        %v8152 = vadd.f32 0.0, %v8151
        %v8153 = vpop.f32.mrf.mxu0
        %8154 = vdwg.mxu0
        %s8155 = scalar_lea.vmem %s17, 10
        %v8156 = vld [vmem:[%s8155] sm:$0x3]
        %v8158 = vperm.slane %v8156, 0
        %v8159 = vperm.slane %v8156, 1
        %v8162 = vmul.f32 %v8139, %v8158
        %v8163 = vmul.f32 %v8152, %v8159
        %v8164 = vadd.f32 %v8122, %v8162
        %v8165 = vadd.f32 %v8123, %v8163
        %s8166 = scalar_lea.vmem %s16, 12
        %v8167 = vld [vmem:[%s8166] sm:$0x3]
        %v8169 = vsel %vm7916, %v8167, 0
        %8171 = vmatpush.bf16.msra.mxu0 0
        %8172 = vmatpush.bf16.msra.mxu0 0
        %8173 = vmatpush.bf16.msra.mxu0 0
        %8174 = vmatpush.bf16.msra.mxu0 0
        %8175 = vmatpush.bf16.msra.mxu0 0
        %8176 = vmatpush.bf16.msra.mxu0 0
        %8177 = vmatpush.bf16.msra.mxu0 0
        %8178 = vmatpush.bf16.msra.mxu0 %v7913
        %8179 = vmatmul.bf16.gmra.mxu0 %v8169
        %v8180 = vpop.f32.mrf.mxu0
        %v8181 = vadd.f32 0.0, %v8180
        %v8182 = vpop.f32.mrf.mxu0
        %8183 = vdwg.mxu0
        %8184 = vmatpush.bf16.msra.mxu0 0
        %8185 = vmatpush.bf16.msra.mxu0 0
        %8186 = vmatpush.bf16.msra.mxu0 0
        %8187 = vmatpush.bf16.msra.mxu0 0
        %8188 = vmatpush.bf16.msra.mxu0 0
        %8189 = vmatpush.bf16.msra.mxu0 0
        %8190 = vmatpush.bf16.msra.mxu0 0
        %8191 = vmatpush.bf16.msra.mxu0 %v7914
        %8192 = vmatmul.bf16.gmra.mxu0 %v8169
        %v8193 = vpop.f32.mrf.mxu0
        %v8194 = vadd.f32 0.0, %v8193
        %v8195 = vpop.f32.mrf.mxu0
        %8196 = vdwg.mxu0
        %s8197 = scalar_lea.vmem %s17, 12
        %v8198 = vld [vmem:[%s8197] sm:$0x3]
        %v8200 = vperm.slane %v8198, 0
        %v8201 = vperm.slane %v8198, 1
        %v8204 = vmul.f32 %v8181, %v8200
        %v8205 = vmul.f32 %v8194, %v8201
        %v8206 = vadd.f32 %v8164, %v8204
        %v8207 = vadd.f32 %v8165, %v8205
        %s8208 = scalar_lea.vmem %s16, 14
        %v8209 = vld [vmem:[%s8208] sm:$0x3]
        %v8211 = vsel %vm7916, %v8209, 0
        %8213 = vmatpush.bf16.msra.mxu0 0
        %8214 = vmatpush.bf16.msra.mxu0 0
        %8215 = vmatpush.bf16.msra.mxu0 0
        %8216 = vmatpush.bf16.msra.mxu0 0
        %8217 = vmatpush.bf16.msra.mxu0 0
        %8218 = vmatpush.bf16.msra.mxu0 0
        %8219 = vmatpush.bf16.msra.mxu0 0
        %8220 = vmatpush.bf16.msra.mxu0 %v7913
        %8221 = vmatmul.bf16.gmra.mxu0 %v8211
        %v8222 = vpop.f32.mrf.mxu0
        %v8223 = vadd.f32 0.0, %v8222
        %v8224 = vpop.f32.mrf.mxu0
        %8225 = vdwg.mxu0
        %8226 = vmatpush.bf16.msra.mxu0 0
        %8227 = vmatpush.bf16.msra.mxu0 0
        %8228 = vmatpush.bf16.msra.mxu0 0
        %8229 = vmatpush.bf16.msra.mxu0 0
        %8230 = vmatpush.bf16.msra.mxu0 0
        %8231 = vmatpush.bf16.msra.mxu0 0
        %8232 = vmatpush.bf16.msra.mxu0 0
        %8233 = vmatpush.bf16.msra.mxu0 %v7914
        %8234 = vmatmul.bf16.gmra.mxu0 %v8211
        %v8235 = vpop.f32.mrf.mxu0
        %v8236 = vadd.f32 0.0, %v8235
        %v8237 = vpop.f32.mrf.mxu0
        %8238 = vdwg.mxu0
        %s8239 = scalar_lea.vmem %s17, 14
        %v8240 = vld [vmem:[%s8239] sm:$0x3]
        %v8242 = vperm.slane %v8240, 0
        %v8243 = vperm.slane %v8240, 1
        %v8246 = vmul.f32 %v8223, %v8242
        %v8247 = vmul.f32 %v8236, %v8243
        %v8248 = vadd.f32 %v8206, %v8246
        %v8249 = vadd.f32 %v8207, %v8247
        %s8250 = scalar_lea.vmem %s16, 16
        %v8251 = vld [vmem:[%s8250] sm:$0x3]
        %v8253 = vsel %vm7916, %v8251, 0
        %8255 = vmatpush.bf16.msra.mxu0 0
        %8256 = vmatpush.bf16.msra.mxu0 0
        %8257 = vmatpush.bf16.msra.mxu0 0
        %8258 = vmatpush.bf16.msra.mxu0 0
        %8259 = vmatpush.bf16.msra.mxu0 0
        %8260 = vmatpush.bf16.msra.mxu0 0
        %8261 = vmatpush.bf16.msra.mxu0 0
        %8262 = vmatpush.bf16.msra.mxu0 %v7913
        %8263 = vmatmul.bf16.gmra.mxu0 %v8253
        %v8264 = vpop.f32.mrf.mxu0
        %v8265 = vadd.f32 0.0, %v8264
        %v8266 = vpop.f32.mrf.mxu0
        %8267 = vdwg.mxu0
        %8268 = vmatpush.bf16.msra.mxu0 0
        %8269 = vmatpush.bf16.msra.mxu0 0
        %8270 = vmatpush.bf16.msra.mxu0 0
        %8271 = vmatpush.bf16.msra.mxu0 0
        %8272 = vmatpush.bf16.msra.mxu0 0
        %8273 = vmatpush.bf16.msra.mxu0 0
        %8274 = vmatpush.bf16.msra.mxu0 0
        %8275 = vmatpush.bf16.msra.mxu0 %v7914
        %8276 = vmatmul.bf16.gmra.mxu0 %v8253
        %v8277 = vpop.f32.mrf.mxu0
        %v8278 = vadd.f32 0.0, %v8277
        %v8279 = vpop.f32.mrf.mxu0
        %8280 = vdwg.mxu0
        %s8281 = scalar_lea.vmem %s17, 16
        %v8282 = vld [vmem:[%s8281] sm:$0x3]
        %v8284 = vperm.slane %v8282, 0
        %v8285 = vperm.slane %v8282, 1
        %v8288 = vmul.f32 %v8265, %v8284
        %v8289 = vmul.f32 %v8278, %v8285
        %v8290 = vadd.f32 %v8248, %v8288
        %v8291 = vadd.f32 %v8249, %v8289
        %v8292 = vld [vmem:[%s18] sm:$0x3]
        %v8294 = vperm.slane %v8292, 0
        %v8295 = vperm.slane %v8292, 1
        %v8298 = vadd.f32 %v8290, %v8294
        %v8299 = vadd.f32 %v8291, %v8295
        %v8300 = vmax.f32 %v8298, 0.0
        %v8301 = vmax.f32 %v8299, 0.0
        %v8302 = vld [vmem:[%s19] sm:$0xff]
        %v8303 = vld [vmem:[%s19 + $0x8] sm:$0xff]
        %v8304 = vld [vmem:[%s19 + $0x10] sm:$0xff]
        %v8305 = vld [vmem:[%s19 + $0x18] sm:$0xff]
        %v8306 = vld [vmem:[%s19 + $0x20] sm:$0xff]
        %v8307 = vld [vmem:[%s19 + $0x28] sm:$0xff]
        %v8308 = vld [vmem:[%s19 + $0x30] sm:$0xff]
        %v8309 = vld [vmem:[%s19 + $0x38] sm:$0xff]
        %v8310 = vld [vmem:[%s19 + $0x40] sm:$0xff]
        %v8311 = vld [vmem:[%s19 + $0x48] sm:$0xff]
        %v8312 = vld [vmem:[%s19 + $0x50] sm:$0xff]
        %v8313 = vld [vmem:[%s19 + $0x58] sm:$0xff]
        %v8314 = vld [vmem:[%s19 + $0x60] sm:$0xff]
        %v8315 = vld [vmem:[%s19 + $0x68] sm:$0xff]
        %v8316 = vld [vmem:[%s19 + $0x70] sm:$0xff]
        %v8317 = vld [vmem:[%s19 + $0x78] sm:$0xff]
        %v8318 = vld [vmem:[%s19 + $0x80] sm:$0xff]
        %v8319 = vld [vmem:[%s19 + $0x88] sm:$0xff]
        %v8320 = vld [vmem:[%s19 + $0x90] sm:$0xff]
        %v8321 = vld [vmem:[%s19 + $0x98] sm:$0xff]
        %v8322 = vld [vmem:[%s19 + $0xa0] sm:$0xff]
        %v8323 = vld [vmem:[%s19 + $0xa8] sm:$0xff]
        %v8324 = vld [vmem:[%s19 + $0xb0] sm:$0xff]
        %v8325 = vld [vmem:[%s19 + $0xb8] sm:$0xff]
        %v8326 = vld [vmem:[%s19 + $0xc0] sm:$0xff]
        %v8327 = vld [vmem:[%s19 + $0xc8] sm:$0xff]
        %v8328 = vld [vmem:[%s19 + $0xd0] sm:$0xff]
        %v8329 = vld [vmem:[%s19 + $0xd8] sm:$0xff]
        %v8330 = vld [vmem:[%s19 + $0xe0] sm:$0xff]
        %v8331 = vld [vmem:[%s19 + $0xe8] sm:$0xff]
        %v8332 = vld [vmem:[%s19 + $0xf0] sm:$0xff]
        %v8333 = vld [vmem:[%s19 + $0xf8] sm:$0xff]
        %v8334 = vld [vmem:[%s19 + $0x100] sm:$0xff]
        %v8335 = vld [vmem:[%s19 + $0x108] sm:$0xff]
        %v8336 = vld [vmem:[%s19 + $0x110] sm:$0xff]
        %v8337 = vld [vmem:[%s19 + $0x118] sm:$0xff]
        %v8338 = vld [vmem:[%s19 + $0x120] sm:$0xff]
        %v8339 = vld [vmem:[%s19 + $0x128] sm:$0xff]
        %v8340 = vld [vmem:[%s19 + $0x130] sm:$0xff]
        %v8341 = vld [vmem:[%s19 + $0x138] sm:$0xff]
        %v8342 = vld [vmem:[%s19 + $0x140] sm:$0xff]
        %v8343 = vld [vmem:[%s19 + $0x148] sm:$0xff]
        %v8344 = vld [vmem:[%s19 + $0x150] sm:$0xff]
        %v8345 = vld [vmem:[%s19 + $0x158] sm:$0xff]
        %v8346 = vld [vmem:[%s19 + $0x160] sm:$0xff]
        %v8347 = vld [vmem:[%s19 + $0x168] sm:$0xff]
        %v8348 = vld [vmem:[%s19 + $0x170] sm:$0xff]
        %v8349 = vld [vmem:[%s19 + $0x178] sm:$0xff]
        %v8350 = vld [vmem:[%s19 + $0x180] sm:$0xff]
        %v8351 = vld [vmem:[%s19 + $0x188] sm:$0xff]
        %v8352 = vld [vmem:[%s19 + $0x190] sm:$0xff]
        %v8353 = vld [vmem:[%s19 + $0x198] sm:$0xff]
        %v8354 = vld [vmem:[%s19 + $0x1a0] sm:$0xff]
        %v8355 = vld [vmem:[%s19 + $0x1a8] sm:$0xff]
        %v8356 = vld [vmem:[%s19 + $0x1b0] sm:$0xff]
        %v8357 = vld [vmem:[%s19 + $0x1b8] sm:$0xff]
        %v8358 = vld [vmem:[%s19 + $0x1c0] sm:$0xff]
        %v8359 = vld [vmem:[%s19 + $0x1c8] sm:$0xff]
        %v8360 = vld [vmem:[%s19 + $0x1d0] sm:$0xff]
        %v8361 = vld [vmem:[%s19 + $0x1d8] sm:$0xff]
        %v8362 = vld [vmem:[%s19 + $0x1e0] sm:$0xff]
        %v8363 = vld [vmem:[%s19 + $0x1e8] sm:$0xff]
        %v8364 = vld [vmem:[%s19 + $0x1f0] sm:$0xff]
        %v8365 = vld [vmem:[%s19 + $0x1f8] sm:$0xff]
        %v8366 = vpack.c.bf16 %v8300, %v8300
        %v8367 = vpack.c.bf16 %v8301, %v8301
        %v8368 = vld [vmem:[%s20] sm:$0xf]
        %v8370 = vperm.slane %v8368, 0
        %v8371 = vperm.slane %v8368, 1
        %v8372 = vperm.slane %v8368, 2
        %v8373 = vperm.slane %v8368, 3
        %v8442 = vunpack.c.l.b16 %v8302
        %v8443 = vunpack.c.h.b16 %v8302
        %v8444 = vunpack.c.l.b16 %v8303
        %v8445 = vunpack.c.h.b16 %v8303
        %v8446 = vunpack.c.l.b16 %v8304
        %v8447 = vunpack.c.h.b16 %v8304
        %v8448 = vunpack.c.l.b16 %v8305
        %v8449 = vunpack.c.h.b16 %v8305
        %v8450 = vunpack.c.l.b16 %v8306
        %v8451 = vunpack.c.h.b16 %v8306
        %v8452 = vunpack.c.l.b16 %v8307
        %v8453 = vunpack.c.h.b16 %v8307
        %v8454 = vunpack.c.l.b16 %v8308
        %v8455 = vunpack.c.h.b16 %v8308
        %v8456 = vunpack.c.l.b16 %v8309
        %v8457 = vunpack.c.h.b16 %v8309
        %v8458 = vunpack.c.l.b16 %v8310
        %v8459 = vunpack.c.h.b16 %v8310
        %v8460 = vunpack.c.l.b16 %v8311
        %v8461 = vunpack.c.h.b16 %v8311
        %v8462 = vunpack.c.l.b16 %v8312
        %v8463 = vunpack.c.h.b16 %v8312
        %v8464 = vunpack.c.l.b16 %v8313
        %v8465 = vunpack.c.h.b16 %v8313
        %v8466 = vunpack.c.l.b16 %v8314
        %v8467 = vunpack.c.h.b16 %v8314
        %v8468 = vunpack.c.l.b16 %v8315
        %v8469 = vunpack.c.h.b16 %v8315
        %v8470 = vunpack.c.l.b16 %v8316
        %v8471 = vunpack.c.h.b16 %v8316
        %v8472 = vunpack.c.l.b16 %v8317
        %v8473 = vunpack.c.h.b16 %v8317
        %v8474 = vunpack.c.l.b16 %v8318
        %v8475 = vunpack.c.h.b16 %v8318
        %v8476 = vunpack.c.l.b16 %v8319
        %v8477 = vunpack.c.h.b16 %v8319
        %v8478 = vunpack.c.l.b16 %v8320
        %v8479 = vunpack.c.h.b16 %v8320
        %v8480 = vunpack.c.l.b16 %v8321
        %v8481 = vunpack.c.h.b16 %v8321
        %v8482 = vunpack.c.l.b16 %v8322
        %v8483 = vunpack.c.h.b16 %v8322
        %v8484 = vunpack.c.l.b16 %v8323
        %v8485 = vunpack.c.h.b16 %v8323
        %v8486 = vunpack.c.l.b16 %v8324
        %v8487 = vunpack.c.h.b16 %v8324
        %v8488 = vunpack.c.l.b16 %v8325
        %v8489 = vunpack.c.h.b16 %v8325
        %v8490 = vunpack.c.l.b16 %v8326
        %v8491 = vunpack.c.h.b16 %v8326
        %v8492 = vunpack.c.l.b16 %v8327
        %v8493 = vunpack.c.h.b16 %v8327
        %v8494 = vunpack.c.l.b16 %v8328
        %v8495 = vunpack.c.h.b16 %v8328
        %v8496 = vunpack.c.l.b16 %v8329
        %v8497 = vunpack.c.h.b16 %v8329
        %v8498 = vunpack.c.l.b16 %v8330
        %v8499 = vunpack.c.h.b16 %v8330
        %v8500 = vunpack.c.l.b16 %v8331
        %v8501 = vunpack.c.h.b16 %v8331
        %v8502 = vunpack.c.l.b16 %v8332
        %v8503 = vunpack.c.h.b16 %v8332
        %v8504 = vunpack.c.l.b16 %v8333
        %v8505 = vunpack.c.h.b16 %v8333
        %v8506 = vunpack.c.l.b16 %v8334
        %v8507 = vunpack.c.h.b16 %v8334
        %v8508 = vunpack.c.l.b16 %v8335
        %v8509 = vunpack.c.h.b16 %v8335
        %v8510 = vunpack.c.l.b16 %v8336
        %v8511 = vunpack.c.h.b16 %v8336
        %v8512 = vunpack.c.l.b16 %v8337
        %v8513 = vunpack.c.h.b16 %v8337
        %v8514 = vunpack.c.l.b16 %v8338
        %v8515 = vunpack.c.h.b16 %v8338
        %v8516 = vunpack.c.l.b16 %v8339
        %v8517 = vunpack.c.h.b16 %v8339
        %v8518 = vunpack.c.l.b16 %v8340
        %v8519 = vunpack.c.h.b16 %v8340
        %v8520 = vunpack.c.l.b16 %v8341
        %v8521 = vunpack.c.h.b16 %v8341
        %v8522 = vunpack.c.l.b16 %v8342
        %v8523 = vunpack.c.h.b16 %v8342
        %v8524 = vunpack.c.l.b16 %v8343
        %v8525 = vunpack.c.h.b16 %v8343
        %v8526 = vunpack.c.l.b16 %v8344
        %v8527 = vunpack.c.h.b16 %v8344
        %v8528 = vunpack.c.l.b16 %v8345
        %v8529 = vunpack.c.h.b16 %v8345
        %v8530 = vunpack.c.l.b16 %v8346
        %v8531 = vunpack.c.h.b16 %v8346
        %v8532 = vunpack.c.l.b16 %v8347
        %v8533 = vunpack.c.h.b16 %v8347
        %v8534 = vunpack.c.l.b16 %v8348
        %v8535 = vunpack.c.h.b16 %v8348
        %v8536 = vunpack.c.l.b16 %v8349
        %v8537 = vunpack.c.h.b16 %v8349
        %v8538 = vunpack.c.l.b16 %v8350
        %v8539 = vunpack.c.h.b16 %v8350
        %v8540 = vunpack.c.l.b16 %v8351
        %v8541 = vunpack.c.h.b16 %v8351
        %v8542 = vunpack.c.l.b16 %v8352
        %v8543 = vunpack.c.h.b16 %v8352
        %v8544 = vunpack.c.l.b16 %v8353
        %v8545 = vunpack.c.h.b16 %v8353
        %v8546 = vunpack.c.l.b16 %v8354
        %v8547 = vunpack.c.h.b16 %v8354
        %v8548 = vunpack.c.l.b16 %v8355
        %v8549 = vunpack.c.h.b16 %v8355
        %v8550 = vunpack.c.l.b16 %v8356
        %v8551 = vunpack.c.h.b16 %v8356
        %v8552 = vunpack.c.l.b16 %v8357
        %v8553 = vunpack.c.h.b16 %v8357
        %v8554 = vunpack.c.l.b16 %v8358
        %v8555 = vunpack.c.h.b16 %v8358
        %v8556 = vunpack.c.l.b16 %v8359
        %v8557 = vunpack.c.h.b16 %v8359
        %v8558 = vunpack.c.l.b16 %v8360
        %v8559 = vunpack.c.h.b16 %v8360
        %v8560 = vunpack.c.l.b16 %v8361
        %v8561 = vunpack.c.h.b16 %v8361
        %v8562 = vunpack.c.l.b16 %v8362
        %v8563 = vunpack.c.h.b16 %v8362
        %v8564 = vunpack.c.l.b16 %v8363
        %v8565 = vunpack.c.h.b16 %v8363
        %v8566 = vunpack.c.l.b16 %v8364
        %v8567 = vunpack.c.h.b16 %v8364
        %v8568 = vunpack.c.l.b16 %v8365
        %v8569 = vunpack.c.h.b16 %v8365
        %v8570 = vpack.c.b16 %v8446, %v8442
        %v8571 = vpack.c.b16 %v8447, %v8443
        %v8572 = vpack.c.b16 %v8448, %v8444
        %v8573 = vpack.c.b16 %v8449, %v8445
        %v8574 = vpack.c.b16 %v8454, %v8450
        %v8575 = vpack.c.b16 %v8455, %v8451
        %v8576 = vpack.c.b16 %v8456, %v8452
        %v8577 = vpack.c.b16 %v8457, %v8453
        %v8578 = vpack.c.b16 %v8462, %v8458
        %v8579 = vpack.c.b16 %v8463, %v8459
        %v8580 = vpack.c.b16 %v8464, %v8460
        %v8581 = vpack.c.b16 %v8465, %v8461
        %v8582 = vpack.c.b16 %v8470, %v8466
        %v8583 = vpack.c.b16 %v8471, %v8467
        %v8584 = vpack.c.b16 %v8472, %v8468
        %v8585 = vpack.c.b16 %v8473, %v8469
        %v8586 = vpack.c.b16 %v8478, %v8474
        %v8587 = vpack.c.b16 %v8479, %v8475
        %v8588 = vpack.c.b16 %v8480, %v8476
        %v8589 = vpack.c.b16 %v8481, %v8477
        %v8590 = vpack.c.b16 %v8486, %v8482
        %v8591 = vpack.c.b16 %v8487, %v8483
        %v8592 = vpack.c.b16 %v8488, %v8484
        %v8593 = vpack.c.b16 %v8489, %v8485
        %v8594 = vpack.c.b16 %v8494, %v8490
        %v8595 = vpack.c.b16 %v8495, %v8491
        %v8596 = vpack.c.b16 %v8496, %v8492
        %v8597 = vpack.c.b16 %v8497, %v8493
        %v8598 = vpack.c.b16 %v8502, %v8498
        %v8599 = vpack.c.b16 %v8503, %v8499
        %v8600 = vpack.c.b16 %v8504, %v8500
        %v8601 = vpack.c.b16 %v8505, %v8501
        %v8602 = vpack.c.b16 %v8510, %v8506
        %v8603 = vpack.c.b16 %v8511, %v8507
        %v8604 = vpack.c.b16 %v8512, %v8508
        %v8605 = vpack.c.b16 %v8513, %v8509
        %v8606 = vpack.c.b16 %v8518, %v8514
        %v8607 = vpack.c.b16 %v8519, %v8515
        %v8608 = vpack.c.b16 %v8520, %v8516
        %v8609 = vpack.c.b16 %v8521, %v8517
        %v8610 = vpack.c.b16 %v8526, %v8522
        %v8611 = vpack.c.b16 %v8527, %v8523
        %v8612 = vpack.c.b16 %v8528, %v8524
        %v8613 = vpack.c.b16 %v8529, %v8525
        %v8614 = vpack.c.b16 %v8534, %v8530
        %v8615 = vpack.c.b16 %v8535, %v8531
        %v8616 = vpack.c.b16 %v8536, %v8532
        %v8617 = vpack.c.b16 %v8537, %v8533
        %v8618 = vpack.c.b16 %v8542, %v8538
        %v8619 = vpack.c.b16 %v8543, %v8539
        %v8620 = vpack.c.b16 %v8544, %v8540
        %v8621 = vpack.c.b16 %v8545, %v8541
        %v8622 = vpack.c.b16 %v8550, %v8546
        %v8623 = vpack.c.b16 %v8551, %v8547
        %v8624 = vpack.c.b16 %v8552, %v8548
        %v8625 = vpack.c.b16 %v8553, %v8549
        %v8626 = vpack.c.b16 %v8558, %v8554
        %v8627 = vpack.c.b16 %v8559, %v8555
        %v8628 = vpack.c.b16 %v8560, %v8556
        %v8629 = vpack.c.b16 %v8561, %v8557
        %v8630 = vpack.c.b16 %v8566, %v8562
        %v8631 = vpack.c.b16 %v8567, %v8563
        %v8632 = vpack.c.b16 %v8568, %v8564
        %v8633 = vpack.c.b16 %v8569, %v8565
        %8698 = vmatpush.bf16.msra.mxu0 %v8598
        %8699 = vmatpush.bf16.msra.mxu0 %v8594
        %8700 = vmatpush.bf16.msra.mxu0 %v8590
        %8701 = vmatpush.bf16.msra.mxu0 %v8586
        %8702 = vmatpush.bf16.msra.mxu0 %v8582
        %8703 = vmatpush.bf16.msra.mxu0 %v8578
        %8704 = vmatpush.bf16.msra.mxu0 %v8574
        %8705 = vmatpush.bf16.msra.mxu0 %v8570
        %8706 = vmatmul.bf16.gmra.mxu0 %v8366
        %v8707 = vpop.f32.mrf.mxu0
        %v8708 = vadd.f32 %v8370, %v8707
        %v8709 = vpop.f32.mrf.mxu0
        %8710 = vdwg.mxu0
        %8711 = vmatpush.bf16.msra.mxu0 %v8630
        %8712 = vmatpush.bf16.msra.mxu0 %v8626
        %8713 = vmatpush.bf16.msra.mxu0 %v8622
        %8714 = vmatpush.bf16.msra.mxu0 %v8618
        %8715 = vmatpush.bf16.msra.mxu0 %v8614
        %8716 = vmatpush.bf16.msra.mxu0 %v8610
        %8717 = vmatpush.bf16.msra.mxu0 %v8606
        %8718 = vmatpush.bf16.msra.mxu0 %v8602
        %8719 = vmatmul.bf16.gmra.mxu0 %v8367
        %v8720 = vpop.f32.mrf.mxu0
        %v8721 = vadd.f32 %v8708, %v8720
        %v8722 = vpop.f32.mrf.mxu0
        %8723 = vdwg.mxu0
        %8724 = vmatpush.bf16.msra.mxu0 %v8599
        %8725 = vmatpush.bf16.msra.mxu0 %v8595
        %8726 = vmatpush.bf16.msra.mxu0 %v8591
        %8727 = vmatpush.bf16.msra.mxu0 %v8587
        %8728 = vmatpush.bf16.msra.mxu0 %v8583
        %8729 = vmatpush.bf16.msra.mxu0 %v8579
        %8730 = vmatpush.bf16.msra.mxu0 %v8575
        %8731 = vmatpush.bf16.msra.mxu0 %v8571
        %8732 = vmatmul.bf16.gmra.mxu0 %v8366
        %v8733 = vpop.f32.mrf.mxu0
        %v8734 = vadd.f32 %v8371, %v8733
        %v8735 = vpop.f32.mrf.mxu0
        %8736 = vdwg.mxu0
        %8737 = vmatpush.bf16.msra.mxu0 %v8631
        %8738 = vmatpush.bf16.msra.mxu0 %v8627
        %8739 = vmatpush.bf16.msra.mxu0 %v8623
        %8740 = vmatpush.bf16.msra.mxu0 %v8619
        %8741 = vmatpush.bf16.msra.mxu0 %v8615
        %8742 = vmatpush.bf16.msra.mxu0 %v8611
        %8743 = vmatpush.bf16.msra.mxu0 %v8607
        %8744 = vmatpush.bf16.msra.mxu0 %v8603
        %8745 = vmatmul.bf16.gmra.mxu0 %v8367
        %v8746 = vpop.f32.mrf.mxu0
        %v8747 = vadd.f32 %v8734, %v8746
        %v8748 = vpop.f32.mrf.mxu0
        %8749 = vdwg.mxu0
        %8750 = vmatpush.bf16.msra.mxu0 %v8600
        %8751 = vmatpush.bf16.msra.mxu0 %v8596
        %8752 = vmatpush.bf16.msra.mxu0 %v8592
        %8753 = vmatpush.bf16.msra.mxu0 %v8588
        %8754 = vmatpush.bf16.msra.mxu0 %v8584
        %8755 = vmatpush.bf16.msra.mxu0 %v8580
        %8756 = vmatpush.bf16.msra.mxu0 %v8576
        %8757 = vmatpush.bf16.msra.mxu0 %v8572
        %8758 = vmatmul.bf16.gmra.mxu0 %v8366
        %v8759 = vpop.f32.mrf.mxu0
        %v8760 = vadd.f32 %v8372, %v8759
        %v8761 = vpop.f32.mrf.mxu0
        %8762 = vdwg.mxu0
        %8763 = vmatpush.bf16.msra.mxu0 %v8632
        %8764 = vmatpush.bf16.msra.mxu0 %v8628
        %8765 = vmatpush.bf16.msra.mxu0 %v8624
        %8766 = vmatpush.bf16.msra.mxu0 %v8620
        %8767 = vmatpush.bf16.msra.mxu0 %v8616
        %8768 = vmatpush.bf16.msra.mxu0 %v8612
        %8769 = vmatpush.bf16.msra.mxu0 %v8608
        %8770 = vmatpush.bf16.msra.mxu0 %v8604
        %8771 = vmatmul.bf16.gmra.mxu0 %v8367
        %v8772 = vpop.f32.mrf.mxu0
        %v8773 = vadd.f32 %v8760, %v8772
        %v8774 = vpop.f32.mrf.mxu0
        %8775 = vdwg.mxu0
        %8776 = vmatpush.bf16.msra.mxu0 %v8601
        %8777 = vmatpush.bf16.msra.mxu0 %v8597
        %8778 = vmatpush.bf16.msra.mxu0 %v8593
        %8779 = vmatpush.bf16.msra.mxu0 %v8589
        %8780 = vmatpush.bf16.msra.mxu0 %v8585
        %8781 = vmatpush.bf16.msra.mxu0 %v8581
        %8782 = vmatpush.bf16.msra.mxu0 %v8577
        %8783 = vmatpush.bf16.msra.mxu0 %v8573
        %8784 = vmatmul.bf16.gmra.mxu0 %v8366
        %v8785 = vpop.f32.mrf.mxu0
        %v8786 = vadd.f32 %v8373, %v8785
        %v8787 = vpop.f32.mrf.mxu0
        %8788 = vdwg.mxu0
        %8789 = vmatpush.bf16.msra.mxu0 %v8633
        %8790 = vmatpush.bf16.msra.mxu0 %v8629
        %8791 = vmatpush.bf16.msra.mxu0 %v8625
        %8792 = vmatpush.bf16.msra.mxu0 %v8621
        %8793 = vmatpush.bf16.msra.mxu0 %v8617
        %8794 = vmatpush.bf16.msra.mxu0 %v8613
        %8795 = vmatpush.bf16.msra.mxu0 %v8609
        %8796 = vmatpush.bf16.msra.mxu0 %v8605
        %8797 = vmatmul.bf16.gmra.mxu0 %v8367
        %v8798 = vpop.f32.mrf.mxu0
        %v8799 = vadd.f32 %v8786, %v8798
        %v8800 = vpop.f32.mrf.mxu0
        %8801 = vdwg.mxu0
        %v8802 = vmax.f32 %v8721, 0.0
        %v8803 = vmax.f32 %v8747, 0.0
        %v8804 = vmax.f32 %v8773, 0.0
        %v8805 = vmax.f32 %v8799, 0.0
        %vm8806 = vcmask 1043456
        %v8807 = vsel %vm8806, %v8802, 0.0
        %v8808 = vrot.slane %v8807, 4
        %v8809 = vadd.f32 %v8807, %v8808
        %v8810 = vrot.slane %v8809, 2
        %v8811 = vadd.f32 %v8809, %v8810
        %v8812 = vrot.slane %v8811, 1
        %v8813 = vadd.f32 %v8811, %v8812
        %v8814 = vsel %vm8806, %v8803, 0.0
        %v8815 = vrot.slane %v8814, 4
        %v8816 = vadd.f32 %v8814, %v8815
        %v8817 = vrot.slane %v8816, 2
        %v8818 = vadd.f32 %v8816, %v8817
        %v8819 = vrot.slane %v8818, 1
        %v8820 = vadd.f32 %v8818, %v8819
        %v8821 = vsel %vm8806, %v8804, 0.0
        %v8822 = vrot.slane %v8821, 4
        %v8823 = vadd.f32 %v8821, %v8822
        %v8824 = vrot.slane %v8823, 2
        %v8825 = vadd.f32 %v8823, %v8824
        %v8826 = vrot.slane %v8825, 1
        %v8827 = vadd.f32 %v8825, %v8826
        %v8828 = vsel %vm8806, %v8805, 0.0
        %v8829 = vrot.slane %v8828, 4
        %v8830 = vadd.f32 %v8828, %v8829
        %v8831 = vrot.slane %v8830, 2
        %v8832 = vadd.f32 %v8830, %v8831
        %v8833 = vrot.slane %v8832, 1
        %v8834 = vadd.f32 %v8832, %v8833
        %v8835 = vmul.f32 %v8813, 0.25
        %v8836 = vmul.f32 %v8820, 0.25
        %v8837 = vmul.f32 %v8827, 0.25
        %v8838 = vmul.f32 %v8834, 0.25
        %v8839 = vld [vmem:[%s21] sm:$0xf]
        %v8840 = vld [vmem:[%s21 + $0x4] sm:$0xf]
        %v8841 = vld [vmem:[%s21 + $0x8] sm:$0xf]
        %v8842 = vld [vmem:[%s21 + $0xc] sm:$0xf]
        %v8843 = vld [vmem:[%s21 + $0x10] sm:$0xf]
        %v8844 = vld [vmem:[%s21 + $0x14] sm:$0xf]
        %v8845 = vld [vmem:[%s21 + $0x18] sm:$0xf]
        %v8846 = vld [vmem:[%s21 + $0x1c] sm:$0xf]
        %v8847 = vld [vmem:[%s21 + $0x20] sm:$0xf]
        %v8848 = vld [vmem:[%s21 + $0x24] sm:$0xf]
        %v8849 = vld [vmem:[%s21 + $0x28] sm:$0xf]
        %v8850 = vld [vmem:[%s21 + $0x2c] sm:$0xf]
        %v8851 = vld [vmem:[%s21 + $0x30] sm:$0xf]
        %v8852 = vld [vmem:[%s21 + $0x34] sm:$0xf]
        %v8853 = vld [vmem:[%s21 + $0x38] sm:$0xf]
        %v8854 = vld [vmem:[%s21 + $0x3c] sm:$0xf]
        %v8855 = vld [vmem:[%s21 + $0x40] sm:$0xf]
        %v8856 = vld [vmem:[%s21 + $0x44] sm:$0xf]
        %v8857 = vld [vmem:[%s21 + $0x48] sm:$0xf]
        %v8858 = vld [vmem:[%s21 + $0x4c] sm:$0xf]
        %v8859 = vld [vmem:[%s21 + $0x50] sm:$0xf]
        %v8860 = vld [vmem:[%s21 + $0x54] sm:$0xf]
        %v8861 = vld [vmem:[%s21 + $0x58] sm:$0xf]
        %v8862 = vld [vmem:[%s21 + $0x5c] sm:$0xf]
        %v8863 = vld [vmem:[%s21 + $0x60] sm:$0xf]
        %v8864 = vld [vmem:[%s21 + $0x64] sm:$0xf]
        %v8865 = vld [vmem:[%s21 + $0x68] sm:$0xf]
        %v8866 = vld [vmem:[%s21 + $0x6c] sm:$0xf]
        %v8867 = vld [vmem:[%s21 + $0x70] sm:$0xf]
        %v8868 = vld [vmem:[%s21 + $0x74] sm:$0xf]
        %v8869 = vld [vmem:[%s21 + $0x78] sm:$0xf]
        %v8870 = vld [vmem:[%s21 + $0x7c] sm:$0xf]
        %v8871 = vld [vmem:[%s21 + $0x80] sm:$0xf]
        %v8872 = vld [vmem:[%s21 + $0x84] sm:$0xf]
        %v8873 = vld [vmem:[%s21 + $0x88] sm:$0xf]
        %v8874 = vld [vmem:[%s21 + $0x8c] sm:$0xf]
        %v8875 = vld [vmem:[%s21 + $0x90] sm:$0xf]
        %v8876 = vld [vmem:[%s21 + $0x94] sm:$0xf]
        %v8877 = vld [vmem:[%s21 + $0x98] sm:$0xf]
        %v8878 = vld [vmem:[%s21 + $0x9c] sm:$0xf]
        %v8879 = vld [vmem:[%s21 + $0xa0] sm:$0xf]
        %v8880 = vld [vmem:[%s21 + $0xa4] sm:$0xf]
        %v8881 = vld [vmem:[%s21 + $0xa8] sm:$0xf]
        %v8882 = vld [vmem:[%s21 + $0xac] sm:$0xf]
        %v8883 = vld [vmem:[%s21 + $0xb0] sm:$0xf]
        %v8884 = vld [vmem:[%s21 + $0xb4] sm:$0xf]
        %v8885 = vld [vmem:[%s21 + $0xb8] sm:$0xf]
        %v8886 = vld [vmem:[%s21 + $0xbc] sm:$0xf]
        %v8887 = vld [vmem:[%s21 + $0xc0] sm:$0xf]
        %v8888 = vld [vmem:[%s21 + $0xc4] sm:$0xf]
        %v8889 = vld [vmem:[%s21 + $0xc8] sm:$0xf]
        %v8890 = vld [vmem:[%s21 + $0xcc] sm:$0xf]
        %v8891 = vld [vmem:[%s21 + $0xd0] sm:$0xf]
        %v8892 = vld [vmem:[%s21 + $0xd4] sm:$0xf]
        %v8893 = vld [vmem:[%s21 + $0xd8] sm:$0xf]
        %v8894 = vld [vmem:[%s21 + $0xdc] sm:$0xf]
        %v8895 = vld [vmem:[%s21 + $0xe0] sm:$0xf]
        %v8896 = vld [vmem:[%s21 + $0xe4] sm:$0xf]
        %v8897 = vld [vmem:[%s21 + $0xe8] sm:$0xf]
        %v8898 = vld [vmem:[%s21 + $0xec] sm:$0xf]
        %v8899 = vld [vmem:[%s21 + $0xf0] sm:$0xf]
        %v8900 = vld [vmem:[%s21 + $0xf4] sm:$0xf]
        %v8901 = vld [vmem:[%s21 + $0xf8] sm:$0xf]
        %v8902 = vld [vmem:[%s21 + $0xfc] sm:$0xf]
        %v8903 = vpack.c.bf16 %v8835, %v8835
        %v8904 = vpack.c.bf16 %v8836, %v8836
        %v8905 = vpack.c.bf16 %v8837, %v8837
        %v8906 = vpack.c.bf16 %v8838, %v8838
        %v8907 = vld [vmem:[%s22] sm:$0x1]
        %v8972 = vunpack.c.l.b16 %v8839
        %v8973 = vunpack.c.l.b16 %v8840
        %v8974 = vunpack.c.l.b16 %v8841
        %v8975 = vunpack.c.l.b16 %v8842
        %v8976 = vunpack.c.l.b16 %v8843
        %v8977 = vunpack.c.l.b16 %v8844
        %v8978 = vunpack.c.l.b16 %v8845
        %v8979 = vunpack.c.l.b16 %v8846
        %v8980 = vunpack.c.l.b16 %v8847
        %v8981 = vunpack.c.l.b16 %v8848
        %v8982 = vunpack.c.l.b16 %v8849
        %v8983 = vunpack.c.l.b16 %v8850
        %v8984 = vunpack.c.l.b16 %v8851
        %v8985 = vunpack.c.l.b16 %v8852
        %v8986 = vunpack.c.l.b16 %v8853
        %v8987 = vunpack.c.l.b16 %v8854
        %v8988 = vunpack.c.l.b16 %v8855
        %v8989 = vunpack.c.l.b16 %v8856
        %v8990 = vunpack.c.l.b16 %v8857
        %v8991 = vunpack.c.l.b16 %v8858
        %v8992 = vunpack.c.l.b16 %v8859
        %v8993 = vunpack.c.l.b16 %v8860
        %v8994 = vunpack.c.l.b16 %v8861
        %v8995 = vunpack.c.l.b16 %v8862
        %v8996 = vunpack.c.l.b16 %v8863
        %v8997 = vunpack.c.l.b16 %v8864
        %v8998 = vunpack.c.l.b16 %v8865
        %v8999 = vunpack.c.l.b16 %v8866
        %v9000 = vunpack.c.l.b16 %v8867
        %v9001 = vunpack.c.l.b16 %v8868
        %v9002 = vunpack.c.l.b16 %v8869
        %v9003 = vunpack.c.l.b16 %v8870
        %v9004 = vunpack.c.l.b16 %v8871
        %v9005 = vunpack.c.l.b16 %v8872
        %v9006 = vunpack.c.l.b16 %v8873
        %v9007 = vunpack.c.l.b16 %v8874
        %v9008 = vunpack.c.l.b16 %v8875
        %v9009 = vunpack.c.l.b16 %v8876
        %v9010 = vunpack.c.l.b16 %v8877
        %v9011 = vunpack.c.l.b16 %v8878
        %v9012 = vunpack.c.l.b16 %v8879
        %v9013 = vunpack.c.l.b16 %v8880
        %v9014 = vunpack.c.l.b16 %v8881
        %v9015 = vunpack.c.l.b16 %v8882
        %v9016 = vunpack.c.l.b16 %v8883
        %v9017 = vunpack.c.l.b16 %v8884
        %v9018 = vunpack.c.l.b16 %v8885
        %v9019 = vunpack.c.l.b16 %v8886
        %v9020 = vunpack.c.l.b16 %v8887
        %v9021 = vunpack.c.l.b16 %v8888
        %v9022 = vunpack.c.l.b16 %v8889
        %v9023 = vunpack.c.l.b16 %v8890
        %v9024 = vunpack.c.l.b16 %v8891
        %v9025 = vunpack.c.l.b16 %v8892
        %v9026 = vunpack.c.l.b16 %v8893
        %v9027 = vunpack.c.l.b16 %v8894
        %v9028 = vunpack.c.l.b16 %v8895
        %v9029 = vunpack.c.l.b16 %v8896
        %v9030 = vunpack.c.l.b16 %v8897
        %v9031 = vunpack.c.l.b16 %v8898
        %v9032 = vunpack.c.l.b16 %v8899
        %v9033 = vunpack.c.l.b16 %v8900
        %v9034 = vunpack.c.l.b16 %v8901
        %v9035 = vunpack.c.l.b16 %v8902
        %v9036 = vpack.c.b16 %v8973, %v8972
        %v9037 = vpack.c.b16 %v8975, %v8974
        %v9038 = vpack.c.b16 %v8977, %v8976
        %v9039 = vpack.c.b16 %v8979, %v8978
        %v9040 = vpack.c.b16 %v8981, %v8980
        %v9041 = vpack.c.b16 %v8983, %v8982
        %v9042 = vpack.c.b16 %v8985, %v8984
        %v9043 = vpack.c.b16 %v8987, %v8986
        %v9044 = vpack.c.b16 %v8989, %v8988
        %v9045 = vpack.c.b16 %v8991, %v8990
        %v9046 = vpack.c.b16 %v8993, %v8992
        %v9047 = vpack.c.b16 %v8995, %v8994
        %v9048 = vpack.c.b16 %v8997, %v8996
        %v9049 = vpack.c.b16 %v8999, %v8998
        %v9050 = vpack.c.b16 %v9001, %v9000
        %v9051 = vpack.c.b16 %v9003, %v9002
        %v9052 = vpack.c.b16 %v9005, %v9004
        %v9053 = vpack.c.b16 %v9007, %v9006
        %v9054 = vpack.c.b16 %v9009, %v9008
        %v9055 = vpack.c.b16 %v9011, %v9010
        %v9056 = vpack.c.b16 %v9013, %v9012
        %v9057 = vpack.c.b16 %v9015, %v9014
        %v9058 = vpack.c.b16 %v9017, %v9016
        %v9059 = vpack.c.b16 %v9019, %v9018
        %v9060 = vpack.c.b16 %v9021, %v9020
        %v9061 = vpack.c.b16 %v9023, %v9022
        %v9062 = vpack.c.b16 %v9025, %v9024
        %v9063 = vpack.c.b16 %v9027, %v9026
        %v9064 = vpack.c.b16 %v9029, %v9028
        %v9065 = vpack.c.b16 %v9031, %v9030
        %v9066 = vpack.c.b16 %v9033, %v9032
        %v9067 = vpack.c.b16 %v9035, %v9034
        %9100 = vmatpush.bf16.msra.mxu0 %v9043
        %9101 = vmatpush.bf16.msra.mxu0 %v9042
        %9102 = vmatpush.bf16.msra.mxu0 %v9041
        %9103 = vmatpush.bf16.msra.mxu0 %v9040
        %9104 = vmatpush.bf16.msra.mxu0 %v9039
        %9105 = vmatpush.bf16.msra.mxu0 %v9038
        %9106 = vmatpush.bf16.msra.mxu0 %v9037
        %9107 = vmatpush.bf16.msra.mxu0 %v9036
        %9108 = vmatmul.bf16.gmra.mxu0 %v8903
        %v9109 = vpop.f32.mrf.mxu0
        %v9110 = vadd.f32 %v8907, %v9109
        %v9111 = vpop.f32.mrf.mxu0
        %9112 = vdwg.mxu0
        %9113 = vmatpush.bf16.msra.mxu0 %v9051
        %9114 = vmatpush.bf16.msra.mxu0 %v9050
        %9115 = vmatpush.bf16.msra.mxu0 %v9049
        %9116 = vmatpush.bf16.msra.mxu0 %v9048
        %9117 = vmatpush.bf16.msra.mxu0 %v9047
        %9118 = vmatpush.bf16.msra.mxu0 %v9046
        %9119 = vmatpush.bf16.msra.mxu0 %v9045
        %9120 = vmatpush.bf16.msra.mxu0 %v9044
        %9121 = vmatmul.bf16.gmra.mxu0 %v8904
        %v9122 = vpop.f32.mrf.mxu0
        %v9123 = vadd.f32 %v9110, %v9122
        %v9124 = vpop.f32.mrf.mxu0
        %9125 = vdwg.mxu0
        %9126 = vmatpush.bf16.msra.mxu0 %v9059
        %9127 = vmatpush.bf16.msra.mxu0 %v9058
        %9128 = vmatpush.bf16.msra.mxu0 %v9057
        %9129 = vmatpush.bf16.msra.mxu0 %v9056
        %9130 = vmatpush.bf16.msra.mxu0 %v9055
        %9131 = vmatpush.bf16.msra.mxu0 %v9054
        %9132 = vmatpush.bf16.msra.mxu0 %v9053
        %9133 = vmatpush.bf16.msra.mxu0 %v9052
        %9134 = vmatmul.bf16.gmra.mxu0 %v8905
        %v9135 = vpop.f32.mrf.mxu0
        %v9136 = vadd.f32 %v9123, %v9135
        %v9137 = vpop.f32.mrf.mxu0
        %9138 = vdwg.mxu0
        %9139 = vmatpush.bf16.msra.mxu0 %v9067
        %9140 = vmatpush.bf16.msra.mxu0 %v9066
        %9141 = vmatpush.bf16.msra.mxu0 %v9065
        %9142 = vmatpush.bf16.msra.mxu0 %v9064
        %9143 = vmatpush.bf16.msra.mxu0 %v9063
        %9144 = vmatpush.bf16.msra.mxu0 %v9062
        %9145 = vmatpush.bf16.msra.mxu0 %v9061
        %9146 = vmatpush.bf16.msra.mxu0 %v9060
        %9147 = vmatmul.bf16.gmra.mxu0 %v8906
        %v9148 = vpop.f32.mrf.mxu0
        %v9149 = vadd.f32 %v9136, %v9148
        %v9150 = vpop.f32.mrf.mxu0
        %9151 = vdwg.mxu0
        %9152 = vst [vmem:[%s702] sm:$0x1] %v9149
        %s9153 = sand.u32 %s533, 1
        %s9154 = scalar_lea.sflag [#allocation3], %s9153
        %s9155 = sand.u32 %s533, 1
        %s9156 = scalar_lea.vmem [#allocation2], %s9155
        // Predicated region
        $region113: #{cnn_baseline_forward.1} parent=111 // pred_check
          %p9157 = pneg %p543
        $region114: #{cnn_baseline_forward.1} parent=111 // pred_check_branch
          %9159 = sbr.rel (%p9157) target = $region116
        $region115: #{cnn_baseline_forward.1} parent=111 // pred_region
          %9161 = vsyncadd %s9154, 0
          %s9162 = scalar_lea.hbm %s23, %s37
          %s9164 = sshll.u32 %s9156, 4
          %s9165 = int_to_ptr.vmem [resolvable:$true] %s9164
          %s9166 = sshll.u32 %s9162, 4
          %s9167 = int_to_ptr.hbm [resolvable:$true] %s9166
          %9169 = dma.vmem_to_hbm [thread:$0]  %s9165, 16, %s9167, %s9154
        $region116: #{cnn_baseline_forward.1} parent=111 // pred_fallthru
          _
      $region112: #{cnn_baseline_forward.1} parent=5 // pred_fallthru
        _
      %p9170 = scmp.le.s32.totalorder 2, %s32
      // Predicated region
      $region117: #{cnn_baseline_forward.1} parent=5 // pred_check
        %p9171 = pneg %p9170
      $region118: #{cnn_baseline_forward.1} parent=5 // pred_check_branch
        %9173 = sbr.rel (%p9171) target = $region120
      $region119: #{cnn_baseline_forward.1} parent=5 // pred_region
        %s9174 = ssub.s32 %s32, 2
        // Predicated region
        $region121: #{cnn_baseline_forward.1} parent=119 // pred_check
          %p9175 = pneg %p549
        $region122: #{cnn_baseline_forward.1} parent=119 // pred_check_branch
          %9177 = sbr.rel (%p9175) target = $region124
        $region123: #{cnn_baseline_forward.1} parent=119 // pred_region
          %s9178 = sand.u32 %s534, 1
          %s9179 = scalar_lea.sflag [#allocation3], %s9178
          %s9180 = sand.u32 %s534, 1
          %s9181 = scalar_lea.vmem [#allocation2], %s9180
          %9183 = dma.done %s9179, 16
        $region124: #{cnn_baseline_forward.1} parent=119 // pred_fallthru
          _
      $region120: #{cnn_baseline_forward.1} parent=5 // pred_fallthru
        _
    $region6: #{cnn_baseline_forward.1} parent=1 // loop_footer
      %s36 = sadd.s32 1, %s32
    $region7: #{cnn_baseline_forward.1} parent=1 // loop_footer_branch
      %31 = sbr.rel target = $region3
    $region8: #{cnn_baseline_forward.1} parent=1 // loop_exit
      _
    %9184 = vsyncpa [#allocation3], 1
    %s9185 = scalar_lea.sflag [#allocation3], 1
    %9186 = vsyncpa %s9185, 1

</llo_original>
